<compile_context>
chip_gen: v7x
topology: tpu7x:2x2x1
jax: 0.10.0
libtpu: 0.0.40
codegen_flags: <defaults>
</compile_context>

<pallas_src>
import jax
import jax.numpy as jnp
from jax import lax
from jax.experimental import pallas as pl
from jax.experimental.pallas import tpu as pltpu


def mincut_kernel(x_ref, m_ref, a_ref, w1b1_ref, wpbp_ref, s_ref, loss_ref):
    bt, n, f_in = x_ref.shape          # graphs per block, nodes, in-features
    hid = w1b1_ref.shape[1]
    c = wpbp_ref.shape[1]

    # --- GCNConv: h = relu(M_norm @ (X @ W1) + b1) --------------------------
    # Shared-weight matmul with the graph batch stacked along sublanes.
    x2 = x_ref[...].reshape(bt * n, f_in)                        # [bt*N, F]
    w1 = w1b1_ref[:f_in, :]                                      # [F, H]
    b1 = w1b1_ref[f_in:f_in + 1, :]                              # [1, H]
    xw = jnp.dot(x2, w1, preferred_element_type=jnp.float32)     # [bt*N, H]
    # Per-graph propagation (batched matmul).
    hw = jnp.einsum('bij,bjk->bik', m_ref[...], xw.reshape(bt, n, hid),
                    preferred_element_type=jnp.float32)          # [bt, N, H]
    h2 = jnp.maximum(hw.reshape(bt * n, hid) + b1, 0.0)          # [bt*N, H]

    # --- pool1 Linear + softmax (cluster assignment s) ----------------------
    wp = wpbp_ref[:hid, :]                                       # [H, C]
    bp = wpbp_ref[hid:hid + 1, :]                                # [1, C]
    logits = jnp.dot(h2, wp, preferred_element_type=jnp.float32) + bp
    mmax = jnp.max(logits, axis=-1, keepdims=True)
    e = jnp.exp(logits - mmax)
    inv_den = pl.reciprocal(jnp.sum(e, axis=-1, keepdims=True), approx=False)
    s2 = e * inv_den                                             # [bt*N, C]
    s = s2.reshape(bt, n, c)
    s_ref[...] = s

    # --- dense_mincut_pool losses (per graph) -------------------------------
    adj = a_ref[...]                                             # [bt, N, N]

    # mincut_num = trace(S^T A S) = sum(S * (A @ S)) : one batched matmul.
    a_s = jnp.einsum('bij,bjk->bik', adj, s,
                     preferred_element_type=jnp.float32)         # [bt, N, C]
    num = jnp.sum(jnp.sum(s * a_s, axis=2, keepdims=True),
                  axis=1, keepdims=True)                         # [bt, 1, 1]

    # trace(S^T D S) = sum_n deg[n] * sum_c s[n,c]^2
    deg = jnp.sum(adj, axis=2, keepdims=True)                    # [bt, N, 1]
    s_row = jnp.sum(s * s, axis=2, keepdims=True)                # [bt, N, 1]
    den = jnp.sum(deg * s_row, axis=1, keepdims=True)            # [bt, 1, 1]
    mincut_loss = -(num / jnp.maximum(den, 1e-12))

    # ortho_loss = ||S^T S / ||S^T S|| - I/sqrt(C)||_F, explicit difference
    # (numerically stable when s is near-orthonormal).
    ss = jnp.einsum('bni,bnj->bij', s, s,
                    preferred_element_type=jnp.float32)          # [bt, C, C]
    ss_norm = jnp.sqrt(jnp.sum(jnp.sum(ss * ss, axis=2, keepdims=True),
                               axis=1, keepdims=True))           # [bt, 1, 1]
    rows = lax.broadcasted_iota(jnp.int32, (c, c), 0)
    cols = lax.broadcasted_iota(jnp.int32, (c, c), 1)
    eye_scaled = jnp.where(rows == cols, float(c) ** -0.5,
                           0.0).astype(jnp.float32)              # [C, C]
    diff = ss / ss_norm - eye_scaled                             # [bt, C, C]
    ortho_loss = jnp.sqrt(jnp.sum(jnp.sum(diff * diff, axis=2, keepdims=True),
                                  axis=1, keepdims=True))        # [bt, 1, 1]

    loss_ref[...] = ortho_loss + mincut_loss


def mincut_forward(x, m_norm, a_dense, w1b1, wpbp, *, b_tile=16):
    """Batched MinCut forward. w1b1/wpbp are pre-packed parameter slabs."""
    B, N, F = x.shape
    H = w1b1.shape[1]
    C = wpbp.shape[1]
    assert B % b_tile == 0

    flops_per_graph = 2 * (N * F * H + N * N * H + N * H * C
                           + N * N * C + N * C * C)
    cost = pl.CostEstimate(
        flops=B * flops_per_graph,
        transcendentals=B * N * C,
        bytes_accessed=4 * (x.size + m_norm.size + a_dense.size
                            + w1b1.size + wpbp.size + B * N * C + B),
    )

    s, loss = pl.pallas_call(
        mincut_kernel,
        out_shape=(jax.ShapeDtypeStruct((B, N, C), jnp.float32),
                   jax.ShapeDtypeStruct((B, 1, 1), jnp.float32)),
        grid=(B // b_tile,),
        in_specs=[
            pl.BlockSpec((b_tile, N, F), lambda b: (b, 0, 0)),
            pl.BlockSpec((b_tile, N, N), lambda b: (b, 0, 0)),
            pl.BlockSpec((b_tile, N, N), lambda b: (b, 0, 0)),
            pl.BlockSpec((F + 1, H), lambda b: (0, 0)),   # grid-invariant
            pl.BlockSpec((H + 1, C), lambda b: (0, 0)),   # grid-invariant
        ],
        out_specs=(
            pl.BlockSpec((b_tile, N, C), lambda b: (b, 0, 0)),
            pl.BlockSpec((b_tile, 1, 1), lambda b: (b, 0, 0)),
        ),
        compiler_params=pltpu.CompilerParams(
            dimension_semantics=("parallel",)),
        cost_estimate=cost,
    )(x, m_norm, a_dense, w1b1, wpbp)
    # matches: return ([softmax(cluster, -1)], ortho_loss + mincut_loss)
    return [s], loss[:, 0, 0]


def _reference(x, m_norm, a_dense, w1, b1, wp, bp):
    h = jnp.maximum(m_norm @ (x @ w1) + b1, 0.0)
    logits = h @ wp + bp
    s = jax.nn.softmax(logits, axis=-1)
    C = s.shape[-1]
    out_adj = s.T @ a_dense @ s
    mincut_num = jnp.trace(out_adj)
    d = jnp.diag(a_dense.sum(-1))
    mincut_den = jnp.trace(s.T @ d @ s)
    mincut_loss = -(mincut_num / mincut_den)
    ss = s.T @ s
    eye = jnp.eye(C, dtype=jnp.float32)
    ortho_loss = jnp.linalg.norm(ss / jnp.linalg.norm(ss) - eye / jnp.sqrt(C))
    return s, ortho_loss + mincut_loss


if __name__ == "__main__":
    # Small shapes: B=64 independent N=16 graphs, in_channels=4, hidden=32,
    # clusters=16; B_TILE=16 graphs per grid step (M = 256 for shared matmuls).
    B, N, F_IN, HID, CLUSTERS = 64, 16, 4, 32, 16
    B_TILE = 16
    key = jax.random.PRNGKey(0)
    k_x, k_w, k_w1, k_wp, k_bp = jax.random.split(key, 5)

    # Node features for B independent graphs (shared model weights).
    x = jax.random.normal(k_x, (B, N, F_IN), dtype=jnp.float32)

    # Bidirectional ring graphs (no self loops), per-graph random edge weights.
    src_fwd = jnp.arange(N, dtype=jnp.int32)
    dst_fwd = (src_fwd + 1) % N
    src = jnp.concatenate([src_fwd, dst_fwd])
    dst = jnp.concatenate([dst_fwd, src_fwd])
    edge_weight = jax.random.uniform(k_w, (B, 2 * N), minval=0.5, maxval=1.5,
                                     dtype=jnp.float32)

    def build_graph(ew):
        # gcn_norm (add_self_loops=True, fill=1.0): A_tilde[target, source].
        a_dir = jnp.zeros((N, N), jnp.float32).at[dst, src].add(ew)
        a_tilde = a_dir + jnp.eye(N, dtype=jnp.float32)
        deg = a_tilde.sum(axis=1)
        dinv = jnp.where(deg > 0, 1.0 / jnp.sqrt(deg), 0.0)
        m_norm = dinv[:, None] * a_tilde * dinv[None, :]
        # to_dense_adj(edge_index): adj[source, target] = 1 (unweighted).
        a_dense = jnp.zeros((N, N), jnp.float32).at[src, dst].add(1.0)
        return m_norm, a_dense

    m_norm, a_dense = jax.vmap(build_graph)(edge_weight)

    # Deterministic shared parameters (synthetic init, not a checkpoint load).
    w1 = jax.random.normal(k_w1, (F_IN, HID), dtype=jnp.float32) * 0.3   # conv1 W
    b1 = jnp.zeros((1, HID), dtype=jnp.float32)                          # conv1 b
    wp = jax.random.normal(k_wp, (HID, CLUSTERS), dtype=jnp.float32) * 0.2  # pool1 W^T
    bp = jax.random.uniform(k_bp, (1, CLUSTERS), minval=-0.1, maxval=0.1,
                            dtype=jnp.float32)                           # pool1 b
    # Pack once at init (stored parameter layout) -- NOT in the per-call path.
    w1b1 = jnp.concatenate([w1, b1], axis=0)    # [F+1, H]
    wpbp = jnp.concatenate([wp, bp], axis=0)    # [H+1, C]

    (s_list, loss) = mincut_forward(x, m_norm, a_dense, w1b1, wpbp,
                                    b_tile=B_TILE)
    s = s_list[0]
    jax.block_until_ready((s, loss))

    s_ref, loss_ref = jax.vmap(
        lambda xi, mi, ai: _reference(xi, mi, ai, w1, b1, wp, bp))(
            x, m_norm, a_dense)
    assert jnp.allclose(s, s_ref, rtol=1e-5, atol=1e-5), "cluster softmax mismatch"
    assert jnp.allclose(loss, loss_ref, rtol=1e-5, atol=1e-5), "loss mismatch"

    print("KERNEL_OK")
</pallas_src>

<mosaic_0001>
module attributes {stable_mosaic.version = 11 : i64} {
  func.func @mincut_kernel(%arg0: i32, %arg1: memref<16x16x4xf32, #tpu.memory_space<vmem>>, %arg2: memref<16x16x16xf32, #tpu.memory_space<vmem>>, %arg3: memref<16x16x16xf32, #tpu.memory_space<vmem>>, %arg4: memref<5x32xf32, #tpu.memory_space<vmem>>, %arg5: memref<33x16xf32, #tpu.memory_space<vmem>>, %arg6: memref<16x16x16xf32, #tpu.memory_space<vmem>>, %arg7: memref<16x1x1xf32, #tpu.memory_space<vmem>>) attributes {dimension_semantics = [#tpu.dimension_semantics<parallel>], iteration_bounds = array<i64: 4>, scalar_prefetch = 0 : i64, scratch_operands = 0 : i64, tpu.core_type = #tpu.core_type<tc>, window_params = [{transform_indices = @transform_0, window_bounds = array<i64: 16, 16, 4>}, {transform_indices = @transform_1, window_bounds = array<i64: 16, 16, 16>}, {transform_indices = @transform_2, window_bounds = array<i64: 16, 16, 16>}, {pipeline_mode = #tpu.pipeline_mode<synchronous>, transform_indices = @transform_3, window_bounds = array<i64: 5, 32>}, {pipeline_mode = #tpu.pipeline_mode<synchronous>, transform_indices = @transform_4, window_bounds = array<i64: 33, 16>}, {transform_indices = @transform_5, window_bounds = array<i64: 16, 16, 16>}, {transform_indices = @transform_6, window_bounds = array<i64: 16, 1, 1>}]} {
    %c0 = arith.constant 0 : index
    %c0_0 = arith.constant 0 : index
    %c0_1 = arith.constant 0 : index
    %0 = vector.load %arg1[%c0, %c0_0, %c0_1] : memref<16x16x4xf32, #tpu.memory_space<vmem>>, vector<16x16x4xf32>
    %1 = vector.shape_cast %0 : vector<16x16x4xf32> to vector<256x4xf32>
    %c0_2 = arith.constant 0 : index
    %c0_3 = arith.constant 0 : index
    %2 = vector.load %arg4[%c0_2, %c0_3] : memref<5x32xf32, #tpu.memory_space<vmem>>, vector<4x32xf32>
    %c4 = arith.constant 4 : index
    %c0_4 = arith.constant 0 : index
    %3 = vector.load %arg4[%c4, %c0_4] : memref<5x32xf32, #tpu.memory_space<vmem>>, vector<1x32xf32>
    %cst = arith.constant dense<0.000000e+00> : vector<256x32xf32>
    %4 = tpu.matmul %1, %2, %cst {dimension_numbers = #tpu.dot_dimension_numbers<[1], [0], [0], [1], [0, 0, 1, 1], [], []>} : vector<256x4xf32>, vector<4x32xf32>, vector<256x32xf32> -> vector<256x32xf32>
    %c0_5 = arith.constant 0 : index
    %c0_6 = arith.constant 0 : index
    %c0_7 = arith.constant 0 : index
    %5 = vector.load %arg2[%c0_5, %c0_6, %c0_7] : memref<16x16x16xf32, #tpu.memory_space<vmem>>, vector<16x16x16xf32>
    %6 = vector.shape_cast %4 : vector<256x32xf32> to vector<16x16x32xf32>
    "tpu.trace_start"() <{level = 10 : i32, message = "bij,bjk->bik"}> : () -> ()
    %cst_8 = arith.constant dense<0.000000e+00> : vector<16x16x32xf32>
    %7 = tpu.matmul %5, %6, %cst_8 {dimension_numbers = #tpu.dot_dimension_numbers<[2], [1], [1], [2], [0, 0, 0, 1, 1, 2], [0], [0]>} : vector<16x16x16xf32>, vector<16x16x32xf32>, vector<16x16x32xf32> -> vector<16x16x32xf32>
    "tpu.trace_stop"() : () -> ()
    %8 = vector.shape_cast %7 : vector<16x16x32xf32> to vector<256x32xf32>
    %9 = vector.broadcast %3 : vector<1x32xf32> to vector<256x32xf32>
    %10 = arith.addf %8, %9 : vector<256x32xf32>
    %cst_9 = arith.constant 0.000000e+00 : f32
    %11 = vector.broadcast %cst_9 : f32 to vector<256x32xf32>
    %12 = arith.maximumf %10, %11 : vector<256x32xf32>
    %c0_10 = arith.constant 0 : index
    %c0_11 = arith.constant 0 : index
    %13 = vector.load %arg5[%c0_10, %c0_11] : memref<33x16xf32, #tpu.memory_space<vmem>>, vector<32x16xf32>
    %c32 = arith.constant 32 : index
    %c0_12 = arith.constant 0 : index
    %14 = vector.load %arg5[%c32, %c0_12] : memref<33x16xf32, #tpu.memory_space<vmem>>, vector<1x16xf32>
    %cst_13 = arith.constant dense<0.000000e+00> : vector<256x16xf32>
    %15 = tpu.matmul %12, %13, %cst_13 {dimension_numbers = #tpu.dot_dimension_numbers<[1], [0], [0], [1], [0, 0, 1, 1], [], []>} : vector<256x32xf32>, vector<32x16xf32>, vector<256x16xf32> -> vector<256x16xf32>
    %16 = vector.broadcast %14 : vector<1x16xf32> to vector<256x16xf32>
    %17 = arith.addf %15, %16 : vector<256x16xf32>
    %cst_14 = arith.constant dense<0xFF800000> : vector<256xf32>
    %18 = vector.multi_reduction <maximumf>, %17, %cst_14 [1] : vector<256x16xf32> to vector<256xf32>
    %19 = vector.shape_cast %18 : vector<256xf32> to vector<256x1xf32>
    %20 = vector.broadcast %19 : vector<256x1xf32> to vector<256x16xf32>
    %21 = arith.subf %17, %20 : vector<256x16xf32>
    %22 = math.exp %21 : vector<256x16xf32>
    %cst_15 = arith.constant dense<0.000000e+00> : vector<256xf32>
    %23 = vector.multi_reduction <add>, %22, %cst_15 [1] : vector<256x16xf32> to vector<256xf32>
    %24 = vector.shape_cast %23 : vector<256xf32> to vector<256x1xf32>
    %25 = tpu.reciprocal %24 : vector<256x1xf32> -> vector<256x1xf32>
    %26 = vector.broadcast %25 : vector<256x1xf32> to vector<256x16xf32>
    %27 = arith.mulf %22, %26 : vector<256x16xf32>
    %28 = vector.shape_cast %27 : vector<256x16xf32> to vector<16x16x16xf32>
    %c0_16 = arith.constant 0 : index
    %c0_17 = arith.constant 0 : index
    %c0_18 = arith.constant 0 : index
    %29 = vector.load %arg6[%c0_16, %c0_17, %c0_18] : memref<16x16x16xf32, #tpu.memory_space<vmem>>, vector<16x16x16xf32>
    tpu.vector_store %arg6[%c0_16, %c0_17, %c0_18], %28 {strides = array<i32>} : memref<16x16x16xf32, #tpu.memory_space<vmem>>, vector<16x16x16xf32>,
    %c0_19 = arith.constant 0 : index
    %c0_20 = arith.constant 0 : index
    %c0_21 = arith.constant 0 : index
    %30 = vector.load %arg3[%c0_19, %c0_20, %c0_21] : memref<16x16x16xf32, #tpu.memory_space<vmem>>, vector<16x16x16xf32>
    "tpu.trace_start"() <{level = 10 : i32, message = "bij,bjk->bik"}> : () -> ()
    %cst_22 = arith.constant dense<0.000000e+00> : vector<16x16x16xf32>
    %31 = tpu.matmul %30, %28, %cst_22 {dimension_numbers = #tpu.dot_dimension_numbers<[2], [1], [1], [2], [0, 0, 0, 1, 1, 2], [0], [0]>} : vector<16x16x16xf32>, vector<16x16x16xf32>, vector<16x16x16xf32> -> vector<16x16x16xf32>
    "tpu.trace_stop"() : () -> ()
    %32 = arith.mulf %28, %31 : vector<16x16x16xf32>
    %cst_23 = arith.constant dense<0.000000e+00> : vector<16x16xf32>
    %33 = vector.multi_reduction <add>, %32, %cst_23 [2] : vector<16x16x16xf32> to vector<16x16xf32>
    %34 = vector.shape_cast %33 : vector<16x16xf32> to vector<16x16x1xf32>
    %cst_24 = arith.constant dense<0.000000e+00> : vector<16x1xf32>
    %35 = vector.multi_reduction <add>, %34, %cst_24 [1] : vector<16x16x1xf32> to vector<16x1xf32>
    %36 = vector.shape_cast %35 : vector<16x1xf32> to vector<16x1x1xf32>
    %cst_25 = arith.constant dense<0.000000e+00> : vector<16x16xf32>
    %37 = vector.multi_reduction <add>, %30, %cst_25 [2] : vector<16x16x16xf32> to vector<16x16xf32>
    %38 = vector.shape_cast %37 : vector<16x16xf32> to vector<16x16x1xf32>
    %39 = arith.mulf %28, %28 : vector<16x16x16xf32>
    %cst_26 = arith.constant dense<0.000000e+00> : vector<16x16xf32>
    %40 = vector.multi_reduction <add>, %39, %cst_26 [2] : vector<16x16x16xf32> to vector<16x16xf32>
    %41 = vector.shape_cast %40 : vector<16x16xf32> to vector<16x16x1xf32>
    %42 = arith.mulf %38, %41 : vector<16x16x1xf32>
    %cst_27 = arith.constant dense<0.000000e+00> : vector<16x1xf32>
    %43 = vector.multi_reduction <add>, %42, %cst_27 [1] : vector<16x16x1xf32> to vector<16x1xf32>
    %44 = vector.shape_cast %43 : vector<16x1xf32> to vector<16x1x1xf32>
    %cst_28 = arith.constant 9.99999996E-13 : f32
    %45 = vector.broadcast %cst_28 : f32 to vector<16x1x1xf32>
    %46 = arith.maximumf %44, %45 : vector<16x1x1xf32>
    %47 = arith.divf %36, %46 : vector<16x1x1xf32>
    %cst_29 = arith.constant 0.000000e+00 : f32
    %48 = vector.broadcast %cst_29 : f32 to vector<16x1x1xf32>
    %49 = arith.subf %48, %47 : vector<16x1x1xf32>
    "tpu.trace_start"() <{level = 10 : i32, message = "bni,bnj->bij"}> : () -> ()
    %cst_30 = arith.constant dense<0.000000e+00> : vector<16x16x16xf32>
    %50 = tpu.matmul %28, %28, %cst_30 {dimension_numbers = #tpu.dot_dimension_numbers<[1], [1], [2], [2], [0, 0, 0, 2, 1, 2], [0], [0]>} : vector<16x16x16xf32>, vector<16x16x16xf32>, vector<16x16x16xf32> -> vector<16x16x16xf32>
    "tpu.trace_stop"() : () -> ()
    %51 = arith.mulf %50, %50 : vector<16x16x16xf32>
    %cst_31 = arith.constant dense<0.000000e+00> : vector<16x16xf32>
    %52 = vector.multi_reduction <add>, %51, %cst_31 [2] : vector<16x16x16xf32> to vector<16x16xf32>
    %53 = vector.shape_cast %52 : vector<16x16xf32> to vector<16x16x1xf32>
    %cst_32 = arith.constant dense<0.000000e+00> : vector<16x1xf32>
    %54 = vector.multi_reduction <add>, %53, %cst_32 [1] : vector<16x16x1xf32> to vector<16x1xf32>
    %55 = vector.shape_cast %54 : vector<16x1xf32> to vector<16x1x1xf32>
    %56 = math.sqrt %55 : vector<16x1x1xf32>
    %57 = tpu.iota {dimensions = array<i32: 0>} : vector<16x16xi32>
    %58 = tpu.iota {dimensions = array<i32: 1>} : vector<16x16xi32>
    %59 = arith.cmpi eq, %57, %58 : vector<16x16xi32>
    %cst_33 = arith.constant 2.500000e-01 : f32
    %cst_34 = arith.constant 0.000000e+00 : f32
    %60 = vector.broadcast %cst_33 : f32 to vector<16x16xf32>
    %61 = vector.broadcast %cst_34 : f32 to vector<16x16xf32>
    %62 = arith.select %59, %60, %61 : vector<16x16xi1>, vector<16x16xf32>
    %63 = vector.broadcast %56 : vector<16x1x1xf32> to vector<16x16x16xf32>
    %64 = arith.divf %50, %63 : vector<16x16x16xf32>
    %65 = vector.shape_cast %62 : vector<16x16xf32> to vector<1x16x16xf32>
    %66 = vector.broadcast %65 : vector<1x16x16xf32> to vector<16x16x16xf32>
    %67 = arith.subf %64, %66 : vector<16x16x16xf32>
    %68 = arith.mulf %67, %67 : vector<16x16x16xf32>
    %cst_35 = arith.constant dense<0.000000e+00> : vector<16x16xf32>
    %69 = vector.multi_reduction <add>, %68, %cst_35 [2] : vector<16x16x16xf32> to vector<16x16xf32>
    %70 = vector.shape_cast %69 : vector<16x16xf32> to vector<16x16x1xf32>
    %cst_36 = arith.constant dense<0.000000e+00> : vector<16x1xf32>
    %71 = vector.multi_reduction <add>, %70, %cst_36 [1] : vector<16x16x1xf32> to vector<16x1xf32>
    %72 = vector.shape_cast %71 : vector<16x1xf32> to vector<16x1x1xf32>
    %73 = math.sqrt %72 : vector<16x1x1xf32>
    %74 = arith.addf %73, %49 : vector<16x1x1xf32>
    %c0_37 = arith.constant 0 : index
    %c0_38 = arith.constant 0 : index
    %c0_39 = arith.constant 0 : index
    %75 = vector.load %arg7[%c0_37, %c0_38, %c0_39] : memref<16x1x1xf32, #tpu.memory_space<vmem>>, vector<16x1x1xf32>
    tpu.vector_store %arg7[%c0_37, %c0_38, %c0_39], %74 {strides = array<i32>} : memref<16x1x1xf32, #tpu.memory_space<vmem>>, vector<16x1x1xf32>,
    return
  }
  func.func @transform_0(%arg0: i32) -> (i32, i32, i32) {
    %c0_i32 = arith.constant 0 : i32
    %c0_i32_0 = arith.constant 0 : i32
    %c0_i32_1 = arith.constant 0 : i32
    return %arg0, %c0_i32, %c0_i32_0 : i32, i32, i32
  }
  func.func @transform_1(%arg0: i32) -> (i32, i32, i32) {
    %c0_i32 = arith.constant 0 : i32
    %c0_i32_0 = arith.constant 0 : i32
    %c0_i32_1 = arith.constant 0 : i32
    return %arg0, %c0_i32, %c0_i32_0 : i32, i32, i32
  }
  func.func @transform_2(%arg0: i32) -> (i32, i32, i32) {
    %c0_i32 = arith.constant 0 : i32
    %c0_i32_0 = arith.constant 0 : i32
    %c0_i32_1 = arith.constant 0 : i32
    return %arg0, %c0_i32, %c0_i32_0 : i32, i32, i32
  }
  func.func @transform_3(%arg0: i32) -> (i32, i32) {
    %c0_i32 = arith.constant 0 : i32
    %c0_i32_0 = arith.constant 0 : i32
    %c0_i32_1 = arith.constant 0 : i32
    return %c0_i32, %c0_i32_0 : i32, i32
  }
  func.func @transform_4(%arg0: i32) -> (i32, i32) {
    %c0_i32 = arith.constant 0 : i32
    %c0_i32_0 = arith.constant 0 : i32
    %c0_i32_1 = arith.constant 0 : i32
    return %c0_i32, %c0_i32_0 : i32, i32
  }
  func.func @transform_5(%arg0: i32) -> (i32, i32, i32) {
    %c0_i32 = arith.constant 0 : i32
    %c0_i32_0 = arith.constant 0 : i32
    %c0_i32_1 = arith.constant 0 : i32
    return %arg0, %c0_i32, %c0_i32_0 : i32, i32, i32
  }
  func.func @transform_6(%arg0: i32) -> (i32, i32, i32) {
    %c0_i32 = arith.constant 0 : i32
    %c0_i32_0 = arith.constant 0 : i32
    %c0_i32_1 = arith.constant 0 : i32
    return %arg0, %c0_i32, %c0_i32_0 : i32, i32, i32
  }
}

</mosaic_0001>

<llo_original>
// kernel: tpu_custom_call.1
$region0: #{tpu_custom_call.1}
  #allocation0 [shape = 'u32[]', space=smem, size = 0x4, offset = 0x4, fixed_abs, tag = 'smem constant byte address 0x4 - core index']
  #allocation1 [shape = 'u32[144,128]{1,0:T(1,128)}', space=vmem, size = 0x12000, scoped, tag = 'internal scratch']
  %s0 = inlined_call_operand.vmem [shape: f32[64,16,4], index: 0, kind: input, shape index: {}]
  %s1 = inlined_call_operand.vmem [shape: f32[64,16,16], index: 1, kind: input, shape index: {}]
  %s2 = inlined_call_operand.vmem [shape: f32[64,16,16], index: 2, kind: input, shape index: {}]
  %s3 = inlined_call_operand.vmem [shape: f32[5,32], index: 3, kind: input, shape index: {}]
  %s4 = inlined_call_operand.vmem [shape: f32[33,16], index: 4, kind: input, shape index: {}]
  %s5 = inlined_call_operand.vmem [shape: f32[64,16,16], index: 5, kind: output, shape index: {0}]
  %s6 = inlined_call_operand.vmem [shape: f32[64,1,1], index: 6, kind: output, shape index: {1}]
  %7 = xla_tuple %s5, %s6
  %s8 = sld [smem:[#allocation0]]
  $region61: #{tpu_custom_call.1} parent=0
    _
  %s10 = ssub.s32 1, %s8
  %s11 = scalar_select 0, %s10, %s8
  loop: start=0, step=1, limit=6
  $region2: #{tpu_custom_call.1} parent=0 // loop_pre_header
    _
  $region3: #{tpu_custom_call.1} parent=0 // loop_header
    %s13 = sphi 0, %s17
    %p14 = scmp.ge.s32.totalorder %s13, 6
    %s23 = sphi 0, %s25
    %s26 = sphi 0, %s23
    %s27 = sphi 0, %s26
    %s43 = sphi 0, %s27
    %s49 = sphi 0, %s51
    %s52 = sphi 0, %s49
    %s53 = sphi 0, %s52
    %s69 = sphi 0, %s53
    %s75 = sphi 0, %s77
    %s78 = sphi 0, %s75
    %s79 = sphi 0, %s78
    %s95 = sphi 0, %s79
    %s99 = sphi 0, %s99
    %s101 = sphi 0, %s99
    %s102 = sphi 0, %s101
    %s116 = sphi 0, %s102
    %s120 = sphi 0, %s120
    %s122 = sphi 0, %s120
    %s123 = sphi 0, %s122
    %s137 = sphi 0, %s123
    %s143 = sphi 0, %s145
    %s146 = sphi 0, %s143
    %s147 = sphi 0, %s146
    %s163 = sphi 0, %s147
    %s169 = sphi 0, %s171
    %s172 = sphi 0, %s169
    %s173 = sphi 0, %s172
    %s189 = sphi 0, %s173
  $region4: #{tpu_custom_call.1} parent=0 // loop_header_branch
    %16 = sbr.rel (%p14) target = $region8
  $region5: #{tpu_custom_call.1} parent=0 // loop_body
    %s18 = ssub.s32 %s13, 1
    %s19 = ssub.s32 %s13, 2
    %s20 = sadd.s32 %s13, 1
    %s21 = ssub.s32 %s13, %s20
    %p22 = scmp.eq.s32.totalorder %s21, 0
    %s24 = sadd.s32 %s23, 1
    %s25 = scalar_select %p22, %s23, %s24
    %p28 = pneg %p22
    %p29 = scmp.eq.s32.totalorder %s13, 3
    %p30 = por %p28, %p29
    %p31 = scmp.ne.s32.totalorder %s23, %s26
    %p32 = scmp.eq.s32.totalorder %s13, 0
    %p33 = por %p31, %p32
    %p34 = scmp.ne.s32.totalorder %s23, %s26
    %p35 = scmp.eq.s32.totalorder %s18, 3
    %p36 = por %p34, %p35
    %p37 = scmp.ne.s32.totalorder %s26, %s27
    %p38 = scmp.eq.s32.totalorder %s18, 0
    %p39 = por %p37, %p38
    %p40 = scmp.ne.s32.totalorder %s26, %s27
    %p41 = scmp.eq.s32.totalorder %s19, 3
    %p42 = por %p40, %p41
    %p44 = scmp.ne.s32.totalorder %s27, %s43
    %p45 = scmp.eq.s32.totalorder %s19, 0
    %p46 = por %p44, %p45
    %s47 = ssub.s32 %s13, %s20
    %p48 = scmp.eq.s32.totalorder %s47, 0
    %s50 = sadd.s32 %s49, 1
    %s51 = scalar_select %p48, %s49, %s50
    %p54 = pneg %p48
    %p55 = scmp.eq.s32.totalorder %s13, 3
    %p56 = por %p54, %p55
    %p57 = scmp.ne.s32.totalorder %s49, %s52
    %p58 = scmp.eq.s32.totalorder %s13, 0
    %p59 = por %p57, %p58
    %p60 = scmp.ne.s32.totalorder %s49, %s52
    %p61 = scmp.eq.s32.totalorder %s18, 3
    %p62 = por %p60, %p61
    %p63 = scmp.ne.s32.totalorder %s52, %s53
    %p64 = scmp.eq.s32.totalorder %s18, 0
    %p65 = por %p63, %p64
    %p66 = scmp.ne.s32.totalorder %s52, %s53
    %p67 = scmp.eq.s32.totalorder %s19, 3
    %p68 = por %p66, %p67
    %p70 = scmp.ne.s32.totalorder %s53, %s69
    %p71 = scmp.eq.s32.totalorder %s19, 0
    %p72 = por %p70, %p71
    %s73 = ssub.s32 %s13, %s20
    %p74 = scmp.eq.s32.totalorder %s73, 0
    %s76 = sadd.s32 %s75, 1
    %s77 = scalar_select %p74, %s75, %s76
    %p80 = pneg %p74
    %p81 = scmp.eq.s32.totalorder %s13, 3
    %p82 = por %p80, %p81
    %p83 = scmp.ne.s32.totalorder %s75, %s78
    %p84 = scmp.eq.s32.totalorder %s13, 0
    %p85 = por %p83, %p84
    %p86 = scmp.ne.s32.totalorder %s75, %s78
    %p87 = scmp.eq.s32.totalorder %s18, 3
    %p88 = por %p86, %p87
    %p89 = scmp.ne.s32.totalorder %s78, %s79
    %p90 = scmp.eq.s32.totalorder %s18, 0
    %p91 = por %p89, %p90
    %p92 = scmp.ne.s32.totalorder %s78, %s79
    %p93 = scmp.eq.s32.totalorder %s19, 3
    %p94 = por %p92, %p93
    %p96 = scmp.ne.s32.totalorder %s79, %s95
    %p97 = scmp.eq.s32.totalorder %s19, 0
    %p98 = por %p96, %p97
    %s100 = sadd.s32 %s99, 1
    %p103 = scmp.eq.s32.totalorder %s13, 3
    %p104 = scmp.ne.s32.totalorder %s99, %s101
    %p105 = scmp.eq.s32.totalorder %s13, 0
    %p106 = por %p104, %p105
    %p107 = scmp.ne.s32.totalorder %s99, %s101
    %p108 = scmp.eq.s32.totalorder %s18, 3
    %p109 = por %p107, %p108
    %p110 = scmp.ne.s32.totalorder %s101, %s102
    %p111 = scmp.eq.s32.totalorder %s18, 0
    %p112 = por %p110, %p111
    %p113 = scmp.ne.s32.totalorder %s101, %s102
    %p114 = scmp.eq.s32.totalorder %s19, 3
    %p115 = por %p113, %p114
    %p117 = scmp.ne.s32.totalorder %s102, %s116
    %p118 = scmp.eq.s32.totalorder %s19, 0
    %p119 = por %p117, %p118
    %s121 = sadd.s32 %s120, 1
    %p124 = scmp.eq.s32.totalorder %s13, 3
    %p125 = scmp.ne.s32.totalorder %s120, %s122
    %p126 = scmp.eq.s32.totalorder %s13, 0
    %p127 = por %p125, %p126
    %p128 = scmp.ne.s32.totalorder %s120, %s122
    %p129 = scmp.eq.s32.totalorder %s18, 3
    %p130 = por %p128, %p129
    %p131 = scmp.ne.s32.totalorder %s122, %s123
    %p132 = scmp.eq.s32.totalorder %s18, 0
    %p133 = por %p131, %p132
    %p134 = scmp.ne.s32.totalorder %s122, %s123
    %p135 = scmp.eq.s32.totalorder %s19, 3
    %p136 = por %p134, %p135
    %p138 = scmp.ne.s32.totalorder %s123, %s137
    %p139 = scmp.eq.s32.totalorder %s19, 0
    %p140 = por %p138, %p139
    %s141 = ssub.s32 %s13, %s20
    %p142 = scmp.eq.s32.totalorder %s141, 0
    %s144 = sadd.s32 %s143, 1
    %s145 = scalar_select %p142, %s143, %s144
    %p148 = pneg %p142
    %p149 = scmp.eq.s32.totalorder %s13, 3
    %p150 = por %p148, %p149
    %p151 = scmp.ne.s32.totalorder %s143, %s146
    %p152 = scmp.eq.s32.totalorder %s13, 0
    %p153 = por %p151, %p152
    %p154 = scmp.ne.s32.totalorder %s143, %s146
    %p155 = scmp.eq.s32.totalorder %s18, 3
    %p156 = por %p154, %p155
    %p157 = scmp.ne.s32.totalorder %s146, %s147
    %p158 = scmp.eq.s32.totalorder %s18, 0
    %p159 = por %p157, %p158
    %p160 = scmp.ne.s32.totalorder %s146, %s147
    %p161 = scmp.eq.s32.totalorder %s19, 3
    %p162 = por %p160, %p161
    %p164 = scmp.ne.s32.totalorder %s147, %s163
    %p165 = scmp.eq.s32.totalorder %s19, 0
    %p166 = por %p164, %p165
    %s167 = ssub.s32 %s13, %s20
    %p168 = scmp.eq.s32.totalorder %s167, 0
    %s170 = sadd.s32 %s169, 1
    %s171 = scalar_select %p168, %s169, %s170
    %p174 = pneg %p168
    %p175 = scmp.eq.s32.totalorder %s13, 3
    %p176 = por %p174, %p175
    %p177 = scmp.ne.s32.totalorder %s169, %s172
    %p178 = scmp.eq.s32.totalorder %s13, 0
    %p179 = por %p177, %p178
    %p180 = scmp.ne.s32.totalorder %s169, %s172
    %p181 = scmp.eq.s32.totalorder %s18, 3
    %p182 = por %p180, %p181
    %p183 = scmp.ne.s32.totalorder %s172, %s173
    %p184 = scmp.eq.s32.totalorder %s18, 0
    %p185 = por %p183, %p184
    %p186 = scmp.ne.s32.totalorder %s172, %s173
    %p187 = scmp.eq.s32.totalorder %s19, 3
    %p188 = por %p186, %p187
    %p190 = scmp.ne.s32.totalorder %s173, %s189
    %p191 = scmp.eq.s32.totalorder %s19, 0
    %p192 = por %p190, %p191
    %p193 = scmp.le.s32.totalorder 1, %s13
    %p194 = scmp.lt.s32.totalorder %s13, 5
    %p195 = pnand %p193, %p194
    %p196 = pneg %p195
    // Predicated region
    $region9: #{tpu_custom_call.1} parent=5 // pred_check
      _
    $region10: #{tpu_custom_call.1} parent=5 // pred_check_branch
      %198 = sbr.rel (%p195) target = $region12
    $region11: #{tpu_custom_call.1} parent=5 // pred_region
      %s199 = ssub.s32 %s13, 1
      // Predicated region
      $region13: #{tpu_custom_call.1} parent=11 // pred_check
        %p200 = pneg %p112
      $region14: #{tpu_custom_call.1} parent=11 // pred_check_branch
        %202 = sbr.rel (%p200) target = $region16
      $region15: #{tpu_custom_call.1} parent=11 // pred_region
        _
      $region16: #{tpu_custom_call.1} parent=11 // pred_fallthru
        _
      // Predicated region
      $region17: #{tpu_custom_call.1} parent=11 // pred_check
        %p203 = pneg %p133
      $region18: #{tpu_custom_call.1} parent=11 // pred_check_branch
        %205 = sbr.rel (%p203) target = $region20
      $region19: #{tpu_custom_call.1} parent=11 // pred_region
        _
      $region20: #{tpu_custom_call.1} parent=11 // pred_fallthru
        _
    $region12: #{tpu_custom_call.1} parent=5 // pred_fallthru
      _
    %p206 = scmp.lt.s32.totalorder %s13, 4
    // Predicated region
    $region21: #{tpu_custom_call.1} parent=5 // pred_check
      %p207 = pneg %p206
    $region22: #{tpu_custom_call.1} parent=5 // pred_check_branch
      %209 = sbr.rel (%p207) target = $region24
    $region23: #{tpu_custom_call.1} parent=5 // pred_region
      // Predicated region
      $region25: #{tpu_custom_call.1} parent=23 // pred_check
        %p210 = pneg %p33
      $region26: #{tpu_custom_call.1} parent=23 // pred_check_branch
        %212 = sbr.rel (%p210) target = $region28
      $region27: #{tpu_custom_call.1} parent=23 // pred_region
        %s213 = smul.u32 16, %s13
        %p214 = scmp.lt.s32.totalorder %s213, 63
        %s215 = scalar_select %p214, %s213, 63
        %s216 = smul.addr %s215, 2
        %s217 = smul.addr %s216, 8
        %s218 = scalar_lea.vmem %s0, %s217
        %s219 = smul.u32 16, %s13
      $region28: #{tpu_custom_call.1} parent=23 // pred_fallthru
        _
      // Predicated region
      $region29: #{tpu_custom_call.1} parent=23 // pred_check
        %p220 = pneg %p59
      $region30: #{tpu_custom_call.1} parent=23 // pred_check_branch
        %222 = sbr.rel (%p220) target = $region32
      $region31: #{tpu_custom_call.1} parent=23 // pred_region
        %s223 = smul.u32 16, %s13
        %p224 = scmp.lt.s32.totalorder %s223, 63
        %s225 = scalar_select %p224, %s223, 63
        %s226 = smul.addr %s225, 2
        %s227 = smul.addr %s226, 8
        %s228 = scalar_lea.vmem %s1, %s227
        %s229 = smul.u32 16, %s13
      $region32: #{tpu_custom_call.1} parent=23 // pred_fallthru
        _
      // Predicated region
      $region33: #{tpu_custom_call.1} parent=23 // pred_check
        %p230 = pneg %p85
      $region34: #{tpu_custom_call.1} parent=23 // pred_check_branch
        %232 = sbr.rel (%p230) target = $region36
      $region35: #{tpu_custom_call.1} parent=23 // pred_region
        %s233 = smul.u32 16, %s13
        %p234 = scmp.lt.s32.totalorder %s233, 63
        %s235 = scalar_select %p234, %s233, 63
        %s236 = smul.addr %s235, 2
        %s237 = smul.addr %s236, 8
        %s238 = scalar_lea.vmem %s2, %s237
        %s239 = smul.u32 16, %s13
      $region36: #{tpu_custom_call.1} parent=23 // pred_fallthru
        _
    $region24: #{tpu_custom_call.1} parent=5 // pred_fallthru
      _
    %p240 = scmp.le.s32.totalorder 1, %s13
    %p241 = scmp.lt.s32.totalorder %s13, 5
    %p242 = pnand %p240, %p241
    %p243 = pneg %p242
    // Predicated region
    $region37: #{tpu_custom_call.1} parent=5 // pred_check
      _
    $region38: #{tpu_custom_call.1} parent=5 // pred_check_branch
      %245 = sbr.rel (%p242) target = $region40
    $region39: #{tpu_custom_call.1} parent=5 // pred_region
      %s246 = ssub.s32 %s13, 1
      %s247 = smul.u32 16, %s18
      %p248 = scmp.lt.s32.totalorder %s247, 63
      %s249 = scalar_select %p248, %s247, 63
      %s250 = smul.addr %s249, 2
      %s251 = smul.addr %s250, 8
      %s252 = scalar_lea.vmem %s0, %s251
      %p253 = pneg %p39
      %p254 = pneg %p36
      %s255 = smul.u32 16, %s18
      %p256 = scmp.lt.s32.totalorder %s255, 63
      %s257 = scalar_select %p256, %s255, 63
      %s258 = smul.addr %s257, 2
      %s259 = smul.addr %s258, 8
      %s260 = scalar_lea.vmem %s1, %s259
      %p261 = pneg %p65
      %p262 = pneg %p62
      %s263 = smul.u32 16, %s18
      %p264 = scmp.lt.s32.totalorder %s263, 63
      %s265 = scalar_select %p264, %s263, 63
      %s266 = smul.addr %s265, 2
      %s267 = smul.addr %s266, 8
      %s268 = scalar_lea.vmem %s2, %s267
      %p269 = pneg %p91
      %p270 = pneg %p88
      %p271 = pneg %p112
      %p272 = pneg %p109
      %p273 = pneg %p133
      %p274 = pneg %p130
      %p275 = pneg %p159
      %p276 = pneg %p156
      %s277 = smul.u32 16, %s18
      %p278 = scmp.lt.s32.totalorder %s277, 63
      %s279 = scalar_select %p278, %s277, 63
      %s280 = smul.addr %s279, 2
      %s281 = smul.addr %s280, 8
      %s282 = scalar_lea.vmem %s5, %s281
      %p283 = pneg %p185
      %p284 = pneg %p182
      %s285 = smul.u32 16, %s18
      %p286 = scmp.lt.s32.totalorder %s285, 63
      %s287 = scalar_select %p286, %s285, 63
      %s288 = scalar_lea.vmem %s6, %s287
      %s289 = smul.u32 16, %s18
      %p290 = scmp.lt.s32.totalorder %s289, 63
      %s291 = scalar_select %p290, %s289, 63
      %s292 = smul.addr %s291, 2
      %s293 = smul.addr %s292, 8
      %s294 = scalar_lea.vmem %s0, %s293
      %s295 = smul.u32 16, %s18
      %s296 = smul.u32 16, %s18
      %p297 = scmp.lt.s32.totalorder %s296, 63
      %s298 = scalar_select %p297, %s296, 63
      %s299 = smul.addr %s298, 2
      %s300 = smul.addr %s299, 8
      %s301 = scalar_lea.vmem %s1, %s300
      %s302 = smul.u32 16, %s18
      %s303 = smul.u32 16, %s18
      %p304 = scmp.lt.s32.totalorder %s303, 63
      %s305 = scalar_select %p304, %s303, 63
      %s306 = smul.addr %s305, 2
      %s307 = smul.addr %s306, 8
      %s308 = scalar_lea.vmem %s2, %s307
      %s309 = smul.u32 16, %s18
      %s310 = smul.u32 16, %s18
      %p311 = scmp.lt.s32.totalorder %s310, 63
      %s312 = scalar_select %p311, %s310, 63
      %s313 = smul.addr %s312, 2
      %s314 = smul.addr %s313, 8
      %s315 = scalar_lea.vmem %s5, %s314
      %s316 = smul.u32 16, %s18
      %s317 = smul.u32 16, %s18
      %p318 = scmp.lt.s32.totalorder %s317, 63
      %s319 = scalar_select %p318, %s317, 63
      %s320 = scalar_lea.vmem %s6, %s319
      %s321 = smul.u32 16, %s18
      %v322 = vld [vmem:[%s294] sm:$0xff]
      %v323 = vld [vmem:[%s294 + $0x8] sm:$0xff]
      %v324 = vld [vmem:[%s294 + $0x10] sm:$0xff]
      %v325 = vld [vmem:[%s294 + $0x18] sm:$0xff]
      %v326 = vld [vmem:[%s294 + $0x20] sm:$0xff]
      %v327 = vld [vmem:[%s294 + $0x28] sm:$0xff]
      %v328 = vld [vmem:[%s294 + $0x30] sm:$0xff]
      %v329 = vld [vmem:[%s294 + $0x38] sm:$0xff]
      %v330 = vld [vmem:[%s294 + $0x40] sm:$0xff]
      %v331 = vld [vmem:[%s294 + $0x48] sm:$0xff]
      %v332 = vld [vmem:[%s294 + $0x50] sm:$0xff]
      %v333 = vld [vmem:[%s294 + $0x58] sm:$0xff]
      %v334 = vld [vmem:[%s294 + $0x60] sm:$0xff]
      %v335 = vld [vmem:[%s294 + $0x68] sm:$0xff]
      %v336 = vld [vmem:[%s294 + $0x70] sm:$0xff]
      %v337 = vld [vmem:[%s294 + $0x78] sm:$0xff]
      %v338 = vld [vmem:[%s294 + $0x80] sm:$0xff]
      %v339 = vld [vmem:[%s294 + $0x88] sm:$0xff]
      %v340 = vld [vmem:[%s294 + $0x90] sm:$0xff]
      %v341 = vld [vmem:[%s294 + $0x98] sm:$0xff]
      %v342 = vld [vmem:[%s294 + $0xa0] sm:$0xff]
      %v343 = vld [vmem:[%s294 + $0xa8] sm:$0xff]
      %v344 = vld [vmem:[%s294 + $0xb0] sm:$0xff]
      %v345 = vld [vmem:[%s294 + $0xb8] sm:$0xff]
      %v346 = vld [vmem:[%s294 + $0xc0] sm:$0xff]
      %v347 = vld [vmem:[%s294 + $0xc8] sm:$0xff]
      %v348 = vld [vmem:[%s294 + $0xd0] sm:$0xff]
      %v349 = vld [vmem:[%s294 + $0xd8] sm:$0xff]
      %v350 = vld [vmem:[%s294 + $0xe0] sm:$0xff]
      %v351 = vld [vmem:[%s294 + $0xe8] sm:$0xff]
      %v352 = vld [vmem:[%s294 + $0xf0] sm:$0xff]
      %v353 = vld [vmem:[%s294 + $0xf8] sm:$0xff]
      %v354 = vld [vmem:[%s3] sm:$0xf]
      %v355 = vld [vmem:[%s3 + $0x4] sm:$0x1]
      %vm356 = vcmask 31744
      %v358 = vsel %vm356, %v322, 0
      %v361 = vsel %vm356, %v323, 0
      %v364 = vsel %vm356, %v324, 0
      %v367 = vsel %vm356, %v325, 0
      %v370 = vsel %vm356, %v326, 0
      %v373 = vsel %vm356, %v327, 0
      %v376 = vsel %vm356, %v328, 0
      %v379 = vsel %vm356, %v329, 0
      %v382 = vsel %vm356, %v330, 0
      %v385 = vsel %vm356, %v331, 0
      %v388 = vsel %vm356, %v332, 0
      %v391 = vsel %vm356, %v333, 0
      %v394 = vsel %vm356, %v334, 0
      %v397 = vsel %vm356, %v335, 0
      %v400 = vsel %vm356, %v336, 0
      %v403 = vsel %vm356, %v337, 0
      %v406 = vsel %vm356, %v338, 0
      %v409 = vsel %vm356, %v339, 0
      %v412 = vsel %vm356, %v340, 0
      %v415 = vsel %vm356, %v341, 0
      %v418 = vsel %vm356, %v342, 0
      %v421 = vsel %vm356, %v343, 0
      %v424 = vsel %vm356, %v344, 0
      %v427 = vsel %vm356, %v345, 0
      %v430 = vsel %vm356, %v346, 0
      %v433 = vsel %vm356, %v347, 0
      %v436 = vsel %vm356, %v348, 0
      %v439 = vsel %vm356, %v349, 0
      %v442 = vsel %vm356, %v350, 0
      %v445 = vsel %vm356, %v351, 0
      %v448 = vsel %vm356, %v352, 0
      %v451 = vsel %vm356, %v353, 0
      %vm453 = vcmask 1043456
      %v455 = vsel %vm453, %v354, 0
      %457 = vmatprep.subr.mxu0 0.0
      %458 = vmatpush1.msra.mxu0 %v455
      %459 = vmatprep.subr.mxu0 0.0
      %460 = vmatpush1.msra.mxu0 0.0
      %461 = vmatprep.subr.mxu0 0.0
      %462 = vmatpush1.msra.mxu0 0.0
      %463 = vmatprep.subr.mxu0 0.0
      %464 = vmatpush1.msra.mxu0 0.0
      %465 = vmatprep.subr.mxu0 0.0
      %466 = vmatpush1.msra.mxu0 0.0
      %467 = vmatprep.subr.mxu0 0.0
      %468 = vmatpush1.msra.mxu0 0.0
      %469 = vmatprep.subr.mxu0 0.0
      %470 = vmatpush1.msra.mxu0 0.0
      %471 = vmatprep.subr.mxu0 0.0
      %472 = vmatpush1.msra.mxu0 0.0
      %473 = vmatprep.subr.mxu0 0.0
      %474 = vmatpush1.msra.mxu0 0.0
      %475 = vmatprep.subr.mxu0 0.0
      %476 = vmatpush1.msra.mxu0 0.0
      %477 = vmatprep.subr.mxu0 0.0
      %478 = vmatpush1.msra.mxu0 0.0
      %479 = vmatprep.subr.mxu0 0.0
      %480 = vmatpush1.msra.mxu0 0.0
      %481 = vmatprep.subr.mxu0 0.0
      %482 = vmatpush1.msra.mxu0 0.0
      %483 = vmatprep.subr.mxu0 0.0
      %484 = vmatpush1.msra.mxu0 0.0
      %485 = vmatprep.subr.mxu0 0.0
      %486 = vmatpush1.msra.mxu0 0.0
      %487 = vmatprep.subr.mxu0 0.0
      %488 = vmatpush1.msra.mxu0 0.0
      %489 = vmatprep.subr.mxu0 0.0
      %490 = vmatpush1.msra.mxu0 0.0
      %491 = vmatprep.subr.mxu0 0.0
      %492 = vmatpush1.msra.mxu0 0.0
      %493 = vmatprep.subr.mxu0 0.0
      %494 = vmatpush1.msra.mxu0 0.0
      %495 = vmatprep.subr.mxu0 0.0
      %496 = vmatpush1.msra.mxu0 0.0
      %497 = vmatprep.subr.mxu0 0.0
      %498 = vmatpush1.msra.mxu0 0.0
      %499 = vmatprep.subr.mxu0 0.0
      %500 = vmatpush1.msra.mxu0 0.0
      %501 = vmatprep.subr.mxu0 0.0
      %502 = vmatpush1.msra.mxu0 0.0
      %503 = vmatprep.subr.mxu0 0.0
      %504 = vmatpush1.msra.mxu0 0.0
      %505 = vmatprep.subr.mxu0 0.0
      %506 = vmatpush1.msra.mxu0 0.0
      %507 = vmatprep.subr.mxu0 0.0
      %508 = vmatpush1.msra.mxu0 0.0
      %509 = vmatprep.subr.mxu0 0.0
      %510 = vmatpush1.msra.mxu0 0.0
      %511 = vmatprep.subr.mxu0 0.0
      %512 = vmatpush1.msra.mxu0 0.0
      %513 = vmatprep.subr.mxu0 0.0
      %514 = vmatpush1.msra.mxu0 0.0
      %515 = vmatprep.subr.mxu0 0.0
      %516 = vmatpush1.msra.mxu0 0.0
      %517 = vmatprep.subr.mxu0 0.0
      %518 = vmatpush1.msra.mxu0 0.0
      %519 = vmatprep.subr.mxu0 0.0
      %520 = vmatpush1.msra.mxu0 0.0
      %521 = vmatprep.mubr.f32.mxu0 0.0
      %522 = vmatmul.mubr.f32.gmra.mrb[0].mxu0 %v358
      %v523 = vpop.f32.mrb[0].mxu0
      %v524 = vadd.f32 0.0, %v523
      %v525 = vpop.f32.mrb[0].mxu0
      %526 = vmatprep.mubr.f32.mxu0 0.0
      %527 = vmatmul.mubr.f32.gmra.mrb[0].mxu0 %v361
      %v528 = vpop.f32.mrb[0].mxu0
      %v529 = vadd.f32 0.0, %v528
      %v530 = vpop.f32.mrb[0].mxu0
      %531 = vmatprep.mubr.f32.mxu0 0.0
      %532 = vmatmul.mubr.f32.gmra.mrb[0].mxu0 %v364
      %v533 = vpop.f32.mrb[0].mxu0
      %v534 = vadd.f32 0.0, %v533
      %v535 = vpop.f32.mrb[0].mxu0
      %536 = vmatprep.mubr.f32.mxu0 0.0
      %537 = vmatmul.mubr.f32.gmra.mrb[0].mxu0 %v367
      %v538 = vpop.f32.mrb[0].mxu0
      %v539 = vadd.f32 0.0, %v538
      %v540 = vpop.f32.mrb[0].mxu0
      %541 = vmatprep.mubr.f32.mxu0 0.0
      %542 = vmatmul.mubr.f32.gmra.mrb[0].mxu0 %v370
      %v543 = vpop.f32.mrb[0].mxu0
      %v544 = vadd.f32 0.0, %v543
      %v545 = vpop.f32.mrb[0].mxu0
      %546 = vmatprep.mubr.f32.mxu0 0.0
      %547 = vmatmul.mubr.f32.gmra.mrb[0].mxu0 %v373
      %v548 = vpop.f32.mrb[0].mxu0
      %v549 = vadd.f32 0.0, %v548
      %v550 = vpop.f32.mrb[0].mxu0
      %551 = vmatprep.mubr.f32.mxu0 0.0
      %552 = vmatmul.mubr.f32.gmra.mrb[0].mxu0 %v376
      %v553 = vpop.f32.mrb[0].mxu0
      %v554 = vadd.f32 0.0, %v553
      %v555 = vpop.f32.mrb[0].mxu0
      %556 = vmatprep.mubr.f32.mxu0 0.0
      %557 = vmatmul.mubr.f32.gmra.mrb[0].mxu0 %v379
      %v558 = vpop.f32.mrb[0].mxu0
      %v559 = vadd.f32 0.0, %v558
      %v560 = vpop.f32.mrb[0].mxu0
      %561 = vmatprep.mubr.f32.mxu0 0.0
      %562 = vmatmul.mubr.f32.gmra.mrb[0].mxu0 %v382
      %v563 = vpop.f32.mrb[0].mxu0
      %v564 = vadd.f32 0.0, %v563
      %v565 = vpop.f32.mrb[0].mxu0
      %566 = vmatprep.mubr.f32.mxu0 0.0
      %567 = vmatmul.mubr.f32.gmra.mrb[0].mxu0 %v385
      %v568 = vpop.f32.mrb[0].mxu0
      %v569 = vadd.f32 0.0, %v568
      %v570 = vpop.f32.mrb[0].mxu0
      %571 = vmatprep.mubr.f32.mxu0 0.0
      %572 = vmatmul.mubr.f32.gmra.mrb[0].mxu0 %v388
      %v573 = vpop.f32.mrb[0].mxu0
      %v574 = vadd.f32 0.0, %v573
      %v575 = vpop.f32.mrb[0].mxu0
      %576 = vmatprep.mubr.f32.mxu0 0.0
      %577 = vmatmul.mubr.f32.gmra.mrb[0].mxu0 %v391
      %v578 = vpop.f32.mrb[0].mxu0
      %v579 = vadd.f32 0.0, %v578
      %v580 = vpop.f32.mrb[0].mxu0
      %581 = vmatprep.mubr.f32.mxu0 0.0
      %582 = vmatmul.mubr.f32.gmra.mrb[0].mxu0 %v394
      %v583 = vpop.f32.mrb[0].mxu0
      %v584 = vadd.f32 0.0, %v583
      %v585 = vpop.f32.mrb[0].mxu0
      %586 = vmatprep.mubr.f32.mxu0 0.0
      %587 = vmatmul.mubr.f32.gmra.mrb[0].mxu0 %v397
      %v588 = vpop.f32.mrb[0].mxu0
      %v589 = vadd.f32 0.0, %v588
      %v590 = vpop.f32.mrb[0].mxu0
      %591 = vmatprep.mubr.f32.mxu0 0.0
      %592 = vmatmul.mubr.f32.gmra.mrb[0].mxu0 %v400
      %v593 = vpop.f32.mrb[0].mxu0
      %v594 = vadd.f32 0.0, %v593
      %v595 = vpop.f32.mrb[0].mxu0
      %596 = vmatprep.mubr.f32.mxu0 0.0
      %597 = vmatmul.mubr.f32.gmra.mrb[0].mxu0 %v403
      %v598 = vpop.f32.mrb[0].mxu0
      %v599 = vadd.f32 0.0, %v598
      %v600 = vpop.f32.mrb[0].mxu0
      %601 = vmatprep.mubr.f32.mxu0 0.0
      %602 = vmatmul.mubr.f32.gmra.mrb[0].mxu0 %v406
      %v603 = vpop.f32.mrb[0].mxu0
      %v604 = vadd.f32 0.0, %v603
      %v605 = vpop.f32.mrb[0].mxu0
      %606 = vmatprep.mubr.f32.mxu0 0.0
      %607 = vmatmul.mubr.f32.gmra.mrb[0].mxu0 %v409
      %v608 = vpop.f32.mrb[0].mxu0
      %v609 = vadd.f32 0.0, %v608
      %v610 = vpop.f32.mrb[0].mxu0
      %611 = vmatprep.mubr.f32.mxu0 0.0
      %612 = vmatmul.mubr.f32.gmra.mrb[0].mxu0 %v412
      %v613 = vpop.f32.mrb[0].mxu0
      %v614 = vadd.f32 0.0, %v613
      %v615 = vpop.f32.mrb[0].mxu0
      %616 = vmatprep.mubr.f32.mxu0 0.0
      %617 = vmatmul.mubr.f32.gmra.mrb[0].mxu0 %v415
      %v618 = vpop.f32.mrb[0].mxu0
      %v619 = vadd.f32 0.0, %v618
      %v620 = vpop.f32.mrb[0].mxu0
      %621 = vmatprep.mubr.f32.mxu0 0.0
      %622 = vmatmul.mubr.f32.gmra.mrb[0].mxu0 %v418
      %v623 = vpop.f32.mrb[0].mxu0
      %v624 = vadd.f32 0.0, %v623
      %v625 = vpop.f32.mrb[0].mxu0
      %626 = vmatprep.mubr.f32.mxu0 0.0
      %627 = vmatmul.mubr.f32.gmra.mrb[0].mxu0 %v421
      %v628 = vpop.f32.mrb[0].mxu0
      %v629 = vadd.f32 0.0, %v628
      %v630 = vpop.f32.mrb[0].mxu0
      %631 = vmatprep.mubr.f32.mxu0 0.0
      %632 = vmatmul.mubr.f32.gmra.mrb[0].mxu0 %v424
      %v633 = vpop.f32.mrb[0].mxu0
      %v634 = vadd.f32 0.0, %v633
      %v635 = vpop.f32.mrb[0].mxu0
      %636 = vmatprep.mubr.f32.mxu0 0.0
      %637 = vmatmul.mubr.f32.gmra.mrb[0].mxu0 %v427
      %v638 = vpop.f32.mrb[0].mxu0
      %v639 = vadd.f32 0.0, %v638
      %v640 = vpop.f32.mrb[0].mxu0
      %641 = vmatprep.mubr.f32.mxu0 0.0
      %642 = vmatmul.mubr.f32.gmra.mrb[0].mxu0 %v430
      %v643 = vpop.f32.mrb[0].mxu0
      %v644 = vadd.f32 0.0, %v643
      %v645 = vpop.f32.mrb[0].mxu0
      %646 = vmatprep.mubr.f32.mxu0 0.0
      %647 = vmatmul.mubr.f32.gmra.mrb[0].mxu0 %v433
      %v648 = vpop.f32.mrb[0].mxu0
      %v649 = vadd.f32 0.0, %v648
      %v650 = vpop.f32.mrb[0].mxu0
      %651 = vmatprep.mubr.f32.mxu0 0.0
      %652 = vmatmul.mubr.f32.gmra.mrb[0].mxu0 %v436
      %v653 = vpop.f32.mrb[0].mxu0
      %v654 = vadd.f32 0.0, %v653
      %v655 = vpop.f32.mrb[0].mxu0
      %656 = vmatprep.mubr.f32.mxu0 0.0
      %657 = vmatmul.mubr.f32.gmra.mrb[0].mxu0 %v439
      %v658 = vpop.f32.mrb[0].mxu0
      %v659 = vadd.f32 0.0, %v658
      %v660 = vpop.f32.mrb[0].mxu0
      %661 = vmatprep.mubr.f32.mxu0 0.0
      %662 = vmatmul.mubr.f32.gmra.mrb[0].mxu0 %v442
      %v663 = vpop.f32.mrb[0].mxu0
      %v664 = vadd.f32 0.0, %v663
      %v665 = vpop.f32.mrb[0].mxu0
      %666 = vmatprep.mubr.f32.mxu0 0.0
      %667 = vmatmul.mubr.f32.gmra.mrb[0].mxu0 %v445
      %v668 = vpop.f32.mrb[0].mxu0
      %v669 = vadd.f32 0.0, %v668
      %v670 = vpop.f32.mrb[0].mxu0
      %671 = vmatprep.mubr.f32.mxu0 0.0
      %672 = vmatmul.mubr.f32.gmra.mrb[0].mxu0 %v448
      %v673 = vpop.f32.mrb[0].mxu0
      %v674 = vadd.f32 0.0, %v673
      %v675 = vpop.f32.mrb[0].mxu0
      %676 = vmatprep.mubr.f32.mxu0 0.0
      %677 = vmatmul.mubr.f32.gmra.mrb[0].mxu0 %v451
      %v678 = vpop.f32.mrb[0].mxu0
      %v679 = vadd.f32 0.0, %v678
      %v680 = vpop.f32.mrb[0].mxu0
      %681 = vdwg.mxu0
      %v682 = vld [vmem:[%s301] sm:$0xff]
      %v683 = vld [vmem:[%s301 + $0x8] sm:$0xff]
      %v684 = vld [vmem:[%s301 + $0x10] sm:$0xff]
      %v685 = vld [vmem:[%s301 + $0x18] sm:$0xff]
      %v686 = vld [vmem:[%s301 + $0x20] sm:$0xff]
      %v687 = vld [vmem:[%s301 + $0x28] sm:$0xff]
      %v688 = vld [vmem:[%s301 + $0x30] sm:$0xff]
      %v689 = vld [vmem:[%s301 + $0x38] sm:$0xff]
      %v690 = vld [vmem:[%s301 + $0x40] sm:$0xff]
      %v691 = vld [vmem:[%s301 + $0x48] sm:$0xff]
      %v692 = vld [vmem:[%s301 + $0x50] sm:$0xff]
      %v693 = vld [vmem:[%s301 + $0x58] sm:$0xff]
      %v694 = vld [vmem:[%s301 + $0x60] sm:$0xff]
      %v695 = vld [vmem:[%s301 + $0x68] sm:$0xff]
      %v696 = vld [vmem:[%s301 + $0x70] sm:$0xff]
      %v697 = vld [vmem:[%s301 + $0x78] sm:$0xff]
      %v698 = vld [vmem:[%s301 + $0x80] sm:$0xff]
      %v699 = vld [vmem:[%s301 + $0x88] sm:$0xff]
      %v700 = vld [vmem:[%s301 + $0x90] sm:$0xff]
      %v701 = vld [vmem:[%s301 + $0x98] sm:$0xff]
      %v702 = vld [vmem:[%s301 + $0xa0] sm:$0xff]
      %v703 = vld [vmem:[%s301 + $0xa8] sm:$0xff]
      %v704 = vld [vmem:[%s301 + $0xb0] sm:$0xff]
      %v705 = vld [vmem:[%s301 + $0xb8] sm:$0xff]
      %v706 = vld [vmem:[%s301 + $0xc0] sm:$0xff]
      %v707 = vld [vmem:[%s301 + $0xc8] sm:$0xff]
      %v708 = vld [vmem:[%s301 + $0xd0] sm:$0xff]
      %v709 = vld [vmem:[%s301 + $0xd8] sm:$0xff]
      %v710 = vld [vmem:[%s301 + $0xe0] sm:$0xff]
      %v711 = vld [vmem:[%s301 + $0xe8] sm:$0xff]
      %v712 = vld [vmem:[%s301 + $0xf0] sm:$0xff]
      %v713 = vld [vmem:[%s301 + $0xf8] sm:$0xff]
      %vm714 = vcmask 130048
      %v716 = vsel %vm714, %v682, 0
      %v719 = vsel %vm714, %v683, 0
      %721 = vmatprep.subr.mxu0 0.0
      %722 = vmatpush1.msra.mxu0 %v524
      %723 = vmatprep.subr.mxu0 0.0
      %724 = vmatpush1.msra.mxu0 %v529
      %725 = vmatprep.subr.mxu0 0.0
      %726 = vmatpush1.msra.mxu0 0.0
      %727 = vmatprep.subr.mxu0 0.0
      %728 = vmatpush1.msra.mxu0 0.0
      %729 = vmatprep.subr.mxu0 0.0
      %730 = vmatpush1.msra.mxu0 0.0
      %731 = vmatprep.subr.mxu0 0.0
      %732 = vmatpush1.msra.mxu0 0.0
      %733 = vmatprep.subr.mxu0 0.0
      %734 = vmatpush1.msra.mxu0 0.0
      %735 = vmatprep.subr.mxu0 0.0
      %736 = vmatpush1.msra.mxu0 0.0
      %737 = vmatprep.subr.mxu0 0.0
      %738 = vmatpush1.msra.mxu0 0.0
      %739 = vmatprep.subr.mxu0 0.0
      %740 = vmatpush1.msra.mxu0 0.0
      %741 = vmatprep.subr.mxu0 0.0
      %742 = vmatpush1.msra.mxu0 0.0
      %743 = vmatprep.subr.mxu0 0.0
      %744 = vmatpush1.msra.mxu0 0.0
      %745 = vmatprep.subr.mxu0 0.0
      %746 = vmatpush1.msra.mxu0 0.0
      %747 = vmatprep.subr.mxu0 0.0
      %748 = vmatpush1.msra.mxu0 0.0
      %749 = vmatprep.subr.mxu0 0.0
      %750 = vmatpush1.msra.mxu0 0.0
      %751 = vmatprep.subr.mxu0 0.0
      %752 = vmatpush1.msra.mxu0 0.0
      %753 = vmatprep.subr.mxu0 0.0
      %754 = vmatpush1.msra.mxu0 0.0
      %755 = vmatprep.subr.mxu0 0.0
      %756 = vmatpush1.msra.mxu0 0.0
      %757 = vmatprep.subr.mxu0 0.0
      %758 = vmatpush1.msra.mxu0 0.0
      %759 = vmatprep.subr.mxu0 0.0
      %760 = vmatpush1.msra.mxu0 0.0
      %761 = vmatprep.subr.mxu0 0.0
      %762 = vmatpush1.msra.mxu0 0.0
      %763 = vmatprep.subr.mxu0 0.0
      %764 = vmatpush1.msra.mxu0 0.0
      %765 = vmatprep.subr.mxu0 0.0
      %766 = vmatpush1.msra.mxu0 0.0
      %767 = vmatprep.subr.mxu0 0.0
      %768 = vmatpush1.msra.mxu0 0.0
      %769 = vmatprep.subr.mxu0 0.0
      %770 = vmatpush1.msra.mxu0 0.0
      %771 = vmatprep.subr.mxu0 0.0
      %772 = vmatpush1.msra.mxu0 0.0
      %773 = vmatprep.subr.mxu0 0.0
      %774 = vmatpush1.msra.mxu0 0.0
      %775 = vmatprep.subr.mxu0 0.0
      %776 = vmatpush1.msra.mxu0 0.0
      %777 = vmatprep.subr.mxu0 0.0
      %778 = vmatpush1.msra.mxu0 0.0
      %779 = vmatprep.subr.mxu0 0.0
      %780 = vmatpush1.msra.mxu0 0.0
      %781 = vmatprep.subr.mxu0 0.0
      %782 = vmatpush1.msra.mxu0 0.0
      %783 = vmatprep.subr.mxu0 0.0
      %784 = vmatpush1.msra.mxu0 0.0
      %785 = vmatprep.mubr.f32.mxu0 0.0
      %786 = vmatmul.mubr.f32.gmra.mrb[0].mxu0 %v716
      %v787 = vpop.f32.mrb[0].mxu0
      %v788 = vadd.f32 0.0, %v787
      %v789 = vpop.f32.mrb[0].mxu0
      %790 = vmatprep.mubr.f32.mxu0 0.0
      %791 = vmatmul.mubr.f32.gmra.mrb[0].mxu0 %v719
      %v792 = vpop.f32.mrb[0].mxu0
      %v793 = vadd.f32 0.0, %v792
      %v794 = vpop.f32.mrb[0].mxu0
      %795 = vdwg.mxu0
      %v797 = vsel %vm714, %v684, 0
      %v800 = vsel %vm714, %v685, 0
      %802 = vmatprep.subr.mxu0 0.0
      %803 = vmatpush1.msra.mxu0 %v534
      %804 = vmatprep.subr.mxu0 0.0
      %805 = vmatpush1.msra.mxu0 %v539
      %806 = vmatprep.subr.mxu0 0.0
      %807 = vmatpush1.msra.mxu0 0.0
      %808 = vmatprep.subr.mxu0 0.0
      %809 = vmatpush1.msra.mxu0 0.0
      %810 = vmatprep.subr.mxu0 0.0
      %811 = vmatpush1.msra.mxu0 0.0
      %812 = vmatprep.subr.mxu0 0.0
      %813 = vmatpush1.msra.mxu0 0.0
      %814 = vmatprep.subr.mxu0 0.0
      %815 = vmatpush1.msra.mxu0 0.0
      %816 = vmatprep.subr.mxu0 0.0
      %817 = vmatpush1.msra.mxu0 0.0
      %818 = vmatprep.subr.mxu0 0.0
      %819 = vmatpush1.msra.mxu0 0.0
      %820 = vmatprep.subr.mxu0 0.0
      %821 = vmatpush1.msra.mxu0 0.0
      %822 = vmatprep.subr.mxu0 0.0
      %823 = vmatpush1.msra.mxu0 0.0
      %824 = vmatprep.subr.mxu0 0.0
      %825 = vmatpush1.msra.mxu0 0.0
      %826 = vmatprep.subr.mxu0 0.0
      %827 = vmatpush1.msra.mxu0 0.0
      %828 = vmatprep.subr.mxu0 0.0
      %829 = vmatpush1.msra.mxu0 0.0
      %830 = vmatprep.subr.mxu0 0.0
      %831 = vmatpush1.msra.mxu0 0.0
      %832 = vmatprep.subr.mxu0 0.0
      %833 = vmatpush1.msra.mxu0 0.0
      %834 = vmatprep.subr.mxu0 0.0
      %835 = vmatpush1.msra.mxu0 0.0
      %836 = vmatprep.subr.mxu0 0.0
      %837 = vmatpush1.msra.mxu0 0.0
      %838 = vmatprep.subr.mxu0 0.0
      %839 = vmatpush1.msra.mxu0 0.0
      %840 = vmatprep.subr.mxu0 0.0
      %841 = vmatpush1.msra.mxu0 0.0
      %842 = vmatprep.subr.mxu0 0.0
      %843 = vmatpush1.msra.mxu0 0.0
      %844 = vmatprep.subr.mxu0 0.0
      %845 = vmatpush1.msra.mxu0 0.0
      %846 = vmatprep.subr.mxu0 0.0
      %847 = vmatpush1.msra.mxu0 0.0
      %848 = vmatprep.subr.mxu0 0.0
      %849 = vmatpush1.msra.mxu0 0.0
      %850 = vmatprep.subr.mxu0 0.0
      %851 = vmatpush1.msra.mxu0 0.0
      %852 = vmatprep.subr.mxu0 0.0
      %853 = vmatpush1.msra.mxu0 0.0
      %854 = vmatprep.subr.mxu0 0.0
      %855 = vmatpush1.msra.mxu0 0.0
      %856 = vmatprep.subr.mxu0 0.0
      %857 = vmatpush1.msra.mxu0 0.0
      %858 = vmatprep.subr.mxu0 0.0
      %859 = vmatpush1.msra.mxu0 0.0
      %860 = vmatprep.subr.mxu0 0.0
      %861 = vmatpush1.msra.mxu0 0.0
      %862 = vmatprep.subr.mxu0 0.0
      %863 = vmatpush1.msra.mxu0 0.0
      %864 = vmatprep.subr.mxu0 0.0
      %865 = vmatpush1.msra.mxu0 0.0
      %866 = vmatprep.mubr.f32.mxu0 0.0
      %867 = vmatmul.mubr.f32.gmra.mrb[0].mxu0 %v797
      %v868 = vpop.f32.mrb[0].mxu0
      %v869 = vadd.f32 0.0, %v868
      %v870 = vpop.f32.mrb[0].mxu0
      %871 = vmatprep.mubr.f32.mxu0 0.0
      %872 = vmatmul.mubr.f32.gmra.mrb[0].mxu0 %v800
      %v873 = vpop.f32.mrb[0].mxu0
      %v874 = vadd.f32 0.0, %v873
      %v875 = vpop.f32.mrb[0].mxu0
      %876 = vdwg.mxu0
      %v878 = vsel %vm714, %v686, 0
      %v881 = vsel %vm714, %v687, 0
      %883 = vmatprep.subr.mxu0 0.0
      %884 = vmatpush1.msra.mxu0 %v544
      %885 = vmatprep.subr.mxu0 0.0
      %886 = vmatpush1.msra.mxu0 %v549
      %887 = vmatprep.subr.mxu0 0.0
      %888 = vmatpush1.msra.mxu0 0.0
      %889 = vmatprep.subr.mxu0 0.0
      %890 = vmatpush1.msra.mxu0 0.0
      %891 = vmatprep.subr.mxu0 0.0
      %892 = vmatpush1.msra.mxu0 0.0
      %893 = vmatprep.subr.mxu0 0.0
      %894 = vmatpush1.msra.mxu0 0.0
      %895 = vmatprep.subr.mxu0 0.0
      %896 = vmatpush1.msra.mxu0 0.0
      %897 = vmatprep.subr.mxu0 0.0
      %898 = vmatpush1.msra.mxu0 0.0
      %899 = vmatprep.subr.mxu0 0.0
      %900 = vmatpush1.msra.mxu0 0.0
      %901 = vmatprep.subr.mxu0 0.0
      %902 = vmatpush1.msra.mxu0 0.0
      %903 = vmatprep.subr.mxu0 0.0
      %904 = vmatpush1.msra.mxu0 0.0
      %905 = vmatprep.subr.mxu0 0.0
      %906 = vmatpush1.msra.mxu0 0.0
      %907 = vmatprep.subr.mxu0 0.0
      %908 = vmatpush1.msra.mxu0 0.0
      %909 = vmatprep.subr.mxu0 0.0
      %910 = vmatpush1.msra.mxu0 0.0
      %911 = vmatprep.subr.mxu0 0.0
      %912 = vmatpush1.msra.mxu0 0.0
      %913 = vmatprep.subr.mxu0 0.0
      %914 = vmatpush1.msra.mxu0 0.0
      %915 = vmatprep.subr.mxu0 0.0
      %916 = vmatpush1.msra.mxu0 0.0
      %917 = vmatprep.subr.mxu0 0.0
      %918 = vmatpush1.msra.mxu0 0.0
      %919 = vmatprep.subr.mxu0 0.0
      %920 = vmatpush1.msra.mxu0 0.0
      %921 = vmatprep.subr.mxu0 0.0
      %922 = vmatpush1.msra.mxu0 0.0
      %923 = vmatprep.subr.mxu0 0.0
      %924 = vmatpush1.msra.mxu0 0.0
      %925 = vmatprep.subr.mxu0 0.0
      %926 = vmatpush1.msra.mxu0 0.0
      %927 = vmatprep.subr.mxu0 0.0
      %928 = vmatpush1.msra.mxu0 0.0
      %929 = vmatprep.subr.mxu0 0.0
      %930 = vmatpush1.msra.mxu0 0.0
      %931 = vmatprep.subr.mxu0 0.0
      %932 = vmatpush1.msra.mxu0 0.0
      %933 = vmatprep.subr.mxu0 0.0
      %934 = vmatpush1.msra.mxu0 0.0
      %935 = vmatprep.subr.mxu0 0.0
      %936 = vmatpush1.msra.mxu0 0.0
      %937 = vmatprep.subr.mxu0 0.0
      %938 = vmatpush1.msra.mxu0 0.0
      %939 = vmatprep.subr.mxu0 0.0
      %940 = vmatpush1.msra.mxu0 0.0
      %941 = vmatprep.subr.mxu0 0.0
      %942 = vmatpush1.msra.mxu0 0.0
      %943 = vmatprep.subr.mxu0 0.0
      %944 = vmatpush1.msra.mxu0 0.0
      %945 = vmatprep.subr.mxu0 0.0
      %946 = vmatpush1.msra.mxu0 0.0
      %947 = vmatprep.mubr.f32.mxu0 0.0
      %948 = vmatmul.mubr.f32.gmra.mrb[0].mxu0 %v878
      %v949 = vpop.f32.mrb[0].mxu0
      %v950 = vadd.f32 0.0, %v949
      %v951 = vpop.f32.mrb[0].mxu0
      %952 = vmatprep.mubr.f32.mxu0 0.0
      %953 = vmatmul.mubr.f32.gmra.mrb[0].mxu0 %v881
      %v954 = vpop.f32.mrb[0].mxu0
      %v955 = vadd.f32 0.0, %v954
      %v956 = vpop.f32.mrb[0].mxu0
      %957 = vdwg.mxu0
      %v959 = vsel %vm714, %v688, 0
      %v962 = vsel %vm714, %v689, 0
      %964 = vmatprep.subr.mxu0 0.0
      %965 = vmatpush1.msra.mxu0 %v554
      %966 = vmatprep.subr.mxu0 0.0
      %967 = vmatpush1.msra.mxu0 %v559
      %968 = vmatprep.subr.mxu0 0.0
      %969 = vmatpush1.msra.mxu0 0.0
      %970 = vmatprep.subr.mxu0 0.0
      %971 = vmatpush1.msra.mxu0 0.0
      %972 = vmatprep.subr.mxu0 0.0
      %973 = vmatpush1.msra.mxu0 0.0
      %974 = vmatprep.subr.mxu0 0.0
      %975 = vmatpush1.msra.mxu0 0.0
      %976 = vmatprep.subr.mxu0 0.0
      %977 = vmatpush1.msra.mxu0 0.0
      %978 = vmatprep.subr.mxu0 0.0
      %979 = vmatpush1.msra.mxu0 0.0
      %980 = vmatprep.subr.mxu0 0.0
      %981 = vmatpush1.msra.mxu0 0.0
      %982 = vmatprep.subr.mxu0 0.0
      %983 = vmatpush1.msra.mxu0 0.0
      %984 = vmatprep.subr.mxu0 0.0
      %985 = vmatpush1.msra.mxu0 0.0
      %986 = vmatprep.subr.mxu0 0.0
      %987 = vmatpush1.msra.mxu0 0.0
      %988 = vmatprep.subr.mxu0 0.0
      %989 = vmatpush1.msra.mxu0 0.0
      %990 = vmatprep.subr.mxu0 0.0
      %991 = vmatpush1.msra.mxu0 0.0
      %992 = vmatprep.subr.mxu0 0.0
      %993 = vmatpush1.msra.mxu0 0.0
      %994 = vmatprep.subr.mxu0 0.0
      %995 = vmatpush1.msra.mxu0 0.0
      %996 = vmatprep.subr.mxu0 0.0
      %997 = vmatpush1.msra.mxu0 0.0
      %998 = vmatprep.subr.mxu0 0.0
      %999 = vmatpush1.msra.mxu0 0.0
      %1000 = vmatprep.subr.mxu0 0.0
      %1001 = vmatpush1.msra.mxu0 0.0
      %1002 = vmatprep.subr.mxu0 0.0
      %1003 = vmatpush1.msra.mxu0 0.0
      %1004 = vmatprep.subr.mxu0 0.0
      %1005 = vmatpush1.msra.mxu0 0.0
      %1006 = vmatprep.subr.mxu0 0.0
      %1007 = vmatpush1.msra.mxu0 0.0
      %1008 = vmatprep.subr.mxu0 0.0
      %1009 = vmatpush1.msra.mxu0 0.0
      %1010 = vmatprep.subr.mxu0 0.0
      %1011 = vmatpush1.msra.mxu0 0.0
      %1012 = vmatprep.subr.mxu0 0.0
      %1013 = vmatpush1.msra.mxu0 0.0
      %1014 = vmatprep.subr.mxu0 0.0
      %1015 = vmatpush1.msra.mxu0 0.0
      %1016 = vmatprep.subr.mxu0 0.0
      %1017 = vmatpush1.msra.mxu0 0.0
      %1018 = vmatprep.subr.mxu0 0.0
      %1019 = vmatpush1.msra.mxu0 0.0
      %1020 = vmatprep.subr.mxu0 0.0
      %1021 = vmatpush1.msra.mxu0 0.0
      %1022 = vmatprep.subr.mxu0 0.0
      %1023 = vmatpush1.msra.mxu0 0.0
      %1024 = vmatprep.subr.mxu0 0.0
      %1025 = vmatpush1.msra.mxu0 0.0
      %1026 = vmatprep.subr.mxu0 0.0
      %1027 = vmatpush1.msra.mxu0 0.0
      %1028 = vmatprep.mubr.f32.mxu0 0.0
      %1029 = vmatmul.mubr.f32.gmra.mrb[0].mxu0 %v959
      %v1030 = vpop.f32.mrb[0].mxu0
      %v1031 = vadd.f32 0.0, %v1030
      %v1032 = vpop.f32.mrb[0].mxu0
      %1033 = vmatprep.mubr.f32.mxu0 0.0
      %1034 = vmatmul.mubr.f32.gmra.mrb[0].mxu0 %v962
      %v1035 = vpop.f32.mrb[0].mxu0
      %v1036 = vadd.f32 0.0, %v1035
      %v1037 = vpop.f32.mrb[0].mxu0
      %1038 = vdwg.mxu0
      %v1040 = vsel %vm714, %v690, 0
      %v1043 = vsel %vm714, %v691, 0
      %1045 = vmatprep.subr.mxu0 0.0
      %1046 = vmatpush1.msra.mxu0 %v564
      %1047 = vmatprep.subr.mxu0 0.0
      %1048 = vmatpush1.msra.mxu0 %v569
      %1049 = vmatprep.subr.mxu0 0.0
      %1050 = vmatpush1.msra.mxu0 0.0
      %1051 = vmatprep.subr.mxu0 0.0
      %1052 = vmatpush1.msra.mxu0 0.0
      %1053 = vmatprep.subr.mxu0 0.0
      %1054 = vmatpush1.msra.mxu0 0.0
      %1055 = vmatprep.subr.mxu0 0.0
      %1056 = vmatpush1.msra.mxu0 0.0
      %1057 = vmatprep.subr.mxu0 0.0
      %1058 = vmatpush1.msra.mxu0 0.0
      %1059 = vmatprep.subr.mxu0 0.0
      %1060 = vmatpush1.msra.mxu0 0.0
      %1061 = vmatprep.subr.mxu0 0.0
      %1062 = vmatpush1.msra.mxu0 0.0
      %1063 = vmatprep.subr.mxu0 0.0
      %1064 = vmatpush1.msra.mxu0 0.0
      %1065 = vmatprep.subr.mxu0 0.0
      %1066 = vmatpush1.msra.mxu0 0.0
      %1067 = vmatprep.subr.mxu0 0.0
      %1068 = vmatpush1.msra.mxu0 0.0
      %1069 = vmatprep.subr.mxu0 0.0
      %1070 = vmatpush1.msra.mxu0 0.0
      %1071 = vmatprep.subr.mxu0 0.0
      %1072 = vmatpush1.msra.mxu0 0.0
      %1073 = vmatprep.subr.mxu0 0.0
      %1074 = vmatpush1.msra.mxu0 0.0
      %1075 = vmatprep.subr.mxu0 0.0
      %1076 = vmatpush1.msra.mxu0 0.0
      %1077 = vmatprep.subr.mxu0 0.0
      %1078 = vmatpush1.msra.mxu0 0.0
      %1079 = vmatprep.subr.mxu0 0.0
      %1080 = vmatpush1.msra.mxu0 0.0
      %1081 = vmatprep.subr.mxu0 0.0
      %1082 = vmatpush1.msra.mxu0 0.0
      %1083 = vmatprep.subr.mxu0 0.0
      %1084 = vmatpush1.msra.mxu0 0.0
      %1085 = vmatprep.subr.mxu0 0.0
      %1086 = vmatpush1.msra.mxu0 0.0
      %1087 = vmatprep.subr.mxu0 0.0
      %1088 = vmatpush1.msra.mxu0 0.0
      %1089 = vmatprep.subr.mxu0 0.0
      %1090 = vmatpush1.msra.mxu0 0.0
      %1091 = vmatprep.subr.mxu0 0.0
      %1092 = vmatpush1.msra.mxu0 0.0
      %1093 = vmatprep.subr.mxu0 0.0
      %1094 = vmatpush1.msra.mxu0 0.0
      %1095 = vmatprep.subr.mxu0 0.0
      %1096 = vmatpush1.msra.mxu0 0.0
      %1097 = vmatprep.subr.mxu0 0.0
      %1098 = vmatpush1.msra.mxu0 0.0
      %1099 = vmatprep.subr.mxu0 0.0
      %1100 = vmatpush1.msra.mxu0 0.0
      %1101 = vmatprep.subr.mxu0 0.0
      %1102 = vmatpush1.msra.mxu0 0.0
      %1103 = vmatprep.subr.mxu0 0.0
      %1104 = vmatpush1.msra.mxu0 0.0
      %1105 = vmatprep.subr.mxu0 0.0
      %1106 = vmatpush1.msra.mxu0 0.0
      %1107 = vmatprep.subr.mxu0 0.0
      %1108 = vmatpush1.msra.mxu0 0.0
      %1109 = vmatprep.mubr.f32.mxu0 0.0
      %1110 = vmatmul.mubr.f32.gmra.mrb[0].mxu0 %v1040
      %v1111 = vpop.f32.mrb[0].mxu0
      %v1112 = vadd.f32 0.0, %v1111
      %v1113 = vpop.f32.mrb[0].mxu0
      %1114 = vmatprep.mubr.f32.mxu0 0.0
      %1115 = vmatmul.mubr.f32.gmra.mrb[0].mxu0 %v1043
      %v1116 = vpop.f32.mrb[0].mxu0
      %v1117 = vadd.f32 0.0, %v1116
      %v1118 = vpop.f32.mrb[0].mxu0
      %1119 = vdwg.mxu0
      %v1121 = vsel %vm714, %v692, 0
      %v1124 = vsel %vm714, %v693, 0
      %1126 = vmatprep.subr.mxu0 0.0
      %1127 = vmatpush1.msra.mxu0 %v574
      %1128 = vmatprep.subr.mxu0 0.0
      %1129 = vmatpush1.msra.mxu0 %v579
      %1130 = vmatprep.subr.mxu0 0.0
      %1131 = vmatpush1.msra.mxu0 0.0
      %1132 = vmatprep.subr.mxu0 0.0
      %1133 = vmatpush1.msra.mxu0 0.0
      %1134 = vmatprep.subr.mxu0 0.0
      %1135 = vmatpush1.msra.mxu0 0.0
      %1136 = vmatprep.subr.mxu0 0.0
      %1137 = vmatpush1.msra.mxu0 0.0
      %1138 = vmatprep.subr.mxu0 0.0
      %1139 = vmatpush1.msra.mxu0 0.0
      %1140 = vmatprep.subr.mxu0 0.0
      %1141 = vmatpush1.msra.mxu0 0.0
      %1142 = vmatprep.subr.mxu0 0.0
      %1143 = vmatpush1.msra.mxu0 0.0
      %1144 = vmatprep.subr.mxu0 0.0
      %1145 = vmatpush1.msra.mxu0 0.0
      %1146 = vmatprep.subr.mxu0 0.0
      %1147 = vmatpush1.msra.mxu0 0.0
      %1148 = vmatprep.subr.mxu0 0.0
      %1149 = vmatpush1.msra.mxu0 0.0
      %1150 = vmatprep.subr.mxu0 0.0
      %1151 = vmatpush1.msra.mxu0 0.0
      %1152 = vmatprep.subr.mxu0 0.0
      %1153 = vmatpush1.msra.mxu0 0.0
      %1154 = vmatprep.subr.mxu0 0.0
      %1155 = vmatpush1.msra.mxu0 0.0
      %1156 = vmatprep.subr.mxu0 0.0
      %1157 = vmatpush1.msra.mxu0 0.0
      %1158 = vmatprep.subr.mxu0 0.0
      %1159 = vmatpush1.msra.mxu0 0.0
      %1160 = vmatprep.subr.mxu0 0.0
      %1161 = vmatpush1.msra.mxu0 0.0
      %1162 = vmatprep.subr.mxu0 0.0
      %1163 = vmatpush1.msra.mxu0 0.0
      %1164 = vmatprep.subr.mxu0 0.0
      %1165 = vmatpush1.msra.mxu0 0.0
      %1166 = vmatprep.subr.mxu0 0.0
      %1167 = vmatpush1.msra.mxu0 0.0
      %1168 = vmatprep.subr.mxu0 0.0
      %1169 = vmatpush1.msra.mxu0 0.0
      %1170 = vmatprep.subr.mxu0 0.0
      %1171 = vmatpush1.msra.mxu0 0.0
      %1172 = vmatprep.subr.mxu0 0.0
      %1173 = vmatpush1.msra.mxu0 0.0
      %1174 = vmatprep.subr.mxu0 0.0
      %1175 = vmatpush1.msra.mxu0 0.0
      %1176 = vmatprep.subr.mxu0 0.0
      %1177 = vmatpush1.msra.mxu0 0.0
      %1178 = vmatprep.subr.mxu0 0.0
      %1179 = vmatpush1.msra.mxu0 0.0
      %1180 = vmatprep.subr.mxu0 0.0
      %1181 = vmatpush1.msra.mxu0 0.0
      %1182 = vmatprep.subr.mxu0 0.0
      %1183 = vmatpush1.msra.mxu0 0.0
      %1184 = vmatprep.subr.mxu0 0.0
      %1185 = vmatpush1.msra.mxu0 0.0
      %1186 = vmatprep.subr.mxu0 0.0
      %1187 = vmatpush1.msra.mxu0 0.0
      %1188 = vmatprep.subr.mxu0 0.0
      %1189 = vmatpush1.msra.mxu0 0.0
      %1190 = vmatprep.mubr.f32.mxu0 0.0
      %1191 = vmatmul.mubr.f32.gmra.mrb[0].mxu0 %v1121
      %v1192 = vpop.f32.mrb[0].mxu0
      %v1193 = vadd.f32 0.0, %v1192
      %v1194 = vpop.f32.mrb[0].mxu0
      %1195 = vmatprep.mubr.f32.mxu0 0.0
      %1196 = vmatmul.mubr.f32.gmra.mrb[0].mxu0 %v1124
      %v1197 = vpop.f32.mrb[0].mxu0
      %v1198 = vadd.f32 0.0, %v1197
      %v1199 = vpop.f32.mrb[0].mxu0
      %1200 = vdwg.mxu0
      %v1202 = vsel %vm714, %v694, 0
      %v1205 = vsel %vm714, %v695, 0
      %1207 = vmatprep.subr.mxu0 0.0
      %1208 = vmatpush1.msra.mxu0 %v584
      %1209 = vmatprep.subr.mxu0 0.0
      %1210 = vmatpush1.msra.mxu0 %v589
      %1211 = vmatprep.subr.mxu0 0.0
      %1212 = vmatpush1.msra.mxu0 0.0
      %1213 = vmatprep.subr.mxu0 0.0
      %1214 = vmatpush1.msra.mxu0 0.0
      %1215 = vmatprep.subr.mxu0 0.0
      %1216 = vmatpush1.msra.mxu0 0.0
      %1217 = vmatprep.subr.mxu0 0.0
      %1218 = vmatpush1.msra.mxu0 0.0
      %1219 = vmatprep.subr.mxu0 0.0
      %1220 = vmatpush1.msra.mxu0 0.0
      %1221 = vmatprep.subr.mxu0 0.0
      %1222 = vmatpush1.msra.mxu0 0.0
      %1223 = vmatprep.subr.mxu0 0.0
      %1224 = vmatpush1.msra.mxu0 0.0
      %1225 = vmatprep.subr.mxu0 0.0
      %1226 = vmatpush1.msra.mxu0 0.0
      %1227 = vmatprep.subr.mxu0 0.0
      %1228 = vmatpush1.msra.mxu0 0.0
      %1229 = vmatprep.subr.mxu0 0.0
      %1230 = vmatpush1.msra.mxu0 0.0
      %1231 = vmatprep.subr.mxu0 0.0
      %1232 = vmatpush1.msra.mxu0 0.0
      %1233 = vmatprep.subr.mxu0 0.0
      %1234 = vmatpush1.msra.mxu0 0.0
      %1235 = vmatprep.subr.mxu0 0.0
      %1236 = vmatpush1.msra.mxu0 0.0
      %1237 = vmatprep.subr.mxu0 0.0
      %1238 = vmatpush1.msra.mxu0 0.0
      %1239 = vmatprep.subr.mxu0 0.0
      %1240 = vmatpush1.msra.mxu0 0.0
      %1241 = vmatprep.subr.mxu0 0.0
      %1242 = vmatpush1.msra.mxu0 0.0
      %1243 = vmatprep.subr.mxu0 0.0
      %1244 = vmatpush1.msra.mxu0 0.0
      %1245 = vmatprep.subr.mxu0 0.0
      %1246 = vmatpush1.msra.mxu0 0.0
      %1247 = vmatprep.subr.mxu0 0.0
      %1248 = vmatpush1.msra.mxu0 0.0
      %1249 = vmatprep.subr.mxu0 0.0
      %1250 = vmatpush1.msra.mxu0 0.0
      %1251 = vmatprep.subr.mxu0 0.0
      %1252 = vmatpush1.msra.mxu0 0.0
      %1253 = vmatprep.subr.mxu0 0.0
      %1254 = vmatpush1.msra.mxu0 0.0
      %1255 = vmatprep.subr.mxu0 0.0
      %1256 = vmatpush1.msra.mxu0 0.0
      %1257 = vmatprep.subr.mxu0 0.0
      %1258 = vmatpush1.msra.mxu0 0.0
      %1259 = vmatprep.subr.mxu0 0.0
      %1260 = vmatpush1.msra.mxu0 0.0
      %1261 = vmatprep.subr.mxu0 0.0
      %1262 = vmatpush1.msra.mxu0 0.0
      %1263 = vmatprep.subr.mxu0 0.0
      %1264 = vmatpush1.msra.mxu0 0.0
      %1265 = vmatprep.subr.mxu0 0.0
      %1266 = vmatpush1.msra.mxu0 0.0
      %1267 = vmatprep.subr.mxu0 0.0
      %1268 = vmatpush1.msra.mxu0 0.0
      %1269 = vmatprep.subr.mxu0 0.0
      %1270 = vmatpush1.msra.mxu0 0.0
      %1271 = vmatprep.mubr.f32.mxu0 0.0
      %1272 = vmatmul.mubr.f32.gmra.mrb[0].mxu0 %v1202
      %v1273 = vpop.f32.mrb[0].mxu0
      %v1274 = vadd.f32 0.0, %v1273
      %v1275 = vpop.f32.mrb[0].mxu0
      %1276 = vmatprep.mubr.f32.mxu0 0.0
      %1277 = vmatmul.mubr.f32.gmra.mrb[0].mxu0 %v1205
      %v1278 = vpop.f32.mrb[0].mxu0
      %v1279 = vadd.f32 0.0, %v1278
      %v1280 = vpop.f32.mrb[0].mxu0
      %1281 = vdwg.mxu0
      %v1283 = vsel %vm714, %v696, 0
      %v1286 = vsel %vm714, %v697, 0
      %1288 = vmatprep.subr.mxu0 0.0
      %1289 = vmatpush1.msra.mxu0 %v594
      %1290 = vmatprep.subr.mxu0 0.0
      %1291 = vmatpush1.msra.mxu0 %v599
      %1292 = vmatprep.subr.mxu0 0.0
      %1293 = vmatpush1.msra.mxu0 0.0
      %1294 = vmatprep.subr.mxu0 0.0
      %1295 = vmatpush1.msra.mxu0 0.0
      %1296 = vmatprep.subr.mxu0 0.0
      %1297 = vmatpush1.msra.mxu0 0.0
      %1298 = vmatprep.subr.mxu0 0.0
      %1299 = vmatpush1.msra.mxu0 0.0
      %1300 = vmatprep.subr.mxu0 0.0
      %1301 = vmatpush1.msra.mxu0 0.0
      %1302 = vmatprep.subr.mxu0 0.0
      %1303 = vmatpush1.msra.mxu0 0.0
      %1304 = vmatprep.subr.mxu0 0.0
      %1305 = vmatpush1.msra.mxu0 0.0
      %1306 = vmatprep.subr.mxu0 0.0
      %1307 = vmatpush1.msra.mxu0 0.0
      %1308 = vmatprep.subr.mxu0 0.0
      %1309 = vmatpush1.msra.mxu0 0.0
      %1310 = vmatprep.subr.mxu0 0.0
      %1311 = vmatpush1.msra.mxu0 0.0
      %1312 = vmatprep.subr.mxu0 0.0
      %1313 = vmatpush1.msra.mxu0 0.0
      %1314 = vmatprep.subr.mxu0 0.0
      %1315 = vmatpush1.msra.mxu0 0.0
      %1316 = vmatprep.subr.mxu0 0.0
      %1317 = vmatpush1.msra.mxu0 0.0
      %1318 = vmatprep.subr.mxu0 0.0
      %1319 = vmatpush1.msra.mxu0 0.0
      %1320 = vmatprep.subr.mxu0 0.0
      %1321 = vmatpush1.msra.mxu0 0.0
      %1322 = vmatprep.subr.mxu0 0.0
      %1323 = vmatpush1.msra.mxu0 0.0
      %1324 = vmatprep.subr.mxu0 0.0
      %1325 = vmatpush1.msra.mxu0 0.0
      %1326 = vmatprep.subr.mxu0 0.0
      %1327 = vmatpush1.msra.mxu0 0.0
      %1328 = vmatprep.subr.mxu0 0.0
      %1329 = vmatpush1.msra.mxu0 0.0
      %1330 = vmatprep.subr.mxu0 0.0
      %1331 = vmatpush1.msra.mxu0 0.0
      %1332 = vmatprep.subr.mxu0 0.0
      %1333 = vmatpush1.msra.mxu0 0.0
      %1334 = vmatprep.subr.mxu0 0.0
      %1335 = vmatpush1.msra.mxu0 0.0
      %1336 = vmatprep.subr.mxu0 0.0
      %1337 = vmatpush1.msra.mxu0 0.0
      %1338 = vmatprep.subr.mxu0 0.0
      %1339 = vmatpush1.msra.mxu0 0.0
      %1340 = vmatprep.subr.mxu0 0.0
      %1341 = vmatpush1.msra.mxu0 0.0
      %1342 = vmatprep.subr.mxu0 0.0
      %1343 = vmatpush1.msra.mxu0 0.0
      %1344 = vmatprep.subr.mxu0 0.0
      %1345 = vmatpush1.msra.mxu0 0.0
      %1346 = vmatprep.subr.mxu0 0.0
      %1347 = vmatpush1.msra.mxu0 0.0
      %1348 = vmatprep.subr.mxu0 0.0
      %1349 = vmatpush1.msra.mxu0 0.0
      %1350 = vmatprep.subr.mxu0 0.0
      %1351 = vmatpush1.msra.mxu0 0.0
      %1352 = vmatprep.mubr.f32.mxu0 0.0
      %1353 = vmatmul.mubr.f32.gmra.mrb[0].mxu0 %v1283
      %v1354 = vpop.f32.mrb[0].mxu0
      %v1355 = vadd.f32 0.0, %v1354
      %v1356 = vpop.f32.mrb[0].mxu0
      %1357 = vmatprep.mubr.f32.mxu0 0.0
      %1358 = vmatmul.mubr.f32.gmra.mrb[0].mxu0 %v1286
      %v1359 = vpop.f32.mrb[0].mxu0
      %v1360 = vadd.f32 0.0, %v1359
      %v1361 = vpop.f32.mrb[0].mxu0
      %1362 = vdwg.mxu0
      %v1364 = vsel %vm714, %v698, 0
      %v1367 = vsel %vm714, %v699, 0
      %1369 = vmatprep.subr.mxu0 0.0
      %1370 = vmatpush1.msra.mxu0 %v604
      %1371 = vmatprep.subr.mxu0 0.0
      %1372 = vmatpush1.msra.mxu0 %v609
      %1373 = vmatprep.subr.mxu0 0.0
      %1374 = vmatpush1.msra.mxu0 0.0
      %1375 = vmatprep.subr.mxu0 0.0
      %1376 = vmatpush1.msra.mxu0 0.0
      %1377 = vmatprep.subr.mxu0 0.0
      %1378 = vmatpush1.msra.mxu0 0.0
      %1379 = vmatprep.subr.mxu0 0.0
      %1380 = vmatpush1.msra.mxu0 0.0
      %1381 = vmatprep.subr.mxu0 0.0
      %1382 = vmatpush1.msra.mxu0 0.0
      %1383 = vmatprep.subr.mxu0 0.0
      %1384 = vmatpush1.msra.mxu0 0.0
      %1385 = vmatprep.subr.mxu0 0.0
      %1386 = vmatpush1.msra.mxu0 0.0
      %1387 = vmatprep.subr.mxu0 0.0
      %1388 = vmatpush1.msra.mxu0 0.0
      %1389 = vmatprep.subr.mxu0 0.0
      %1390 = vmatpush1.msra.mxu0 0.0
      %1391 = vmatprep.subr.mxu0 0.0
      %1392 = vmatpush1.msra.mxu0 0.0
      %1393 = vmatprep.subr.mxu0 0.0
      %1394 = vmatpush1.msra.mxu0 0.0
      %1395 = vmatprep.subr.mxu0 0.0
      %1396 = vmatpush1.msra.mxu0 0.0
      %1397 = vmatprep.subr.mxu0 0.0
      %1398 = vmatpush1.msra.mxu0 0.0
      %1399 = vmatprep.subr.mxu0 0.0
      %1400 = vmatpush1.msra.mxu0 0.0
      %1401 = vmatprep.subr.mxu0 0.0
      %1402 = vmatpush1.msra.mxu0 0.0
      %1403 = vmatprep.subr.mxu0 0.0
      %1404 = vmatpush1.msra.mxu0 0.0
      %1405 = vmatprep.subr.mxu0 0.0
      %1406 = vmatpush1.msra.mxu0 0.0
      %1407 = vmatprep.subr.mxu0 0.0
      %1408 = vmatpush1.msra.mxu0 0.0
      %1409 = vmatprep.subr.mxu0 0.0
      %1410 = vmatpush1.msra.mxu0 0.0
      %1411 = vmatprep.subr.mxu0 0.0
      %1412 = vmatpush1.msra.mxu0 0.0
      %1413 = vmatprep.subr.mxu0 0.0
      %1414 = vmatpush1.msra.mxu0 0.0
      %1415 = vmatprep.subr.mxu0 0.0
      %1416 = vmatpush1.msra.mxu0 0.0
      %1417 = vmatprep.subr.mxu0 0.0
      %1418 = vmatpush1.msra.mxu0 0.0
      %1419 = vmatprep.subr.mxu0 0.0
      %1420 = vmatpush1.msra.mxu0 0.0
      %1421 = vmatprep.subr.mxu0 0.0
      %1422 = vmatpush1.msra.mxu0 0.0
      %1423 = vmatprep.subr.mxu0 0.0
      %1424 = vmatpush1.msra.mxu0 0.0
      %1425 = vmatprep.subr.mxu0 0.0
      %1426 = vmatpush1.msra.mxu0 0.0
      %1427 = vmatprep.subr.mxu0 0.0
      %1428 = vmatpush1.msra.mxu0 0.0
      %1429 = vmatprep.subr.mxu0 0.0
      %1430 = vmatpush1.msra.mxu0 0.0
      %1431 = vmatprep.subr.mxu0 0.0
      %1432 = vmatpush1.msra.mxu0 0.0
      %1433 = vmatprep.mubr.f32.mxu0 0.0
      %1434 = vmatmul.mubr.f32.gmra.mrb[0].mxu0 %v1364
      %v1435 = vpop.f32.mrb[0].mxu0
      %v1436 = vadd.f32 0.0, %v1435
      %v1437 = vpop.f32.mrb[0].mxu0
      %1438 = vmatprep.mubr.f32.mxu0 0.0
      %1439 = vmatmul.mubr.f32.gmra.mrb[0].mxu0 %v1367
      %v1440 = vpop.f32.mrb[0].mxu0
      %v1441 = vadd.f32 0.0, %v1440
      %v1442 = vpop.f32.mrb[0].mxu0
      %1443 = vdwg.mxu0
      %v1445 = vsel %vm714, %v700, 0
      %v1448 = vsel %vm714, %v701, 0
      %1450 = vmatprep.subr.mxu0 0.0
      %1451 = vmatpush1.msra.mxu0 %v614
      %1452 = vmatprep.subr.mxu0 0.0
      %1453 = vmatpush1.msra.mxu0 %v619
      %1454 = vmatprep.subr.mxu0 0.0
      %1455 = vmatpush1.msra.mxu0 0.0
      %1456 = vmatprep.subr.mxu0 0.0
      %1457 = vmatpush1.msra.mxu0 0.0
      %1458 = vmatprep.subr.mxu0 0.0
      %1459 = vmatpush1.msra.mxu0 0.0
      %1460 = vmatprep.subr.mxu0 0.0
      %1461 = vmatpush1.msra.mxu0 0.0
      %1462 = vmatprep.subr.mxu0 0.0
      %1463 = vmatpush1.msra.mxu0 0.0
      %1464 = vmatprep.subr.mxu0 0.0
      %1465 = vmatpush1.msra.mxu0 0.0
      %1466 = vmatprep.subr.mxu0 0.0
      %1467 = vmatpush1.msra.mxu0 0.0
      %1468 = vmatprep.subr.mxu0 0.0
      %1469 = vmatpush1.msra.mxu0 0.0
      %1470 = vmatprep.subr.mxu0 0.0
      %1471 = vmatpush1.msra.mxu0 0.0
      %1472 = vmatprep.subr.mxu0 0.0
      %1473 = vmatpush1.msra.mxu0 0.0
      %1474 = vmatprep.subr.mxu0 0.0
      %1475 = vmatpush1.msra.mxu0 0.0
      %1476 = vmatprep.subr.mxu0 0.0
      %1477 = vmatpush1.msra.mxu0 0.0
      %1478 = vmatprep.subr.mxu0 0.0
      %1479 = vmatpush1.msra.mxu0 0.0
      %1480 = vmatprep.subr.mxu0 0.0
      %1481 = vmatpush1.msra.mxu0 0.0
      %1482 = vmatprep.subr.mxu0 0.0
      %1483 = vmatpush1.msra.mxu0 0.0
      %1484 = vmatprep.subr.mxu0 0.0
      %1485 = vmatpush1.msra.mxu0 0.0
      %1486 = vmatprep.subr.mxu0 0.0
      %1487 = vmatpush1.msra.mxu0 0.0
      %1488 = vmatprep.subr.mxu0 0.0
      %1489 = vmatpush1.msra.mxu0 0.0
      %1490 = vmatprep.subr.mxu0 0.0
      %1491 = vmatpush1.msra.mxu0 0.0
      %1492 = vmatprep.subr.mxu0 0.0
      %1493 = vmatpush1.msra.mxu0 0.0
      %1494 = vmatprep.subr.mxu0 0.0
      %1495 = vmatpush1.msra.mxu0 0.0
      %1496 = vmatprep.subr.mxu0 0.0
      %1497 = vmatpush1.msra.mxu0 0.0
      %1498 = vmatprep.subr.mxu0 0.0
      %1499 = vmatpush1.msra.mxu0 0.0
      %1500 = vmatprep.subr.mxu0 0.0
      %1501 = vmatpush1.msra.mxu0 0.0
      %1502 = vmatprep.subr.mxu0 0.0
      %1503 = vmatpush1.msra.mxu0 0.0
      %1504 = vmatprep.subr.mxu0 0.0
      %1505 = vmatpush1.msra.mxu0 0.0
      %1506 = vmatprep.subr.mxu0 0.0
      %1507 = vmatpush1.msra.mxu0 0.0
      %1508 = vmatprep.subr.mxu0 0.0
      %1509 = vmatpush1.msra.mxu0 0.0
      %1510 = vmatprep.subr.mxu0 0.0
      %1511 = vmatpush1.msra.mxu0 0.0
      %1512 = vmatprep.subr.mxu0 0.0
      %1513 = vmatpush1.msra.mxu0 0.0
      %1514 = vmatprep.mubr.f32.mxu0 0.0
      %1515 = vmatmul.mubr.f32.gmra.mrb[0].mxu0 %v1445
      %v1516 = vpop.f32.mrb[0].mxu0
      %v1517 = vadd.f32 0.0, %v1516
      %v1518 = vpop.f32.mrb[0].mxu0
      %1519 = vmatprep.mubr.f32.mxu0 0.0
      %1520 = vmatmul.mubr.f32.gmra.mrb[0].mxu0 %v1448
      %v1521 = vpop.f32.mrb[0].mxu0
      %v1522 = vadd.f32 0.0, %v1521
      %v1523 = vpop.f32.mrb[0].mxu0
      %1524 = vdwg.mxu0
      %v1526 = vsel %vm714, %v702, 0
      %v1529 = vsel %vm714, %v703, 0
      %1531 = vmatprep.subr.mxu0 0.0
      %1532 = vmatpush1.msra.mxu0 %v624
      %1533 = vmatprep.subr.mxu0 0.0
      %1534 = vmatpush1.msra.mxu0 %v629
      %1535 = vmatprep.subr.mxu0 0.0
      %1536 = vmatpush1.msra.mxu0 0.0
      %1537 = vmatprep.subr.mxu0 0.0
      %1538 = vmatpush1.msra.mxu0 0.0
      %1539 = vmatprep.subr.mxu0 0.0
      %1540 = vmatpush1.msra.mxu0 0.0
      %1541 = vmatprep.subr.mxu0 0.0
      %1542 = vmatpush1.msra.mxu0 0.0
      %1543 = vmatprep.subr.mxu0 0.0
      %1544 = vmatpush1.msra.mxu0 0.0
      %1545 = vmatprep.subr.mxu0 0.0
      %1546 = vmatpush1.msra.mxu0 0.0
      %1547 = vmatprep.subr.mxu0 0.0
      %1548 = vmatpush1.msra.mxu0 0.0
      %1549 = vmatprep.subr.mxu0 0.0
      %1550 = vmatpush1.msra.mxu0 0.0
      %1551 = vmatprep.subr.mxu0 0.0
      %1552 = vmatpush1.msra.mxu0 0.0
      %1553 = vmatprep.subr.mxu0 0.0
      %1554 = vmatpush1.msra.mxu0 0.0
      %1555 = vmatprep.subr.mxu0 0.0
      %1556 = vmatpush1.msra.mxu0 0.0
      %1557 = vmatprep.subr.mxu0 0.0
      %1558 = vmatpush1.msra.mxu0 0.0
      %1559 = vmatprep.subr.mxu0 0.0
      %1560 = vmatpush1.msra.mxu0 0.0
      %1561 = vmatprep.subr.mxu0 0.0
      %1562 = vmatpush1.msra.mxu0 0.0
      %1563 = vmatprep.subr.mxu0 0.0
      %1564 = vmatpush1.msra.mxu0 0.0
      %1565 = vmatprep.subr.mxu0 0.0
      %1566 = vmatpush1.msra.mxu0 0.0
      %1567 = vmatprep.subr.mxu0 0.0
      %1568 = vmatpush1.msra.mxu0 0.0
      %1569 = vmatprep.subr.mxu0 0.0
      %1570 = vmatpush1.msra.mxu0 0.0
      %1571 = vmatprep.subr.mxu0 0.0
      %1572 = vmatpush1.msra.mxu0 0.0
      %1573 = vmatprep.subr.mxu0 0.0
      %1574 = vmatpush1.msra.mxu0 0.0
      %1575 = vmatprep.subr.mxu0 0.0
      %1576 = vmatpush1.msra.mxu0 0.0
      %1577 = vmatprep.subr.mxu0 0.0
      %1578 = vmatpush1.msra.mxu0 0.0
      %1579 = vmatprep.subr.mxu0 0.0
      %1580 = vmatpush1.msra.mxu0 0.0
      %1581 = vmatprep.subr.mxu0 0.0
      %1582 = vmatpush1.msra.mxu0 0.0
      %1583 = vmatprep.subr.mxu0 0.0
      %1584 = vmatpush1.msra.mxu0 0.0
      %1585 = vmatprep.subr.mxu0 0.0
      %1586 = vmatpush1.msra.mxu0 0.0
      %1587 = vmatprep.subr.mxu0 0.0
      %1588 = vmatpush1.msra.mxu0 0.0
      %1589 = vmatprep.subr.mxu0 0.0
      %1590 = vmatpush1.msra.mxu0 0.0
      %1591 = vmatprep.subr.mxu0 0.0
      %1592 = vmatpush1.msra.mxu0 0.0
      %1593 = vmatprep.subr.mxu0 0.0
      %1594 = vmatpush1.msra.mxu0 0.0
      %1595 = vmatprep.mubr.f32.mxu0 0.0
      %1596 = vmatmul.mubr.f32.gmra.mrb[0].mxu0 %v1526
      %v1597 = vpop.f32.mrb[0].mxu0
      %v1598 = vadd.f32 0.0, %v1597
      %v1599 = vpop.f32.mrb[0].mxu0
      %1600 = vmatprep.mubr.f32.mxu0 0.0
      %1601 = vmatmul.mubr.f32.gmra.mrb[0].mxu0 %v1529
      %v1602 = vpop.f32.mrb[0].mxu0
      %v1603 = vadd.f32 0.0, %v1602
      %v1604 = vpop.f32.mrb[0].mxu0
      %1605 = vdwg.mxu0
      %v1607 = vsel %vm714, %v704, 0
      %v1610 = vsel %vm714, %v705, 0
      %1612 = vmatprep.subr.mxu0 0.0
      %1613 = vmatpush1.msra.mxu0 %v634
      %1614 = vmatprep.subr.mxu0 0.0
      %1615 = vmatpush1.msra.mxu0 %v639
      %1616 = vmatprep.subr.mxu0 0.0
      %1617 = vmatpush1.msra.mxu0 0.0
      %1618 = vmatprep.subr.mxu0 0.0
      %1619 = vmatpush1.msra.mxu0 0.0
      %1620 = vmatprep.subr.mxu0 0.0
      %1621 = vmatpush1.msra.mxu0 0.0
      %1622 = vmatprep.subr.mxu0 0.0
      %1623 = vmatpush1.msra.mxu0 0.0
      %1624 = vmatprep.subr.mxu0 0.0
      %1625 = vmatpush1.msra.mxu0 0.0
      %1626 = vmatprep.subr.mxu0 0.0
      %1627 = vmatpush1.msra.mxu0 0.0
      %1628 = vmatprep.subr.mxu0 0.0
      %1629 = vmatpush1.msra.mxu0 0.0
      %1630 = vmatprep.subr.mxu0 0.0
      %1631 = vmatpush1.msra.mxu0 0.0
      %1632 = vmatprep.subr.mxu0 0.0
      %1633 = vmatpush1.msra.mxu0 0.0
      %1634 = vmatprep.subr.mxu0 0.0
      %1635 = vmatpush1.msra.mxu0 0.0
      %1636 = vmatprep.subr.mxu0 0.0
      %1637 = vmatpush1.msra.mxu0 0.0
      %1638 = vmatprep.subr.mxu0 0.0
      %1639 = vmatpush1.msra.mxu0 0.0
      %1640 = vmatprep.subr.mxu0 0.0
      %1641 = vmatpush1.msra.mxu0 0.0
      %1642 = vmatprep.subr.mxu0 0.0
      %1643 = vmatpush1.msra.mxu0 0.0
      %1644 = vmatprep.subr.mxu0 0.0
      %1645 = vmatpush1.msra.mxu0 0.0
      %1646 = vmatprep.subr.mxu0 0.0
      %1647 = vmatpush1.msra.mxu0 0.0
      %1648 = vmatprep.subr.mxu0 0.0
      %1649 = vmatpush1.msra.mxu0 0.0
      %1650 = vmatprep.subr.mxu0 0.0
      %1651 = vmatpush1.msra.mxu0 0.0
      %1652 = vmatprep.subr.mxu0 0.0
      %1653 = vmatpush1.msra.mxu0 0.0
      %1654 = vmatprep.subr.mxu0 0.0
      %1655 = vmatpush1.msra.mxu0 0.0
      %1656 = vmatprep.subr.mxu0 0.0
      %1657 = vmatpush1.msra.mxu0 0.0
      %1658 = vmatprep.subr.mxu0 0.0
      %1659 = vmatpush1.msra.mxu0 0.0
      %1660 = vmatprep.subr.mxu0 0.0
      %1661 = vmatpush1.msra.mxu0 0.0
      %1662 = vmatprep.subr.mxu0 0.0
      %1663 = vmatpush1.msra.mxu0 0.0
      %1664 = vmatprep.subr.mxu0 0.0
      %1665 = vmatpush1.msra.mxu0 0.0
      %1666 = vmatprep.subr.mxu0 0.0
      %1667 = vmatpush1.msra.mxu0 0.0
      %1668 = vmatprep.subr.mxu0 0.0
      %1669 = vmatpush1.msra.mxu0 0.0
      %1670 = vmatprep.subr.mxu0 0.0
      %1671 = vmatpush1.msra.mxu0 0.0
      %1672 = vmatprep.subr.mxu0 0.0
      %1673 = vmatpush1.msra.mxu0 0.0
      %1674 = vmatprep.subr.mxu0 0.0
      %1675 = vmatpush1.msra.mxu0 0.0
      %1676 = vmatprep.mubr.f32.mxu0 0.0
      %1677 = vmatmul.mubr.f32.gmra.mrb[0].mxu0 %v1607
      %v1678 = vpop.f32.mrb[0].mxu0
      %v1679 = vadd.f32 0.0, %v1678
      %v1680 = vpop.f32.mrb[0].mxu0
      %1681 = vmatprep.mubr.f32.mxu0 0.0
      %1682 = vmatmul.mubr.f32.gmra.mrb[0].mxu0 %v1610
      %v1683 = vpop.f32.mrb[0].mxu0
      %v1684 = vadd.f32 0.0, %v1683
      %v1685 = vpop.f32.mrb[0].mxu0
      %1686 = vdwg.mxu0
      %v1688 = vsel %vm714, %v706, 0
      %v1691 = vsel %vm714, %v707, 0
      %1693 = vmatprep.subr.mxu0 0.0
      %1694 = vmatpush1.msra.mxu0 %v644
      %1695 = vmatprep.subr.mxu0 0.0
      %1696 = vmatpush1.msra.mxu0 %v649
      %1697 = vmatprep.subr.mxu0 0.0
      %1698 = vmatpush1.msra.mxu0 0.0
      %1699 = vmatprep.subr.mxu0 0.0
      %1700 = vmatpush1.msra.mxu0 0.0
      %1701 = vmatprep.subr.mxu0 0.0
      %1702 = vmatpush1.msra.mxu0 0.0
      %1703 = vmatprep.subr.mxu0 0.0
      %1704 = vmatpush1.msra.mxu0 0.0
      %1705 = vmatprep.subr.mxu0 0.0
      %1706 = vmatpush1.msra.mxu0 0.0
      %1707 = vmatprep.subr.mxu0 0.0
      %1708 = vmatpush1.msra.mxu0 0.0
      %1709 = vmatprep.subr.mxu0 0.0
      %1710 = vmatpush1.msra.mxu0 0.0
      %1711 = vmatprep.subr.mxu0 0.0
      %1712 = vmatpush1.msra.mxu0 0.0
      %1713 = vmatprep.subr.mxu0 0.0
      %1714 = vmatpush1.msra.mxu0 0.0
      %1715 = vmatprep.subr.mxu0 0.0
      %1716 = vmatpush1.msra.mxu0 0.0
      %1717 = vmatprep.subr.mxu0 0.0
      %1718 = vmatpush1.msra.mxu0 0.0
      %1719 = vmatprep.subr.mxu0 0.0
      %1720 = vmatpush1.msra.mxu0 0.0
      %1721 = vmatprep.subr.mxu0 0.0
      %1722 = vmatpush1.msra.mxu0 0.0
      %1723 = vmatprep.subr.mxu0 0.0
      %1724 = vmatpush1.msra.mxu0 0.0
      %1725 = vmatprep.subr.mxu0 0.0
      %1726 = vmatpush1.msra.mxu0 0.0
      %1727 = vmatprep.subr.mxu0 0.0
      %1728 = vmatpush1.msra.mxu0 0.0
      %1729 = vmatprep.subr.mxu0 0.0
      %1730 = vmatpush1.msra.mxu0 0.0
      %1731 = vmatprep.subr.mxu0 0.0
      %1732 = vmatpush1.msra.mxu0 0.0
      %1733 = vmatprep.subr.mxu0 0.0
      %1734 = vmatpush1.msra.mxu0 0.0
      %1735 = vmatprep.subr.mxu0 0.0
      %1736 = vmatpush1.msra.mxu0 0.0
      %1737 = vmatprep.subr.mxu0 0.0
      %1738 = vmatpush1.msra.mxu0 0.0
      %1739 = vmatprep.subr.mxu0 0.0
      %1740 = vmatpush1.msra.mxu0 0.0
      %1741 = vmatprep.subr.mxu0 0.0
      %1742 = vmatpush1.msra.mxu0 0.0
      %1743 = vmatprep.subr.mxu0 0.0
      %1744 = vmatpush1.msra.mxu0 0.0
      %1745 = vmatprep.subr.mxu0 0.0
      %1746 = vmatpush1.msra.mxu0 0.0
      %1747 = vmatprep.subr.mxu0 0.0
      %1748 = vmatpush1.msra.mxu0 0.0
      %1749 = vmatprep.subr.mxu0 0.0
      %1750 = vmatpush1.msra.mxu0 0.0
      %1751 = vmatprep.subr.mxu0 0.0
      %1752 = vmatpush1.msra.mxu0 0.0
      %1753 = vmatprep.subr.mxu0 0.0
      %1754 = vmatpush1.msra.mxu0 0.0
      %1755 = vmatprep.subr.mxu0 0.0
      %1756 = vmatpush1.msra.mxu0 0.0
      %1757 = vmatprep.mubr.f32.mxu0 0.0
      %1758 = vmatmul.mubr.f32.gmra.mrb[0].mxu0 %v1688
      %v1759 = vpop.f32.mrb[0].mxu0
      %v1760 = vadd.f32 0.0, %v1759
      %v1761 = vpop.f32.mrb[0].mxu0
      %1762 = vmatprep.mubr.f32.mxu0 0.0
      %1763 = vmatmul.mubr.f32.gmra.mrb[0].mxu0 %v1691
      %v1764 = vpop.f32.mrb[0].mxu0
      %v1765 = vadd.f32 0.0, %v1764
      %v1766 = vpop.f32.mrb[0].mxu0
      %1767 = vdwg.mxu0
      %v1769 = vsel %vm714, %v708, 0
      %v1772 = vsel %vm714, %v709, 0
      %1774 = vmatprep.subr.mxu0 0.0
      %1775 = vmatpush1.msra.mxu0 %v654
      %1776 = vmatprep.subr.mxu0 0.0
      %1777 = vmatpush1.msra.mxu0 %v659
      %1778 = vmatprep.subr.mxu0 0.0
      %1779 = vmatpush1.msra.mxu0 0.0
      %1780 = vmatprep.subr.mxu0 0.0
      %1781 = vmatpush1.msra.mxu0 0.0
      %1782 = vmatprep.subr.mxu0 0.0
      %1783 = vmatpush1.msra.mxu0 0.0
      %1784 = vmatprep.subr.mxu0 0.0
      %1785 = vmatpush1.msra.mxu0 0.0
      %1786 = vmatprep.subr.mxu0 0.0
      %1787 = vmatpush1.msra.mxu0 0.0
      %1788 = vmatprep.subr.mxu0 0.0
      %1789 = vmatpush1.msra.mxu0 0.0
      %1790 = vmatprep.subr.mxu0 0.0
      %1791 = vmatpush1.msra.mxu0 0.0
      %1792 = vmatprep.subr.mxu0 0.0
      %1793 = vmatpush1.msra.mxu0 0.0
      %1794 = vmatprep.subr.mxu0 0.0
      %1795 = vmatpush1.msra.mxu0 0.0
      %1796 = vmatprep.subr.mxu0 0.0
      %1797 = vmatpush1.msra.mxu0 0.0
      %1798 = vmatprep.subr.mxu0 0.0
      %1799 = vmatpush1.msra.mxu0 0.0
      %1800 = vmatprep.subr.mxu0 0.0
      %1801 = vmatpush1.msra.mxu0 0.0
      %1802 = vmatprep.subr.mxu0 0.0
      %1803 = vmatpush1.msra.mxu0 0.0
      %1804 = vmatprep.subr.mxu0 0.0
      %1805 = vmatpush1.msra.mxu0 0.0
      %1806 = vmatprep.subr.mxu0 0.0
      %1807 = vmatpush1.msra.mxu0 0.0
      %1808 = vmatprep.subr.mxu0 0.0
      %1809 = vmatpush1.msra.mxu0 0.0
      %1810 = vmatprep.subr.mxu0 0.0
      %1811 = vmatpush1.msra.mxu0 0.0
      %1812 = vmatprep.subr.mxu0 0.0
      %1813 = vmatpush1.msra.mxu0 0.0
      %1814 = vmatprep.subr.mxu0 0.0
      %1815 = vmatpush1.msra.mxu0 0.0
      %1816 = vmatprep.subr.mxu0 0.0
      %1817 = vmatpush1.msra.mxu0 0.0
      %1818 = vmatprep.subr.mxu0 0.0
      %1819 = vmatpush1.msra.mxu0 0.0
      %1820 = vmatprep.subr.mxu0 0.0
      %1821 = vmatpush1.msra.mxu0 0.0
      %1822 = vmatprep.subr.mxu0 0.0
      %1823 = vmatpush1.msra.mxu0 0.0
      %1824 = vmatprep.subr.mxu0 0.0
      %1825 = vmatpush1.msra.mxu0 0.0
      %1826 = vmatprep.subr.mxu0 0.0
      %1827 = vmatpush1.msra.mxu0 0.0
      %1828 = vmatprep.subr.mxu0 0.0
      %1829 = vmatpush1.msra.mxu0 0.0
      %1830 = vmatprep.subr.mxu0 0.0
      %1831 = vmatpush1.msra.mxu0 0.0
      %1832 = vmatprep.subr.mxu0 0.0
      %1833 = vmatpush1.msra.mxu0 0.0
      %1834 = vmatprep.subr.mxu0 0.0
      %1835 = vmatpush1.msra.mxu0 0.0
      %1836 = vmatprep.subr.mxu0 0.0
      %1837 = vmatpush1.msra.mxu0 0.0
      %1838 = vmatprep.mubr.f32.mxu0 0.0
      %1839 = vmatmul.mubr.f32.gmra.mrb[0].mxu0 %v1769
      %v1840 = vpop.f32.mrb[0].mxu0
      %v1841 = vadd.f32 0.0, %v1840
      %v1842 = vpop.f32.mrb[0].mxu0
      %1843 = vmatprep.mubr.f32.mxu0 0.0
      %1844 = vmatmul.mubr.f32.gmra.mrb[0].mxu0 %v1772
      %v1845 = vpop.f32.mrb[0].mxu0
      %v1846 = vadd.f32 0.0, %v1845
      %v1847 = vpop.f32.mrb[0].mxu0
      %1848 = vdwg.mxu0
      %v1850 = vsel %vm714, %v710, 0
      %v1853 = vsel %vm714, %v711, 0
      %1855 = vmatprep.subr.mxu0 0.0
      %1856 = vmatpush1.msra.mxu0 %v664
      %1857 = vmatprep.subr.mxu0 0.0
      %1858 = vmatpush1.msra.mxu0 %v669
      %1859 = vmatprep.subr.mxu0 0.0
      %1860 = vmatpush1.msra.mxu0 0.0
      %1861 = vmatprep.subr.mxu0 0.0
      %1862 = vmatpush1.msra.mxu0 0.0
      %1863 = vmatprep.subr.mxu0 0.0
      %1864 = vmatpush1.msra.mxu0 0.0
      %1865 = vmatprep.subr.mxu0 0.0
      %1866 = vmatpush1.msra.mxu0 0.0
      %1867 = vmatprep.subr.mxu0 0.0
      %1868 = vmatpush1.msra.mxu0 0.0
      %1869 = vmatprep.subr.mxu0 0.0
      %1870 = vmatpush1.msra.mxu0 0.0
      %1871 = vmatprep.subr.mxu0 0.0
      %1872 = vmatpush1.msra.mxu0 0.0
      %1873 = vmatprep.subr.mxu0 0.0
      %1874 = vmatpush1.msra.mxu0 0.0
      %1875 = vmatprep.subr.mxu0 0.0
      %1876 = vmatpush1.msra.mxu0 0.0
      %1877 = vmatprep.subr.mxu0 0.0
      %1878 = vmatpush1.msra.mxu0 0.0
      %1879 = vmatprep.subr.mxu0 0.0
      %1880 = vmatpush1.msra.mxu0 0.0
      %1881 = vmatprep.subr.mxu0 0.0
      %1882 = vmatpush1.msra.mxu0 0.0
      %1883 = vmatprep.subr.mxu0 0.0
      %1884 = vmatpush1.msra.mxu0 0.0
      %1885 = vmatprep.subr.mxu0 0.0
      %1886 = vmatpush1.msra.mxu0 0.0
      %1887 = vmatprep.subr.mxu0 0.0
      %1888 = vmatpush1.msra.mxu0 0.0
      %1889 = vmatprep.subr.mxu0 0.0
      %1890 = vmatpush1.msra.mxu0 0.0
      %1891 = vmatprep.subr.mxu0 0.0
      %1892 = vmatpush1.msra.mxu0 0.0
      %1893 = vmatprep.subr.mxu0 0.0
      %1894 = vmatpush1.msra.mxu0 0.0
      %1895 = vmatprep.subr.mxu0 0.0
      %1896 = vmatpush1.msra.mxu0 0.0
      %1897 = vmatprep.subr.mxu0 0.0
      %1898 = vmatpush1.msra.mxu0 0.0
      %1899 = vmatprep.subr.mxu0 0.0
      %1900 = vmatpush1.msra.mxu0 0.0
      %1901 = vmatprep.subr.mxu0 0.0
      %1902 = vmatpush1.msra.mxu0 0.0
      %1903 = vmatprep.subr.mxu0 0.0
      %1904 = vmatpush1.msra.mxu0 0.0
      %1905 = vmatprep.subr.mxu0 0.0
      %1906 = vmatpush1.msra.mxu0 0.0
      %1907 = vmatprep.subr.mxu0 0.0
      %1908 = vmatpush1.msra.mxu0 0.0
      %1909 = vmatprep.subr.mxu0 0.0
      %1910 = vmatpush1.msra.mxu0 0.0
      %1911 = vmatprep.subr.mxu0 0.0
      %1912 = vmatpush1.msra.mxu0 0.0
      %1913 = vmatprep.subr.mxu0 0.0
      %1914 = vmatpush1.msra.mxu0 0.0
      %1915 = vmatprep.subr.mxu0 0.0
      %1916 = vmatpush1.msra.mxu0 0.0
      %1917 = vmatprep.subr.mxu0 0.0
      %1918 = vmatpush1.msra.mxu0 0.0
      %1919 = vmatprep.mubr.f32.mxu0 0.0
      %1920 = vmatmul.mubr.f32.gmra.mrb[0].mxu0 %v1850
      %v1921 = vpop.f32.mrb[0].mxu0
      %v1922 = vadd.f32 0.0, %v1921
      %v1923 = vpop.f32.mrb[0].mxu0
      %1924 = vmatprep.mubr.f32.mxu0 0.0
      %1925 = vmatmul.mubr.f32.gmra.mrb[0].mxu0 %v1853
      %v1926 = vpop.f32.mrb[0].mxu0
      %v1927 = vadd.f32 0.0, %v1926
      %v1928 = vpop.f32.mrb[0].mxu0
      %1929 = vdwg.mxu0
      %v1931 = vsel %vm714, %v712, 0
      %v1934 = vsel %vm714, %v713, 0
      %1936 = vmatprep.subr.mxu0 0.0
      %1937 = vmatpush1.msra.mxu0 %v674
      %1938 = vmatprep.subr.mxu0 0.0
      %1939 = vmatpush1.msra.mxu0 %v679
      %1940 = vmatprep.subr.mxu0 0.0
      %1941 = vmatpush1.msra.mxu0 0.0
      %1942 = vmatprep.subr.mxu0 0.0
      %1943 = vmatpush1.msra.mxu0 0.0
      %1944 = vmatprep.subr.mxu0 0.0
      %1945 = vmatpush1.msra.mxu0 0.0
      %1946 = vmatprep.subr.mxu0 0.0
      %1947 = vmatpush1.msra.mxu0 0.0
      %1948 = vmatprep.subr.mxu0 0.0
      %1949 = vmatpush1.msra.mxu0 0.0
      %1950 = vmatprep.subr.mxu0 0.0
      %1951 = vmatpush1.msra.mxu0 0.0
      %1952 = vmatprep.subr.mxu0 0.0
      %1953 = vmatpush1.msra.mxu0 0.0
      %1954 = vmatprep.subr.mxu0 0.0
      %1955 = vmatpush1.msra.mxu0 0.0
      %1956 = vmatprep.subr.mxu0 0.0
      %1957 = vmatpush1.msra.mxu0 0.0
      %1958 = vmatprep.subr.mxu0 0.0
      %1959 = vmatpush1.msra.mxu0 0.0
      %1960 = vmatprep.subr.mxu0 0.0
      %1961 = vmatpush1.msra.mxu0 0.0
      %1962 = vmatprep.subr.mxu0 0.0
      %1963 = vmatpush1.msra.mxu0 0.0
      %1964 = vmatprep.subr.mxu0 0.0
      %1965 = vmatpush1.msra.mxu0 0.0
      %1966 = vmatprep.subr.mxu0 0.0
      %1967 = vmatpush1.msra.mxu0 0.0
      %1968 = vmatprep.subr.mxu0 0.0
      %1969 = vmatpush1.msra.mxu0 0.0
      %1970 = vmatprep.subr.mxu0 0.0
      %1971 = vmatpush1.msra.mxu0 0.0
      %1972 = vmatprep.subr.mxu0 0.0
      %1973 = vmatpush1.msra.mxu0 0.0
      %1974 = vmatprep.subr.mxu0 0.0
      %1975 = vmatpush1.msra.mxu0 0.0
      %1976 = vmatprep.subr.mxu0 0.0
      %1977 = vmatpush1.msra.mxu0 0.0
      %1978 = vmatprep.subr.mxu0 0.0
      %1979 = vmatpush1.msra.mxu0 0.0
      %1980 = vmatprep.subr.mxu0 0.0
      %1981 = vmatpush1.msra.mxu0 0.0
      %1982 = vmatprep.subr.mxu0 0.0
      %1983 = vmatpush1.msra.mxu0 0.0
      %1984 = vmatprep.subr.mxu0 0.0
      %1985 = vmatpush1.msra.mxu0 0.0
      %1986 = vmatprep.subr.mxu0 0.0
      %1987 = vmatpush1.msra.mxu0 0.0
      %1988 = vmatprep.subr.mxu0 0.0
      %1989 = vmatpush1.msra.mxu0 0.0
      %1990 = vmatprep.subr.mxu0 0.0
      %1991 = vmatpush1.msra.mxu0 0.0
      %1992 = vmatprep.subr.mxu0 0.0
      %1993 = vmatpush1.msra.mxu0 0.0
      %1994 = vmatprep.subr.mxu0 0.0
      %1995 = vmatpush1.msra.mxu0 0.0
      %1996 = vmatprep.subr.mxu0 0.0
      %1997 = vmatpush1.msra.mxu0 0.0
      %1998 = vmatprep.subr.mxu0 0.0
      %1999 = vmatpush1.msra.mxu0 0.0
      %2000 = vmatprep.mubr.f32.mxu0 0.0
      %2001 = vmatmul.mubr.f32.gmra.mrb[0].mxu0 %v1931
      %v2002 = vpop.f32.mrb[0].mxu0
      %v2003 = vadd.f32 0.0, %v2002
      %v2004 = vpop.f32.mrb[0].mxu0
      %2005 = vmatprep.mubr.f32.mxu0 0.0
      %2006 = vmatmul.mubr.f32.gmra.mrb[0].mxu0 %v1934
      %v2007 = vpop.f32.mrb[0].mxu0
      %v2008 = vadd.f32 0.0, %v2007
      %v2009 = vpop.f32.mrb[0].mxu0
      %2010 = vdwg.mxu0
      %v2011 = vlaneseq
      %v2012 = vshrl.u32 %v2011, 7
      %v2013 = vsub.s32 0, %v2012
      %v2014 = vrot.slane %v355, %v2013
      %v2015 = vadd.f32 %v788, %v2014
      %v2016 = vadd.f32 %v793, %v2014
      %v2017 = vadd.f32 %v869, %v2014
      %v2018 = vadd.f32 %v874, %v2014
      %v2019 = vadd.f32 %v950, %v2014
      %v2020 = vadd.f32 %v955, %v2014
      %v2021 = vadd.f32 %v1031, %v2014
      %v2022 = vadd.f32 %v1036, %v2014
      %v2023 = vadd.f32 %v1112, %v2014
      %v2024 = vadd.f32 %v1117, %v2014
      %v2025 = vadd.f32 %v1193, %v2014
      %v2026 = vadd.f32 %v1198, %v2014
      %v2027 = vadd.f32 %v1274, %v2014
      %v2028 = vadd.f32 %v1279, %v2014
      %v2029 = vadd.f32 %v1355, %v2014
      %v2030 = vadd.f32 %v1360, %v2014
      %v2031 = vadd.f32 %v1436, %v2014
      %v2032 = vadd.f32 %v1441, %v2014
      %v2033 = vadd.f32 %v1517, %v2014
      %v2034 = vadd.f32 %v1522, %v2014
      %v2035 = vadd.f32 %v1598, %v2014
      %v2036 = vadd.f32 %v1603, %v2014
      %v2037 = vadd.f32 %v1679, %v2014
      %v2038 = vadd.f32 %v1684, %v2014
      %v2039 = vadd.f32 %v1760, %v2014
      %v2040 = vadd.f32 %v1765, %v2014
      %v2041 = vadd.f32 %v1841, %v2014
      %v2042 = vadd.f32 %v1846, %v2014
      %v2043 = vadd.f32 %v1922, %v2014
      %v2044 = vadd.f32 %v1927, %v2014
      %v2045 = vadd.f32 %v2003, %v2014
      %v2046 = vadd.f32 %v2008, %v2014
      %v2047 = vmax.f32 %v2015, 0.0
      %v2048 = vmax.f32 %v2016, 0.0
      %v2049 = vmax.f32 %v2017, 0.0
      %v2050 = vmax.f32 %v2018, 0.0
      %v2051 = vmax.f32 %v2019, 0.0
      %v2052 = vmax.f32 %v2020, 0.0
      %v2053 = vmax.f32 %v2021, 0.0
      %v2054 = vmax.f32 %v2022, 0.0
      %v2055 = vmax.f32 %v2023, 0.0
      %v2056 = vmax.f32 %v2024, 0.0
      %v2057 = vmax.f32 %v2025, 0.0
      %v2058 = vmax.f32 %v2026, 0.0
      %v2059 = vmax.f32 %v2027, 0.0
      %v2060 = vmax.f32 %v2028, 0.0
      %v2061 = vmax.f32 %v2029, 0.0
      %v2062 = vmax.f32 %v2030, 0.0
      %v2063 = vmax.f32 %v2031, 0.0
      %v2064 = vmax.f32 %v2032, 0.0
      %v2065 = vmax.f32 %v2033, 0.0
      %v2066 = vmax.f32 %v2034, 0.0
      %v2067 = vmax.f32 %v2035, 0.0
      %v2068 = vmax.f32 %v2036, 0.0
      %v2069 = vmax.f32 %v2037, 0.0
      %v2070 = vmax.f32 %v2038, 0.0
      %v2071 = vmax.f32 %v2039, 0.0
      %v2072 = vmax.f32 %v2040, 0.0
      %v2073 = vmax.f32 %v2041, 0.0
      %v2074 = vmax.f32 %v2042, 0.0
      %v2075 = vmax.f32 %v2043, 0.0
      %v2076 = vmax.f32 %v2044, 0.0
      %v2077 = vmax.f32 %v2045, 0.0
      %v2078 = vmax.f32 %v2046, 0.0
      %v2079 = vld [vmem:[%s4] sm:$0xff]
      %v2080 = vld [vmem:[%s4 + $0x8] sm:$0xff]
      %v2081 = vld [vmem:[%s4 + $0x10] sm:$0xff]
      %v2082 = vld [vmem:[%s4 + $0x18] sm:$0xff]
      %v2083 = vld [vmem:[%s4 + $0x20] sm:$0x1]
      %v2084 = vlaneseq
      %v2085 = vshrl.u32 %v2084, 7
      %v2086 = vsub.s32 0, %v2085
      %v2087 = vrot.slane %v2083, %v2086
      %vm2088 = vcmask 261120
      %v2090 = vsel %vm2088, %v2047, 0
      %v2093 = vsel %vm2088, %v2048, 0
      %v2096 = vsel %vm2088, %v2049, 0
      %v2099 = vsel %vm2088, %v2050, 0
      %v2102 = vsel %vm2088, %v2051, 0
      %v2105 = vsel %vm2088, %v2052, 0
      %v2108 = vsel %vm2088, %v2053, 0
      %v2111 = vsel %vm2088, %v2054, 0
      %v2114 = vsel %vm2088, %v2055, 0
      %v2117 = vsel %vm2088, %v2056, 0
      %v2120 = vsel %vm2088, %v2057, 0
      %v2123 = vsel %vm2088, %v2058, 0
      %v2126 = vsel %vm2088, %v2059, 0
      %v2129 = vsel %vm2088, %v2060, 0
      %v2132 = vsel %vm2088, %v2061, 0
      %v2135 = vsel %vm2088, %v2062, 0
      %v2138 = vsel %vm2088, %v2063, 0
      %v2141 = vsel %vm2088, %v2064, 0
      %v2144 = vsel %vm2088, %v2065, 0
      %v2147 = vsel %vm2088, %v2066, 0
      %v2150 = vsel %vm2088, %v2067, 0
      %v2153 = vsel %vm2088, %v2068, 0
      %v2156 = vsel %vm2088, %v2069, 0
      %v2159 = vsel %vm2088, %v2070, 0
      %v2162 = vsel %vm2088, %v2071, 0
      %v2165 = vsel %vm2088, %v2072, 0
      %v2168 = vsel %vm2088, %v2073, 0
      %v2171 = vsel %vm2088, %v2074, 0
      %v2174 = vsel %vm2088, %v2075, 0
      %v2177 = vsel %vm2088, %v2076, 0
      %v2180 = vsel %vm2088, %v2077, 0
      %v2183 = vsel %vm2088, %v2078, 0
      %2185 = vmatprep.subr.mxu0 0.0
      %2186 = vmatpush1.msra.mxu0 %v2079
      %2187 = vmatprep.subr.mxu0 0.0
      %2188 = vmatpush1.msra.mxu0 %v2080
      %2189 = vmatprep.subr.mxu0 0.0
      %2190 = vmatpush1.msra.mxu0 %v2081
      %2191 = vmatprep.subr.mxu0 0.0
      %2192 = vmatpush1.msra.mxu0 %v2082
      %2193 = vmatprep.subr.mxu0 0.0
      %2194 = vmatpush1.msra.mxu0 0.0
      %2195 = vmatprep.subr.mxu0 0.0
      %2196 = vmatpush1.msra.mxu0 0.0
      %2197 = vmatprep.subr.mxu0 0.0
      %2198 = vmatpush1.msra.mxu0 0.0
      %2199 = vmatprep.subr.mxu0 0.0
      %2200 = vmatpush1.msra.mxu0 0.0
      %2201 = vmatprep.subr.mxu0 0.0
      %2202 = vmatpush1.msra.mxu0 0.0
      %2203 = vmatprep.subr.mxu0 0.0
      %2204 = vmatpush1.msra.mxu0 0.0
      %2205 = vmatprep.subr.mxu0 0.0
      %2206 = vmatpush1.msra.mxu0 0.0
      %2207 = vmatprep.subr.mxu0 0.0
      %2208 = vmatpush1.msra.mxu0 0.0
      %2209 = vmatprep.subr.mxu0 0.0
      %2210 = vmatpush1.msra.mxu0 0.0
      %2211 = vmatprep.subr.mxu0 0.0
      %2212 = vmatpush1.msra.mxu0 0.0
      %2213 = vmatprep.subr.mxu0 0.0
      %2214 = vmatpush1.msra.mxu0 0.0
      %2215 = vmatprep.subr.mxu0 0.0
      %2216 = vmatpush1.msra.mxu0 0.0
      %2217 = vmatprep.subr.mxu0 0.0
      %2218 = vmatpush1.msra.mxu0 0.0
      %2219 = vmatprep.subr.mxu0 0.0
      %2220 = vmatpush1.msra.mxu0 0.0
      %2221 = vmatprep.subr.mxu0 0.0
      %2222 = vmatpush1.msra.mxu0 0.0
      %2223 = vmatprep.subr.mxu0 0.0
      %2224 = vmatpush1.msra.mxu0 0.0
      %2225 = vmatprep.subr.mxu0 0.0
      %2226 = vmatpush1.msra.mxu0 0.0
      %2227 = vmatprep.subr.mxu0 0.0
      %2228 = vmatpush1.msra.mxu0 0.0
      %2229 = vmatprep.subr.mxu0 0.0
      %2230 = vmatpush1.msra.mxu0 0.0
      %2231 = vmatprep.subr.mxu0 0.0
      %2232 = vmatpush1.msra.mxu0 0.0
      %2233 = vmatprep.subr.mxu0 0.0
      %2234 = vmatpush1.msra.mxu0 0.0
      %2235 = vmatprep.subr.mxu0 0.0
      %2236 = vmatpush1.msra.mxu0 0.0
      %2237 = vmatprep.subr.mxu0 0.0
      %2238 = vmatpush1.msra.mxu0 0.0
      %2239 = vmatprep.subr.mxu0 0.0
      %2240 = vmatpush1.msra.mxu0 0.0
      %2241 = vmatprep.subr.mxu0 0.0
      %2242 = vmatpush1.msra.mxu0 0.0
      %2243 = vmatprep.subr.mxu0 0.0
      %2244 = vmatpush1.msra.mxu0 0.0
      %2245 = vmatprep.subr.mxu0 0.0
      %2246 = vmatpush1.msra.mxu0 0.0
      %2247 = vmatprep.subr.mxu0 0.0
      %2248 = vmatpush1.msra.mxu0 0.0
      %2249 = vmatprep.mubr.f32.mxu0 0.0
      %2250 = vmatmul.mubr.f32.gmra.mrb[0].mxu0 %v2090
      %v2251 = vpop.f32.mrb[0].mxu0
      %v2252 = vadd.f32 %v2087, %v2251
      %v2253 = vpop.f32.mrb[0].mxu0
      %2254 = vmatprep.mubr.f32.mxu0 0.0
      %2255 = vmatmul.mubr.f32.gmra.mrb[0].mxu0 %v2093
      %v2256 = vpop.f32.mrb[0].mxu0
      %v2257 = vadd.f32 %v2087, %v2256
      %v2258 = vpop.f32.mrb[0].mxu0
      %2259 = vmatprep.mubr.f32.mxu0 0.0
      %2260 = vmatmul.mubr.f32.gmra.mrb[0].mxu0 %v2096
      %v2261 = vpop.f32.mrb[0].mxu0
      %v2262 = vadd.f32 %v2087, %v2261
      %v2263 = vpop.f32.mrb[0].mxu0
      %2264 = vmatprep.mubr.f32.mxu0 0.0
      %2265 = vmatmul.mubr.f32.gmra.mrb[0].mxu0 %v2099
      %v2266 = vpop.f32.mrb[0].mxu0
      %v2267 = vadd.f32 %v2087, %v2266
      %v2268 = vpop.f32.mrb[0].mxu0
      %2269 = vmatprep.mubr.f32.mxu0 0.0
      %2270 = vmatmul.mubr.f32.gmra.mrb[0].mxu0 %v2102
      %v2271 = vpop.f32.mrb[0].mxu0
      %v2272 = vadd.f32 %v2087, %v2271
      %v2273 = vpop.f32.mrb[0].mxu0
      %2274 = vmatprep.mubr.f32.mxu0 0.0
      %2275 = vmatmul.mubr.f32.gmra.mrb[0].mxu0 %v2105
      %v2276 = vpop.f32.mrb[0].mxu0
      %v2277 = vadd.f32 %v2087, %v2276
      %v2278 = vpop.f32.mrb[0].mxu0
      %2279 = vmatprep.mubr.f32.mxu0 0.0
      %2280 = vmatmul.mubr.f32.gmra.mrb[0].mxu0 %v2108
      %v2281 = vpop.f32.mrb[0].mxu0
      %v2282 = vadd.f32 %v2087, %v2281
      %v2283 = vpop.f32.mrb[0].mxu0
      %2284 = vmatprep.mubr.f32.mxu0 0.0
      %2285 = vmatmul.mubr.f32.gmra.mrb[0].mxu0 %v2111
      %v2286 = vpop.f32.mrb[0].mxu0
      %v2287 = vadd.f32 %v2087, %v2286
      %v2288 = vpop.f32.mrb[0].mxu0
      %2289 = vmatprep.mubr.f32.mxu0 0.0
      %2290 = vmatmul.mubr.f32.gmra.mrb[0].mxu0 %v2114
      %v2291 = vpop.f32.mrb[0].mxu0
      %v2292 = vadd.f32 %v2087, %v2291
      %v2293 = vpop.f32.mrb[0].mxu0
      %2294 = vmatprep.mubr.f32.mxu0 0.0
      %2295 = vmatmul.mubr.f32.gmra.mrb[0].mxu0 %v2117
      %v2296 = vpop.f32.mrb[0].mxu0
      %v2297 = vadd.f32 %v2087, %v2296
      %v2298 = vpop.f32.mrb[0].mxu0
      %2299 = vmatprep.mubr.f32.mxu0 0.0
      %2300 = vmatmul.mubr.f32.gmra.mrb[0].mxu0 %v2120
      %v2301 = vpop.f32.mrb[0].mxu0
      %v2302 = vadd.f32 %v2087, %v2301
      %v2303 = vpop.f32.mrb[0].mxu0
      %2304 = vmatprep.mubr.f32.mxu0 0.0
      %2305 = vmatmul.mubr.f32.gmra.mrb[0].mxu0 %v2123
      %v2306 = vpop.f32.mrb[0].mxu0
      %v2307 = vadd.f32 %v2087, %v2306
      %v2308 = vpop.f32.mrb[0].mxu0
      %2309 = vmatprep.mubr.f32.mxu0 0.0
      %2310 = vmatmul.mubr.f32.gmra.mrb[0].mxu0 %v2126
      %v2311 = vpop.f32.mrb[0].mxu0
      %v2312 = vadd.f32 %v2087, %v2311
      %v2313 = vpop.f32.mrb[0].mxu0
      %2314 = vmatprep.mubr.f32.mxu0 0.0
      %2315 = vmatmul.mubr.f32.gmra.mrb[0].mxu0 %v2129
      %v2316 = vpop.f32.mrb[0].mxu0
      %v2317 = vadd.f32 %v2087, %v2316
      %v2318 = vpop.f32.mrb[0].mxu0
      %2319 = vmatprep.mubr.f32.mxu0 0.0
      %2320 = vmatmul.mubr.f32.gmra.mrb[0].mxu0 %v2132
      %v2321 = vpop.f32.mrb[0].mxu0
      %v2322 = vadd.f32 %v2087, %v2321
      %v2323 = vpop.f32.mrb[0].mxu0
      %2324 = vmatprep.mubr.f32.mxu0 0.0
      %2325 = vmatmul.mubr.f32.gmra.mrb[0].mxu0 %v2135
      %v2326 = vpop.f32.mrb[0].mxu0
      %v2327 = vadd.f32 %v2087, %v2326
      %v2328 = vpop.f32.mrb[0].mxu0
      %2329 = vmatprep.mubr.f32.mxu0 0.0
      %2330 = vmatmul.mubr.f32.gmra.mrb[0].mxu0 %v2138
      %v2331 = vpop.f32.mrb[0].mxu0
      %v2332 = vadd.f32 %v2087, %v2331
      %v2333 = vpop.f32.mrb[0].mxu0
      %2334 = vmatprep.mubr.f32.mxu0 0.0
      %2335 = vmatmul.mubr.f32.gmra.mrb[0].mxu0 %v2141
      %v2336 = vpop.f32.mrb[0].mxu0
      %v2337 = vadd.f32 %v2087, %v2336
      %v2338 = vpop.f32.mrb[0].mxu0
      %2339 = vmatprep.mubr.f32.mxu0 0.0
      %2340 = vmatmul.mubr.f32.gmra.mrb[0].mxu0 %v2144
      %v2341 = vpop.f32.mrb[0].mxu0
      %v2342 = vadd.f32 %v2087, %v2341
      %v2343 = vpop.f32.mrb[0].mxu0
      %2344 = vmatprep.mubr.f32.mxu0 0.0
      %2345 = vmatmul.mubr.f32.gmra.mrb[0].mxu0 %v2147
      %v2346 = vpop.f32.mrb[0].mxu0
      %v2347 = vadd.f32 %v2087, %v2346
      %v2348 = vpop.f32.mrb[0].mxu0
      %2349 = vmatprep.mubr.f32.mxu0 0.0
      %2350 = vmatmul.mubr.f32.gmra.mrb[0].mxu0 %v2150
      %v2351 = vpop.f32.mrb[0].mxu0
      %v2352 = vadd.f32 %v2087, %v2351
      %v2353 = vpop.f32.mrb[0].mxu0
      %2354 = vmatprep.mubr.f32.mxu0 0.0
      %2355 = vmatmul.mubr.f32.gmra.mrb[0].mxu0 %v2153
      %v2356 = vpop.f32.mrb[0].mxu0
      %v2357 = vadd.f32 %v2087, %v2356
      %v2358 = vpop.f32.mrb[0].mxu0
      %2359 = vmatprep.mubr.f32.mxu0 0.0
      %2360 = vmatmul.mubr.f32.gmra.mrb[0].mxu0 %v2156
      %v2361 = vpop.f32.mrb[0].mxu0
      %v2362 = vadd.f32 %v2087, %v2361
      %v2363 = vpop.f32.mrb[0].mxu0
      %2364 = vmatprep.mubr.f32.mxu0 0.0
      %2365 = vmatmul.mubr.f32.gmra.mrb[0].mxu0 %v2159
      %v2366 = vpop.f32.mrb[0].mxu0
      %v2367 = vadd.f32 %v2087, %v2366
      %v2368 = vpop.f32.mrb[0].mxu0
      %2369 = vmatprep.mubr.f32.mxu0 0.0
      %2370 = vmatmul.mubr.f32.gmra.mrb[0].mxu0 %v2162
      %v2371 = vpop.f32.mrb[0].mxu0
      %v2372 = vadd.f32 %v2087, %v2371
      %v2373 = vpop.f32.mrb[0].mxu0
      %2374 = vmatprep.mubr.f32.mxu0 0.0
      %2375 = vmatmul.mubr.f32.gmra.mrb[0].mxu0 %v2165
      %v2376 = vpop.f32.mrb[0].mxu0
      %v2377 = vadd.f32 %v2087, %v2376
      %v2378 = vpop.f32.mrb[0].mxu0
      %2379 = vmatprep.mubr.f32.mxu0 0.0
      %2380 = vmatmul.mubr.f32.gmra.mrb[0].mxu0 %v2168
      %v2381 = vpop.f32.mrb[0].mxu0
      %v2382 = vadd.f32 %v2087, %v2381
      %v2383 = vpop.f32.mrb[0].mxu0
      %2384 = vmatprep.mubr.f32.mxu0 0.0
      %2385 = vmatmul.mubr.f32.gmra.mrb[0].mxu0 %v2171
      %v2386 = vpop.f32.mrb[0].mxu0
      %v2387 = vadd.f32 %v2087, %v2386
      %v2388 = vpop.f32.mrb[0].mxu0
      %2389 = vmatprep.mubr.f32.mxu0 0.0
      %2390 = vmatmul.mubr.f32.gmra.mrb[0].mxu0 %v2174
      %v2391 = vpop.f32.mrb[0].mxu0
      %v2392 = vadd.f32 %v2087, %v2391
      %v2393 = vpop.f32.mrb[0].mxu0
      %2394 = vmatprep.mubr.f32.mxu0 0.0
      %2395 = vmatmul.mubr.f32.gmra.mrb[0].mxu0 %v2177
      %v2396 = vpop.f32.mrb[0].mxu0
      %v2397 = vadd.f32 %v2087, %v2396
      %v2398 = vpop.f32.mrb[0].mxu0
      %2399 = vmatprep.mubr.f32.mxu0 0.0
      %2400 = vmatmul.mubr.f32.gmra.mrb[0].mxu0 %v2180
      %v2401 = vpop.f32.mrb[0].mxu0
      %v2402 = vadd.f32 %v2087, %v2401
      %v2403 = vpop.f32.mrb[0].mxu0
      %2404 = vmatprep.mubr.f32.mxu0 0.0
      %2405 = vmatmul.mubr.f32.gmra.mrb[0].mxu0 %v2183
      %v2406 = vpop.f32.mrb[0].mxu0
      %v2407 = vadd.f32 %v2087, %v2406
      %v2408 = vpop.f32.mrb[0].mxu0
      %2409 = vdwg.mxu0
      %v2410 = vsel %vm714, %v2252, -inf
      %2411 = vmax.xlane.f32.xlu0 %v2410
      %v2412 = vpop.xlane.xlu0 %2411
      %v2413 = vsel %vm714, %v2257, -inf
      %2414 = vmax.xlane.f32.xlu0 %v2413
      %v2415 = vpop.xlane.xlu0 %2414
      %v2416 = vsel %vm714, %v2262, -inf
      %2417 = vmax.xlane.f32.xlu0 %v2416
      %v2418 = vpop.xlane.xlu0 %2417
      %v2419 = vsel %vm714, %v2267, -inf
      %2420 = vmax.xlane.f32.xlu0 %v2419
      %v2421 = vpop.xlane.xlu0 %2420
      %v2422 = vsel %vm714, %v2272, -inf
      %2423 = vmax.xlane.f32.xlu0 %v2422
      %v2424 = vpop.xlane.xlu0 %2423
      %v2425 = vsel %vm714, %v2277, -inf
      %2426 = vmax.xlane.f32.xlu0 %v2425
      %v2427 = vpop.xlane.xlu0 %2426
      %v2428 = vsel %vm714, %v2282, -inf
      %2429 = vmax.xlane.f32.xlu0 %v2428
      %v2430 = vpop.xlane.xlu0 %2429
      %v2431 = vsel %vm714, %v2287, -inf
      %2432 = vmax.xlane.f32.xlu0 %v2431
      %v2433 = vpop.xlane.xlu0 %2432
      %v2434 = vsel %vm714, %v2292, -inf
      %2435 = vmax.xlane.f32.xlu0 %v2434
      %v2436 = vpop.xlane.xlu0 %2435
      %v2437 = vsel %vm714, %v2297, -inf
      %2438 = vmax.xlane.f32.xlu0 %v2437
      %v2439 = vpop.xlane.xlu0 %2438
      %v2440 = vsel %vm714, %v2302, -inf
      %2441 = vmax.xlane.f32.xlu0 %v2440
      %v2442 = vpop.xlane.xlu0 %2441
      %v2443 = vsel %vm714, %v2307, -inf
      %2444 = vmax.xlane.f32.xlu0 %v2443
      %v2445 = vpop.xlane.xlu0 %2444
      %v2446 = vsel %vm714, %v2312, -inf
      %2447 = vmax.xlane.f32.xlu0 %v2446
      %v2448 = vpop.xlane.xlu0 %2447
      %v2449 = vsel %vm714, %v2317, -inf
      %2450 = vmax.xlane.f32.xlu0 %v2449
      %v2451 = vpop.xlane.xlu0 %2450
      %v2452 = vsel %vm714, %v2322, -inf
      %2453 = vmax.xlane.f32.xlu0 %v2452
      %v2454 = vpop.xlane.xlu0 %2453
      %v2455 = vsel %vm714, %v2327, -inf
      %2456 = vmax.xlane.f32.xlu0 %v2455
      %v2457 = vpop.xlane.xlu0 %2456
      %v2458 = vsel %vm714, %v2332, -inf
      %2459 = vmax.xlane.f32.xlu0 %v2458
      %v2460 = vpop.xlane.xlu0 %2459
      %v2461 = vsel %vm714, %v2337, -inf
      %2462 = vmax.xlane.f32.xlu0 %v2461
      %v2463 = vpop.xlane.xlu0 %2462
      %v2464 = vsel %vm714, %v2342, -inf
      %2465 = vmax.xlane.f32.xlu0 %v2464
      %v2466 = vpop.xlane.xlu0 %2465
      %v2467 = vsel %vm714, %v2347, -inf
      %2468 = vmax.xlane.f32.xlu0 %v2467
      %v2469 = vpop.xlane.xlu0 %2468
      %v2470 = vsel %vm714, %v2352, -inf
      %2471 = vmax.xlane.f32.xlu0 %v2470
      %v2472 = vpop.xlane.xlu0 %2471
      %v2473 = vsel %vm714, %v2357, -inf
      %2474 = vmax.xlane.f32.xlu0 %v2473
      %v2475 = vpop.xlane.xlu0 %2474
      %v2476 = vsel %vm714, %v2362, -inf
      %2477 = vmax.xlane.f32.xlu0 %v2476
      %v2478 = vpop.xlane.xlu0 %2477
      %v2479 = vsel %vm714, %v2367, -inf
      %2480 = vmax.xlane.f32.xlu0 %v2479
      %v2481 = vpop.xlane.xlu0 %2480
      %v2482 = vsel %vm714, %v2372, -inf
      %2483 = vmax.xlane.f32.xlu0 %v2482
      %v2484 = vpop.xlane.xlu0 %2483
      %v2485 = vsel %vm714, %v2377, -inf
      %2486 = vmax.xlane.f32.xlu0 %v2485
      %v2487 = vpop.xlane.xlu0 %2486
      %v2488 = vsel %vm714, %v2382, -inf
      %2489 = vmax.xlane.f32.xlu0 %v2488
      %v2490 = vpop.xlane.xlu0 %2489
      %v2491 = vsel %vm714, %v2387, -inf
      %2492 = vmax.xlane.f32.xlu0 %v2491
      %v2493 = vpop.xlane.xlu0 %2492
      %v2494 = vsel %vm714, %v2392, -inf
      %2495 = vmax.xlane.f32.xlu0 %v2494
      %v2496 = vpop.xlane.xlu0 %2495
      %v2497 = vsel %vm714, %v2397, -inf
      %2498 = vmax.xlane.f32.xlu0 %v2497
      %v2499 = vpop.xlane.xlu0 %2498
      %v2500 = vsel %vm714, %v2402, -inf
      %2501 = vmax.xlane.f32.xlu0 %v2500
      %v2502 = vpop.xlane.xlu0 %2501
      %v2503 = vsel %vm714, %v2407, -inf
      %2504 = vmax.xlane.f32.xlu0 %v2503
      %v2505 = vpop.xlane.xlu0 %2504
      %v2506 = vsub.f32 %v2252, %v2412
      %v2507 = vsub.f32 %v2257, %v2415
      %v2508 = vsub.f32 %v2262, %v2418
      %v2509 = vsub.f32 %v2267, %v2421
      %v2510 = vsub.f32 %v2272, %v2424
      %v2511 = vsub.f32 %v2277, %v2427
      %v2512 = vsub.f32 %v2282, %v2430
      %v2513 = vsub.f32 %v2287, %v2433
      %v2514 = vsub.f32 %v2292, %v2436
      %v2515 = vsub.f32 %v2297, %v2439
      %v2516 = vsub.f32 %v2302, %v2442
      %v2517 = vsub.f32 %v2307, %v2445
      %v2518 = vsub.f32 %v2312, %v2448
      %v2519 = vsub.f32 %v2317, %v2451
      %v2520 = vsub.f32 %v2322, %v2454
      %v2521 = vsub.f32 %v2327, %v2457
      %v2522 = vsub.f32 %v2332, %v2460
      %v2523 = vsub.f32 %v2337, %v2463
      %v2524 = vsub.f32 %v2342, %v2466
      %v2525 = vsub.f32 %v2347, %v2469
      %v2526 = vsub.f32 %v2352, %v2472
      %v2527 = vsub.f32 %v2357, %v2475
      %v2528 = vsub.f32 %v2362, %v2478
      %v2529 = vsub.f32 %v2367, %v2481
      %v2530 = vsub.f32 %v2372, %v2484
      %v2531 = vsub.f32 %v2377, %v2487
      %v2532 = vsub.f32 %v2382, %v2490
      %v2533 = vsub.f32 %v2387, %v2493
      %v2534 = vsub.f32 %v2392, %v2496
      %v2535 = vsub.f32 %v2397, %v2499
      %v2536 = vsub.f32 %v2402, %v2502
      %v2537 = vsub.f32 %v2407, %v2505
      %v2538 = vmul.f32 %v2506, 1.442695
      %v2539 = vpow.pop %v2538
      %v2540 = vmul.f32 %v2507, 1.442695
      %v2541 = vpow.pop %v2540
      %v2542 = vmul.f32 %v2508, 1.442695
      %v2543 = vpow.pop %v2542
      %v2544 = vmul.f32 %v2509, 1.442695
      %v2545 = vpow.pop %v2544
      %v2546 = vmul.f32 %v2510, 1.442695
      %v2547 = vpow.pop %v2546
      %v2548 = vmul.f32 %v2511, 1.442695
      %v2549 = vpow.pop %v2548
      %v2550 = vmul.f32 %v2512, 1.442695
      %v2551 = vpow.pop %v2550
      %v2552 = vmul.f32 %v2513, 1.442695
      %v2553 = vpow.pop %v2552
      %v2554 = vmul.f32 %v2514, 1.442695
      %v2555 = vpow.pop %v2554
      %v2556 = vmul.f32 %v2515, 1.442695
      %v2557 = vpow.pop %v2556
      %v2558 = vmul.f32 %v2516, 1.442695
      %v2559 = vpow.pop %v2558
      %v2560 = vmul.f32 %v2517, 1.442695
      %v2561 = vpow.pop %v2560
      %v2562 = vmul.f32 %v2518, 1.442695
      %v2563 = vpow.pop %v2562
      %v2564 = vmul.f32 %v2519, 1.442695
      %v2565 = vpow.pop %v2564
      %v2566 = vmul.f32 %v2520, 1.442695
      %v2567 = vpow.pop %v2566
      %v2568 = vmul.f32 %v2521, 1.442695
      %v2569 = vpow.pop %v2568
      %v2570 = vmul.f32 %v2522, 1.442695
      %v2571 = vpow.pop %v2570
      %v2572 = vmul.f32 %v2523, 1.442695
      %v2573 = vpow.pop %v2572
      %v2574 = vmul.f32 %v2524, 1.442695
      %v2575 = vpow.pop %v2574
      %v2576 = vmul.f32 %v2525, 1.442695
      %v2577 = vpow.pop %v2576
      %v2578 = vmul.f32 %v2526, 1.442695
      %v2579 = vpow.pop %v2578
      %v2580 = vmul.f32 %v2527, 1.442695
      %v2581 = vpow.pop %v2580
      %v2582 = vmul.f32 %v2528, 1.442695
      %v2583 = vpow.pop %v2582
      %v2584 = vmul.f32 %v2529, 1.442695
      %v2585 = vpow.pop %v2584
      %v2586 = vmul.f32 %v2530, 1.442695
      %v2587 = vpow.pop %v2586
      %v2588 = vmul.f32 %v2531, 1.442695
      %v2589 = vpow.pop %v2588
      %v2590 = vmul.f32 %v2532, 1.442695
      %v2591 = vpow.pop %v2590
      %v2592 = vmul.f32 %v2533, 1.442695
      %v2593 = vpow.pop %v2592
      %v2594 = vmul.f32 %v2534, 1.442695
      %v2595 = vpow.pop %v2594
      %v2596 = vmul.f32 %v2535, 1.442695
      %v2597 = vpow.pop %v2596
      %v2598 = vmul.f32 %v2536, 1.442695
      %v2599 = vpow.pop %v2598
      %v2600 = vmul.f32 %v2537, 1.442695
      %v2601 = vpow.pop %v2600
      %v2602 = vsel %vm714, %v2539, 0.0
      %2603 = vadd.xlane.f32.xlu0 %v2602
      %v2604 = vpop.xlane.xlu0 %2603
      %v2605 = vsel %vm714, %v2541, 0.0
      %2606 = vadd.xlane.f32.xlu0 %v2605
      %v2607 = vpop.xlane.xlu0 %2606
      %v2608 = vsel %vm714, %v2543, 0.0
      %2609 = vadd.xlane.f32.xlu0 %v2608
      %v2610 = vpop.xlane.xlu0 %2609
      %v2611 = vsel %vm714, %v2545, 0.0
      %2612 = vadd.xlane.f32.xlu0 %v2611
      %v2613 = vpop.xlane.xlu0 %2612
      %v2614 = vsel %vm714, %v2547, 0.0
      %2615 = vadd.xlane.f32.xlu0 %v2614
      %v2616 = vpop.xlane.xlu0 %2615
      %v2617 = vsel %vm714, %v2549, 0.0
      %2618 = vadd.xlane.f32.xlu0 %v2617
      %v2619 = vpop.xlane.xlu0 %2618
      %v2620 = vsel %vm714, %v2551, 0.0
      %2621 = vadd.xlane.f32.xlu0 %v2620
      %v2622 = vpop.xlane.xlu0 %2621
      %v2623 = vsel %vm714, %v2553, 0.0
      %2624 = vadd.xlane.f32.xlu0 %v2623
      %v2625 = vpop.xlane.xlu0 %2624
      %v2626 = vsel %vm714, %v2555, 0.0
      %2627 = vadd.xlane.f32.xlu0 %v2626
      %v2628 = vpop.xlane.xlu0 %2627
      %v2629 = vsel %vm714, %v2557, 0.0
      %2630 = vadd.xlane.f32.xlu0 %v2629
      %v2631 = vpop.xlane.xlu0 %2630
      %v2632 = vsel %vm714, %v2559, 0.0
      %2633 = vadd.xlane.f32.xlu0 %v2632
      %v2634 = vpop.xlane.xlu0 %2633
      %v2635 = vsel %vm714, %v2561, 0.0
      %2636 = vadd.xlane.f32.xlu0 %v2635
      %v2637 = vpop.xlane.xlu0 %2636
      %v2638 = vsel %vm714, %v2563, 0.0
      %2639 = vadd.xlane.f32.xlu0 %v2638
      %v2640 = vpop.xlane.xlu0 %2639
      %v2641 = vsel %vm714, %v2565, 0.0
      %2642 = vadd.xlane.f32.xlu0 %v2641
      %v2643 = vpop.xlane.xlu0 %2642
      %v2644 = vsel %vm714, %v2567, 0.0
      %2645 = vadd.xlane.f32.xlu0 %v2644
      %v2646 = vpop.xlane.xlu0 %2645
      %v2647 = vsel %vm714, %v2569, 0.0
      %2648 = vadd.xlane.f32.xlu0 %v2647
      %v2649 = vpop.xlane.xlu0 %2648
      %v2650 = vsel %vm714, %v2571, 0.0
      %2651 = vadd.xlane.f32.xlu0 %v2650
      %v2652 = vpop.xlane.xlu0 %2651
      %v2653 = vsel %vm714, %v2573, 0.0
      %2654 = vadd.xlane.f32.xlu0 %v2653
      %v2655 = vpop.xlane.xlu0 %2654
      %v2656 = vsel %vm714, %v2575, 0.0
      %2657 = vadd.xlane.f32.xlu0 %v2656
      %v2658 = vpop.xlane.xlu0 %2657
      %v2659 = vsel %vm714, %v2577, 0.0
      %2660 = vadd.xlane.f32.xlu0 %v2659
      %v2661 = vpop.xlane.xlu0 %2660
      %v2662 = vsel %vm714, %v2579, 0.0
      %2663 = vadd.xlane.f32.xlu0 %v2662
      %v2664 = vpop.xlane.xlu0 %2663
      %v2665 = vsel %vm714, %v2581, 0.0
      %2666 = vadd.xlane.f32.xlu0 %v2665
      %v2667 = vpop.xlane.xlu0 %2666
      %v2668 = vsel %vm714, %v2583, 0.0
      %2669 = vadd.xlane.f32.xlu0 %v2668
      %v2670 = vpop.xlane.xlu0 %2669
      %v2671 = vsel %vm714, %v2585, 0.0
      %2672 = vadd.xlane.f32.xlu0 %v2671
      %v2673 = vpop.xlane.xlu0 %2672
      %v2674 = vsel %vm714, %v2587, 0.0
      %2675 = vadd.xlane.f32.xlu0 %v2674
      %v2676 = vpop.xlane.xlu0 %2675
      %v2677 = vsel %vm714, %v2589, 0.0
      %2678 = vadd.xlane.f32.xlu0 %v2677
      %v2679 = vpop.xlane.xlu0 %2678
      %v2680 = vsel %vm714, %v2591, 0.0
      %2681 = vadd.xlane.f32.xlu0 %v2680
      %v2682 = vpop.xlane.xlu0 %2681
      %v2683 = vsel %vm714, %v2593, 0.0
      %2684 = vadd.xlane.f32.xlu0 %v2683
      %v2685 = vpop.xlane.xlu0 %2684
      %v2686 = vsel %vm714, %v2595, 0.0
      %2687 = vadd.xlane.f32.xlu0 %v2686
      %v2688 = vpop.xlane.xlu0 %2687
      %v2689 = vsel %vm714, %v2597, 0.0
      %2690 = vadd.xlane.f32.xlu0 %v2689
      %v2691 = vpop.xlane.xlu0 %2690
      %v2692 = vsel %vm714, %v2599, 0.0
      %2693 = vadd.xlane.f32.xlu0 %v2692
      %v2694 = vpop.xlane.xlu0 %2693
      %v2695 = vsel %vm714, %v2601, 0.0
      %2696 = vadd.xlane.f32.xlu0 %v2695
      %v2697 = vpop.xlane.xlu0 %2696
      %v2698 = vrcp.pop %v2604
      %v2699 = vrcp.pop %v2607
      %v2700 = vrcp.pop %v2610
      %v2701 = vrcp.pop %v2613
      %v2702 = vrcp.pop %v2616
      %v2703 = vrcp.pop %v2619
      %v2704 = vrcp.pop %v2622
      %v2705 = vrcp.pop %v2625
      %v2706 = vrcp.pop %v2628
      %v2707 = vrcp.pop %v2631
      %v2708 = vrcp.pop %v2634
      %v2709 = vrcp.pop %v2637
      %v2710 = vrcp.pop %v2640
      %v2711 = vrcp.pop %v2643
      %v2712 = vrcp.pop %v2646
      %v2713 = vrcp.pop %v2649
      %v2714 = vrcp.pop %v2652
      %v2715 = vrcp.pop %v2655
      %v2716 = vrcp.pop %v2658
      %v2717 = vrcp.pop %v2661
      %v2718 = vrcp.pop %v2664
      %v2719 = vrcp.pop %v2667
      %v2720 = vrcp.pop %v2670
      %v2721 = vrcp.pop %v2673
      %v2722 = vrcp.pop %v2676
      %v2723 = vrcp.pop %v2679
      %v2724 = vrcp.pop %v2682
      %v2725 = vrcp.pop %v2685
      %v2726 = vrcp.pop %v2688
      %v2727 = vrcp.pop %v2691
      %v2728 = vrcp.pop %v2694
      %v2729 = vrcp.pop %v2697
      %v2730 = vmul.f32 %v2539, %v2698
      %v2731 = vmul.f32 %v2541, %v2699
      %v2732 = vmul.f32 %v2543, %v2700
      %v2733 = vmul.f32 %v2545, %v2701
      %v2734 = vmul.f32 %v2547, %v2702
      %v2735 = vmul.f32 %v2549, %v2703
      %v2736 = vmul.f32 %v2551, %v2704
      %v2737 = vmul.f32 %v2553, %v2705
      %v2738 = vmul.f32 %v2555, %v2706
      %v2739 = vmul.f32 %v2557, %v2707
      %v2740 = vmul.f32 %v2559, %v2708
      %v2741 = vmul.f32 %v2561, %v2709
      %v2742 = vmul.f32 %v2563, %v2710
      %v2743 = vmul.f32 %v2565, %v2711
      %v2744 = vmul.f32 %v2567, %v2712
      %v2745 = vmul.f32 %v2569, %v2713
      %v2746 = vmul.f32 %v2571, %v2714
      %v2747 = vmul.f32 %v2573, %v2715
      %v2748 = vmul.f32 %v2575, %v2716
      %v2749 = vmul.f32 %v2577, %v2717
      %v2750 = vmul.f32 %v2579, %v2718
      %v2751 = vmul.f32 %v2581, %v2719
      %v2752 = vmul.f32 %v2583, %v2720
      %v2753 = vmul.f32 %v2585, %v2721
      %v2754 = vmul.f32 %v2587, %v2722
      %v2755 = vmul.f32 %v2589, %v2723
      %v2756 = vmul.f32 %v2591, %v2724
      %v2757 = vmul.f32 %v2593, %v2725
      %v2758 = vmul.f32 %v2595, %v2726
      %v2759 = vmul.f32 %v2597, %v2727
      %v2760 = vmul.f32 %v2599, %v2728
      %v2761 = vmul.f32 %v2601, %v2729
      %2762 = vst.msk [vmem:[%s315] sm:$0xff] %vm714, %v2730
      %2763 = vst.msk [vmem:[%s315 + $0x8] sm:$0xff] %vm714, %v2731
      %2764 = vst.msk [vmem:[%s315 + $0x10] sm:$0xff] %vm714, %v2732
      %2765 = vst.msk [vmem:[%s315 + $0x18] sm:$0xff] %vm714, %v2733
      %2766 = vst.msk [vmem:[%s315 + $0x20] sm:$0xff] %vm714, %v2734
      %2767 = vst.msk [vmem:[%s315 + $0x28] sm:$0xff] %vm714, %v2735
      %2768 = vst.msk [vmem:[%s315 + $0x30] sm:$0xff] %vm714, %v2736
      %2769 = vst.msk [vmem:[%s315 + $0x38] sm:$0xff] %vm714, %v2737
      %2770 = vst.msk [vmem:[%s315 + $0x40] sm:$0xff] %vm714, %v2738
      %2771 = vst.msk [vmem:[%s315 + $0x48] sm:$0xff] %vm714, %v2739
      %2772 = vst.msk [vmem:[%s315 + $0x50] sm:$0xff] %vm714, %v2740
      %2773 = vst.msk [vmem:[%s315 + $0x58] sm:$0xff] %vm714, %v2741
      %2774 = vst.msk [vmem:[%s315 + $0x60] sm:$0xff] %vm714, %v2742
      %2775 = vst.msk [vmem:[%s315 + $0x68] sm:$0xff] %vm714, %v2743
      %2776 = vst.msk [vmem:[%s315 + $0x70] sm:$0xff] %vm714, %v2744
      %2777 = vst.msk [vmem:[%s315 + $0x78] sm:$0xff] %vm714, %v2745
      %2778 = vst.msk [vmem:[%s315 + $0x80] sm:$0xff] %vm714, %v2746
      %2779 = vst.msk [vmem:[%s315 + $0x88] sm:$0xff] %vm714, %v2747
      %2780 = vst.msk [vmem:[%s315 + $0x90] sm:$0xff] %vm714, %v2748
      %2781 = vst.msk [vmem:[%s315 + $0x98] sm:$0xff] %vm714, %v2749
      %2782 = vst.msk [vmem:[%s315 + $0xa0] sm:$0xff] %vm714, %v2750
      %2783 = vst.msk [vmem:[%s315 + $0xa8] sm:$0xff] %vm714, %v2751
      %2784 = vst.msk [vmem:[%s315 + $0xb0] sm:$0xff] %vm714, %v2752
      %2785 = vst.msk [vmem:[%s315 + $0xb8] sm:$0xff] %vm714, %v2753
      %2786 = vst.msk [vmem:[%s315 + $0xc0] sm:$0xff] %vm714, %v2754
      %2787 = vst.msk [vmem:[%s315 + $0xc8] sm:$0xff] %vm714, %v2755
      %2788 = vst.msk [vmem:[%s315 + $0xd0] sm:$0xff] %vm714, %v2756
      %2789 = vst.msk [vmem:[%s315 + $0xd8] sm:$0xff] %vm714, %v2757
      %2790 = vst.msk [vmem:[%s315 + $0xe0] sm:$0xff] %vm714, %v2758
      %2791 = vst.msk [vmem:[%s315 + $0xe8] sm:$0xff] %vm714, %v2759
      %2792 = vst.msk [vmem:[%s315 + $0xf0] sm:$0xff] %vm714, %v2760
      %2793 = vst.msk [vmem:[%s315 + $0xf8] sm:$0xff] %vm714, %v2761
      %v2794 = vld [vmem:[%s308] sm:$0xff]
      %v2795 = vld [vmem:[%s308 + $0x8] sm:$0xff]
      %v2796 = vld [vmem:[%s308 + $0x10] sm:$0xff]
      %v2797 = vld [vmem:[%s308 + $0x18] sm:$0xff]
      %v2798 = vld [vmem:[%s308 + $0x20] sm:$0xff]
      %v2799 = vld [vmem:[%s308 + $0x28] sm:$0xff]
      %v2800 = vld [vmem:[%s308 + $0x30] sm:$0xff]
      %v2801 = vld [vmem:[%s308 + $0x38] sm:$0xff]
      %v2802 = vld [vmem:[%s308 + $0x40] sm:$0xff]
      %v2803 = vld [vmem:[%s308 + $0x48] sm:$0xff]
      %v2804 = vld [vmem:[%s308 + $0x50] sm:$0xff]
      %v2805 = vld [vmem:[%s308 + $0x58] sm:$0xff]
      %v2806 = vld [vmem:[%s308 + $0x60] sm:$0xff]
      %v2807 = vld [vmem:[%s308 + $0x68] sm:$0xff]
      %v2808 = vld [vmem:[%s308 + $0x70] sm:$0xff]
      %v2809 = vld [vmem:[%s308 + $0x78] sm:$0xff]
      %v2810 = vld [vmem:[%s308 + $0x80] sm:$0xff]
      %v2811 = vld [vmem:[%s308 + $0x88] sm:$0xff]
      %v2812 = vld [vmem:[%s308 + $0x90] sm:$0xff]
      %v2813 = vld [vmem:[%s308 + $0x98] sm:$0xff]
      %v2814 = vld [vmem:[%s308 + $0xa0] sm:$0xff]
      %v2815 = vld [vmem:[%s308 + $0xa8] sm:$0xff]
      %v2816 = vld [vmem:[%s308 + $0xb0] sm:$0xff]
      %v2817 = vld [vmem:[%s308 + $0xb8] sm:$0xff]
      %v2818 = vld [vmem:[%s308 + $0xc0] sm:$0xff]
      %v2819 = vld [vmem:[%s308 + $0xc8] sm:$0xff]
      %v2820 = vld [vmem:[%s308 + $0xd0] sm:$0xff]
      %v2821 = vld [vmem:[%s308 + $0xd8] sm:$0xff]
      %v2822 = vld [vmem:[%s308 + $0xe0] sm:$0xff]
      %v2823 = vld [vmem:[%s308 + $0xe8] sm:$0xff]
      %v2824 = vld [vmem:[%s308 + $0xf0] sm:$0xff]
      %v2825 = vld [vmem:[%s308 + $0xf8] sm:$0xff]
      %v2827 = vsel %vm714, %v2794, 0
      %v2830 = vsel %vm714, %v2795, 0
      %2832 = vmatprep.subr.mxu0 0.0
      %2833 = vmatpush1.msra.mxu0 %v2730
      %2834 = vmatprep.subr.mxu0 0.0
      %2835 = vmatpush1.msra.mxu0 %v2731
      %2836 = vmatprep.subr.mxu0 0.0
      %2837 = vmatpush1.msra.mxu0 0.0
      %2838 = vmatprep.subr.mxu0 0.0
      %2839 = vmatpush1.msra.mxu0 0.0
      %2840 = vmatprep.subr.mxu0 0.0
      %2841 = vmatpush1.msra.mxu0 0.0
      %2842 = vmatprep.subr.mxu0 0.0
      %2843 = vmatpush1.msra.mxu0 0.0
      %2844 = vmatprep.subr.mxu0 0.0
      %2845 = vmatpush1.msra.mxu0 0.0
      %2846 = vmatprep.subr.mxu0 0.0
      %2847 = vmatpush1.msra.mxu0 0.0
      %2848 = vmatprep.subr.mxu0 0.0
      %2849 = vmatpush1.msra.mxu0 0.0
      %2850 = vmatprep.subr.mxu0 0.0
      %2851 = vmatpush1.msra.mxu0 0.0
      %2852 = vmatprep.subr.mxu0 0.0
      %2853 = vmatpush1.msra.mxu0 0.0
      %2854 = vmatprep.subr.mxu0 0.0
      %2855 = vmatpush1.msra.mxu0 0.0
      %2856 = vmatprep.subr.mxu0 0.0
      %2857 = vmatpush1.msra.mxu0 0.0
      %2858 = vmatprep.subr.mxu0 0.0
      %2859 = vmatpush1.msra.mxu0 0.0
      %2860 = vmatprep.subr.mxu0 0.0
      %2861 = vmatpush1.msra.mxu0 0.0
      %2862 = vmatprep.subr.mxu0 0.0
      %2863 = vmatpush1.msra.mxu0 0.0
      %2864 = vmatprep.subr.mxu0 0.0
      %2865 = vmatpush1.msra.mxu0 0.0
      %2866 = vmatprep.subr.mxu0 0.0
      %2867 = vmatpush1.msra.mxu0 0.0
      %2868 = vmatprep.subr.mxu0 0.0
      %2869 = vmatpush1.msra.mxu0 0.0
      %2870 = vmatprep.subr.mxu0 0.0
      %2871 = vmatpush1.msra.mxu0 0.0
      %2872 = vmatprep.subr.mxu0 0.0
      %2873 = vmatpush1.msra.mxu0 0.0
      %2874 = vmatprep.subr.mxu0 0.0
      %2875 = vmatpush1.msra.mxu0 0.0
      %2876 = vmatprep.subr.mxu0 0.0
      %2877 = vmatpush1.msra.mxu0 0.0
      %2878 = vmatprep.subr.mxu0 0.0
      %2879 = vmatpush1.msra.mxu0 0.0
      %2880 = vmatprep.subr.mxu0 0.0
      %2881 = vmatpush1.msra.mxu0 0.0
      %2882 = vmatprep.subr.mxu0 0.0
      %2883 = vmatpush1.msra.mxu0 0.0
      %2884 = vmatprep.subr.mxu0 0.0
      %2885 = vmatpush1.msra.mxu0 0.0
      %2886 = vmatprep.subr.mxu0 0.0
      %2887 = vmatpush1.msra.mxu0 0.0
      %2888 = vmatprep.subr.mxu0 0.0
      %2889 = vmatpush1.msra.mxu0 0.0
      %2890 = vmatprep.subr.mxu0 0.0
      %2891 = vmatpush1.msra.mxu0 0.0
      %2892 = vmatprep.subr.mxu0 0.0
      %2893 = vmatpush1.msra.mxu0 0.0
      %2894 = vmatprep.subr.mxu0 0.0
      %2895 = vmatpush1.msra.mxu0 0.0
      %2896 = vmatprep.mubr.f32.mxu0 0.0
      %2897 = vmatmul.mubr.f32.gmra.mrb[0].mxu0 %v2827
      %v2898 = vpop.f32.mrb[0].mxu0
      %v2899 = vadd.f32 0.0, %v2898
      %v2900 = vpop.f32.mrb[0].mxu0
      %2901 = vmatprep.mubr.f32.mxu0 0.0
      %2902 = vmatmul.mubr.f32.gmra.mrb[0].mxu0 %v2830
      %v2903 = vpop.f32.mrb[0].mxu0
      %v2904 = vadd.f32 0.0, %v2903
      %v2905 = vpop.f32.mrb[0].mxu0
      %2906 = vdwg.mxu0
      %v2908 = vsel %vm714, %v2796, 0
      %v2911 = vsel %vm714, %v2797, 0
      %2913 = vmatprep.subr.mxu0 0.0
      %2914 = vmatpush1.msra.mxu0 %v2732
      %2915 = vmatprep.subr.mxu0 0.0
      %2916 = vmatpush1.msra.mxu0 %v2733
      %2917 = vmatprep.subr.mxu0 0.0
      %2918 = vmatpush1.msra.mxu0 0.0
      %2919 = vmatprep.subr.mxu0 0.0
      %2920 = vmatpush1.msra.mxu0 0.0
      %2921 = vmatprep.subr.mxu0 0.0
      %2922 = vmatpush1.msra.mxu0 0.0
      %2923 = vmatprep.subr.mxu0 0.0
      %2924 = vmatpush1.msra.mxu0 0.0
      %2925 = vmatprep.subr.mxu0 0.0
      %2926 = vmatpush1.msra.mxu0 0.0
      %2927 = vmatprep.subr.mxu0 0.0
      %2928 = vmatpush1.msra.mxu0 0.0
      %2929 = vmatprep.subr.mxu0 0.0
      %2930 = vmatpush1.msra.mxu0 0.0
      %2931 = vmatprep.subr.mxu0 0.0
      %2932 = vmatpush1.msra.mxu0 0.0
      %2933 = vmatprep.subr.mxu0 0.0
      %2934 = vmatpush1.msra.mxu0 0.0
      %2935 = vmatprep.subr.mxu0 0.0
      %2936 = vmatpush1.msra.mxu0 0.0
      %2937 = vmatprep.subr.mxu0 0.0
      %2938 = vmatpush1.msra.mxu0 0.0
      %2939 = vmatprep.subr.mxu0 0.0
      %2940 = vmatpush1.msra.mxu0 0.0
      %2941 = vmatprep.subr.mxu0 0.0
      %2942 = vmatpush1.msra.mxu0 0.0
      %2943 = vmatprep.subr.mxu0 0.0
      %2944 = vmatpush1.msra.mxu0 0.0
      %2945 = vmatprep.subr.mxu0 0.0
      %2946 = vmatpush1.msra.mxu0 0.0
      %2947 = vmatprep.subr.mxu0 0.0
      %2948 = vmatpush1.msra.mxu0 0.0
      %2949 = vmatprep.subr.mxu0 0.0
      %2950 = vmatpush1.msra.mxu0 0.0
      %2951 = vmatprep.subr.mxu0 0.0
      %2952 = vmatpush1.msra.mxu0 0.0
      %2953 = vmatprep.subr.mxu0 0.0
      %2954 = vmatpush1.msra.mxu0 0.0
      %2955 = vmatprep.subr.mxu0 0.0
      %2956 = vmatpush1.msra.mxu0 0.0
      %2957 = vmatprep.subr.mxu0 0.0
      %2958 = vmatpush1.msra.mxu0 0.0
      %2959 = vmatprep.subr.mxu0 0.0
      %2960 = vmatpush1.msra.mxu0 0.0
      %2961 = vmatprep.subr.mxu0 0.0
      %2962 = vmatpush1.msra.mxu0 0.0
      %2963 = vmatprep.subr.mxu0 0.0
      %2964 = vmatpush1.msra.mxu0 0.0
      %2965 = vmatprep.subr.mxu0 0.0
      %2966 = vmatpush1.msra.mxu0 0.0
      %2967 = vmatprep.subr.mxu0 0.0
      %2968 = vmatpush1.msra.mxu0 0.0
      %2969 = vmatprep.subr.mxu0 0.0
      %2970 = vmatpush1.msra.mxu0 0.0
      %2971 = vmatprep.subr.mxu0 0.0
      %2972 = vmatpush1.msra.mxu0 0.0
      %2973 = vmatprep.subr.mxu0 0.0
      %2974 = vmatpush1.msra.mxu0 0.0
      %2975 = vmatprep.subr.mxu0 0.0
      %2976 = vmatpush1.msra.mxu0 0.0
      %2977 = vmatprep.mubr.f32.mxu0 0.0
      %2978 = vmatmul.mubr.f32.gmra.mrb[0].mxu0 %v2908
      %v2979 = vpop.f32.mrb[0].mxu0
      %v2980 = vadd.f32 0.0, %v2979
      %v2981 = vpop.f32.mrb[0].mxu0
      %2982 = vmatprep.mubr.f32.mxu0 0.0
      %2983 = vmatmul.mubr.f32.gmra.mrb[0].mxu0 %v2911
      %v2984 = vpop.f32.mrb[0].mxu0
      %v2985 = vadd.f32 0.0, %v2984
      %v2986 = vpop.f32.mrb[0].mxu0
      %2987 = vdwg.mxu0
      %v2989 = vsel %vm714, %v2798, 0
      %v2992 = vsel %vm714, %v2799, 0
      %2994 = vmatprep.subr.mxu0 0.0
      %2995 = vmatpush1.msra.mxu0 %v2734
      %2996 = vmatprep.subr.mxu0 0.0
      %2997 = vmatpush1.msra.mxu0 %v2735
      %2998 = vmatprep.subr.mxu0 0.0
      %2999 = vmatpush1.msra.mxu0 0.0
      %3000 = vmatprep.subr.mxu0 0.0
      %3001 = vmatpush1.msra.mxu0 0.0
      %3002 = vmatprep.subr.mxu0 0.0
      %3003 = vmatpush1.msra.mxu0 0.0
      %3004 = vmatprep.subr.mxu0 0.0
      %3005 = vmatpush1.msra.mxu0 0.0
      %3006 = vmatprep.subr.mxu0 0.0
      %3007 = vmatpush1.msra.mxu0 0.0
      %3008 = vmatprep.subr.mxu0 0.0
      %3009 = vmatpush1.msra.mxu0 0.0
      %3010 = vmatprep.subr.mxu0 0.0
      %3011 = vmatpush1.msra.mxu0 0.0
      %3012 = vmatprep.subr.mxu0 0.0
      %3013 = vmatpush1.msra.mxu0 0.0
      %3014 = vmatprep.subr.mxu0 0.0
      %3015 = vmatpush1.msra.mxu0 0.0
      %3016 = vmatprep.subr.mxu0 0.0
      %3017 = vmatpush1.msra.mxu0 0.0
      %3018 = vmatprep.subr.mxu0 0.0
      %3019 = vmatpush1.msra.mxu0 0.0
      %3020 = vmatprep.subr.mxu0 0.0
      %3021 = vmatpush1.msra.mxu0 0.0
      %3022 = vmatprep.subr.mxu0 0.0
      %3023 = vmatpush1.msra.mxu0 0.0
      %3024 = vmatprep.subr.mxu0 0.0
      %3025 = vmatpush1.msra.mxu0 0.0
      %3026 = vmatprep.subr.mxu0 0.0
      %3027 = vmatpush1.msra.mxu0 0.0
      %3028 = vmatprep.subr.mxu0 0.0
      %3029 = vmatpush1.msra.mxu0 0.0
      %3030 = vmatprep.subr.mxu0 0.0
      %3031 = vmatpush1.msra.mxu0 0.0
      %3032 = vmatprep.subr.mxu0 0.0
      %3033 = vmatpush1.msra.mxu0 0.0
      %3034 = vmatprep.subr.mxu0 0.0
      %3035 = vmatpush1.msra.mxu0 0.0
      %3036 = vmatprep.subr.mxu0 0.0
      %3037 = vmatpush1.msra.mxu0 0.0
      %3038 = vmatprep.subr.mxu0 0.0
      %3039 = vmatpush1.msra.mxu0 0.0
      %3040 = vmatprep.subr.mxu0 0.0
      %3041 = vmatpush1.msra.mxu0 0.0
      %3042 = vmatprep.subr.mxu0 0.0
      %3043 = vmatpush1.msra.mxu0 0.0
      %3044 = vmatprep.subr.mxu0 0.0
      %3045 = vmatpush1.msra.mxu0 0.0
      %3046 = vmatprep.subr.mxu0 0.0
      %3047 = vmatpush1.msra.mxu0 0.0
      %3048 = vmatprep.subr.mxu0 0.0
      %3049 = vmatpush1.msra.mxu0 0.0
      %3050 = vmatprep.subr.mxu0 0.0
      %3051 = vmatpush1.msra.mxu0 0.0
      %3052 = vmatprep.subr.mxu0 0.0
      %3053 = vmatpush1.msra.mxu0 0.0
      %3054 = vmatprep.subr.mxu0 0.0
      %3055 = vmatpush1.msra.mxu0 0.0
      %3056 = vmatprep.subr.mxu0 0.0
      %3057 = vmatpush1.msra.mxu0 0.0
      %3058 = vmatprep.mubr.f32.mxu0 0.0
      %3059 = vmatmul.mubr.f32.gmra.mrb[0].mxu0 %v2989
      %v3060 = vpop.f32.mrb[0].mxu0
      %v3061 = vadd.f32 0.0, %v3060
      %v3062 = vpop.f32.mrb[0].mxu0
      %3063 = vmatprep.mubr.f32.mxu0 0.0
      %3064 = vmatmul.mubr.f32.gmra.mrb[0].mxu0 %v2992
      %v3065 = vpop.f32.mrb[0].mxu0
      %v3066 = vadd.f32 0.0, %v3065
      %v3067 = vpop.f32.mrb[0].mxu0
      %3068 = vdwg.mxu0
      %v3070 = vsel %vm714, %v2800, 0
      %v3073 = vsel %vm714, %v2801, 0
      %3075 = vmatprep.subr.mxu0 0.0
      %3076 = vmatpush1.msra.mxu0 %v2736
      %3077 = vmatprep.subr.mxu0 0.0
      %3078 = vmatpush1.msra.mxu0 %v2737
      %3079 = vmatprep.subr.mxu0 0.0
      %3080 = vmatpush1.msra.mxu0 0.0
      %3081 = vmatprep.subr.mxu0 0.0
      %3082 = vmatpush1.msra.mxu0 0.0
      %3083 = vmatprep.subr.mxu0 0.0
      %3084 = vmatpush1.msra.mxu0 0.0
      %3085 = vmatprep.subr.mxu0 0.0
      %3086 = vmatpush1.msra.mxu0 0.0
      %3087 = vmatprep.subr.mxu0 0.0
      %3088 = vmatpush1.msra.mxu0 0.0
      %3089 = vmatprep.subr.mxu0 0.0
      %3090 = vmatpush1.msra.mxu0 0.0
      %3091 = vmatprep.subr.mxu0 0.0
      %3092 = vmatpush1.msra.mxu0 0.0
      %3093 = vmatprep.subr.mxu0 0.0
      %3094 = vmatpush1.msra.mxu0 0.0
      %3095 = vmatprep.subr.mxu0 0.0
      %3096 = vmatpush1.msra.mxu0 0.0
      %3097 = vmatprep.subr.mxu0 0.0
      %3098 = vmatpush1.msra.mxu0 0.0
      %3099 = vmatprep.subr.mxu0 0.0
      %3100 = vmatpush1.msra.mxu0 0.0
      %3101 = vmatprep.subr.mxu0 0.0
      %3102 = vmatpush1.msra.mxu0 0.0
      %3103 = vmatprep.subr.mxu0 0.0
      %3104 = vmatpush1.msra.mxu0 0.0
      %3105 = vmatprep.subr.mxu0 0.0
      %3106 = vmatpush1.msra.mxu0 0.0
      %3107 = vmatprep.subr.mxu0 0.0
      %3108 = vmatpush1.msra.mxu0 0.0
      %3109 = vmatprep.subr.mxu0 0.0
      %3110 = vmatpush1.msra.mxu0 0.0
      %3111 = vmatprep.subr.mxu0 0.0
      %3112 = vmatpush1.msra.mxu0 0.0
      %3113 = vmatprep.subr.mxu0 0.0
      %3114 = vmatpush1.msra.mxu0 0.0
      %3115 = vmatprep.subr.mxu0 0.0
      %3116 = vmatpush1.msra.mxu0 0.0
      %3117 = vmatprep.subr.mxu0 0.0
      %3118 = vmatpush1.msra.mxu0 0.0
      %3119 = vmatprep.subr.mxu0 0.0
      %3120 = vmatpush1.msra.mxu0 0.0
      %3121 = vmatprep.subr.mxu0 0.0
      %3122 = vmatpush1.msra.mxu0 0.0
      %3123 = vmatprep.subr.mxu0 0.0
      %3124 = vmatpush1.msra.mxu0 0.0
      %3125 = vmatprep.subr.mxu0 0.0
      %3126 = vmatpush1.msra.mxu0 0.0
      %3127 = vmatprep.subr.mxu0 0.0
      %3128 = vmatpush1.msra.mxu0 0.0
      %3129 = vmatprep.subr.mxu0 0.0
      %3130 = vmatpush1.msra.mxu0 0.0
      %3131 = vmatprep.subr.mxu0 0.0
      %3132 = vmatpush1.msra.mxu0 0.0
      %3133 = vmatprep.subr.mxu0 0.0
      %3134 = vmatpush1.msra.mxu0 0.0
      %3135 = vmatprep.subr.mxu0 0.0
      %3136 = vmatpush1.msra.mxu0 0.0
      %3137 = vmatprep.subr.mxu0 0.0
      %3138 = vmatpush1.msra.mxu0 0.0
      %3139 = vmatprep.mubr.f32.mxu0 0.0
      %3140 = vmatmul.mubr.f32.gmra.mrb[0].mxu0 %v3070
      %v3141 = vpop.f32.mrb[0].mxu0
      %v3142 = vadd.f32 0.0, %v3141
      %v3143 = vpop.f32.mrb[0].mxu0
      %3144 = vmatprep.mubr.f32.mxu0 0.0
      %3145 = vmatmul.mubr.f32.gmra.mrb[0].mxu0 %v3073
      %v3146 = vpop.f32.mrb[0].mxu0
      %v3147 = vadd.f32 0.0, %v3146
      %v3148 = vpop.f32.mrb[0].mxu0
      %3149 = vdwg.mxu0
      %v3151 = vsel %vm714, %v2802, 0
      %v3154 = vsel %vm714, %v2803, 0
      %3156 = vmatprep.subr.mxu0 0.0
      %3157 = vmatpush1.msra.mxu0 %v2738
      %3158 = vmatprep.subr.mxu0 0.0
      %3159 = vmatpush1.msra.mxu0 %v2739
      %3160 = vmatprep.subr.mxu0 0.0
      %3161 = vmatpush1.msra.mxu0 0.0
      %3162 = vmatprep.subr.mxu0 0.0
      %3163 = vmatpush1.msra.mxu0 0.0
      %3164 = vmatprep.subr.mxu0 0.0
      %3165 = vmatpush1.msra.mxu0 0.0
      %3166 = vmatprep.subr.mxu0 0.0
      %3167 = vmatpush1.msra.mxu0 0.0
      %3168 = vmatprep.subr.mxu0 0.0
      %3169 = vmatpush1.msra.mxu0 0.0
      %3170 = vmatprep.subr.mxu0 0.0
      %3171 = vmatpush1.msra.mxu0 0.0
      %3172 = vmatprep.subr.mxu0 0.0
      %3173 = vmatpush1.msra.mxu0 0.0
      %3174 = vmatprep.subr.mxu0 0.0
      %3175 = vmatpush1.msra.mxu0 0.0
      %3176 = vmatprep.subr.mxu0 0.0
      %3177 = vmatpush1.msra.mxu0 0.0
      %3178 = vmatprep.subr.mxu0 0.0
      %3179 = vmatpush1.msra.mxu0 0.0
      %3180 = vmatprep.subr.mxu0 0.0
      %3181 = vmatpush1.msra.mxu0 0.0
      %3182 = vmatprep.subr.mxu0 0.0
      %3183 = vmatpush1.msra.mxu0 0.0
      %3184 = vmatprep.subr.mxu0 0.0
      %3185 = vmatpush1.msra.mxu0 0.0
      %3186 = vmatprep.subr.mxu0 0.0
      %3187 = vmatpush1.msra.mxu0 0.0
      %3188 = vmatprep.subr.mxu0 0.0
      %3189 = vmatpush1.msra.mxu0 0.0
      %3190 = vmatprep.subr.mxu0 0.0
      %3191 = vmatpush1.msra.mxu0 0.0
      %3192 = vmatprep.subr.mxu0 0.0
      %3193 = vmatpush1.msra.mxu0 0.0
      %3194 = vmatprep.subr.mxu0 0.0
      %3195 = vmatpush1.msra.mxu0 0.0
      %3196 = vmatprep.subr.mxu0 0.0
      %3197 = vmatpush1.msra.mxu0 0.0
      %3198 = vmatprep.subr.mxu0 0.0
      %3199 = vmatpush1.msra.mxu0 0.0
      %3200 = vmatprep.subr.mxu0 0.0
      %3201 = vmatpush1.msra.mxu0 0.0
      %3202 = vmatprep.subr.mxu0 0.0
      %3203 = vmatpush1.msra.mxu0 0.0
      %3204 = vmatprep.subr.mxu0 0.0
      %3205 = vmatpush1.msra.mxu0 0.0
      %3206 = vmatprep.subr.mxu0 0.0
      %3207 = vmatpush1.msra.mxu0 0.0
      %3208 = vmatprep.subr.mxu0 0.0
      %3209 = vmatpush1.msra.mxu0 0.0
      %3210 = vmatprep.subr.mxu0 0.0
      %3211 = vmatpush1.msra.mxu0 0.0
      %3212 = vmatprep.subr.mxu0 0.0
      %3213 = vmatpush1.msra.mxu0 0.0
      %3214 = vmatprep.subr.mxu0 0.0
      %3215 = vmatpush1.msra.mxu0 0.0
      %3216 = vmatprep.subr.mxu0 0.0
      %3217 = vmatpush1.msra.mxu0 0.0
      %3218 = vmatprep.subr.mxu0 0.0
      %3219 = vmatpush1.msra.mxu0 0.0
      %3220 = vmatprep.mubr.f32.mxu0 0.0
      %3221 = vmatmul.mubr.f32.gmra.mrb[0].mxu0 %v3151
      %v3222 = vpop.f32.mrb[0].mxu0
      %v3223 = vadd.f32 0.0, %v3222
      %v3224 = vpop.f32.mrb[0].mxu0
      %3225 = vmatprep.mubr.f32.mxu0 0.0
      %3226 = vmatmul.mubr.f32.gmra.mrb[0].mxu0 %v3154
      %v3227 = vpop.f32.mrb[0].mxu0
      %v3228 = vadd.f32 0.0, %v3227
      %v3229 = vpop.f32.mrb[0].mxu0
      %3230 = vdwg.mxu0
      %v3232 = vsel %vm714, %v2804, 0
      %v3235 = vsel %vm714, %v2805, 0
      %3237 = vmatprep.subr.mxu0 0.0
      %3238 = vmatpush1.msra.mxu0 %v2740
      %3239 = vmatprep.subr.mxu0 0.0
      %3240 = vmatpush1.msra.mxu0 %v2741
      %3241 = vmatprep.subr.mxu0 0.0
      %3242 = vmatpush1.msra.mxu0 0.0
      %3243 = vmatprep.subr.mxu0 0.0
      %3244 = vmatpush1.msra.mxu0 0.0
      %3245 = vmatprep.subr.mxu0 0.0
      %3246 = vmatpush1.msra.mxu0 0.0
      %3247 = vmatprep.subr.mxu0 0.0
      %3248 = vmatpush1.msra.mxu0 0.0
      %3249 = vmatprep.subr.mxu0 0.0
      %3250 = vmatpush1.msra.mxu0 0.0
      %3251 = vmatprep.subr.mxu0 0.0
      %3252 = vmatpush1.msra.mxu0 0.0
      %3253 = vmatprep.subr.mxu0 0.0
      %3254 = vmatpush1.msra.mxu0 0.0
      %3255 = vmatprep.subr.mxu0 0.0
      %3256 = vmatpush1.msra.mxu0 0.0
      %3257 = vmatprep.subr.mxu0 0.0
      %3258 = vmatpush1.msra.mxu0 0.0
      %3259 = vmatprep.subr.mxu0 0.0
      %3260 = vmatpush1.msra.mxu0 0.0
      %3261 = vmatprep.subr.mxu0 0.0
      %3262 = vmatpush1.msra.mxu0 0.0
      %3263 = vmatprep.subr.mxu0 0.0
      %3264 = vmatpush1.msra.mxu0 0.0
      %3265 = vmatprep.subr.mxu0 0.0
      %3266 = vmatpush1.msra.mxu0 0.0
      %3267 = vmatprep.subr.mxu0 0.0
      %3268 = vmatpush1.msra.mxu0 0.0
      %3269 = vmatprep.subr.mxu0 0.0
      %3270 = vmatpush1.msra.mxu0 0.0
      %3271 = vmatprep.subr.mxu0 0.0
      %3272 = vmatpush1.msra.mxu0 0.0
      %3273 = vmatprep.subr.mxu0 0.0
      %3274 = vmatpush1.msra.mxu0 0.0
      %3275 = vmatprep.subr.mxu0 0.0
      %3276 = vmatpush1.msra.mxu0 0.0
      %3277 = vmatprep.subr.mxu0 0.0
      %3278 = vmatpush1.msra.mxu0 0.0
      %3279 = vmatprep.subr.mxu0 0.0
      %3280 = vmatpush1.msra.mxu0 0.0
      %3281 = vmatprep.subr.mxu0 0.0
      %3282 = vmatpush1.msra.mxu0 0.0
      %3283 = vmatprep.subr.mxu0 0.0
      %3284 = vmatpush1.msra.mxu0 0.0
      %3285 = vmatprep.subr.mxu0 0.0
      %3286 = vmatpush1.msra.mxu0 0.0
      %3287 = vmatprep.subr.mxu0 0.0
      %3288 = vmatpush1.msra.mxu0 0.0
      %3289 = vmatprep.subr.mxu0 0.0
      %3290 = vmatpush1.msra.mxu0 0.0
      %3291 = vmatprep.subr.mxu0 0.0
      %3292 = vmatpush1.msra.mxu0 0.0
      %3293 = vmatprep.subr.mxu0 0.0
      %3294 = vmatpush1.msra.mxu0 0.0
      %3295 = vmatprep.subr.mxu0 0.0
      %3296 = vmatpush1.msra.mxu0 0.0
      %3297 = vmatprep.subr.mxu0 0.0
      %3298 = vmatpush1.msra.mxu0 0.0
      %3299 = vmatprep.subr.mxu0 0.0
      %3300 = vmatpush1.msra.mxu0 0.0
      %3301 = vmatprep.mubr.f32.mxu0 0.0
      %3302 = vmatmul.mubr.f32.gmra.mrb[0].mxu0 %v3232
      %v3303 = vpop.f32.mrb[0].mxu0
      %v3304 = vadd.f32 0.0, %v3303
      %v3305 = vpop.f32.mrb[0].mxu0
      %3306 = vmatprep.mubr.f32.mxu0 0.0
      %3307 = vmatmul.mubr.f32.gmra.mrb[0].mxu0 %v3235
      %v3308 = vpop.f32.mrb[0].mxu0
      %v3309 = vadd.f32 0.0, %v3308
      %v3310 = vpop.f32.mrb[0].mxu0
      %3311 = vdwg.mxu0
      %v3313 = vsel %vm714, %v2806, 0
      %v3316 = vsel %vm714, %v2807, 0
      %3318 = vmatprep.subr.mxu0 0.0
      %3319 = vmatpush1.msra.mxu0 %v2742
      %3320 = vmatprep.subr.mxu0 0.0
      %3321 = vmatpush1.msra.mxu0 %v2743
      %3322 = vmatprep.subr.mxu0 0.0
      %3323 = vmatpush1.msra.mxu0 0.0
      %3324 = vmatprep.subr.mxu0 0.0
      %3325 = vmatpush1.msra.mxu0 0.0
      %3326 = vmatprep.subr.mxu0 0.0
      %3327 = vmatpush1.msra.mxu0 0.0
      %3328 = vmatprep.subr.mxu0 0.0
      %3329 = vmatpush1.msra.mxu0 0.0
      %3330 = vmatprep.subr.mxu0 0.0
      %3331 = vmatpush1.msra.mxu0 0.0
      %3332 = vmatprep.subr.mxu0 0.0
      %3333 = vmatpush1.msra.mxu0 0.0
      %3334 = vmatprep.subr.mxu0 0.0
      %3335 = vmatpush1.msra.mxu0 0.0
      %3336 = vmatprep.subr.mxu0 0.0
      %3337 = vmatpush1.msra.mxu0 0.0
      %3338 = vmatprep.subr.mxu0 0.0
      %3339 = vmatpush1.msra.mxu0 0.0
      %3340 = vmatprep.subr.mxu0 0.0
      %3341 = vmatpush1.msra.mxu0 0.0
      %3342 = vmatprep.subr.mxu0 0.0
      %3343 = vmatpush1.msra.mxu0 0.0
      %3344 = vmatprep.subr.mxu0 0.0
      %3345 = vmatpush1.msra.mxu0 0.0
      %3346 = vmatprep.subr.mxu0 0.0
      %3347 = vmatpush1.msra.mxu0 0.0
      %3348 = vmatprep.subr.mxu0 0.0
      %3349 = vmatpush1.msra.mxu0 0.0
      %3350 = vmatprep.subr.mxu0 0.0
      %3351 = vmatpush1.msra.mxu0 0.0
      %3352 = vmatprep.subr.mxu0 0.0
      %3353 = vmatpush1.msra.mxu0 0.0
      %3354 = vmatprep.subr.mxu0 0.0
      %3355 = vmatpush1.msra.mxu0 0.0
      %3356 = vmatprep.subr.mxu0 0.0
      %3357 = vmatpush1.msra.mxu0 0.0
      %3358 = vmatprep.subr.mxu0 0.0
      %3359 = vmatpush1.msra.mxu0 0.0
      %3360 = vmatprep.subr.mxu0 0.0
      %3361 = vmatpush1.msra.mxu0 0.0
      %3362 = vmatprep.subr.mxu0 0.0
      %3363 = vmatpush1.msra.mxu0 0.0
      %3364 = vmatprep.subr.mxu0 0.0
      %3365 = vmatpush1.msra.mxu0 0.0
      %3366 = vmatprep.subr.mxu0 0.0
      %3367 = vmatpush1.msra.mxu0 0.0
      %3368 = vmatprep.subr.mxu0 0.0
      %3369 = vmatpush1.msra.mxu0 0.0
      %3370 = vmatprep.subr.mxu0 0.0
      %3371 = vmatpush1.msra.mxu0 0.0
      %3372 = vmatprep.subr.mxu0 0.0
      %3373 = vmatpush1.msra.mxu0 0.0
      %3374 = vmatprep.subr.mxu0 0.0
      %3375 = vmatpush1.msra.mxu0 0.0
      %3376 = vmatprep.subr.mxu0 0.0
      %3377 = vmatpush1.msra.mxu0 0.0
      %3378 = vmatprep.subr.mxu0 0.0
      %3379 = vmatpush1.msra.mxu0 0.0
      %3380 = vmatprep.subr.mxu0 0.0
      %3381 = vmatpush1.msra.mxu0 0.0
      %3382 = vmatprep.mubr.f32.mxu0 0.0
      %3383 = vmatmul.mubr.f32.gmra.mrb[0].mxu0 %v3313
      %v3384 = vpop.f32.mrb[0].mxu0
      %v3385 = vadd.f32 0.0, %v3384
      %v3386 = vpop.f32.mrb[0].mxu0
      %3387 = vmatprep.mubr.f32.mxu0 0.0
      %3388 = vmatmul.mubr.f32.gmra.mrb[0].mxu0 %v3316
      %v3389 = vpop.f32.mrb[0].mxu0
      %v3390 = vadd.f32 0.0, %v3389
      %v3391 = vpop.f32.mrb[0].mxu0
      %3392 = vdwg.mxu0
      %v3394 = vsel %vm714, %v2808, 0
      %v3397 = vsel %vm714, %v2809, 0
      %3399 = vmatprep.subr.mxu0 0.0
      %3400 = vmatpush1.msra.mxu0 %v2744
      %3401 = vmatprep.subr.mxu0 0.0
      %3402 = vmatpush1.msra.mxu0 %v2745
      %3403 = vmatprep.subr.mxu0 0.0
      %3404 = vmatpush1.msra.mxu0 0.0
      %3405 = vmatprep.subr.mxu0 0.0
      %3406 = vmatpush1.msra.mxu0 0.0
      %3407 = vmatprep.subr.mxu0 0.0
      %3408 = vmatpush1.msra.mxu0 0.0
      %3409 = vmatprep.subr.mxu0 0.0
      %3410 = vmatpush1.msra.mxu0 0.0
      %3411 = vmatprep.subr.mxu0 0.0
      %3412 = vmatpush1.msra.mxu0 0.0
      %3413 = vmatprep.subr.mxu0 0.0
      %3414 = vmatpush1.msra.mxu0 0.0
      %3415 = vmatprep.subr.mxu0 0.0
      %3416 = vmatpush1.msra.mxu0 0.0
      %3417 = vmatprep.subr.mxu0 0.0
      %3418 = vmatpush1.msra.mxu0 0.0
      %3419 = vmatprep.subr.mxu0 0.0
      %3420 = vmatpush1.msra.mxu0 0.0
      %3421 = vmatprep.subr.mxu0 0.0
      %3422 = vmatpush1.msra.mxu0 0.0
      %3423 = vmatprep.subr.mxu0 0.0
      %3424 = vmatpush1.msra.mxu0 0.0
      %3425 = vmatprep.subr.mxu0 0.0
      %3426 = vmatpush1.msra.mxu0 0.0
      %3427 = vmatprep.subr.mxu0 0.0
      %3428 = vmatpush1.msra.mxu0 0.0
      %3429 = vmatprep.subr.mxu0 0.0
      %3430 = vmatpush1.msra.mxu0 0.0
      %3431 = vmatprep.subr.mxu0 0.0
      %3432 = vmatpush1.msra.mxu0 0.0
      %3433 = vmatprep.subr.mxu0 0.0
      %3434 = vmatpush1.msra.mxu0 0.0
      %3435 = vmatprep.subr.mxu0 0.0
      %3436 = vmatpush1.msra.mxu0 0.0
      %3437 = vmatprep.subr.mxu0 0.0
      %3438 = vmatpush1.msra.mxu0 0.0
      %3439 = vmatprep.subr.mxu0 0.0
      %3440 = vmatpush1.msra.mxu0 0.0
      %3441 = vmatprep.subr.mxu0 0.0
      %3442 = vmatpush1.msra.mxu0 0.0
      %3443 = vmatprep.subr.mxu0 0.0
      %3444 = vmatpush1.msra.mxu0 0.0
      %3445 = vmatprep.subr.mxu0 0.0
      %3446 = vmatpush1.msra.mxu0 0.0
      %3447 = vmatprep.subr.mxu0 0.0
      %3448 = vmatpush1.msra.mxu0 0.0
      %3449 = vmatprep.subr.mxu0 0.0
      %3450 = vmatpush1.msra.mxu0 0.0
      %3451 = vmatprep.subr.mxu0 0.0
      %3452 = vmatpush1.msra.mxu0 0.0
      %3453 = vmatprep.subr.mxu0 0.0
      %3454 = vmatpush1.msra.mxu0 0.0
      %3455 = vmatprep.subr.mxu0 0.0
      %3456 = vmatpush1.msra.mxu0 0.0
      %3457 = vmatprep.subr.mxu0 0.0
      %3458 = vmatpush1.msra.mxu0 0.0
      %3459 = vmatprep.subr.mxu0 0.0
      %3460 = vmatpush1.msra.mxu0 0.0
      %3461 = vmatprep.subr.mxu0 0.0
      %3462 = vmatpush1.msra.mxu0 0.0
      %3463 = vmatprep.mubr.f32.mxu0 0.0
      %3464 = vmatmul.mubr.f32.gmra.mrb[0].mxu0 %v3394
      %v3465 = vpop.f32.mrb[0].mxu0
      %v3466 = vadd.f32 0.0, %v3465
      %v3467 = vpop.f32.mrb[0].mxu0
      %3468 = vmatprep.mubr.f32.mxu0 0.0
      %3469 = vmatmul.mubr.f32.gmra.mrb[0].mxu0 %v3397
      %v3470 = vpop.f32.mrb[0].mxu0
      %v3471 = vadd.f32 0.0, %v3470
      %v3472 = vpop.f32.mrb[0].mxu0
      %3473 = vdwg.mxu0
      %v3475 = vsel %vm714, %v2810, 0
      %v3478 = vsel %vm714, %v2811, 0
      %3480 = vmatprep.subr.mxu0 0.0
      %3481 = vmatpush1.msra.mxu0 %v2746
      %3482 = vmatprep.subr.mxu0 0.0
      %3483 = vmatpush1.msra.mxu0 %v2747
      %3484 = vmatprep.subr.mxu0 0.0
      %3485 = vmatpush1.msra.mxu0 0.0
      %3486 = vmatprep.subr.mxu0 0.0
      %3487 = vmatpush1.msra.mxu0 0.0
      %3488 = vmatprep.subr.mxu0 0.0
      %3489 = vmatpush1.msra.mxu0 0.0
      %3490 = vmatprep.subr.mxu0 0.0
      %3491 = vmatpush1.msra.mxu0 0.0
      %3492 = vmatprep.subr.mxu0 0.0
      %3493 = vmatpush1.msra.mxu0 0.0
      %3494 = vmatprep.subr.mxu0 0.0
      %3495 = vmatpush1.msra.mxu0 0.0
      %3496 = vmatprep.subr.mxu0 0.0
      %3497 = vmatpush1.msra.mxu0 0.0
      %3498 = vmatprep.subr.mxu0 0.0
      %3499 = vmatpush1.msra.mxu0 0.0
      %3500 = vmatprep.subr.mxu0 0.0
      %3501 = vmatpush1.msra.mxu0 0.0
      %3502 = vmatprep.subr.mxu0 0.0
      %3503 = vmatpush1.msra.mxu0 0.0
      %3504 = vmatprep.subr.mxu0 0.0
      %3505 = vmatpush1.msra.mxu0 0.0
      %3506 = vmatprep.subr.mxu0 0.0
      %3507 = vmatpush1.msra.mxu0 0.0
      %3508 = vmatprep.subr.mxu0 0.0
      %3509 = vmatpush1.msra.mxu0 0.0
      %3510 = vmatprep.subr.mxu0 0.0
      %3511 = vmatpush1.msra.mxu0 0.0
      %3512 = vmatprep.subr.mxu0 0.0
      %3513 = vmatpush1.msra.mxu0 0.0
      %3514 = vmatprep.subr.mxu0 0.0
      %3515 = vmatpush1.msra.mxu0 0.0
      %3516 = vmatprep.subr.mxu0 0.0
      %3517 = vmatpush1.msra.mxu0 0.0
      %3518 = vmatprep.subr.mxu0 0.0
      %3519 = vmatpush1.msra.mxu0 0.0
      %3520 = vmatprep.subr.mxu0 0.0
      %3521 = vmatpush1.msra.mxu0 0.0
      %3522 = vmatprep.subr.mxu0 0.0
      %3523 = vmatpush1.msra.mxu0 0.0
      %3524 = vmatprep.subr.mxu0 0.0
      %3525 = vmatpush1.msra.mxu0 0.0
      %3526 = vmatprep.subr.mxu0 0.0
      %3527 = vmatpush1.msra.mxu0 0.0
      %3528 = vmatprep.subr.mxu0 0.0
      %3529 = vmatpush1.msra.mxu0 0.0
      %3530 = vmatprep.subr.mxu0 0.0
      %3531 = vmatpush1.msra.mxu0 0.0
      %3532 = vmatprep.subr.mxu0 0.0
      %3533 = vmatpush1.msra.mxu0 0.0
      %3534 = vmatprep.subr.mxu0 0.0
      %3535 = vmatpush1.msra.mxu0 0.0
      %3536 = vmatprep.subr.mxu0 0.0
      %3537 = vmatpush1.msra.mxu0 0.0
      %3538 = vmatprep.subr.mxu0 0.0
      %3539 = vmatpush1.msra.mxu0 0.0
      %3540 = vmatprep.subr.mxu0 0.0
      %3541 = vmatpush1.msra.mxu0 0.0
      %3542 = vmatprep.subr.mxu0 0.0
      %3543 = vmatpush1.msra.mxu0 0.0
      %3544 = vmatprep.mubr.f32.mxu0 0.0
      %3545 = vmatmul.mubr.f32.gmra.mrb[0].mxu0 %v3475
      %v3546 = vpop.f32.mrb[0].mxu0
      %v3547 = vadd.f32 0.0, %v3546
      %v3548 = vpop.f32.mrb[0].mxu0
      %3549 = vmatprep.mubr.f32.mxu0 0.0
      %3550 = vmatmul.mubr.f32.gmra.mrb[0].mxu0 %v3478
      %v3551 = vpop.f32.mrb[0].mxu0
      %v3552 = vadd.f32 0.0, %v3551
      %v3553 = vpop.f32.mrb[0].mxu0
      %3554 = vdwg.mxu0
      %v3556 = vsel %vm714, %v2812, 0
      %v3559 = vsel %vm714, %v2813, 0
      %3561 = vmatprep.subr.mxu0 0.0
      %3562 = vmatpush1.msra.mxu0 %v2748
      %3563 = vmatprep.subr.mxu0 0.0
      %3564 = vmatpush1.msra.mxu0 %v2749
      %3565 = vmatprep.subr.mxu0 0.0
      %3566 = vmatpush1.msra.mxu0 0.0
      %3567 = vmatprep.subr.mxu0 0.0
      %3568 = vmatpush1.msra.mxu0 0.0
      %3569 = vmatprep.subr.mxu0 0.0
      %3570 = vmatpush1.msra.mxu0 0.0
      %3571 = vmatprep.subr.mxu0 0.0
      %3572 = vmatpush1.msra.mxu0 0.0
      %3573 = vmatprep.subr.mxu0 0.0
      %3574 = vmatpush1.msra.mxu0 0.0
      %3575 = vmatprep.subr.mxu0 0.0
      %3576 = vmatpush1.msra.mxu0 0.0
      %3577 = vmatprep.subr.mxu0 0.0
      %3578 = vmatpush1.msra.mxu0 0.0
      %3579 = vmatprep.subr.mxu0 0.0
      %3580 = vmatpush1.msra.mxu0 0.0
      %3581 = vmatprep.subr.mxu0 0.0
      %3582 = vmatpush1.msra.mxu0 0.0
      %3583 = vmatprep.subr.mxu0 0.0
      %3584 = vmatpush1.msra.mxu0 0.0
      %3585 = vmatprep.subr.mxu0 0.0
      %3586 = vmatpush1.msra.mxu0 0.0
      %3587 = vmatprep.subr.mxu0 0.0
      %3588 = vmatpush1.msra.mxu0 0.0
      %3589 = vmatprep.subr.mxu0 0.0
      %3590 = vmatpush1.msra.mxu0 0.0
      %3591 = vmatprep.subr.mxu0 0.0
      %3592 = vmatpush1.msra.mxu0 0.0
      %3593 = vmatprep.subr.mxu0 0.0
      %3594 = vmatpush1.msra.mxu0 0.0
      %3595 = vmatprep.subr.mxu0 0.0
      %3596 = vmatpush1.msra.mxu0 0.0
      %3597 = vmatprep.subr.mxu0 0.0
      %3598 = vmatpush1.msra.mxu0 0.0
      %3599 = vmatprep.subr.mxu0 0.0
      %3600 = vmatpush1.msra.mxu0 0.0
      %3601 = vmatprep.subr.mxu0 0.0
      %3602 = vmatpush1.msra.mxu0 0.0
      %3603 = vmatprep.subr.mxu0 0.0
      %3604 = vmatpush1.msra.mxu0 0.0
      %3605 = vmatprep.subr.mxu0 0.0
      %3606 = vmatpush1.msra.mxu0 0.0
      %3607 = vmatprep.subr.mxu0 0.0
      %3608 = vmatpush1.msra.mxu0 0.0
      %3609 = vmatprep.subr.mxu0 0.0
      %3610 = vmatpush1.msra.mxu0 0.0
      %3611 = vmatprep.subr.mxu0 0.0
      %3612 = vmatpush1.msra.mxu0 0.0
      %3613 = vmatprep.subr.mxu0 0.0
      %3614 = vmatpush1.msra.mxu0 0.0
      %3615 = vmatprep.subr.mxu0 0.0
      %3616 = vmatpush1.msra.mxu0 0.0
      %3617 = vmatprep.subr.mxu0 0.0
      %3618 = vmatpush1.msra.mxu0 0.0
      %3619 = vmatprep.subr.mxu0 0.0
      %3620 = vmatpush1.msra.mxu0 0.0
      %3621 = vmatprep.subr.mxu0 0.0
      %3622 = vmatpush1.msra.mxu0 0.0
      %3623 = vmatprep.subr.mxu0 0.0
      %3624 = vmatpush1.msra.mxu0 0.0
      %3625 = vmatprep.mubr.f32.mxu0 0.0
      %3626 = vmatmul.mubr.f32.gmra.mrb[0].mxu0 %v3556
      %v3627 = vpop.f32.mrb[0].mxu0
      %v3628 = vadd.f32 0.0, %v3627
      %v3629 = vpop.f32.mrb[0].mxu0
      %3630 = vmatprep.mubr.f32.mxu0 0.0
      %3631 = vmatmul.mubr.f32.gmra.mrb[0].mxu0 %v3559
      %v3632 = vpop.f32.mrb[0].mxu0
      %v3633 = vadd.f32 0.0, %v3632
      %v3634 = vpop.f32.mrb[0].mxu0
      %3635 = vdwg.mxu0
      %v3637 = vsel %vm714, %v2814, 0
      %v3640 = vsel %vm714, %v2815, 0
      %3642 = vmatprep.subr.mxu0 0.0
      %3643 = vmatpush1.msra.mxu0 %v2750
      %3644 = vmatprep.subr.mxu0 0.0
      %3645 = vmatpush1.msra.mxu0 %v2751
      %3646 = vmatprep.subr.mxu0 0.0
      %3647 = vmatpush1.msra.mxu0 0.0
      %3648 = vmatprep.subr.mxu0 0.0
      %3649 = vmatpush1.msra.mxu0 0.0
      %3650 = vmatprep.subr.mxu0 0.0
      %3651 = vmatpush1.msra.mxu0 0.0
      %3652 = vmatprep.subr.mxu0 0.0
      %3653 = vmatpush1.msra.mxu0 0.0
      %3654 = vmatprep.subr.mxu0 0.0
      %3655 = vmatpush1.msra.mxu0 0.0
      %3656 = vmatprep.subr.mxu0 0.0
      %3657 = vmatpush1.msra.mxu0 0.0
      %3658 = vmatprep.subr.mxu0 0.0
      %3659 = vmatpush1.msra.mxu0 0.0
      %3660 = vmatprep.subr.mxu0 0.0
      %3661 = vmatpush1.msra.mxu0 0.0
      %3662 = vmatprep.subr.mxu0 0.0
      %3663 = vmatpush1.msra.mxu0 0.0
      %3664 = vmatprep.subr.mxu0 0.0
      %3665 = vmatpush1.msra.mxu0 0.0
      %3666 = vmatprep.subr.mxu0 0.0
      %3667 = vmatpush1.msra.mxu0 0.0
      %3668 = vmatprep.subr.mxu0 0.0
      %3669 = vmatpush1.msra.mxu0 0.0
      %3670 = vmatprep.subr.mxu0 0.0
      %3671 = vmatpush1.msra.mxu0 0.0
      %3672 = vmatprep.subr.mxu0 0.0
      %3673 = vmatpush1.msra.mxu0 0.0
      %3674 = vmatprep.subr.mxu0 0.0
      %3675 = vmatpush1.msra.mxu0 0.0
      %3676 = vmatprep.subr.mxu0 0.0
      %3677 = vmatpush1.msra.mxu0 0.0
      %3678 = vmatprep.subr.mxu0 0.0
      %3679 = vmatpush1.msra.mxu0 0.0
      %3680 = vmatprep.subr.mxu0 0.0
      %3681 = vmatpush1.msra.mxu0 0.0
      %3682 = vmatprep.subr.mxu0 0.0
      %3683 = vmatpush1.msra.mxu0 0.0
      %3684 = vmatprep.subr.mxu0 0.0
      %3685 = vmatpush1.msra.mxu0 0.0
      %3686 = vmatprep.subr.mxu0 0.0
      %3687 = vmatpush1.msra.mxu0 0.0
      %3688 = vmatprep.subr.mxu0 0.0
      %3689 = vmatpush1.msra.mxu0 0.0
      %3690 = vmatprep.subr.mxu0 0.0
      %3691 = vmatpush1.msra.mxu0 0.0
      %3692 = vmatprep.subr.mxu0 0.0
      %3693 = vmatpush1.msra.mxu0 0.0
      %3694 = vmatprep.subr.mxu0 0.0
      %3695 = vmatpush1.msra.mxu0 0.0
      %3696 = vmatprep.subr.mxu0 0.0
      %3697 = vmatpush1.msra.mxu0 0.0
      %3698 = vmatprep.subr.mxu0 0.0
      %3699 = vmatpush1.msra.mxu0 0.0
      %3700 = vmatprep.subr.mxu0 0.0
      %3701 = vmatpush1.msra.mxu0 0.0
      %3702 = vmatprep.subr.mxu0 0.0
      %3703 = vmatpush1.msra.mxu0 0.0
      %3704 = vmatprep.subr.mxu0 0.0
      %3705 = vmatpush1.msra.mxu0 0.0
      %3706 = vmatprep.mubr.f32.mxu0 0.0
      %3707 = vmatmul.mubr.f32.gmra.mrb[0].mxu0 %v3637
      %v3708 = vpop.f32.mrb[0].mxu0
      %v3709 = vadd.f32 0.0, %v3708
      %v3710 = vpop.f32.mrb[0].mxu0
      %3711 = vmatprep.mubr.f32.mxu0 0.0
      %3712 = vmatmul.mubr.f32.gmra.mrb[0].mxu0 %v3640
      %v3713 = vpop.f32.mrb[0].mxu0
      %v3714 = vadd.f32 0.0, %v3713
      %v3715 = vpop.f32.mrb[0].mxu0
      %3716 = vdwg.mxu0
      %v3718 = vsel %vm714, %v2816, 0
      %v3721 = vsel %vm714, %v2817, 0
      %3723 = vmatprep.subr.mxu0 0.0
      %3724 = vmatpush1.msra.mxu0 %v2752
      %3725 = vmatprep.subr.mxu0 0.0
      %3726 = vmatpush1.msra.mxu0 %v2753
      %3727 = vmatprep.subr.mxu0 0.0
      %3728 = vmatpush1.msra.mxu0 0.0
      %3729 = vmatprep.subr.mxu0 0.0
      %3730 = vmatpush1.msra.mxu0 0.0
      %3731 = vmatprep.subr.mxu0 0.0
      %3732 = vmatpush1.msra.mxu0 0.0
      %3733 = vmatprep.subr.mxu0 0.0
      %3734 = vmatpush1.msra.mxu0 0.0
      %3735 = vmatprep.subr.mxu0 0.0
      %3736 = vmatpush1.msra.mxu0 0.0
      %3737 = vmatprep.subr.mxu0 0.0
      %3738 = vmatpush1.msra.mxu0 0.0
      %3739 = vmatprep.subr.mxu0 0.0
      %3740 = vmatpush1.msra.mxu0 0.0
      %3741 = vmatprep.subr.mxu0 0.0
      %3742 = vmatpush1.msra.mxu0 0.0
      %3743 = vmatprep.subr.mxu0 0.0
      %3744 = vmatpush1.msra.mxu0 0.0
      %3745 = vmatprep.subr.mxu0 0.0
      %3746 = vmatpush1.msra.mxu0 0.0
      %3747 = vmatprep.subr.mxu0 0.0
      %3748 = vmatpush1.msra.mxu0 0.0
      %3749 = vmatprep.subr.mxu0 0.0
      %3750 = vmatpush1.msra.mxu0 0.0
      %3751 = vmatprep.subr.mxu0 0.0
      %3752 = vmatpush1.msra.mxu0 0.0
      %3753 = vmatprep.subr.mxu0 0.0
      %3754 = vmatpush1.msra.mxu0 0.0
      %3755 = vmatprep.subr.mxu0 0.0
      %3756 = vmatpush1.msra.mxu0 0.0
      %3757 = vmatprep.subr.mxu0 0.0
      %3758 = vmatpush1.msra.mxu0 0.0
      %3759 = vmatprep.subr.mxu0 0.0
      %3760 = vmatpush1.msra.mxu0 0.0
      %3761 = vmatprep.subr.mxu0 0.0
      %3762 = vmatpush1.msra.mxu0 0.0
      %3763 = vmatprep.subr.mxu0 0.0
      %3764 = vmatpush1.msra.mxu0 0.0
      %3765 = vmatprep.subr.mxu0 0.0
      %3766 = vmatpush1.msra.mxu0 0.0
      %3767 = vmatprep.subr.mxu0 0.0
      %3768 = vmatpush1.msra.mxu0 0.0
      %3769 = vmatprep.subr.mxu0 0.0
      %3770 = vmatpush1.msra.mxu0 0.0
      %3771 = vmatprep.subr.mxu0 0.0
      %3772 = vmatpush1.msra.mxu0 0.0
      %3773 = vmatprep.subr.mxu0 0.0
      %3774 = vmatpush1.msra.mxu0 0.0
      %3775 = vmatprep.subr.mxu0 0.0
      %3776 = vmatpush1.msra.mxu0 0.0
      %3777 = vmatprep.subr.mxu0 0.0
      %3778 = vmatpush1.msra.mxu0 0.0
      %3779 = vmatprep.subr.mxu0 0.0
      %3780 = vmatpush1.msra.mxu0 0.0
      %3781 = vmatprep.subr.mxu0 0.0
      %3782 = vmatpush1.msra.mxu0 0.0
      %3783 = vmatprep.subr.mxu0 0.0
      %3784 = vmatpush1.msra.mxu0 0.0
      %3785 = vmatprep.subr.mxu0 0.0
      %3786 = vmatpush1.msra.mxu0 0.0
      %3787 = vmatprep.mubr.f32.mxu0 0.0
      %3788 = vmatmul.mubr.f32.gmra.mrb[0].mxu0 %v3718
      %v3789 = vpop.f32.mrb[0].mxu0
      %v3790 = vadd.f32 0.0, %v3789
      %v3791 = vpop.f32.mrb[0].mxu0
      %3792 = vmatprep.mubr.f32.mxu0 0.0
      %3793 = vmatmul.mubr.f32.gmra.mrb[0].mxu0 %v3721
      %v3794 = vpop.f32.mrb[0].mxu0
      %v3795 = vadd.f32 0.0, %v3794
      %v3796 = vpop.f32.mrb[0].mxu0
      %3797 = vdwg.mxu0
      %v3799 = vsel %vm714, %v2818, 0
      %v3802 = vsel %vm714, %v2819, 0
      %3804 = vmatprep.subr.mxu0 0.0
      %3805 = vmatpush1.msra.mxu0 %v2754
      %3806 = vmatprep.subr.mxu0 0.0
      %3807 = vmatpush1.msra.mxu0 %v2755
      %3808 = vmatprep.subr.mxu0 0.0
      %3809 = vmatpush1.msra.mxu0 0.0
      %3810 = vmatprep.subr.mxu0 0.0
      %3811 = vmatpush1.msra.mxu0 0.0
      %3812 = vmatprep.subr.mxu0 0.0
      %3813 = vmatpush1.msra.mxu0 0.0
      %3814 = vmatprep.subr.mxu0 0.0
      %3815 = vmatpush1.msra.mxu0 0.0
      %3816 = vmatprep.subr.mxu0 0.0
      %3817 = vmatpush1.msra.mxu0 0.0
      %3818 = vmatprep.subr.mxu0 0.0
      %3819 = vmatpush1.msra.mxu0 0.0
      %3820 = vmatprep.subr.mxu0 0.0
      %3821 = vmatpush1.msra.mxu0 0.0
      %3822 = vmatprep.subr.mxu0 0.0
      %3823 = vmatpush1.msra.mxu0 0.0
      %3824 = vmatprep.subr.mxu0 0.0
      %3825 = vmatpush1.msra.mxu0 0.0
      %3826 = vmatprep.subr.mxu0 0.0
      %3827 = vmatpush1.msra.mxu0 0.0
      %3828 = vmatprep.subr.mxu0 0.0
      %3829 = vmatpush1.msra.mxu0 0.0
      %3830 = vmatprep.subr.mxu0 0.0
      %3831 = vmatpush1.msra.mxu0 0.0
      %3832 = vmatprep.subr.mxu0 0.0
      %3833 = vmatpush1.msra.mxu0 0.0
      %3834 = vmatprep.subr.mxu0 0.0
      %3835 = vmatpush1.msra.mxu0 0.0
      %3836 = vmatprep.subr.mxu0 0.0
      %3837 = vmatpush1.msra.mxu0 0.0
      %3838 = vmatprep.subr.mxu0 0.0
      %3839 = vmatpush1.msra.mxu0 0.0
      %3840 = vmatprep.subr.mxu0 0.0
      %3841 = vmatpush1.msra.mxu0 0.0
      %3842 = vmatprep.subr.mxu0 0.0
      %3843 = vmatpush1.msra.mxu0 0.0
      %3844 = vmatprep.subr.mxu0 0.0
      %3845 = vmatpush1.msra.mxu0 0.0
      %3846 = vmatprep.subr.mxu0 0.0
      %3847 = vmatpush1.msra.mxu0 0.0
      %3848 = vmatprep.subr.mxu0 0.0
      %3849 = vmatpush1.msra.mxu0 0.0
      %3850 = vmatprep.subr.mxu0 0.0
      %3851 = vmatpush1.msra.mxu0 0.0
      %3852 = vmatprep.subr.mxu0 0.0
      %3853 = vmatpush1.msra.mxu0 0.0
      %3854 = vmatprep.subr.mxu0 0.0
      %3855 = vmatpush1.msra.mxu0 0.0
      %3856 = vmatprep.subr.mxu0 0.0
      %3857 = vmatpush1.msra.mxu0 0.0
      %3858 = vmatprep.subr.mxu0 0.0
      %3859 = vmatpush1.msra.mxu0 0.0
      %3860 = vmatprep.subr.mxu0 0.0
      %3861 = vmatpush1.msra.mxu0 0.0
      %3862 = vmatprep.subr.mxu0 0.0
      %3863 = vmatpush1.msra.mxu0 0.0
      %3864 = vmatprep.subr.mxu0 0.0
      %3865 = vmatpush1.msra.mxu0 0.0
      %3866 = vmatprep.subr.mxu0 0.0
      %3867 = vmatpush1.msra.mxu0 0.0
      %3868 = vmatprep.mubr.f32.mxu0 0.0
      %3869 = vmatmul.mubr.f32.gmra.mrb[0].mxu0 %v3799
      %v3870 = vpop.f32.mrb[0].mxu0
      %v3871 = vadd.f32 0.0, %v3870
      %v3872 = vpop.f32.mrb[0].mxu0
      %3873 = vmatprep.mubr.f32.mxu0 0.0
      %3874 = vmatmul.mubr.f32.gmra.mrb[0].mxu0 %v3802
      %v3875 = vpop.f32.mrb[0].mxu0
      %v3876 = vadd.f32 0.0, %v3875
      %v3877 = vpop.f32.mrb[0].mxu0
      %3878 = vdwg.mxu0
      %v3880 = vsel %vm714, %v2820, 0
      %v3883 = vsel %vm714, %v2821, 0
      %3885 = vmatprep.subr.mxu0 0.0
      %3886 = vmatpush1.msra.mxu0 %v2756
      %3887 = vmatprep.subr.mxu0 0.0
      %3888 = vmatpush1.msra.mxu0 %v2757
      %3889 = vmatprep.subr.mxu0 0.0
      %3890 = vmatpush1.msra.mxu0 0.0
      %3891 = vmatprep.subr.mxu0 0.0
      %3892 = vmatpush1.msra.mxu0 0.0
      %3893 = vmatprep.subr.mxu0 0.0
      %3894 = vmatpush1.msra.mxu0 0.0
      %3895 = vmatprep.subr.mxu0 0.0
      %3896 = vmatpush1.msra.mxu0 0.0
      %3897 = vmatprep.subr.mxu0 0.0
      %3898 = vmatpush1.msra.mxu0 0.0
      %3899 = vmatprep.subr.mxu0 0.0
      %3900 = vmatpush1.msra.mxu0 0.0
      %3901 = vmatprep.subr.mxu0 0.0
      %3902 = vmatpush1.msra.mxu0 0.0
      %3903 = vmatprep.subr.mxu0 0.0
      %3904 = vmatpush1.msra.mxu0 0.0
      %3905 = vmatprep.subr.mxu0 0.0
      %3906 = vmatpush1.msra.mxu0 0.0
      %3907 = vmatprep.subr.mxu0 0.0
      %3908 = vmatpush1.msra.mxu0 0.0
      %3909 = vmatprep.subr.mxu0 0.0
      %3910 = vmatpush1.msra.mxu0 0.0
      %3911 = vmatprep.subr.mxu0 0.0
      %3912 = vmatpush1.msra.mxu0 0.0
      %3913 = vmatprep.subr.mxu0 0.0
      %3914 = vmatpush1.msra.mxu0 0.0
      %3915 = vmatprep.subr.mxu0 0.0
      %3916 = vmatpush1.msra.mxu0 0.0
      %3917 = vmatprep.subr.mxu0 0.0
      %3918 = vmatpush1.msra.mxu0 0.0
      %3919 = vmatprep.subr.mxu0 0.0
      %3920 = vmatpush1.msra.mxu0 0.0
      %3921 = vmatprep.subr.mxu0 0.0
      %3922 = vmatpush1.msra.mxu0 0.0
      %3923 = vmatprep.subr.mxu0 0.0
      %3924 = vmatpush1.msra.mxu0 0.0
      %3925 = vmatprep.subr.mxu0 0.0
      %3926 = vmatpush1.msra.mxu0 0.0
      %3927 = vmatprep.subr.mxu0 0.0
      %3928 = vmatpush1.msra.mxu0 0.0
      %3929 = vmatprep.subr.mxu0 0.0
      %3930 = vmatpush1.msra.mxu0 0.0
      %3931 = vmatprep.subr.mxu0 0.0
      %3932 = vmatpush1.msra.mxu0 0.0
      %3933 = vmatprep.subr.mxu0 0.0
      %3934 = vmatpush1.msra.mxu0 0.0
      %3935 = vmatprep.subr.mxu0 0.0
      %3936 = vmatpush1.msra.mxu0 0.0
      %3937 = vmatprep.subr.mxu0 0.0
      %3938 = vmatpush1.msra.mxu0 0.0
      %3939 = vmatprep.subr.mxu0 0.0
      %3940 = vmatpush1.msra.mxu0 0.0
      %3941 = vmatprep.subr.mxu0 0.0
      %3942 = vmatpush1.msra.mxu0 0.0
      %3943 = vmatprep.subr.mxu0 0.0
      %3944 = vmatpush1.msra.mxu0 0.0
      %3945 = vmatprep.subr.mxu0 0.0
      %3946 = vmatpush1.msra.mxu0 0.0
      %3947 = vmatprep.subr.mxu0 0.0
      %3948 = vmatpush1.msra.mxu0 0.0
      %3949 = vmatprep.mubr.f32.mxu0 0.0
      %3950 = vmatmul.mubr.f32.gmra.mrb[0].mxu0 %v3880
      %v3951 = vpop.f32.mrb[0].mxu0
      %v3952 = vadd.f32 0.0, %v3951
      %v3953 = vpop.f32.mrb[0].mxu0
      %3954 = vmatprep.mubr.f32.mxu0 0.0
      %3955 = vmatmul.mubr.f32.gmra.mrb[0].mxu0 %v3883
      %v3956 = vpop.f32.mrb[0].mxu0
      %v3957 = vadd.f32 0.0, %v3956
      %v3958 = vpop.f32.mrb[0].mxu0
      %3959 = vdwg.mxu0
      %v3961 = vsel %vm714, %v2822, 0
      %v3964 = vsel %vm714, %v2823, 0
      %3966 = vmatprep.subr.mxu0 0.0
      %3967 = vmatpush1.msra.mxu0 %v2758
      %3968 = vmatprep.subr.mxu0 0.0
      %3969 = vmatpush1.msra.mxu0 %v2759
      %3970 = vmatprep.subr.mxu0 0.0
      %3971 = vmatpush1.msra.mxu0 0.0
      %3972 = vmatprep.subr.mxu0 0.0
      %3973 = vmatpush1.msra.mxu0 0.0
      %3974 = vmatprep.subr.mxu0 0.0
      %3975 = vmatpush1.msra.mxu0 0.0
      %3976 = vmatprep.subr.mxu0 0.0
      %3977 = vmatpush1.msra.mxu0 0.0
      %3978 = vmatprep.subr.mxu0 0.0
      %3979 = vmatpush1.msra.mxu0 0.0
      %3980 = vmatprep.subr.mxu0 0.0
      %3981 = vmatpush1.msra.mxu0 0.0
      %3982 = vmatprep.subr.mxu0 0.0
      %3983 = vmatpush1.msra.mxu0 0.0
      %3984 = vmatprep.subr.mxu0 0.0
      %3985 = vmatpush1.msra.mxu0 0.0
      %3986 = vmatprep.subr.mxu0 0.0
      %3987 = vmatpush1.msra.mxu0 0.0
      %3988 = vmatprep.subr.mxu0 0.0
      %3989 = vmatpush1.msra.mxu0 0.0
      %3990 = vmatprep.subr.mxu0 0.0
      %3991 = vmatpush1.msra.mxu0 0.0
      %3992 = vmatprep.subr.mxu0 0.0
      %3993 = vmatpush1.msra.mxu0 0.0
      %3994 = vmatprep.subr.mxu0 0.0
      %3995 = vmatpush1.msra.mxu0 0.0
      %3996 = vmatprep.subr.mxu0 0.0
      %3997 = vmatpush1.msra.mxu0 0.0
      %3998 = vmatprep.subr.mxu0 0.0
      %3999 = vmatpush1.msra.mxu0 0.0
      %4000 = vmatprep.subr.mxu0 0.0
      %4001 = vmatpush1.msra.mxu0 0.0
      %4002 = vmatprep.subr.mxu0 0.0
      %4003 = vmatpush1.msra.mxu0 0.0
      %4004 = vmatprep.subr.mxu0 0.0
      %4005 = vmatpush1.msra.mxu0 0.0
      %4006 = vmatprep.subr.mxu0 0.0
      %4007 = vmatpush1.msra.mxu0 0.0
      %4008 = vmatprep.subr.mxu0 0.0
      %4009 = vmatpush1.msra.mxu0 0.0
      %4010 = vmatprep.subr.mxu0 0.0
      %4011 = vmatpush1.msra.mxu0 0.0
      %4012 = vmatprep.subr.mxu0 0.0
      %4013 = vmatpush1.msra.mxu0 0.0
      %4014 = vmatprep.subr.mxu0 0.0
      %4015 = vmatpush1.msra.mxu0 0.0
      %4016 = vmatprep.subr.mxu0 0.0
      %4017 = vmatpush1.msra.mxu0 0.0
      %4018 = vmatprep.subr.mxu0 0.0
      %4019 = vmatpush1.msra.mxu0 0.0
      %4020 = vmatprep.subr.mxu0 0.0
      %4021 = vmatpush1.msra.mxu0 0.0
      %4022 = vmatprep.subr.mxu0 0.0
      %4023 = vmatpush1.msra.mxu0 0.0
      %4024 = vmatprep.subr.mxu0 0.0
      %4025 = vmatpush1.msra.mxu0 0.0
      %4026 = vmatprep.subr.mxu0 0.0
      %4027 = vmatpush1.msra.mxu0 0.0
      %4028 = vmatprep.subr.mxu0 0.0
      %4029 = vmatpush1.msra.mxu0 0.0
      %4030 = vmatprep.mubr.f32.mxu0 0.0
      %4031 = vmatmul.mubr.f32.gmra.mrb[0].mxu0 %v3961
      %v4032 = vpop.f32.mrb[0].mxu0
      %v4033 = vadd.f32 0.0, %v4032
      %v4034 = vpop.f32.mrb[0].mxu0
      %4035 = vmatprep.mubr.f32.mxu0 0.0
      %4036 = vmatmul.mubr.f32.gmra.mrb[0].mxu0 %v3964
      %v4037 = vpop.f32.mrb[0].mxu0
      %v4038 = vadd.f32 0.0, %v4037
      %v4039 = vpop.f32.mrb[0].mxu0
      %4040 = vdwg.mxu0
      %v4042 = vsel %vm714, %v2824, 0
      %v4045 = vsel %vm714, %v2825, 0
      %4047 = vmatprep.subr.mxu0 0.0
      %4048 = vmatpush1.msra.mxu0 %v2760
      %4049 = vmatprep.subr.mxu0 0.0
      %4050 = vmatpush1.msra.mxu0 %v2761
      %4051 = vmatprep.subr.mxu0 0.0
      %4052 = vmatpush1.msra.mxu0 0.0
      %4053 = vmatprep.subr.mxu0 0.0
      %4054 = vmatpush1.msra.mxu0 0.0
      %4055 = vmatprep.subr.mxu0 0.0
      %4056 = vmatpush1.msra.mxu0 0.0
      %4057 = vmatprep.subr.mxu0 0.0
      %4058 = vmatpush1.msra.mxu0 0.0
      %4059 = vmatprep.subr.mxu0 0.0
      %4060 = vmatpush1.msra.mxu0 0.0
      %4061 = vmatprep.subr.mxu0 0.0
      %4062 = vmatpush1.msra.mxu0 0.0
      %4063 = vmatprep.subr.mxu0 0.0
      %4064 = vmatpush1.msra.mxu0 0.0
      %4065 = vmatprep.subr.mxu0 0.0
      %4066 = vmatpush1.msra.mxu0 0.0
      %4067 = vmatprep.subr.mxu0 0.0
      %4068 = vmatpush1.msra.mxu0 0.0
      %4069 = vmatprep.subr.mxu0 0.0
      %4070 = vmatpush1.msra.mxu0 0.0
      %4071 = vmatprep.subr.mxu0 0.0
      %4072 = vmatpush1.msra.mxu0 0.0
      %4073 = vmatprep.subr.mxu0 0.0
      %4074 = vmatpush1.msra.mxu0 0.0
      %4075 = vmatprep.subr.mxu0 0.0
      %4076 = vmatpush1.msra.mxu0 0.0
      %4077 = vmatprep.subr.mxu0 0.0
      %4078 = vmatpush1.msra.mxu0 0.0
      %4079 = vmatprep.subr.mxu0 0.0
      %4080 = vmatpush1.msra.mxu0 0.0
      %4081 = vmatprep.subr.mxu0 0.0
      %4082 = vmatpush1.msra.mxu0 0.0
      %4083 = vmatprep.subr.mxu0 0.0
      %4084 = vmatpush1.msra.mxu0 0.0
      %4085 = vmatprep.subr.mxu0 0.0
      %4086 = vmatpush1.msra.mxu0 0.0
      %4087 = vmatprep.subr.mxu0 0.0
      %4088 = vmatpush1.msra.mxu0 0.0
      %4089 = vmatprep.subr.mxu0 0.0
      %4090 = vmatpush1.msra.mxu0 0.0
      %4091 = vmatprep.subr.mxu0 0.0
      %4092 = vmatpush1.msra.mxu0 0.0
      %4093 = vmatprep.subr.mxu0 0.0
      %4094 = vmatpush1.msra.mxu0 0.0
      %4095 = vmatprep.subr.mxu0 0.0
      %4096 = vmatpush1.msra.mxu0 0.0
      %4097 = vmatprep.subr.mxu0 0.0
      %4098 = vmatpush1.msra.mxu0 0.0
      %4099 = vmatprep.subr.mxu0 0.0
      %4100 = vmatpush1.msra.mxu0 0.0
      %4101 = vmatprep.subr.mxu0 0.0
      %4102 = vmatpush1.msra.mxu0 0.0
      %4103 = vmatprep.subr.mxu0 0.0
      %4104 = vmatpush1.msra.mxu0 0.0
      %4105 = vmatprep.subr.mxu0 0.0
      %4106 = vmatpush1.msra.mxu0 0.0
      %4107 = vmatprep.subr.mxu0 0.0
      %4108 = vmatpush1.msra.mxu0 0.0
      %4109 = vmatprep.subr.mxu0 0.0
      %4110 = vmatpush1.msra.mxu0 0.0
      %4111 = vmatprep.mubr.f32.mxu0 0.0
      %4112 = vmatmul.mubr.f32.gmra.mrb[0].mxu0 %v4042
      %v4113 = vpop.f32.mrb[0].mxu0
      %v4114 = vadd.f32 0.0, %v4113
      %v4115 = vpop.f32.mrb[0].mxu0
      %4116 = vmatprep.mubr.f32.mxu0 0.0
      %4117 = vmatmul.mubr.f32.gmra.mrb[0].mxu0 %v4045
      %v4118 = vpop.f32.mrb[0].mxu0
      %v4119 = vadd.f32 0.0, %v4118
      %v4120 = vpop.f32.mrb[0].mxu0
      %4121 = vdwg.mxu0
      %v4122 = vmul.f32 %v2730, %v2899
      %v4123 = vmul.f32 %v2731, %v2904
      %v4124 = vmul.f32 %v2732, %v2980
      %v4125 = vmul.f32 %v2733, %v2985
      %v4126 = vmul.f32 %v2734, %v3061
      %v4127 = vmul.f32 %v2735, %v3066
      %v4128 = vmul.f32 %v2736, %v3142
      %v4129 = vmul.f32 %v2737, %v3147
      %v4130 = vmul.f32 %v2738, %v3223
      %v4131 = vmul.f32 %v2739, %v3228
      %v4132 = vmul.f32 %v2740, %v3304
      %v4133 = vmul.f32 %v2741, %v3309
      %v4134 = vmul.f32 %v2742, %v3385
      %v4135 = vmul.f32 %v2743, %v3390
      %v4136 = vmul.f32 %v2744, %v3466
      %v4137 = vmul.f32 %v2745, %v3471
      %v4138 = vmul.f32 %v2746, %v3547
      %v4139 = vmul.f32 %v2747, %v3552
      %v4140 = vmul.f32 %v2748, %v3628
      %v4141 = vmul.f32 %v2749, %v3633
      %v4142 = vmul.f32 %v2750, %v3709
      %v4143 = vmul.f32 %v2751, %v3714
      %v4144 = vmul.f32 %v2752, %v3790
      %v4145 = vmul.f32 %v2753, %v3795
      %v4146 = vmul.f32 %v2754, %v3871
      %v4147 = vmul.f32 %v2755, %v3876
      %v4148 = vmul.f32 %v2756, %v3952
      %v4149 = vmul.f32 %v2757, %v3957
      %v4150 = vmul.f32 %v2758, %v4033
      %v4151 = vmul.f32 %v2759, %v4038
      %v4152 = vmul.f32 %v2760, %v4114
      %v4153 = vmul.f32 %v2761, %v4119
      %v4154 = vsel %vm714, %v4122, 0.0
      %4155 = vadd.xlane.f32.xlu0 %v4154
      %v4156 = vpop.xlane.xlu0 %4155
      %v4157 = vsel %vm714, %v4123, 0.0
      %4158 = vadd.xlane.f32.xlu0 %v4157
      %v4159 = vpop.xlane.xlu0 %4158
      %v4160 = vsel %vm714, %v4124, 0.0
      %4161 = vadd.xlane.f32.xlu0 %v4160
      %v4162 = vpop.xlane.xlu0 %4161
      %v4163 = vsel %vm714, %v4125, 0.0
      %4164 = vadd.xlane.f32.xlu0 %v4163
      %v4165 = vpop.xlane.xlu0 %4164
      %v4166 = vsel %vm714, %v4126, 0.0
      %4167 = vadd.xlane.f32.xlu0 %v4166
      %v4168 = vpop.xlane.xlu0 %4167
      %v4169 = vsel %vm714, %v4127, 0.0
      %4170 = vadd.xlane.f32.xlu0 %v4169
      %v4171 = vpop.xlane.xlu0 %4170
      %v4172 = vsel %vm714, %v4128, 0.0
      %4173 = vadd.xlane.f32.xlu0 %v4172
      %v4174 = vpop.xlane.xlu0 %4173
      %v4175 = vsel %vm714, %v4129, 0.0
      %4176 = vadd.xlane.f32.xlu0 %v4175
      %v4177 = vpop.xlane.xlu0 %4176
      %v4178 = vsel %vm714, %v4130, 0.0
      %4179 = vadd.xlane.f32.xlu0 %v4178
      %v4180 = vpop.xlane.xlu0 %4179
      %v4181 = vsel %vm714, %v4131, 0.0
      %4182 = vadd.xlane.f32.xlu0 %v4181
      %v4183 = vpop.xlane.xlu0 %4182
      %v4184 = vsel %vm714, %v4132, 0.0
      %4185 = vadd.xlane.f32.xlu0 %v4184
      %v4186 = vpop.xlane.xlu0 %4185
      %v4187 = vsel %vm714, %v4133, 0.0
      %4188 = vadd.xlane.f32.xlu0 %v4187
      %v4189 = vpop.xlane.xlu0 %4188
      %v4190 = vsel %vm714, %v4134, 0.0
      %4191 = vadd.xlane.f32.xlu0 %v4190
      %v4192 = vpop.xlane.xlu0 %4191
      %v4193 = vsel %vm714, %v4135, 0.0
      %4194 = vadd.xlane.f32.xlu0 %v4193
      %v4195 = vpop.xlane.xlu0 %4194
      %v4196 = vsel %vm714, %v4136, 0.0
      %4197 = vadd.xlane.f32.xlu0 %v4196
      %v4198 = vpop.xlane.xlu0 %4197
      %v4199 = vsel %vm714, %v4137, 0.0
      %4200 = vadd.xlane.f32.xlu0 %v4199
      %v4201 = vpop.xlane.xlu0 %4200
      %v4202 = vsel %vm714, %v4138, 0.0
      %4203 = vadd.xlane.f32.xlu0 %v4202
      %v4204 = vpop.xlane.xlu0 %4203
      %v4205 = vsel %vm714, %v4139, 0.0
      %4206 = vadd.xlane.f32.xlu0 %v4205
      %v4207 = vpop.xlane.xlu0 %4206
      %v4208 = vsel %vm714, %v4140, 0.0
      %4209 = vadd.xlane.f32.xlu0 %v4208
      %v4210 = vpop.xlane.xlu0 %4209
      %v4211 = vsel %vm714, %v4141, 0.0
      %4212 = vadd.xlane.f32.xlu0 %v4211
      %v4213 = vpop.xlane.xlu0 %4212
      %v4214 = vsel %vm714, %v4142, 0.0
      %4215 = vadd.xlane.f32.xlu0 %v4214
      %v4216 = vpop.xlane.xlu0 %4215
      %v4217 = vsel %vm714, %v4143, 0.0
      %4218 = vadd.xlane.f32.xlu0 %v4217
      %v4219 = vpop.xlane.xlu0 %4218
      %v4220 = vsel %vm714, %v4144, 0.0
      %4221 = vadd.xlane.f32.xlu0 %v4220
      %v4222 = vpop.xlane.xlu0 %4221
      %v4223 = vsel %vm714, %v4145, 0.0
      %4224 = vadd.xlane.f32.xlu0 %v4223
      %v4225 = vpop.xlane.xlu0 %4224
      %v4226 = vsel %vm714, %v4146, 0.0
      %4227 = vadd.xlane.f32.xlu0 %v4226
      %v4228 = vpop.xlane.xlu0 %4227
      %v4229 = vsel %vm714, %v4147, 0.0
      %4230 = vadd.xlane.f32.xlu0 %v4229
      %v4231 = vpop.xlane.xlu0 %4230
      %v4232 = vsel %vm714, %v4148, 0.0
      %4233 = vadd.xlane.f32.xlu0 %v4232
      %v4234 = vpop.xlane.xlu0 %4233
      %v4235 = vsel %vm714, %v4149, 0.0
      %4236 = vadd.xlane.f32.xlu0 %v4235
      %v4237 = vpop.xlane.xlu0 %4236
      %v4238 = vsel %vm714, %v4150, 0.0
      %4239 = vadd.xlane.f32.xlu0 %v4238
      %v4240 = vpop.xlane.xlu0 %4239
      %v4241 = vsel %vm714, %v4151, 0.0
      %4242 = vadd.xlane.f32.xlu0 %v4241
      %v4243 = vpop.xlane.xlu0 %4242
      %v4244 = vsel %vm714, %v4152, 0.0
      %4245 = vadd.xlane.f32.xlu0 %v4244
      %v4246 = vpop.xlane.xlu0 %4245
      %v4247 = vsel %vm714, %v4153, 0.0
      %4248 = vadd.xlane.f32.xlu0 %v4247
      %v4249 = vpop.xlane.xlu0 %4248
      %v4250 = vadd.f32 %v4156, %v4159
      %v4251 = vrot.slane %v4250, 4
      %v4252 = vadd.f32 %v4250, %v4251
      %v4253 = vrot.slane %v4252, 2
      %v4254 = vadd.f32 %v4252, %v4253
      %v4255 = vrot.slane %v4254, 1
      %v4256 = vadd.f32 %v4254, %v4255
      %v4257 = vadd.f32 %v4162, %v4165
      %v4258 = vrot.slane %v4257, 4
      %v4259 = vadd.f32 %v4257, %v4258
      %v4260 = vrot.slane %v4259, 2
      %v4261 = vadd.f32 %v4259, %v4260
      %v4262 = vrot.slane %v4261, 1
      %v4263 = vadd.f32 %v4261, %v4262
      %v4264 = vadd.f32 %v4168, %v4171
      %v4265 = vrot.slane %v4264, 4
      %v4266 = vadd.f32 %v4264, %v4265
      %v4267 = vrot.slane %v4266, 2
      %v4268 = vadd.f32 %v4266, %v4267
      %v4269 = vrot.slane %v4268, 1
      %v4270 = vadd.f32 %v4268, %v4269
      %v4271 = vadd.f32 %v4174, %v4177
      %v4272 = vrot.slane %v4271, 4
      %v4273 = vadd.f32 %v4271, %v4272
      %v4274 = vrot.slane %v4273, 2
      %v4275 = vadd.f32 %v4273, %v4274
      %v4276 = vrot.slane %v4275, 1
      %v4277 = vadd.f32 %v4275, %v4276
      %v4278 = vadd.f32 %v4180, %v4183
      %v4279 = vrot.slane %v4278, 4
      %v4280 = vadd.f32 %v4278, %v4279
      %v4281 = vrot.slane %v4280, 2
      %v4282 = vadd.f32 %v4280, %v4281
      %v4283 = vrot.slane %v4282, 1
      %v4284 = vadd.f32 %v4282, %v4283
      %v4285 = vadd.f32 %v4186, %v4189
      %v4286 = vrot.slane %v4285, 4
      %v4287 = vadd.f32 %v4285, %v4286
      %v4288 = vrot.slane %v4287, 2
      %v4289 = vadd.f32 %v4287, %v4288
      %v4290 = vrot.slane %v4289, 1
      %v4291 = vadd.f32 %v4289, %v4290
      %v4292 = vadd.f32 %v4192, %v4195
      %v4293 = vrot.slane %v4292, 4
      %v4294 = vadd.f32 %v4292, %v4293
      %v4295 = vrot.slane %v4294, 2
      %v4296 = vadd.f32 %v4294, %v4295
      %v4297 = vrot.slane %v4296, 1
      %v4298 = vadd.f32 %v4296, %v4297
      %v4299 = vadd.f32 %v4198, %v4201
      %v4300 = vrot.slane %v4299, 4
      %v4301 = vadd.f32 %v4299, %v4300
      %v4302 = vrot.slane %v4301, 2
      %v4303 = vadd.f32 %v4301, %v4302
      %v4304 = vrot.slane %v4303, 1
      %v4305 = vadd.f32 %v4303, %v4304
      %v4306 = vadd.f32 %v4204, %v4207
      %v4307 = vrot.slane %v4306, 4
      %v4308 = vadd.f32 %v4306, %v4307
      %v4309 = vrot.slane %v4308, 2
      %v4310 = vadd.f32 %v4308, %v4309
      %v4311 = vrot.slane %v4310, 1
      %v4312 = vadd.f32 %v4310, %v4311
      %v4313 = vadd.f32 %v4210, %v4213
      %v4314 = vrot.slane %v4313, 4
      %v4315 = vadd.f32 %v4313, %v4314
      %v4316 = vrot.slane %v4315, 2
      %v4317 = vadd.f32 %v4315, %v4316
      %v4318 = vrot.slane %v4317, 1
      %v4319 = vadd.f32 %v4317, %v4318
      %v4320 = vadd.f32 %v4216, %v4219
      %v4321 = vrot.slane %v4320, 4
      %v4322 = vadd.f32 %v4320, %v4321
      %v4323 = vrot.slane %v4322, 2
      %v4324 = vadd.f32 %v4322, %v4323
      %v4325 = vrot.slane %v4324, 1
      %v4326 = vadd.f32 %v4324, %v4325
      %v4327 = vadd.f32 %v4222, %v4225
      %v4328 = vrot.slane %v4327, 4
      %v4329 = vadd.f32 %v4327, %v4328
      %v4330 = vrot.slane %v4329, 2
      %v4331 = vadd.f32 %v4329, %v4330
      %v4332 = vrot.slane %v4331, 1
      %v4333 = vadd.f32 %v4331, %v4332
      %v4334 = vadd.f32 %v4228, %v4231
      %v4335 = vrot.slane %v4334, 4
      %v4336 = vadd.f32 %v4334, %v4335
      %v4337 = vrot.slane %v4336, 2
      %v4338 = vadd.f32 %v4336, %v4337
      %v4339 = vrot.slane %v4338, 1
      %v4340 = vadd.f32 %v4338, %v4339
      %v4341 = vadd.f32 %v4234, %v4237
      %v4342 = vrot.slane %v4341, 4
      %v4343 = vadd.f32 %v4341, %v4342
      %v4344 = vrot.slane %v4343, 2
      %v4345 = vadd.f32 %v4343, %v4344
      %v4346 = vrot.slane %v4345, 1
      %v4347 = vadd.f32 %v4345, %v4346
      %v4348 = vadd.f32 %v4240, %v4243
      %v4349 = vrot.slane %v4348, 4
      %v4350 = vadd.f32 %v4348, %v4349
      %v4351 = vrot.slane %v4350, 2
      %v4352 = vadd.f32 %v4350, %v4351
      %v4353 = vrot.slane %v4352, 1
      %v4354 = vadd.f32 %v4352, %v4353
      %v4355 = vadd.f32 %v4246, %v4249
      %v4356 = vrot.slane %v4355, 4
      %v4357 = vadd.f32 %v4355, %v4356
      %v4358 = vrot.slane %v4357, 2
      %v4359 = vadd.f32 %v4357, %v4358
      %v4360 = vrot.slane %v4359, 1
      %v4361 = vadd.f32 %v4359, %v4360
      %v4362 = vsel %vm714, %v2794, 0.0
      %4363 = vadd.xlane.f32.xlu0 %v4362
      %v4364 = vpop.xlane.xlu0 %4363
      %v4365 = vsel %vm714, %v2795, 0.0
      %4366 = vadd.xlane.f32.xlu0 %v4365
      %v4367 = vpop.xlane.xlu0 %4366
      %v4368 = vsel %vm714, %v2796, 0.0
      %4369 = vadd.xlane.f32.xlu0 %v4368
      %v4370 = vpop.xlane.xlu0 %4369
      %v4371 = vsel %vm714, %v2797, 0.0
      %4372 = vadd.xlane.f32.xlu0 %v4371
      %v4373 = vpop.xlane.xlu0 %4372
      %v4374 = vsel %vm714, %v2798, 0.0
      %4375 = vadd.xlane.f32.xlu0 %v4374
      %v4376 = vpop.xlane.xlu0 %4375
      %v4377 = vsel %vm714, %v2799, 0.0
      %4378 = vadd.xlane.f32.xlu0 %v4377
      %v4379 = vpop.xlane.xlu0 %4378
      %v4380 = vsel %vm714, %v2800, 0.0
      %4381 = vadd.xlane.f32.xlu0 %v4380
      %v4382 = vpop.xlane.xlu0 %4381
      %v4383 = vsel %vm714, %v2801, 0.0
      %4384 = vadd.xlane.f32.xlu0 %v4383
      %v4385 = vpop.xlane.xlu0 %4384
      %v4386 = vsel %vm714, %v2802, 0.0
      %4387 = vadd.xlane.f32.xlu0 %v4386
      %v4388 = vpop.xlane.xlu0 %4387
      %v4389 = vsel %vm714, %v2803, 0.0
      %4390 = vadd.xlane.f32.xlu0 %v4389
      %v4391 = vpop.xlane.xlu0 %4390
      %v4392 = vsel %vm714, %v2804, 0.0
      %4393 = vadd.xlane.f32.xlu0 %v4392
      %v4394 = vpop.xlane.xlu0 %4393
      %v4395 = vsel %vm714, %v2805, 0.0
      %4396 = vadd.xlane.f32.xlu0 %v4395
      %v4397 = vpop.xlane.xlu0 %4396
      %v4398 = vsel %vm714, %v2806, 0.0
      %4399 = vadd.xlane.f32.xlu0 %v4398
      %v4400 = vpop.xlane.xlu0 %4399
      %v4401 = vsel %vm714, %v2807, 0.0
      %4402 = vadd.xlane.f32.xlu0 %v4401
      %v4403 = vpop.xlane.xlu0 %4402
      %v4404 = vsel %vm714, %v2808, 0.0
      %4405 = vadd.xlane.f32.xlu0 %v4404
      %v4406 = vpop.xlane.xlu0 %4405
      %v4407 = vsel %vm714, %v2809, 0.0
      %4408 = vadd.xlane.f32.xlu0 %v4407
      %v4409 = vpop.xlane.xlu0 %4408
      %v4410 = vsel %vm714, %v2810, 0.0
      %4411 = vadd.xlane.f32.xlu0 %v4410
      %v4412 = vpop.xlane.xlu0 %4411
      %v4413 = vsel %vm714, %v2811, 0.0
      %4414 = vadd.xlane.f32.xlu0 %v4413
      %v4415 = vpop.xlane.xlu0 %4414
      %v4416 = vsel %vm714, %v2812, 0.0
      %4417 = vadd.xlane.f32.xlu0 %v4416
      %v4418 = vpop.xlane.xlu0 %4417
      %v4419 = vsel %vm714, %v2813, 0.0
      %4420 = vadd.xlane.f32.xlu0 %v4419
      %v4421 = vpop.xlane.xlu0 %4420
      %v4422 = vsel %vm714, %v2814, 0.0
      %4423 = vadd.xlane.f32.xlu0 %v4422
      %v4424 = vpop.xlane.xlu0 %4423
      %v4425 = vsel %vm714, %v2815, 0.0
      %4426 = vadd.xlane.f32.xlu0 %v4425
      %v4427 = vpop.xlane.xlu0 %4426
      %v4428 = vsel %vm714, %v2816, 0.0
      %4429 = vadd.xlane.f32.xlu0 %v4428
      %v4430 = vpop.xlane.xlu0 %4429
      %v4431 = vsel %vm714, %v2817, 0.0
      %4432 = vadd.xlane.f32.xlu0 %v4431
      %v4433 = vpop.xlane.xlu0 %4432
      %v4434 = vsel %vm714, %v2818, 0.0
      %4435 = vadd.xlane.f32.xlu0 %v4434
      %v4436 = vpop.xlane.xlu0 %4435
      %v4437 = vsel %vm714, %v2819, 0.0
      %4438 = vadd.xlane.f32.xlu0 %v4437
      %v4439 = vpop.xlane.xlu0 %4438
      %v4440 = vsel %vm714, %v2820, 0.0
      %4441 = vadd.xlane.f32.xlu0 %v4440
      %v4442 = vpop.xlane.xlu0 %4441
      %v4443 = vsel %vm714, %v2821, 0.0
      %4444 = vadd.xlane.f32.xlu0 %v4443
      %v4445 = vpop.xlane.xlu0 %4444
      %v4446 = vsel %vm714, %v2822, 0.0
      %4447 = vadd.xlane.f32.xlu0 %v4446
      %v4448 = vpop.xlane.xlu0 %4447
      %v4449 = vsel %vm714, %v2823, 0.0
      %4450 = vadd.xlane.f32.xlu0 %v4449
      %v4451 = vpop.xlane.xlu0 %4450
      %v4452 = vsel %vm714, %v2824, 0.0
      %4453 = vadd.xlane.f32.xlu0 %v4452
      %v4454 = vpop.xlane.xlu0 %4453
      %v4455 = vsel %vm714, %v2825, 0.0
      %4456 = vadd.xlane.f32.xlu0 %v4455
      %v4457 = vpop.xlane.xlu0 %4456
      %v4458 = vmul.f32 %v2730, %v2730
      %v4459 = vmul.f32 %v2731, %v2731
      %v4460 = vmul.f32 %v2732, %v2732
      %v4461 = vmul.f32 %v2733, %v2733
      %v4462 = vmul.f32 %v2734, %v2734
      %v4463 = vmul.f32 %v2735, %v2735
      %v4464 = vmul.f32 %v2736, %v2736
      %v4465 = vmul.f32 %v2737, %v2737
      %v4466 = vmul.f32 %v2738, %v2738
      %v4467 = vmul.f32 %v2739, %v2739
      %v4468 = vmul.f32 %v2740, %v2740
      %v4469 = vmul.f32 %v2741, %v2741
      %v4470 = vmul.f32 %v2742, %v2742
      %v4471 = vmul.f32 %v2743, %v2743
      %v4472 = vmul.f32 %v2744, %v2744
      %v4473 = vmul.f32 %v2745, %v2745
      %v4474 = vmul.f32 %v2746, %v2746
      %v4475 = vmul.f32 %v2747, %v2747
      %v4476 = vmul.f32 %v2748, %v2748
      %v4477 = vmul.f32 %v2749, %v2749
      %v4478 = vmul.f32 %v2750, %v2750
      %v4479 = vmul.f32 %v2751, %v2751
      %v4480 = vmul.f32 %v2752, %v2752
      %v4481 = vmul.f32 %v2753, %v2753
      %v4482 = vmul.f32 %v2754, %v2754
      %v4483 = vmul.f32 %v2755, %v2755
      %v4484 = vmul.f32 %v2756, %v2756
      %v4485 = vmul.f32 %v2757, %v2757
      %v4486 = vmul.f32 %v2758, %v2758
      %v4487 = vmul.f32 %v2759, %v2759
      %v4488 = vmul.f32 %v2760, %v2760
      %v4489 = vmul.f32 %v2761, %v2761
      %v4490 = vsel %vm714, %v4458, 0.0
      %4491 = vadd.xlane.f32.xlu0 %v4490
      %v4492 = vpop.xlane.xlu0 %4491
      %v4493 = vsel %vm714, %v4459, 0.0
      %4494 = vadd.xlane.f32.xlu0 %v4493
      %v4495 = vpop.xlane.xlu0 %4494
      %v4496 = vsel %vm714, %v4460, 0.0
      %4497 = vadd.xlane.f32.xlu0 %v4496
      %v4498 = vpop.xlane.xlu0 %4497
      %v4499 = vsel %vm714, %v4461, 0.0
      %4500 = vadd.xlane.f32.xlu0 %v4499
      %v4501 = vpop.xlane.xlu0 %4500
      %v4502 = vsel %vm714, %v4462, 0.0
      %4503 = vadd.xlane.f32.xlu0 %v4502
      %v4504 = vpop.xlane.xlu0 %4503
      %v4505 = vsel %vm714, %v4463, 0.0
      %4506 = vadd.xlane.f32.xlu0 %v4505
      %v4507 = vpop.xlane.xlu0 %4506
      %v4508 = vsel %vm714, %v4464, 0.0
      %4509 = vadd.xlane.f32.xlu0 %v4508
      %v4510 = vpop.xlane.xlu0 %4509
      %v4511 = vsel %vm714, %v4465, 0.0
      %4512 = vadd.xlane.f32.xlu0 %v4511
      %v4513 = vpop.xlane.xlu0 %4512
      %v4514 = vsel %vm714, %v4466, 0.0
      %4515 = vadd.xlane.f32.xlu0 %v4514
      %v4516 = vpop.xlane.xlu0 %4515
      %v4517 = vsel %vm714, %v4467, 0.0
      %4518 = vadd.xlane.f32.xlu0 %v4517
      %v4519 = vpop.xlane.xlu0 %4518
      %v4520 = vsel %vm714, %v4468, 0.0
      %4521 = vadd.xlane.f32.xlu0 %v4520
      %v4522 = vpop.xlane.xlu0 %4521
      %v4523 = vsel %vm714, %v4469, 0.0
      %4524 = vadd.xlane.f32.xlu0 %v4523
      %v4525 = vpop.xlane.xlu0 %4524
      %v4526 = vsel %vm714, %v4470, 0.0
      %4527 = vadd.xlane.f32.xlu0 %v4526
      %v4528 = vpop.xlane.xlu0 %4527
      %v4529 = vsel %vm714, %v4471, 0.0
      %4530 = vadd.xlane.f32.xlu0 %v4529
      %v4531 = vpop.xlane.xlu0 %4530
      %v4532 = vsel %vm714, %v4472, 0.0
      %4533 = vadd.xlane.f32.xlu0 %v4532
      %v4534 = vpop.xlane.xlu0 %4533
      %v4535 = vsel %vm714, %v4473, 0.0
      %4536 = vadd.xlane.f32.xlu0 %v4535
      %v4537 = vpop.xlane.xlu0 %4536
      %v4538 = vsel %vm714, %v4474, 0.0
      %4539 = vadd.xlane.f32.xlu0 %v4538
      %v4540 = vpop.xlane.xlu0 %4539
      %v4541 = vsel %vm714, %v4475, 0.0
      %4542 = vadd.xlane.f32.xlu0 %v4541
      %v4543 = vpop.xlane.xlu0 %4542
      %v4544 = vsel %vm714, %v4476, 0.0
      %4545 = vadd.xlane.f32.xlu0 %v4544
      %v4546 = vpop.xlane.xlu0 %4545
      %v4547 = vsel %vm714, %v4477, 0.0
      %4548 = vadd.xlane.f32.xlu0 %v4547
      %v4549 = vpop.xlane.xlu0 %4548
      %v4550 = vsel %vm714, %v4478, 0.0
      %4551 = vadd.xlane.f32.xlu0 %v4550
      %v4552 = vpop.xlane.xlu0 %4551
      %v4553 = vsel %vm714, %v4479, 0.0
      %4554 = vadd.xlane.f32.xlu0 %v4553
      %v4555 = vpop.xlane.xlu0 %4554
      %v4556 = vsel %vm714, %v4480, 0.0
      %4557 = vadd.xlane.f32.xlu0 %v4556
      %v4558 = vpop.xlane.xlu0 %4557
      %v4559 = vsel %vm714, %v4481, 0.0
      %4560 = vadd.xlane.f32.xlu0 %v4559
      %v4561 = vpop.xlane.xlu0 %4560
      %v4562 = vsel %vm714, %v4482, 0.0
      %4563 = vadd.xlane.f32.xlu0 %v4562
      %v4564 = vpop.xlane.xlu0 %4563
      %v4565 = vsel %vm714, %v4483, 0.0
      %4566 = vadd.xlane.f32.xlu0 %v4565
      %v4567 = vpop.xlane.xlu0 %4566
      %v4568 = vsel %vm714, %v4484, 0.0
      %4569 = vadd.xlane.f32.xlu0 %v4568
      %v4570 = vpop.xlane.xlu0 %4569
      %v4571 = vsel %vm714, %v4485, 0.0
      %4572 = vadd.xlane.f32.xlu0 %v4571
      %v4573 = vpop.xlane.xlu0 %4572
      %v4574 = vsel %vm714, %v4486, 0.0
      %4575 = vadd.xlane.f32.xlu0 %v4574
      %v4576 = vpop.xlane.xlu0 %4575
      %v4577 = vsel %vm714, %v4487, 0.0
      %4578 = vadd.xlane.f32.xlu0 %v4577
      %v4579 = vpop.xlane.xlu0 %4578
      %v4580 = vsel %vm714, %v4488, 0.0
      %4581 = vadd.xlane.f32.xlu0 %v4580
      %v4582 = vpop.xlane.xlu0 %4581
      %v4583 = vsel %vm714, %v4489, 0.0
      %4584 = vadd.xlane.f32.xlu0 %v4583
      %v4585 = vpop.xlane.xlu0 %4584
      %v4586 = vmul.f32 %v4364, %v4492
      %v4587 = vmul.f32 %v4367, %v4495
      %v4588 = vmul.f32 %v4370, %v4498
      %v4589 = vmul.f32 %v4373, %v4501
      %v4590 = vmul.f32 %v4376, %v4504
      %v4591 = vmul.f32 %v4379, %v4507
      %v4592 = vmul.f32 %v4382, %v4510
      %v4593 = vmul.f32 %v4385, %v4513
      %v4594 = vmul.f32 %v4388, %v4516
      %v4595 = vmul.f32 %v4391, %v4519
      %v4596 = vmul.f32 %v4394, %v4522
      %v4597 = vmul.f32 %v4397, %v4525
      %v4598 = vmul.f32 %v4400, %v4528
      %v4599 = vmul.f32 %v4403, %v4531
      %v4600 = vmul.f32 %v4406, %v4534
      %v4601 = vmul.f32 %v4409, %v4537
      %v4602 = vmul.f32 %v4412, %v4540
      %v4603 = vmul.f32 %v4415, %v4543
      %v4604 = vmul.f32 %v4418, %v4546
      %v4605 = vmul.f32 %v4421, %v4549
      %v4606 = vmul.f32 %v4424, %v4552
      %v4607 = vmul.f32 %v4427, %v4555
      %v4608 = vmul.f32 %v4430, %v4558
      %v4609 = vmul.f32 %v4433, %v4561
      %v4610 = vmul.f32 %v4436, %v4564
      %v4611 = vmul.f32 %v4439, %v4567
      %v4612 = vmul.f32 %v4442, %v4570
      %v4613 = vmul.f32 %v4445, %v4573
      %v4614 = vmul.f32 %v4448, %v4576
      %v4615 = vmul.f32 %v4451, %v4579
      %v4616 = vmul.f32 %v4454, %v4582
      %v4617 = vmul.f32 %v4457, %v4585
      %v4618 = vadd.f32 %v4586, %v4587
      %v4619 = vrot.slane %v4618, 4
      %v4620 = vadd.f32 %v4618, %v4619
      %v4621 = vrot.slane %v4620, 2
      %v4622 = vadd.f32 %v4620, %v4621
      %v4623 = vrot.slane %v4622, 1
      %v4624 = vadd.f32 %v4622, %v4623
      %v4625 = vadd.f32 %v4588, %v4589
      %v4626 = vrot.slane %v4625, 4
      %v4627 = vadd.f32 %v4625, %v4626
      %v4628 = vrot.slane %v4627, 2
      %v4629 = vadd.f32 %v4627, %v4628
      %v4630 = vrot.slane %v4629, 1
      %v4631 = vadd.f32 %v4629, %v4630
      %v4632 = vadd.f32 %v4590, %v4591
      %v4633 = vrot.slane %v4632, 4
      %v4634 = vadd.f32 %v4632, %v4633
      %v4635 = vrot.slane %v4634, 2
      %v4636 = vadd.f32 %v4634, %v4635
      %v4637 = vrot.slane %v4636, 1
      %v4638 = vadd.f32 %v4636, %v4637
      %v4639 = vadd.f32 %v4592, %v4593
      %v4640 = vrot.slane %v4639, 4
      %v4641 = vadd.f32 %v4639, %v4640
      %v4642 = vrot.slane %v4641, 2
      %v4643 = vadd.f32 %v4641, %v4642
      %v4644 = vrot.slane %v4643, 1
      %v4645 = vadd.f32 %v4643, %v4644
      %v4646 = vadd.f32 %v4594, %v4595
      %v4647 = vrot.slane %v4646, 4
      %v4648 = vadd.f32 %v4646, %v4647
      %v4649 = vrot.slane %v4648, 2
      %v4650 = vadd.f32 %v4648, %v4649
      %v4651 = vrot.slane %v4650, 1
      %v4652 = vadd.f32 %v4650, %v4651
      %v4653 = vadd.f32 %v4596, %v4597
      %v4654 = vrot.slane %v4653, 4
      %v4655 = vadd.f32 %v4653, %v4654
      %v4656 = vrot.slane %v4655, 2
      %v4657 = vadd.f32 %v4655, %v4656
      %v4658 = vrot.slane %v4657, 1
      %v4659 = vadd.f32 %v4657, %v4658
      %v4660 = vadd.f32 %v4598, %v4599
      %v4661 = vrot.slane %v4660, 4
      %v4662 = vadd.f32 %v4660, %v4661
      %v4663 = vrot.slane %v4662, 2
      %v4664 = vadd.f32 %v4662, %v4663
      %v4665 = vrot.slane %v4664, 1
      %v4666 = vadd.f32 %v4664, %v4665
      %v4667 = vadd.f32 %v4600, %v4601
      %v4668 = vrot.slane %v4667, 4
      %v4669 = vadd.f32 %v4667, %v4668
      %v4670 = vrot.slane %v4669, 2
      %v4671 = vadd.f32 %v4669, %v4670
      %v4672 = vrot.slane %v4671, 1
      %v4673 = vadd.f32 %v4671, %v4672
      %v4674 = vadd.f32 %v4602, %v4603
      %v4675 = vrot.slane %v4674, 4
      %v4676 = vadd.f32 %v4674, %v4675
      %v4677 = vrot.slane %v4676, 2
      %v4678 = vadd.f32 %v4676, %v4677
      %v4679 = vrot.slane %v4678, 1
      %v4680 = vadd.f32 %v4678, %v4679
      %v4681 = vadd.f32 %v4604, %v4605
      %v4682 = vrot.slane %v4681, 4
      %v4683 = vadd.f32 %v4681, %v4682
      %v4684 = vrot.slane %v4683, 2
      %v4685 = vadd.f32 %v4683, %v4684
      %v4686 = vrot.slane %v4685, 1
      %v4687 = vadd.f32 %v4685, %v4686
      %v4688 = vadd.f32 %v4606, %v4607
      %v4689 = vrot.slane %v4688, 4
      %v4690 = vadd.f32 %v4688, %v4689
      %v4691 = vrot.slane %v4690, 2
      %v4692 = vadd.f32 %v4690, %v4691
      %v4693 = vrot.slane %v4692, 1
      %v4694 = vadd.f32 %v4692, %v4693
      %v4695 = vadd.f32 %v4608, %v4609
      %v4696 = vrot.slane %v4695, 4
      %v4697 = vadd.f32 %v4695, %v4696
      %v4698 = vrot.slane %v4697, 2
      %v4699 = vadd.f32 %v4697, %v4698
      %v4700 = vrot.slane %v4699, 1
      %v4701 = vadd.f32 %v4699, %v4700
      %v4702 = vadd.f32 %v4610, %v4611
      %v4703 = vrot.slane %v4702, 4
      %v4704 = vadd.f32 %v4702, %v4703
      %v4705 = vrot.slane %v4704, 2
      %v4706 = vadd.f32 %v4704, %v4705
      %v4707 = vrot.slane %v4706, 1
      %v4708 = vadd.f32 %v4706, %v4707
      %v4709 = vadd.f32 %v4612, %v4613
      %v4710 = vrot.slane %v4709, 4
      %v4711 = vadd.f32 %v4709, %v4710
      %v4712 = vrot.slane %v4711, 2
      %v4713 = vadd.f32 %v4711, %v4712
      %v4714 = vrot.slane %v4713, 1
      %v4715 = vadd.f32 %v4713, %v4714
      %v4716 = vadd.f32 %v4614, %v4615
      %v4717 = vrot.slane %v4716, 4
      %v4718 = vadd.f32 %v4716, %v4717
      %v4719 = vrot.slane %v4718, 2
      %v4720 = vadd.f32 %v4718, %v4719
      %v4721 = vrot.slane %v4720, 1
      %v4722 = vadd.f32 %v4720, %v4721
      %v4723 = vadd.f32 %v4616, %v4617
      %v4724 = vrot.slane %v4723, 4
      %v4725 = vadd.f32 %v4723, %v4724
      %v4726 = vrot.slane %v4725, 2
      %v4727 = vadd.f32 %v4725, %v4726
      %v4728 = vrot.slane %v4727, 1
      %v4729 = vadd.f32 %v4727, %v4728
      %v4730 = vmax.f32 %v4624, 1e-12
      %v4731 = vmax.f32 %v4631, 1e-12
      %v4732 = vmax.f32 %v4638, 1e-12
      %v4733 = vmax.f32 %v4645, 1e-12
      %v4734 = vmax.f32 %v4652, 1e-12
      %v4735 = vmax.f32 %v4659, 1e-12
      %v4736 = vmax.f32 %v4666, 1e-12
      %v4737 = vmax.f32 %v4673, 1e-12
      %v4738 = vmax.f32 %v4680, 1e-12
      %v4739 = vmax.f32 %v4687, 1e-12
      %v4740 = vmax.f32 %v4694, 1e-12
      %v4741 = vmax.f32 %v4701, 1e-12
      %v4742 = vmax.f32 %v4708, 1e-12
      %v4743 = vmax.f32 %v4715, 1e-12
      %v4744 = vmax.f32 %v4722, 1e-12
      %v4745 = vmax.f32 %v4729, 1e-12
      %v4746 = vrcp.pop %v4730
      %v4747 = vmul.f32 %v4256, %v4746
      %v4748 = vrcp.pop %v4731
      %v4749 = vmul.f32 %v4263, %v4748
      %v4750 = vrcp.pop %v4732
      %v4751 = vmul.f32 %v4270, %v4750
      %v4752 = vrcp.pop %v4733
      %v4753 = vmul.f32 %v4277, %v4752
      %v4754 = vrcp.pop %v4734
      %v4755 = vmul.f32 %v4284, %v4754
      %v4756 = vrcp.pop %v4735
      %v4757 = vmul.f32 %v4291, %v4756
      %v4758 = vrcp.pop %v4736
      %v4759 = vmul.f32 %v4298, %v4758
      %v4760 = vrcp.pop %v4737
      %v4761 = vmul.f32 %v4305, %v4760
      %v4762 = vrcp.pop %v4738
      %v4763 = vmul.f32 %v4312, %v4762
      %v4764 = vrcp.pop %v4739
      %v4765 = vmul.f32 %v4319, %v4764
      %v4766 = vrcp.pop %v4740
      %v4767 = vmul.f32 %v4326, %v4766
      %v4768 = vrcp.pop %v4741
      %v4769 = vmul.f32 %v4333, %v4768
      %v4770 = vrcp.pop %v4742
      %v4771 = vmul.f32 %v4340, %v4770
      %v4772 = vrcp.pop %v4743
      %v4773 = vmul.f32 %v4347, %v4772
      %v4774 = vrcp.pop %v4744
      %v4775 = vmul.f32 %v4354, %v4774
      %v4776 = vrcp.pop %v4745
      %v4777 = vmul.f32 %v4361, %v4776
      %v4778 = vsub.f32 0.0, %v4747
      %v4779 = vsub.f32 0.0, %v4749
      %v4780 = vsub.f32 0.0, %v4751
      %v4781 = vsub.f32 0.0, %v4753
      %v4782 = vsub.f32 0.0, %v4755
      %v4783 = vsub.f32 0.0, %v4757
      %v4784 = vsub.f32 0.0, %v4759
      %v4785 = vsub.f32 0.0, %v4761
      %v4786 = vsub.f32 0.0, %v4763
      %v4787 = vsub.f32 0.0, %v4765
      %v4788 = vsub.f32 0.0, %v4767
      %v4789 = vsub.f32 0.0, %v4769
      %v4790 = vsub.f32 0.0, %v4771
      %v4791 = vsub.f32 0.0, %v4773
      %v4792 = vsub.f32 0.0, %v4775
      %v4793 = vsub.f32 0.0, %v4777
      %4794 = vxpose.xlu0.b32.start [1/16] %v2730, 128
      %4795 = vxpose.xlu0.b32.cont [2/16] %v2731, 128
      %4796 = vxpose.xlu0.b32.cont [3/16] 0.0, 128
      %4797 = vxpose.xlu0.b32.cont [4/16] 0.0, 128
      %4798 = vxpose.xlu0.b32.cont [5/16] 0.0, 128
      %4799 = vxpose.xlu0.b32.cont [6/16] 0.0, 128
      %4800 = vxpose.xlu0.b32.cont [7/16] 0.0, 128
      %4801 = vxpose.xlu0.b32.cont [8/16] 0.0, 128
      %4802 = vxpose.xlu0.b32.cont [9/16] 0.0, 128
      %4803 = vxpose.xlu0.b32.cont [10/16] 0.0, 128
      %4804 = vxpose.xlu0.b32.cont [11/16] 0.0, 128
      %4805 = vxpose.xlu0.b32.cont [12/16] 0.0, 128
      %4806 = vxpose.xlu0.b32.cont [13/16] 0.0, 128
      %4807 = vxpose.xlu0.b32.cont [14/16] 0.0, 128
      %4808 = vxpose.xlu0.b32.cont [15/16] 0.0, 128
      %4809 = vxpose.xlu0.b32.end [16/16] 0.0, 128
      %v4810 = vpop.trf.xlu0
      %v4811 = vpop.trf.xlu0
      %v4812 = vpop.trf.xlu0
      %v4813 = vpop.trf.xlu0
      %v4814 = vpop.trf.xlu0
      %v4815 = vpop.trf.xlu0
      %v4816 = vpop.trf.xlu0
      %v4817 = vpop.trf.xlu0
      %v4818 = vpop.trf.xlu0
      %v4819 = vpop.trf.xlu0
      %v4820 = vpop.trf.xlu0
      %v4821 = vpop.trf.xlu0
      %v4822 = vpop.trf.xlu0
      %v4823 = vpop.trf.xlu0
      %v4824 = vpop.trf.xlu0
      %v4825 = vpop.trf.xlu0
      %v4827 = vsel %vm714, %v4810, 0
      %v4830 = vsel %vm714, %v4811, 0
      %4832 = vmatprep.subr.mxu0 0.0
      %4833 = vmatpush1.msra.mxu0 %v2730
      %4834 = vmatprep.subr.mxu0 0.0
      %4835 = vmatpush1.msra.mxu0 %v2731
      %4836 = vmatprep.subr.mxu0 0.0
      %4837 = vmatpush1.msra.mxu0 0.0
      %4838 = vmatprep.subr.mxu0 0.0
      %4839 = vmatpush1.msra.mxu0 0.0
      %4840 = vmatprep.subr.mxu0 0.0
      %4841 = vmatpush1.msra.mxu0 0.0
      %4842 = vmatprep.subr.mxu0 0.0
      %4843 = vmatpush1.msra.mxu0 0.0
      %4844 = vmatprep.subr.mxu0 0.0
      %4845 = vmatpush1.msra.mxu0 0.0
      %4846 = vmatprep.subr.mxu0 0.0
      %4847 = vmatpush1.msra.mxu0 0.0
      %4848 = vmatprep.subr.mxu0 0.0
      %4849 = vmatpush1.msra.mxu0 0.0
      %4850 = vmatprep.subr.mxu0 0.0
      %4851 = vmatpush1.msra.mxu0 0.0
      %4852 = vmatprep.subr.mxu0 0.0
      %4853 = vmatpush1.msra.mxu0 0.0
      %4854 = vmatprep.subr.mxu0 0.0
      %4855 = vmatpush1.msra.mxu0 0.0
      %4856 = vmatprep.subr.mxu0 0.0
      %4857 = vmatpush1.msra.mxu0 0.0
      %4858 = vmatprep.subr.mxu0 0.0
      %4859 = vmatpush1.msra.mxu0 0.0
      %4860 = vmatprep.subr.mxu0 0.0
      %4861 = vmatpush1.msra.mxu0 0.0
      %4862 = vmatprep.subr.mxu0 0.0
      %4863 = vmatpush1.msra.mxu0 0.0
      %4864 = vmatprep.subr.mxu0 0.0
      %4865 = vmatpush1.msra.mxu0 0.0
      %4866 = vmatprep.subr.mxu0 0.0
      %4867 = vmatpush1.msra.mxu0 0.0
      %4868 = vmatprep.subr.mxu0 0.0
      %4869 = vmatpush1.msra.mxu0 0.0
      %4870 = vmatprep.subr.mxu0 0.0
      %4871 = vmatpush1.msra.mxu0 0.0
      %4872 = vmatprep.subr.mxu0 0.0
      %4873 = vmatpush1.msra.mxu0 0.0
      %4874 = vmatprep.subr.mxu0 0.0
      %4875 = vmatpush1.msra.mxu0 0.0
      %4876 = vmatprep.subr.mxu0 0.0
      %4877 = vmatpush1.msra.mxu0 0.0
      %4878 = vmatprep.subr.mxu0 0.0
      %4879 = vmatpush1.msra.mxu0 0.0
      %4880 = vmatprep.subr.mxu0 0.0
      %4881 = vmatpush1.msra.mxu0 0.0
      %4882 = vmatprep.subr.mxu0 0.0
      %4883 = vmatpush1.msra.mxu0 0.0
      %4884 = vmatprep.subr.mxu0 0.0
      %4885 = vmatpush1.msra.mxu0 0.0
      %4886 = vmatprep.subr.mxu0 0.0
      %4887 = vmatpush1.msra.mxu0 0.0
      %4888 = vmatprep.subr.mxu0 0.0
      %4889 = vmatpush1.msra.mxu0 0.0
      %4890 = vmatprep.subr.mxu0 0.0
      %4891 = vmatpush1.msra.mxu0 0.0
      %4892 = vmatprep.subr.mxu0 0.0
      %4893 = vmatpush1.msra.mxu0 0.0
      %4894 = vmatprep.subr.mxu0 0.0
      %4895 = vmatpush1.msra.mxu0 0.0
      %4896 = vmatprep.mubr.f32.mxu0 0.0
      %4897 = vmatmul.mubr.f32.gmra.mrb[0].mxu0 %v4827
      %v4898 = vpop.f32.mrb[0].mxu0
      %v4899 = vadd.f32 0.0, %v4898
      %v4900 = vpop.f32.mrb[0].mxu0
      %4901 = vmatprep.mubr.f32.mxu0 0.0
      %4902 = vmatmul.mubr.f32.gmra.mrb[0].mxu0 %v4830
      %v4903 = vpop.f32.mrb[0].mxu0
      %v4904 = vadd.f32 0.0, %v4903
      %v4905 = vpop.f32.mrb[0].mxu0
      %4906 = vdwg.mxu0
      %4907 = vxpose.xlu0.b32.start [1/16] %v2732, 128
      %4908 = vxpose.xlu0.b32.cont [2/16] %v2733, 128
      %4909 = vxpose.xlu0.b32.cont [3/16] 0.0, 128
      %4910 = vxpose.xlu0.b32.cont [4/16] 0.0, 128
      %4911 = vxpose.xlu0.b32.cont [5/16] 0.0, 128
      %4912 = vxpose.xlu0.b32.cont [6/16] 0.0, 128
      %4913 = vxpose.xlu0.b32.cont [7/16] 0.0, 128
      %4914 = vxpose.xlu0.b32.cont [8/16] 0.0, 128
      %4915 = vxpose.xlu0.b32.cont [9/16] 0.0, 128
      %4916 = vxpose.xlu0.b32.cont [10/16] 0.0, 128
      %4917 = vxpose.xlu0.b32.cont [11/16] 0.0, 128
      %4918 = vxpose.xlu0.b32.cont [12/16] 0.0, 128
      %4919 = vxpose.xlu0.b32.cont [13/16] 0.0, 128
      %4920 = vxpose.xlu0.b32.cont [14/16] 0.0, 128
      %4921 = vxpose.xlu0.b32.cont [15/16] 0.0, 128
      %4922 = vxpose.xlu0.b32.end [16/16] 0.0, 128
      %v4923 = vpop.trf.xlu0
      %v4924 = vpop.trf.xlu0
      %v4925 = vpop.trf.xlu0
      %v4926 = vpop.trf.xlu0
      %v4927 = vpop.trf.xlu0
      %v4928 = vpop.trf.xlu0
      %v4929 = vpop.trf.xlu0
      %v4930 = vpop.trf.xlu0
      %v4931 = vpop.trf.xlu0
      %v4932 = vpop.trf.xlu0
      %v4933 = vpop.trf.xlu0
      %v4934 = vpop.trf.xlu0
      %v4935 = vpop.trf.xlu0
      %v4936 = vpop.trf.xlu0
      %v4937 = vpop.trf.xlu0
      %v4938 = vpop.trf.xlu0
      %v4940 = vsel %vm714, %v4923, 0
      %v4943 = vsel %vm714, %v4924, 0
      %4945 = vmatprep.subr.mxu0 0.0
      %4946 = vmatpush1.msra.mxu0 %v2732
      %4947 = vmatprep.subr.mxu0 0.0
      %4948 = vmatpush1.msra.mxu0 %v2733
      %4949 = vmatprep.subr.mxu0 0.0
      %4950 = vmatpush1.msra.mxu0 0.0
      %4951 = vmatprep.subr.mxu0 0.0
      %4952 = vmatpush1.msra.mxu0 0.0
      %4953 = vmatprep.subr.mxu0 0.0
      %4954 = vmatpush1.msra.mxu0 0.0
      %4955 = vmatprep.subr.mxu0 0.0
      %4956 = vmatpush1.msra.mxu0 0.0
      %4957 = vmatprep.subr.mxu0 0.0
      %4958 = vmatpush1.msra.mxu0 0.0
      %4959 = vmatprep.subr.mxu0 0.0
      %4960 = vmatpush1.msra.mxu0 0.0
      %4961 = vmatprep.subr.mxu0 0.0
      %4962 = vmatpush1.msra.mxu0 0.0
      %4963 = vmatprep.subr.mxu0 0.0
      %4964 = vmatpush1.msra.mxu0 0.0
      %4965 = vmatprep.subr.mxu0 0.0
      %4966 = vmatpush1.msra.mxu0 0.0
      %4967 = vmatprep.subr.mxu0 0.0
      %4968 = vmatpush1.msra.mxu0 0.0
      %4969 = vmatprep.subr.mxu0 0.0
      %4970 = vmatpush1.msra.mxu0 0.0
      %4971 = vmatprep.subr.mxu0 0.0
      %4972 = vmatpush1.msra.mxu0 0.0
      %4973 = vmatprep.subr.mxu0 0.0
      %4974 = vmatpush1.msra.mxu0 0.0
      %4975 = vmatprep.subr.mxu0 0.0
      %4976 = vmatpush1.msra.mxu0 0.0
      %4977 = vmatprep.subr.mxu0 0.0
      %4978 = vmatpush1.msra.mxu0 0.0
      %4979 = vmatprep.subr.mxu0 0.0
      %4980 = vmatpush1.msra.mxu0 0.0
      %4981 = vmatprep.subr.mxu0 0.0
      %4982 = vmatpush1.msra.mxu0 0.0
      %4983 = vmatprep.subr.mxu0 0.0
      %4984 = vmatpush1.msra.mxu0 0.0
      %4985 = vmatprep.subr.mxu0 0.0
      %4986 = vmatpush1.msra.mxu0 0.0
      %4987 = vmatprep.subr.mxu0 0.0
      %4988 = vmatpush1.msra.mxu0 0.0
      %4989 = vmatprep.subr.mxu0 0.0
      %4990 = vmatpush1.msra.mxu0 0.0
      %4991 = vmatprep.subr.mxu0 0.0
      %4992 = vmatpush1.msra.mxu0 0.0
      %4993 = vmatprep.subr.mxu0 0.0
      %4994 = vmatpush1.msra.mxu0 0.0
      %4995 = vmatprep.subr.mxu0 0.0
      %4996 = vmatpush1.msra.mxu0 0.0
      %4997 = vmatprep.subr.mxu0 0.0
      %4998 = vmatpush1.msra.mxu0 0.0
      %4999 = vmatprep.subr.mxu0 0.0
      %5000 = vmatpush1.msra.mxu0 0.0
      %5001 = vmatprep.subr.mxu0 0.0
      %5002 = vmatpush1.msra.mxu0 0.0
      %5003 = vmatprep.subr.mxu0 0.0
      %5004 = vmatpush1.msra.mxu0 0.0
      %5005 = vmatprep.subr.mxu0 0.0
      %5006 = vmatpush1.msra.mxu0 0.0
      %5007 = vmatprep.subr.mxu0 0.0
      %5008 = vmatpush1.msra.mxu0 0.0
      %5009 = vmatprep.mubr.f32.mxu0 0.0
      %5010 = vmatmul.mubr.f32.gmra.mrb[0].mxu0 %v4940
      %v5011 = vpop.f32.mrb[0].mxu0
      %v5012 = vadd.f32 0.0, %v5011
      %v5013 = vpop.f32.mrb[0].mxu0
      %5014 = vmatprep.mubr.f32.mxu0 0.0
      %5015 = vmatmul.mubr.f32.gmra.mrb[0].mxu0 %v4943
      %v5016 = vpop.f32.mrb[0].mxu0
      %v5017 = vadd.f32 0.0, %v5016
      %v5018 = vpop.f32.mrb[0].mxu0
      %5019 = vdwg.mxu0
      %5020 = vxpose.xlu0.b32.start [1/16] %v2734, 128
      %5021 = vxpose.xlu0.b32.cont [2/16] %v2735, 128
      %5022 = vxpose.xlu0.b32.cont [3/16] 0.0, 128
      %5023 = vxpose.xlu0.b32.cont [4/16] 0.0, 128
      %5024 = vxpose.xlu0.b32.cont [5/16] 0.0, 128
      %5025 = vxpose.xlu0.b32.cont [6/16] 0.0, 128
      %5026 = vxpose.xlu0.b32.cont [7/16] 0.0, 128
      %5027 = vxpose.xlu0.b32.cont [8/16] 0.0, 128
      %5028 = vxpose.xlu0.b32.cont [9/16] 0.0, 128
      %5029 = vxpose.xlu0.b32.cont [10/16] 0.0, 128
      %5030 = vxpose.xlu0.b32.cont [11/16] 0.0, 128
      %5031 = vxpose.xlu0.b32.cont [12/16] 0.0, 128
      %5032 = vxpose.xlu0.b32.cont [13/16] 0.0, 128
      %5033 = vxpose.xlu0.b32.cont [14/16] 0.0, 128
      %5034 = vxpose.xlu0.b32.cont [15/16] 0.0, 128
      %5035 = vxpose.xlu0.b32.end [16/16] 0.0, 128
      %v5036 = vpop.trf.xlu0
      %v5037 = vpop.trf.xlu0
      %v5038 = vpop.trf.xlu0
      %v5039 = vpop.trf.xlu0
      %v5040 = vpop.trf.xlu0
      %v5041 = vpop.trf.xlu0
      %v5042 = vpop.trf.xlu0
      %v5043 = vpop.trf.xlu0
      %v5044 = vpop.trf.xlu0
      %v5045 = vpop.trf.xlu0
      %v5046 = vpop.trf.xlu0
      %v5047 = vpop.trf.xlu0
      %v5048 = vpop.trf.xlu0
      %v5049 = vpop.trf.xlu0
      %v5050 = vpop.trf.xlu0
      %v5051 = vpop.trf.xlu0
      %v5053 = vsel %vm714, %v5036, 0
      %v5056 = vsel %vm714, %v5037, 0
      %5058 = vmatprep.subr.mxu0 0.0
      %5059 = vmatpush1.msra.mxu0 %v2734
      %5060 = vmatprep.subr.mxu0 0.0
      %5061 = vmatpush1.msra.mxu0 %v2735
      %5062 = vmatprep.subr.mxu0 0.0
      %5063 = vmatpush1.msra.mxu0 0.0
      %5064 = vmatprep.subr.mxu0 0.0
      %5065 = vmatpush1.msra.mxu0 0.0
      %5066 = vmatprep.subr.mxu0 0.0
      %5067 = vmatpush1.msra.mxu0 0.0
      %5068 = vmatprep.subr.mxu0 0.0
      %5069 = vmatpush1.msra.mxu0 0.0
      %5070 = vmatprep.subr.mxu0 0.0
      %5071 = vmatpush1.msra.mxu0 0.0
      %5072 = vmatprep.subr.mxu0 0.0
      %5073 = vmatpush1.msra.mxu0 0.0
      %5074 = vmatprep.subr.mxu0 0.0
      %5075 = vmatpush1.msra.mxu0 0.0
      %5076 = vmatprep.subr.mxu0 0.0
      %5077 = vmatpush1.msra.mxu0 0.0
      %5078 = vmatprep.subr.mxu0 0.0
      %5079 = vmatpush1.msra.mxu0 0.0
      %5080 = vmatprep.subr.mxu0 0.0
      %5081 = vmatpush1.msra.mxu0 0.0
      %5082 = vmatprep.subr.mxu0 0.0
      %5083 = vmatpush1.msra.mxu0 0.0
      %5084 = vmatprep.subr.mxu0 0.0
      %5085 = vmatpush1.msra.mxu0 0.0
      %5086 = vmatprep.subr.mxu0 0.0
      %5087 = vmatpush1.msra.mxu0 0.0
      %5088 = vmatprep.subr.mxu0 0.0
      %5089 = vmatpush1.msra.mxu0 0.0
      %5090 = vmatprep.subr.mxu0 0.0
      %5091 = vmatpush1.msra.mxu0 0.0
      %5092 = vmatprep.subr.mxu0 0.0
      %5093 = vmatpush1.msra.mxu0 0.0
      %5094 = vmatprep.subr.mxu0 0.0
      %5095 = vmatpush1.msra.mxu0 0.0
      %5096 = vmatprep.subr.mxu0 0.0
      %5097 = vmatpush1.msra.mxu0 0.0
      %5098 = vmatprep.subr.mxu0 0.0
      %5099 = vmatpush1.msra.mxu0 0.0
      %5100 = vmatprep.subr.mxu0 0.0
      %5101 = vmatpush1.msra.mxu0 0.0
      %5102 = vmatprep.subr.mxu0 0.0
      %5103 = vmatpush1.msra.mxu0 0.0
      %5104 = vmatprep.subr.mxu0 0.0
      %5105 = vmatpush1.msra.mxu0 0.0
      %5106 = vmatprep.subr.mxu0 0.0
      %5107 = vmatpush1.msra.mxu0 0.0
      %5108 = vmatprep.subr.mxu0 0.0
      %5109 = vmatpush1.msra.mxu0 0.0
      %5110 = vmatprep.subr.mxu0 0.0
      %5111 = vmatpush1.msra.mxu0 0.0
      %5112 = vmatprep.subr.mxu0 0.0
      %5113 = vmatpush1.msra.mxu0 0.0
      %5114 = vmatprep.subr.mxu0 0.0
      %5115 = vmatpush1.msra.mxu0 0.0
      %5116 = vmatprep.subr.mxu0 0.0
      %5117 = vmatpush1.msra.mxu0 0.0
      %5118 = vmatprep.subr.mxu0 0.0
      %5119 = vmatpush1.msra.mxu0 0.0
      %5120 = vmatprep.subr.mxu0 0.0
      %5121 = vmatpush1.msra.mxu0 0.0
      %5122 = vmatprep.mubr.f32.mxu0 0.0
      %5123 = vmatmul.mubr.f32.gmra.mrb[0].mxu0 %v5053
      %v5124 = vpop.f32.mrb[0].mxu0
      %v5125 = vadd.f32 0.0, %v5124
      %v5126 = vpop.f32.mrb[0].mxu0
      %5127 = vmatprep.mubr.f32.mxu0 0.0
      %5128 = vmatmul.mubr.f32.gmra.mrb[0].mxu0 %v5056
      %v5129 = vpop.f32.mrb[0].mxu0
      %v5130 = vadd.f32 0.0, %v5129
      %v5131 = vpop.f32.mrb[0].mxu0
      %5132 = vdwg.mxu0
      %5133 = vxpose.xlu0.b32.start [1/16] %v2736, 128
      %5134 = vxpose.xlu0.b32.cont [2/16] %v2737, 128
      %5135 = vxpose.xlu0.b32.cont [3/16] 0.0, 128
      %5136 = vxpose.xlu0.b32.cont [4/16] 0.0, 128
      %5137 = vxpose.xlu0.b32.cont [5/16] 0.0, 128
      %5138 = vxpose.xlu0.b32.cont [6/16] 0.0, 128
      %5139 = vxpose.xlu0.b32.cont [7/16] 0.0, 128
      %5140 = vxpose.xlu0.b32.cont [8/16] 0.0, 128
      %5141 = vxpose.xlu0.b32.cont [9/16] 0.0, 128
      %5142 = vxpose.xlu0.b32.cont [10/16] 0.0, 128
      %5143 = vxpose.xlu0.b32.cont [11/16] 0.0, 128
      %5144 = vxpose.xlu0.b32.cont [12/16] 0.0, 128
      %5145 = vxpose.xlu0.b32.cont [13/16] 0.0, 128
      %5146 = vxpose.xlu0.b32.cont [14/16] 0.0, 128
      %5147 = vxpose.xlu0.b32.cont [15/16] 0.0, 128
      %5148 = vxpose.xlu0.b32.end [16/16] 0.0, 128
      %v5149 = vpop.trf.xlu0
      %v5150 = vpop.trf.xlu0
      %v5151 = vpop.trf.xlu0
      %v5152 = vpop.trf.xlu0
      %v5153 = vpop.trf.xlu0
      %v5154 = vpop.trf.xlu0
      %v5155 = vpop.trf.xlu0
      %v5156 = vpop.trf.xlu0
      %v5157 = vpop.trf.xlu0
      %v5158 = vpop.trf.xlu0
      %v5159 = vpop.trf.xlu0
      %v5160 = vpop.trf.xlu0
      %v5161 = vpop.trf.xlu0
      %v5162 = vpop.trf.xlu0
      %v5163 = vpop.trf.xlu0
      %v5164 = vpop.trf.xlu0
      %v5166 = vsel %vm714, %v5149, 0
      %v5169 = vsel %vm714, %v5150, 0
      %5171 = vmatprep.subr.mxu0 0.0
      %5172 = vmatpush1.msra.mxu0 %v2736
      %5173 = vmatprep.subr.mxu0 0.0
      %5174 = vmatpush1.msra.mxu0 %v2737
      %5175 = vmatprep.subr.mxu0 0.0
      %5176 = vmatpush1.msra.mxu0 0.0
      %5177 = vmatprep.subr.mxu0 0.0
      %5178 = vmatpush1.msra.mxu0 0.0
      %5179 = vmatprep.subr.mxu0 0.0
      %5180 = vmatpush1.msra.mxu0 0.0
      %5181 = vmatprep.subr.mxu0 0.0
      %5182 = vmatpush1.msra.mxu0 0.0
      %5183 = vmatprep.subr.mxu0 0.0
      %5184 = vmatpush1.msra.mxu0 0.0
      %5185 = vmatprep.subr.mxu0 0.0
      %5186 = vmatpush1.msra.mxu0 0.0
      %5187 = vmatprep.subr.mxu0 0.0
      %5188 = vmatpush1.msra.mxu0 0.0
      %5189 = vmatprep.subr.mxu0 0.0
      %5190 = vmatpush1.msra.mxu0 0.0
      %5191 = vmatprep.subr.mxu0 0.0
      %5192 = vmatpush1.msra.mxu0 0.0
      %5193 = vmatprep.subr.mxu0 0.0
      %5194 = vmatpush1.msra.mxu0 0.0
      %5195 = vmatprep.subr.mxu0 0.0
      %5196 = vmatpush1.msra.mxu0 0.0
      %5197 = vmatprep.subr.mxu0 0.0
      %5198 = vmatpush1.msra.mxu0 0.0
      %5199 = vmatprep.subr.mxu0 0.0
      %5200 = vmatpush1.msra.mxu0 0.0
      %5201 = vmatprep.subr.mxu0 0.0
      %5202 = vmatpush1.msra.mxu0 0.0
      %5203 = vmatprep.subr.mxu0 0.0
      %5204 = vmatpush1.msra.mxu0 0.0
      %5205 = vmatprep.subr.mxu0 0.0
      %5206 = vmatpush1.msra.mxu0 0.0
      %5207 = vmatprep.subr.mxu0 0.0
      %5208 = vmatpush1.msra.mxu0 0.0
      %5209 = vmatprep.subr.mxu0 0.0
      %5210 = vmatpush1.msra.mxu0 0.0
      %5211 = vmatprep.subr.mxu0 0.0
      %5212 = vmatpush1.msra.mxu0 0.0
      %5213 = vmatprep.subr.mxu0 0.0
      %5214 = vmatpush1.msra.mxu0 0.0
      %5215 = vmatprep.subr.mxu0 0.0
      %5216 = vmatpush1.msra.mxu0 0.0
      %5217 = vmatprep.subr.mxu0 0.0
      %5218 = vmatpush1.msra.mxu0 0.0
      %5219 = vmatprep.subr.mxu0 0.0
      %5220 = vmatpush1.msra.mxu0 0.0
      %5221 = vmatprep.subr.mxu0 0.0
      %5222 = vmatpush1.msra.mxu0 0.0
      %5223 = vmatprep.subr.mxu0 0.0
      %5224 = vmatpush1.msra.mxu0 0.0
      %5225 = vmatprep.subr.mxu0 0.0
      %5226 = vmatpush1.msra.mxu0 0.0
      %5227 = vmatprep.subr.mxu0 0.0
      %5228 = vmatpush1.msra.mxu0 0.0
      %5229 = vmatprep.subr.mxu0 0.0
      %5230 = vmatpush1.msra.mxu0 0.0
      %5231 = vmatprep.subr.mxu0 0.0
      %5232 = vmatpush1.msra.mxu0 0.0
      %5233 = vmatprep.subr.mxu0 0.0
      %5234 = vmatpush1.msra.mxu0 0.0
      %5235 = vmatprep.mubr.f32.mxu0 0.0
      %5236 = vmatmul.mubr.f32.gmra.mrb[0].mxu0 %v5166
      %v5237 = vpop.f32.mrb[0].mxu0
      %v5238 = vadd.f32 0.0, %v5237
      %v5239 = vpop.f32.mrb[0].mxu0
      %5240 = vmatprep.mubr.f32.mxu0 0.0
      %5241 = vmatmul.mubr.f32.gmra.mrb[0].mxu0 %v5169
      %v5242 = vpop.f32.mrb[0].mxu0
      %v5243 = vadd.f32 0.0, %v5242
      %v5244 = vpop.f32.mrb[0].mxu0
      %5245 = vdwg.mxu0
      %5246 = vxpose.xlu0.b32.start [1/16] %v2738, 128
      %5247 = vxpose.xlu0.b32.cont [2/16] %v2739, 128
      %5248 = vxpose.xlu0.b32.cont [3/16] 0.0, 128
      %5249 = vxpose.xlu0.b32.cont [4/16] 0.0, 128
      %5250 = vxpose.xlu0.b32.cont [5/16] 0.0, 128
      %5251 = vxpose.xlu0.b32.cont [6/16] 0.0, 128
      %5252 = vxpose.xlu0.b32.cont [7/16] 0.0, 128
      %5253 = vxpose.xlu0.b32.cont [8/16] 0.0, 128
      %5254 = vxpose.xlu0.b32.cont [9/16] 0.0, 128
      %5255 = vxpose.xlu0.b32.cont [10/16] 0.0, 128
      %5256 = vxpose.xlu0.b32.cont [11/16] 0.0, 128
      %5257 = vxpose.xlu0.b32.cont [12/16] 0.0, 128
      %5258 = vxpose.xlu0.b32.cont [13/16] 0.0, 128
      %5259 = vxpose.xlu0.b32.cont [14/16] 0.0, 128
      %5260 = vxpose.xlu0.b32.cont [15/16] 0.0, 128
      %5261 = vxpose.xlu0.b32.end [16/16] 0.0, 128
      %v5262 = vpop.trf.xlu0
      %v5263 = vpop.trf.xlu0
      %v5264 = vpop.trf.xlu0
      %v5265 = vpop.trf.xlu0
      %v5266 = vpop.trf.xlu0
      %v5267 = vpop.trf.xlu0
      %v5268 = vpop.trf.xlu0
      %v5269 = vpop.trf.xlu0
      %v5270 = vpop.trf.xlu0
      %v5271 = vpop.trf.xlu0
      %v5272 = vpop.trf.xlu0
      %v5273 = vpop.trf.xlu0
      %v5274 = vpop.trf.xlu0
      %v5275 = vpop.trf.xlu0
      %v5276 = vpop.trf.xlu0
      %v5277 = vpop.trf.xlu0
      %v5279 = vsel %vm714, %v5262, 0
      %v5282 = vsel %vm714, %v5263, 0
      %5284 = vmatprep.subr.mxu0 0.0
      %5285 = vmatpush1.msra.mxu0 %v2738
      %5286 = vmatprep.subr.mxu0 0.0
      %5287 = vmatpush1.msra.mxu0 %v2739
      %5288 = vmatprep.subr.mxu0 0.0
      %5289 = vmatpush1.msra.mxu0 0.0
      %5290 = vmatprep.subr.mxu0 0.0
      %5291 = vmatpush1.msra.mxu0 0.0
      %5292 = vmatprep.subr.mxu0 0.0
      %5293 = vmatpush1.msra.mxu0 0.0
      %5294 = vmatprep.subr.mxu0 0.0
      %5295 = vmatpush1.msra.mxu0 0.0
      %5296 = vmatprep.subr.mxu0 0.0
      %5297 = vmatpush1.msra.mxu0 0.0
      %5298 = vmatprep.subr.mxu0 0.0
      %5299 = vmatpush1.msra.mxu0 0.0
      %5300 = vmatprep.subr.mxu0 0.0
      %5301 = vmatpush1.msra.mxu0 0.0
      %5302 = vmatprep.subr.mxu0 0.0
      %5303 = vmatpush1.msra.mxu0 0.0
      %5304 = vmatprep.subr.mxu0 0.0
      %5305 = vmatpush1.msra.mxu0 0.0
      %5306 = vmatprep.subr.mxu0 0.0
      %5307 = vmatpush1.msra.mxu0 0.0
      %5308 = vmatprep.subr.mxu0 0.0
      %5309 = vmatpush1.msra.mxu0 0.0
      %5310 = vmatprep.subr.mxu0 0.0
      %5311 = vmatpush1.msra.mxu0 0.0
      %5312 = vmatprep.subr.mxu0 0.0
      %5313 = vmatpush1.msra.mxu0 0.0
      %5314 = vmatprep.subr.mxu0 0.0
      %5315 = vmatpush1.msra.mxu0 0.0
      %5316 = vmatprep.subr.mxu0 0.0
      %5317 = vmatpush1.msra.mxu0 0.0
      %5318 = vmatprep.subr.mxu0 0.0
      %5319 = vmatpush1.msra.mxu0 0.0
      %5320 = vmatprep.subr.mxu0 0.0
      %5321 = vmatpush1.msra.mxu0 0.0
      %5322 = vmatprep.subr.mxu0 0.0
      %5323 = vmatpush1.msra.mxu0 0.0
      %5324 = vmatprep.subr.mxu0 0.0
      %5325 = vmatpush1.msra.mxu0 0.0
      %5326 = vmatprep.subr.mxu0 0.0
      %5327 = vmatpush1.msra.mxu0 0.0
      %5328 = vmatprep.subr.mxu0 0.0
      %5329 = vmatpush1.msra.mxu0 0.0
      %5330 = vmatprep.subr.mxu0 0.0
      %5331 = vmatpush1.msra.mxu0 0.0
      %5332 = vmatprep.subr.mxu0 0.0
      %5333 = vmatpush1.msra.mxu0 0.0
      %5334 = vmatprep.subr.mxu0 0.0
      %5335 = vmatpush1.msra.mxu0 0.0
      %5336 = vmatprep.subr.mxu0 0.0
      %5337 = vmatpush1.msra.mxu0 0.0
      %5338 = vmatprep.subr.mxu0 0.0
      %5339 = vmatpush1.msra.mxu0 0.0
      %5340 = vmatprep.subr.mxu0 0.0
      %5341 = vmatpush1.msra.mxu0 0.0
      %5342 = vmatprep.subr.mxu0 0.0
      %5343 = vmatpush1.msra.mxu0 0.0
      %5344 = vmatprep.subr.mxu0 0.0
      %5345 = vmatpush1.msra.mxu0 0.0
      %5346 = vmatprep.subr.mxu0 0.0
      %5347 = vmatpush1.msra.mxu0 0.0
      %5348 = vmatprep.mubr.f32.mxu0 0.0
      %5349 = vmatmul.mubr.f32.gmra.mrb[0].mxu0 %v5279
      %v5350 = vpop.f32.mrb[0].mxu0
      %v5351 = vadd.f32 0.0, %v5350
      %v5352 = vpop.f32.mrb[0].mxu0
      %5353 = vmatprep.mubr.f32.mxu0 0.0
      %5354 = vmatmul.mubr.f32.gmra.mrb[0].mxu0 %v5282
      %v5355 = vpop.f32.mrb[0].mxu0
      %v5356 = vadd.f32 0.0, %v5355
      %v5357 = vpop.f32.mrb[0].mxu0
      %5358 = vdwg.mxu0
      %5359 = vxpose.xlu0.b32.start [1/16] %v2740, 128
      %5360 = vxpose.xlu0.b32.cont [2/16] %v2741, 128
      %5361 = vxpose.xlu0.b32.cont [3/16] 0.0, 128
      %5362 = vxpose.xlu0.b32.cont [4/16] 0.0, 128
      %5363 = vxpose.xlu0.b32.cont [5/16] 0.0, 128
      %5364 = vxpose.xlu0.b32.cont [6/16] 0.0, 128
      %5365 = vxpose.xlu0.b32.cont [7/16] 0.0, 128
      %5366 = vxpose.xlu0.b32.cont [8/16] 0.0, 128
      %5367 = vxpose.xlu0.b32.cont [9/16] 0.0, 128
      %5368 = vxpose.xlu0.b32.cont [10/16] 0.0, 128
      %5369 = vxpose.xlu0.b32.cont [11/16] 0.0, 128
      %5370 = vxpose.xlu0.b32.cont [12/16] 0.0, 128
      %5371 = vxpose.xlu0.b32.cont [13/16] 0.0, 128
      %5372 = vxpose.xlu0.b32.cont [14/16] 0.0, 128
      %5373 = vxpose.xlu0.b32.cont [15/16] 0.0, 128
      %5374 = vxpose.xlu0.b32.end [16/16] 0.0, 128
      %v5375 = vpop.trf.xlu0
      %v5376 = vpop.trf.xlu0
      %v5377 = vpop.trf.xlu0
      %v5378 = vpop.trf.xlu0
      %v5379 = vpop.trf.xlu0
      %v5380 = vpop.trf.xlu0
      %v5381 = vpop.trf.xlu0
      %v5382 = vpop.trf.xlu0
      %v5383 = vpop.trf.xlu0
      %v5384 = vpop.trf.xlu0
      %v5385 = vpop.trf.xlu0
      %v5386 = vpop.trf.xlu0
      %v5387 = vpop.trf.xlu0
      %v5388 = vpop.trf.xlu0
      %v5389 = vpop.trf.xlu0
      %v5390 = vpop.trf.xlu0
      %v5392 = vsel %vm714, %v5375, 0
      %v5395 = vsel %vm714, %v5376, 0
      %5397 = vmatprep.subr.mxu0 0.0
      %5398 = vmatpush1.msra.mxu0 %v2740
      %5399 = vmatprep.subr.mxu0 0.0
      %5400 = vmatpush1.msra.mxu0 %v2741
      %5401 = vmatprep.subr.mxu0 0.0
      %5402 = vmatpush1.msra.mxu0 0.0
      %5403 = vmatprep.subr.mxu0 0.0
      %5404 = vmatpush1.msra.mxu0 0.0
      %5405 = vmatprep.subr.mxu0 0.0
      %5406 = vmatpush1.msra.mxu0 0.0
      %5407 = vmatprep.subr.mxu0 0.0
      %5408 = vmatpush1.msra.mxu0 0.0
      %5409 = vmatprep.subr.mxu0 0.0
      %5410 = vmatpush1.msra.mxu0 0.0
      %5411 = vmatprep.subr.mxu0 0.0
      %5412 = vmatpush1.msra.mxu0 0.0
      %5413 = vmatprep.subr.mxu0 0.0
      %5414 = vmatpush1.msra.mxu0 0.0
      %5415 = vmatprep.subr.mxu0 0.0
      %5416 = vmatpush1.msra.mxu0 0.0
      %5417 = vmatprep.subr.mxu0 0.0
      %5418 = vmatpush1.msra.mxu0 0.0
      %5419 = vmatprep.subr.mxu0 0.0
      %5420 = vmatpush1.msra.mxu0 0.0
      %5421 = vmatprep.subr.mxu0 0.0
      %5422 = vmatpush1.msra.mxu0 0.0
      %5423 = vmatprep.subr.mxu0 0.0
      %5424 = vmatpush1.msra.mxu0 0.0
      %5425 = vmatprep.subr.mxu0 0.0
      %5426 = vmatpush1.msra.mxu0 0.0
      %5427 = vmatprep.subr.mxu0 0.0
      %5428 = vmatpush1.msra.mxu0 0.0
      %5429 = vmatprep.subr.mxu0 0.0
      %5430 = vmatpush1.msra.mxu0 0.0
      %5431 = vmatprep.subr.mxu0 0.0
      %5432 = vmatpush1.msra.mxu0 0.0
      %5433 = vmatprep.subr.mxu0 0.0
      %5434 = vmatpush1.msra.mxu0 0.0
      %5435 = vmatprep.subr.mxu0 0.0
      %5436 = vmatpush1.msra.mxu0 0.0
      %5437 = vmatprep.subr.mxu0 0.0
      %5438 = vmatpush1.msra.mxu0 0.0
      %5439 = vmatprep.subr.mxu0 0.0
      %5440 = vmatpush1.msra.mxu0 0.0
      %5441 = vmatprep.subr.mxu0 0.0
      %5442 = vmatpush1.msra.mxu0 0.0
      %5443 = vmatprep.subr.mxu0 0.0
      %5444 = vmatpush1.msra.mxu0 0.0
      %5445 = vmatprep.subr.mxu0 0.0
      %5446 = vmatpush1.msra.mxu0 0.0
      %5447 = vmatprep.subr.mxu0 0.0
      %5448 = vmatpush1.msra.mxu0 0.0
      %5449 = vmatprep.subr.mxu0 0.0
      %5450 = vmatpush1.msra.mxu0 0.0
      %5451 = vmatprep.subr.mxu0 0.0
      %5452 = vmatpush1.msra.mxu0 0.0
      %5453 = vmatprep.subr.mxu0 0.0
      %5454 = vmatpush1.msra.mxu0 0.0
      %5455 = vmatprep.subr.mxu0 0.0
      %5456 = vmatpush1.msra.mxu0 0.0
      %5457 = vmatprep.subr.mxu0 0.0
      %5458 = vmatpush1.msra.mxu0 0.0
      %5459 = vmatprep.subr.mxu0 0.0
      %5460 = vmatpush1.msra.mxu0 0.0
      %5461 = vmatprep.mubr.f32.mxu0 0.0
      %5462 = vmatmul.mubr.f32.gmra.mrb[0].mxu0 %v5392
      %v5463 = vpop.f32.mrb[0].mxu0
      %v5464 = vadd.f32 0.0, %v5463
      %v5465 = vpop.f32.mrb[0].mxu0
      %5466 = vmatprep.mubr.f32.mxu0 0.0
      %5467 = vmatmul.mubr.f32.gmra.mrb[0].mxu0 %v5395
      %v5468 = vpop.f32.mrb[0].mxu0
      %v5469 = vadd.f32 0.0, %v5468
      %v5470 = vpop.f32.mrb[0].mxu0
      %5471 = vdwg.mxu0
      %5472 = vxpose.xlu0.b32.start [1/16] %v2742, 128
      %5473 = vxpose.xlu0.b32.cont [2/16] %v2743, 128
      %5474 = vxpose.xlu0.b32.cont [3/16] 0.0, 128
      %5475 = vxpose.xlu0.b32.cont [4/16] 0.0, 128
      %5476 = vxpose.xlu0.b32.cont [5/16] 0.0, 128
      %5477 = vxpose.xlu0.b32.cont [6/16] 0.0, 128
      %5478 = vxpose.xlu0.b32.cont [7/16] 0.0, 128
      %5479 = vxpose.xlu0.b32.cont [8/16] 0.0, 128
      %5480 = vxpose.xlu0.b32.cont [9/16] 0.0, 128
      %5481 = vxpose.xlu0.b32.cont [10/16] 0.0, 128
      %5482 = vxpose.xlu0.b32.cont [11/16] 0.0, 128
      %5483 = vxpose.xlu0.b32.cont [12/16] 0.0, 128
      %5484 = vxpose.xlu0.b32.cont [13/16] 0.0, 128
      %5485 = vxpose.xlu0.b32.cont [14/16] 0.0, 128
      %5486 = vxpose.xlu0.b32.cont [15/16] 0.0, 128
      %5487 = vxpose.xlu0.b32.end [16/16] 0.0, 128
      %v5488 = vpop.trf.xlu0
      %v5489 = vpop.trf.xlu0
      %v5490 = vpop.trf.xlu0
      %v5491 = vpop.trf.xlu0
      %v5492 = vpop.trf.xlu0
      %v5493 = vpop.trf.xlu0
      %v5494 = vpop.trf.xlu0
      %v5495 = vpop.trf.xlu0
      %v5496 = vpop.trf.xlu0
      %v5497 = vpop.trf.xlu0
      %v5498 = vpop.trf.xlu0
      %v5499 = vpop.trf.xlu0
      %v5500 = vpop.trf.xlu0
      %v5501 = vpop.trf.xlu0
      %v5502 = vpop.trf.xlu0
      %v5503 = vpop.trf.xlu0
      %v5505 = vsel %vm714, %v5488, 0
      %v5508 = vsel %vm714, %v5489, 0
      %5510 = vmatprep.subr.mxu0 0.0
      %5511 = vmatpush1.msra.mxu0 %v2742
      %5512 = vmatprep.subr.mxu0 0.0
      %5513 = vmatpush1.msra.mxu0 %v2743
      %5514 = vmatprep.subr.mxu0 0.0
      %5515 = vmatpush1.msra.mxu0 0.0
      %5516 = vmatprep.subr.mxu0 0.0
      %5517 = vmatpush1.msra.mxu0 0.0
      %5518 = vmatprep.subr.mxu0 0.0
      %5519 = vmatpush1.msra.mxu0 0.0
      %5520 = vmatprep.subr.mxu0 0.0
      %5521 = vmatpush1.msra.mxu0 0.0
      %5522 = vmatprep.subr.mxu0 0.0
      %5523 = vmatpush1.msra.mxu0 0.0
      %5524 = vmatprep.subr.mxu0 0.0
      %5525 = vmatpush1.msra.mxu0 0.0
      %5526 = vmatprep.subr.mxu0 0.0
      %5527 = vmatpush1.msra.mxu0 0.0
      %5528 = vmatprep.subr.mxu0 0.0
      %5529 = vmatpush1.msra.mxu0 0.0
      %5530 = vmatprep.subr.mxu0 0.0
      %5531 = vmatpush1.msra.mxu0 0.0
      %5532 = vmatprep.subr.mxu0 0.0
      %5533 = vmatpush1.msra.mxu0 0.0
      %5534 = vmatprep.subr.mxu0 0.0
      %5535 = vmatpush1.msra.mxu0 0.0
      %5536 = vmatprep.subr.mxu0 0.0
      %5537 = vmatpush1.msra.mxu0 0.0
      %5538 = vmatprep.subr.mxu0 0.0
      %5539 = vmatpush1.msra.mxu0 0.0
      %5540 = vmatprep.subr.mxu0 0.0
      %5541 = vmatpush1.msra.mxu0 0.0
      %5542 = vmatprep.subr.mxu0 0.0
      %5543 = vmatpush1.msra.mxu0 0.0
      %5544 = vmatprep.subr.mxu0 0.0
      %5545 = vmatpush1.msra.mxu0 0.0
      %5546 = vmatprep.subr.mxu0 0.0
      %5547 = vmatpush1.msra.mxu0 0.0
      %5548 = vmatprep.subr.mxu0 0.0
      %5549 = vmatpush1.msra.mxu0 0.0
      %5550 = vmatprep.subr.mxu0 0.0
      %5551 = vmatpush1.msra.mxu0 0.0
      %5552 = vmatprep.subr.mxu0 0.0
      %5553 = vmatpush1.msra.mxu0 0.0
      %5554 = vmatprep.subr.mxu0 0.0
      %5555 = vmatpush1.msra.mxu0 0.0
      %5556 = vmatprep.subr.mxu0 0.0
      %5557 = vmatpush1.msra.mxu0 0.0
      %5558 = vmatprep.subr.mxu0 0.0
      %5559 = vmatpush1.msra.mxu0 0.0
      %5560 = vmatprep.subr.mxu0 0.0
      %5561 = vmatpush1.msra.mxu0 0.0
      %5562 = vmatprep.subr.mxu0 0.0
      %5563 = vmatpush1.msra.mxu0 0.0
      %5564 = vmatprep.subr.mxu0 0.0
      %5565 = vmatpush1.msra.mxu0 0.0
      %5566 = vmatprep.subr.mxu0 0.0
      %5567 = vmatpush1.msra.mxu0 0.0
      %5568 = vmatprep.subr.mxu0 0.0
      %5569 = vmatpush1.msra.mxu0 0.0
      %5570 = vmatprep.subr.mxu0 0.0
      %5571 = vmatpush1.msra.mxu0 0.0
      %5572 = vmatprep.subr.mxu0 0.0
      %5573 = vmatpush1.msra.mxu0 0.0
      %5574 = vmatprep.mubr.f32.mxu0 0.0
      %5575 = vmatmul.mubr.f32.gmra.mrb[0].mxu0 %v5505
      %v5576 = vpop.f32.mrb[0].mxu0
      %v5577 = vadd.f32 0.0, %v5576
      %v5578 = vpop.f32.mrb[0].mxu0
      %5579 = vmatprep.mubr.f32.mxu0 0.0
      %5580 = vmatmul.mubr.f32.gmra.mrb[0].mxu0 %v5508
      %v5581 = vpop.f32.mrb[0].mxu0
      %v5582 = vadd.f32 0.0, %v5581
      %v5583 = vpop.f32.mrb[0].mxu0
      %5584 = vdwg.mxu0
      %5585 = vxpose.xlu0.b32.start [1/16] %v2744, 128
      %5586 = vxpose.xlu0.b32.cont [2/16] %v2745, 128
      %5587 = vxpose.xlu0.b32.cont [3/16] 0.0, 128
      %5588 = vxpose.xlu0.b32.cont [4/16] 0.0, 128
      %5589 = vxpose.xlu0.b32.cont [5/16] 0.0, 128
      %5590 = vxpose.xlu0.b32.cont [6/16] 0.0, 128
      %5591 = vxpose.xlu0.b32.cont [7/16] 0.0, 128
      %5592 = vxpose.xlu0.b32.cont [8/16] 0.0, 128
      %5593 = vxpose.xlu0.b32.cont [9/16] 0.0, 128
      %5594 = vxpose.xlu0.b32.cont [10/16] 0.0, 128
      %5595 = vxpose.xlu0.b32.cont [11/16] 0.0, 128
      %5596 = vxpose.xlu0.b32.cont [12/16] 0.0, 128
      %5597 = vxpose.xlu0.b32.cont [13/16] 0.0, 128
      %5598 = vxpose.xlu0.b32.cont [14/16] 0.0, 128
      %5599 = vxpose.xlu0.b32.cont [15/16] 0.0, 128
      %5600 = vxpose.xlu0.b32.end [16/16] 0.0, 128
      %v5601 = vpop.trf.xlu0
      %v5602 = vpop.trf.xlu0
      %v5603 = vpop.trf.xlu0
      %v5604 = vpop.trf.xlu0
      %v5605 = vpop.trf.xlu0
      %v5606 = vpop.trf.xlu0
      %v5607 = vpop.trf.xlu0
      %v5608 = vpop.trf.xlu0
      %v5609 = vpop.trf.xlu0
      %v5610 = vpop.trf.xlu0
      %v5611 = vpop.trf.xlu0
      %v5612 = vpop.trf.xlu0
      %v5613 = vpop.trf.xlu0
      %v5614 = vpop.trf.xlu0
      %v5615 = vpop.trf.xlu0
      %v5616 = vpop.trf.xlu0
      %v5618 = vsel %vm714, %v5601, 0
      %v5621 = vsel %vm714, %v5602, 0
      %5623 = vmatprep.subr.mxu0 0.0
      %5624 = vmatpush1.msra.mxu0 %v2744
      %5625 = vmatprep.subr.mxu0 0.0
      %5626 = vmatpush1.msra.mxu0 %v2745
      %5627 = vmatprep.subr.mxu0 0.0
      %5628 = vmatpush1.msra.mxu0 0.0
      %5629 = vmatprep.subr.mxu0 0.0
      %5630 = vmatpush1.msra.mxu0 0.0
      %5631 = vmatprep.subr.mxu0 0.0
      %5632 = vmatpush1.msra.mxu0 0.0
      %5633 = vmatprep.subr.mxu0 0.0
      %5634 = vmatpush1.msra.mxu0 0.0
      %5635 = vmatprep.subr.mxu0 0.0
      %5636 = vmatpush1.msra.mxu0 0.0
      %5637 = vmatprep.subr.mxu0 0.0
      %5638 = vmatpush1.msra.mxu0 0.0
      %5639 = vmatprep.subr.mxu0 0.0
      %5640 = vmatpush1.msra.mxu0 0.0
      %5641 = vmatprep.subr.mxu0 0.0
      %5642 = vmatpush1.msra.mxu0 0.0
      %5643 = vmatprep.subr.mxu0 0.0
      %5644 = vmatpush1.msra.mxu0 0.0
      %5645 = vmatprep.subr.mxu0 0.0
      %5646 = vmatpush1.msra.mxu0 0.0
      %5647 = vmatprep.subr.mxu0 0.0
      %5648 = vmatpush1.msra.mxu0 0.0
      %5649 = vmatprep.subr.mxu0 0.0
      %5650 = vmatpush1.msra.mxu0 0.0
      %5651 = vmatprep.subr.mxu0 0.0
      %5652 = vmatpush1.msra.mxu0 0.0
      %5653 = vmatprep.subr.mxu0 0.0
      %5654 = vmatpush1.msra.mxu0 0.0
      %5655 = vmatprep.subr.mxu0 0.0
      %5656 = vmatpush1.msra.mxu0 0.0
      %5657 = vmatprep.subr.mxu0 0.0
      %5658 = vmatpush1.msra.mxu0 0.0
      %5659 = vmatprep.subr.mxu0 0.0
      %5660 = vmatpush1.msra.mxu0 0.0
      %5661 = vmatprep.subr.mxu0 0.0
      %5662 = vmatpush1.msra.mxu0 0.0
      %5663 = vmatprep.subr.mxu0 0.0
      %5664 = vmatpush1.msra.mxu0 0.0
      %5665 = vmatprep.subr.mxu0 0.0
      %5666 = vmatpush1.msra.mxu0 0.0
      %5667 = vmatprep.subr.mxu0 0.0
      %5668 = vmatpush1.msra.mxu0 0.0
      %5669 = vmatprep.subr.mxu0 0.0
      %5670 = vmatpush1.msra.mxu0 0.0
      %5671 = vmatprep.subr.mxu0 0.0
      %5672 = vmatpush1.msra.mxu0 0.0
      %5673 = vmatprep.subr.mxu0 0.0
      %5674 = vmatpush1.msra.mxu0 0.0
      %5675 = vmatprep.subr.mxu0 0.0
      %5676 = vmatpush1.msra.mxu0 0.0
      %5677 = vmatprep.subr.mxu0 0.0
      %5678 = vmatpush1.msra.mxu0 0.0
      %5679 = vmatprep.subr.mxu0 0.0
      %5680 = vmatpush1.msra.mxu0 0.0
      %5681 = vmatprep.subr.mxu0 0.0
      %5682 = vmatpush1.msra.mxu0 0.0
      %5683 = vmatprep.subr.mxu0 0.0
      %5684 = vmatpush1.msra.mxu0 0.0
      %5685 = vmatprep.subr.mxu0 0.0
      %5686 = vmatpush1.msra.mxu0 0.0
      %5687 = vmatprep.mubr.f32.mxu0 0.0
      %5688 = vmatmul.mubr.f32.gmra.mrb[0].mxu0 %v5618
      %v5689 = vpop.f32.mrb[0].mxu0
      %v5690 = vadd.f32 0.0, %v5689
      %v5691 = vpop.f32.mrb[0].mxu0
      %5692 = vmatprep.mubr.f32.mxu0 0.0
      %5693 = vmatmul.mubr.f32.gmra.mrb[0].mxu0 %v5621
      %v5694 = vpop.f32.mrb[0].mxu0
      %v5695 = vadd.f32 0.0, %v5694
      %v5696 = vpop.f32.mrb[0].mxu0
      %5697 = vdwg.mxu0
      %5698 = vxpose.xlu0.b32.start [1/16] %v2746, 128
      %5699 = vxpose.xlu0.b32.cont [2/16] %v2747, 128
      %5700 = vxpose.xlu0.b32.cont [3/16] 0.0, 128
      %5701 = vxpose.xlu0.b32.cont [4/16] 0.0, 128
      %5702 = vxpose.xlu0.b32.cont [5/16] 0.0, 128
      %5703 = vxpose.xlu0.b32.cont [6/16] 0.0, 128
      %5704 = vxpose.xlu0.b32.cont [7/16] 0.0, 128
      %5705 = vxpose.xlu0.b32.cont [8/16] 0.0, 128
      %5706 = vxpose.xlu0.b32.cont [9/16] 0.0, 128
      %5707 = vxpose.xlu0.b32.cont [10/16] 0.0, 128
      %5708 = vxpose.xlu0.b32.cont [11/16] 0.0, 128
      %5709 = vxpose.xlu0.b32.cont [12/16] 0.0, 128
      %5710 = vxpose.xlu0.b32.cont [13/16] 0.0, 128
      %5711 = vxpose.xlu0.b32.cont [14/16] 0.0, 128
      %5712 = vxpose.xlu0.b32.cont [15/16] 0.0, 128
      %5713 = vxpose.xlu0.b32.end [16/16] 0.0, 128
      %v5714 = vpop.trf.xlu0
      %v5715 = vpop.trf.xlu0
      %v5716 = vpop.trf.xlu0
      %v5717 = vpop.trf.xlu0
      %v5718 = vpop.trf.xlu0
      %v5719 = vpop.trf.xlu0
      %v5720 = vpop.trf.xlu0
      %v5721 = vpop.trf.xlu0
      %v5722 = vpop.trf.xlu0
      %v5723 = vpop.trf.xlu0
      %v5724 = vpop.trf.xlu0
      %v5725 = vpop.trf.xlu0
      %v5726 = vpop.trf.xlu0
      %v5727 = vpop.trf.xlu0
      %v5728 = vpop.trf.xlu0
      %v5729 = vpop.trf.xlu0
      %v5731 = vsel %vm714, %v5714, 0
      %v5734 = vsel %vm714, %v5715, 0
      %5736 = vmatprep.subr.mxu0 0.0
      %5737 = vmatpush1.msra.mxu0 %v2746
      %5738 = vmatprep.subr.mxu0 0.0
      %5739 = vmatpush1.msra.mxu0 %v2747
      %5740 = vmatprep.subr.mxu0 0.0
      %5741 = vmatpush1.msra.mxu0 0.0
      %5742 = vmatprep.subr.mxu0 0.0
      %5743 = vmatpush1.msra.mxu0 0.0
      %5744 = vmatprep.subr.mxu0 0.0
      %5745 = vmatpush1.msra.mxu0 0.0
      %5746 = vmatprep.subr.mxu0 0.0
      %5747 = vmatpush1.msra.mxu0 0.0
      %5748 = vmatprep.subr.mxu0 0.0
      %5749 = vmatpush1.msra.mxu0 0.0
      %5750 = vmatprep.subr.mxu0 0.0
      %5751 = vmatpush1.msra.mxu0 0.0
      %5752 = vmatprep.subr.mxu0 0.0
      %5753 = vmatpush1.msra.mxu0 0.0
      %5754 = vmatprep.subr.mxu0 0.0
      %5755 = vmatpush1.msra.mxu0 0.0
      %5756 = vmatprep.subr.mxu0 0.0
      %5757 = vmatpush1.msra.mxu0 0.0
      %5758 = vmatprep.subr.mxu0 0.0
      %5759 = vmatpush1.msra.mxu0 0.0
      %5760 = vmatprep.subr.mxu0 0.0
      %5761 = vmatpush1.msra.mxu0 0.0
      %5762 = vmatprep.subr.mxu0 0.0
      %5763 = vmatpush1.msra.mxu0 0.0
      %5764 = vmatprep.subr.mxu0 0.0
      %5765 = vmatpush1.msra.mxu0 0.0
      %5766 = vmatprep.subr.mxu0 0.0
      %5767 = vmatpush1.msra.mxu0 0.0
      %5768 = vmatprep.subr.mxu0 0.0
      %5769 = vmatpush1.msra.mxu0 0.0
      %5770 = vmatprep.subr.mxu0 0.0
      %5771 = vmatpush1.msra.mxu0 0.0
      %5772 = vmatprep.subr.mxu0 0.0
      %5773 = vmatpush1.msra.mxu0 0.0
      %5774 = vmatprep.subr.mxu0 0.0
      %5775 = vmatpush1.msra.mxu0 0.0
      %5776 = vmatprep.subr.mxu0 0.0
      %5777 = vmatpush1.msra.mxu0 0.0
      %5778 = vmatprep.subr.mxu0 0.0
      %5779 = vmatpush1.msra.mxu0 0.0
      %5780 = vmatprep.subr.mxu0 0.0
      %5781 = vmatpush1.msra.mxu0 0.0
      %5782 = vmatprep.subr.mxu0 0.0
      %5783 = vmatpush1.msra.mxu0 0.0
      %5784 = vmatprep.subr.mxu0 0.0
      %5785 = vmatpush1.msra.mxu0 0.0
      %5786 = vmatprep.subr.mxu0 0.0
      %5787 = vmatpush1.msra.mxu0 0.0
      %5788 = vmatprep.subr.mxu0 0.0
      %5789 = vmatpush1.msra.mxu0 0.0
      %5790 = vmatprep.subr.mxu0 0.0
      %5791 = vmatpush1.msra.mxu0 0.0
      %5792 = vmatprep.subr.mxu0 0.0
      %5793 = vmatpush1.msra.mxu0 0.0
      %5794 = vmatprep.subr.mxu0 0.0
      %5795 = vmatpush1.msra.mxu0 0.0
      %5796 = vmatprep.subr.mxu0 0.0
      %5797 = vmatpush1.msra.mxu0 0.0
      %5798 = vmatprep.subr.mxu0 0.0
      %5799 = vmatpush1.msra.mxu0 0.0
      %5800 = vmatprep.mubr.f32.mxu0 0.0
      %5801 = vmatmul.mubr.f32.gmra.mrb[0].mxu0 %v5731
      %v5802 = vpop.f32.mrb[0].mxu0
      %v5803 = vadd.f32 0.0, %v5802
      %v5804 = vpop.f32.mrb[0].mxu0
      %5805 = vmatprep.mubr.f32.mxu0 0.0
      %5806 = vmatmul.mubr.f32.gmra.mrb[0].mxu0 %v5734
      %v5807 = vpop.f32.mrb[0].mxu0
      %v5808 = vadd.f32 0.0, %v5807
      %v5809 = vpop.f32.mrb[0].mxu0
      %5810 = vdwg.mxu0
      %5811 = vxpose.xlu0.b32.start [1/16] %v2748, 128
      %5812 = vxpose.xlu0.b32.cont [2/16] %v2749, 128
      %5813 = vxpose.xlu0.b32.cont [3/16] 0.0, 128
      %5814 = vxpose.xlu0.b32.cont [4/16] 0.0, 128
      %5815 = vxpose.xlu0.b32.cont [5/16] 0.0, 128
      %5816 = vxpose.xlu0.b32.cont [6/16] 0.0, 128
      %5817 = vxpose.xlu0.b32.cont [7/16] 0.0, 128
      %5818 = vxpose.xlu0.b32.cont [8/16] 0.0, 128
      %5819 = vxpose.xlu0.b32.cont [9/16] 0.0, 128
      %5820 = vxpose.xlu0.b32.cont [10/16] 0.0, 128
      %5821 = vxpose.xlu0.b32.cont [11/16] 0.0, 128
      %5822 = vxpose.xlu0.b32.cont [12/16] 0.0, 128
      %5823 = vxpose.xlu0.b32.cont [13/16] 0.0, 128
      %5824 = vxpose.xlu0.b32.cont [14/16] 0.0, 128
      %5825 = vxpose.xlu0.b32.cont [15/16] 0.0, 128
      %5826 = vxpose.xlu0.b32.end [16/16] 0.0, 128
      %v5827 = vpop.trf.xlu0
      %v5828 = vpop.trf.xlu0
      %v5829 = vpop.trf.xlu0
      %v5830 = vpop.trf.xlu0
      %v5831 = vpop.trf.xlu0
      %v5832 = vpop.trf.xlu0
      %v5833 = vpop.trf.xlu0
      %v5834 = vpop.trf.xlu0
      %v5835 = vpop.trf.xlu0
      %v5836 = vpop.trf.xlu0
      %v5837 = vpop.trf.xlu0
      %v5838 = vpop.trf.xlu0
      %v5839 = vpop.trf.xlu0
      %v5840 = vpop.trf.xlu0
      %v5841 = vpop.trf.xlu0
      %v5842 = vpop.trf.xlu0
      %v5844 = vsel %vm714, %v5827, 0
      %v5847 = vsel %vm714, %v5828, 0
      %5849 = vmatprep.subr.mxu0 0.0
      %5850 = vmatpush1.msra.mxu0 %v2748
      %5851 = vmatprep.subr.mxu0 0.0
      %5852 = vmatpush1.msra.mxu0 %v2749
      %5853 = vmatprep.subr.mxu0 0.0
      %5854 = vmatpush1.msra.mxu0 0.0
      %5855 = vmatprep.subr.mxu0 0.0
      %5856 = vmatpush1.msra.mxu0 0.0
      %5857 = vmatprep.subr.mxu0 0.0
      %5858 = vmatpush1.msra.mxu0 0.0
      %5859 = vmatprep.subr.mxu0 0.0
      %5860 = vmatpush1.msra.mxu0 0.0
      %5861 = vmatprep.subr.mxu0 0.0
      %5862 = vmatpush1.msra.mxu0 0.0
      %5863 = vmatprep.subr.mxu0 0.0
      %5864 = vmatpush1.msra.mxu0 0.0
      %5865 = vmatprep.subr.mxu0 0.0
      %5866 = vmatpush1.msra.mxu0 0.0
      %5867 = vmatprep.subr.mxu0 0.0
      %5868 = vmatpush1.msra.mxu0 0.0
      %5869 = vmatprep.subr.mxu0 0.0
      %5870 = vmatpush1.msra.mxu0 0.0
      %5871 = vmatprep.subr.mxu0 0.0
      %5872 = vmatpush1.msra.mxu0 0.0
      %5873 = vmatprep.subr.mxu0 0.0
      %5874 = vmatpush1.msra.mxu0 0.0
      %5875 = vmatprep.subr.mxu0 0.0
      %5876 = vmatpush1.msra.mxu0 0.0
      %5877 = vmatprep.subr.mxu0 0.0
      %5878 = vmatpush1.msra.mxu0 0.0
      %5879 = vmatprep.subr.mxu0 0.0
      %5880 = vmatpush1.msra.mxu0 0.0
      %5881 = vmatprep.subr.mxu0 0.0
      %5882 = vmatpush1.msra.mxu0 0.0
      %5883 = vmatprep.subr.mxu0 0.0
      %5884 = vmatpush1.msra.mxu0 0.0
      %5885 = vmatprep.subr.mxu0 0.0
      %5886 = vmatpush1.msra.mxu0 0.0
      %5887 = vmatprep.subr.mxu0 0.0
      %5888 = vmatpush1.msra.mxu0 0.0
      %5889 = vmatprep.subr.mxu0 0.0
      %5890 = vmatpush1.msra.mxu0 0.0
      %5891 = vmatprep.subr.mxu0 0.0
      %5892 = vmatpush1.msra.mxu0 0.0
      %5893 = vmatprep.subr.mxu0 0.0
      %5894 = vmatpush1.msra.mxu0 0.0
      %5895 = vmatprep.subr.mxu0 0.0
      %5896 = vmatpush1.msra.mxu0 0.0
      %5897 = vmatprep.subr.mxu0 0.0
      %5898 = vmatpush1.msra.mxu0 0.0
      %5899 = vmatprep.subr.mxu0 0.0
      %5900 = vmatpush1.msra.mxu0 0.0
      %5901 = vmatprep.subr.mxu0 0.0
      %5902 = vmatpush1.msra.mxu0 0.0
      %5903 = vmatprep.subr.mxu0 0.0
      %5904 = vmatpush1.msra.mxu0 0.0
      %5905 = vmatprep.subr.mxu0 0.0
      %5906 = vmatpush1.msra.mxu0 0.0
      %5907 = vmatprep.subr.mxu0 0.0
      %5908 = vmatpush1.msra.mxu0 0.0
      %5909 = vmatprep.subr.mxu0 0.0
      %5910 = vmatpush1.msra.mxu0 0.0
      %5911 = vmatprep.subr.mxu0 0.0
      %5912 = vmatpush1.msra.mxu0 0.0
      %5913 = vmatprep.mubr.f32.mxu0 0.0
      %5914 = vmatmul.mubr.f32.gmra.mrb[0].mxu0 %v5844
      %v5915 = vpop.f32.mrb[0].mxu0
      %v5916 = vadd.f32 0.0, %v5915
      %v5917 = vpop.f32.mrb[0].mxu0
      %5918 = vmatprep.mubr.f32.mxu0 0.0
      %5919 = vmatmul.mubr.f32.gmra.mrb[0].mxu0 %v5847
      %v5920 = vpop.f32.mrb[0].mxu0
      %v5921 = vadd.f32 0.0, %v5920
      %v5922 = vpop.f32.mrb[0].mxu0
      %5923 = vdwg.mxu0
      %5924 = vxpose.xlu0.b32.start [1/16] %v2750, 128
      %5925 = vxpose.xlu0.b32.cont [2/16] %v2751, 128
      %5926 = vxpose.xlu0.b32.cont [3/16] 0.0, 128
      %5927 = vxpose.xlu0.b32.cont [4/16] 0.0, 128
      %5928 = vxpose.xlu0.b32.cont [5/16] 0.0, 128
      %5929 = vxpose.xlu0.b32.cont [6/16] 0.0, 128
      %5930 = vxpose.xlu0.b32.cont [7/16] 0.0, 128
      %5931 = vxpose.xlu0.b32.cont [8/16] 0.0, 128
      %5932 = vxpose.xlu0.b32.cont [9/16] 0.0, 128
      %5933 = vxpose.xlu0.b32.cont [10/16] 0.0, 128
      %5934 = vxpose.xlu0.b32.cont [11/16] 0.0, 128
      %5935 = vxpose.xlu0.b32.cont [12/16] 0.0, 128
      %5936 = vxpose.xlu0.b32.cont [13/16] 0.0, 128
      %5937 = vxpose.xlu0.b32.cont [14/16] 0.0, 128
      %5938 = vxpose.xlu0.b32.cont [15/16] 0.0, 128
      %5939 = vxpose.xlu0.b32.end [16/16] 0.0, 128
      %v5940 = vpop.trf.xlu0
      %v5941 = vpop.trf.xlu0
      %v5942 = vpop.trf.xlu0
      %v5943 = vpop.trf.xlu0
      %v5944 = vpop.trf.xlu0
      %v5945 = vpop.trf.xlu0
      %v5946 = vpop.trf.xlu0
      %v5947 = vpop.trf.xlu0
      %v5948 = vpop.trf.xlu0
      %v5949 = vpop.trf.xlu0
      %v5950 = vpop.trf.xlu0
      %v5951 = vpop.trf.xlu0
      %v5952 = vpop.trf.xlu0
      %v5953 = vpop.trf.xlu0
      %v5954 = vpop.trf.xlu0
      %v5955 = vpop.trf.xlu0
      %v5957 = vsel %vm714, %v5940, 0
      %v5960 = vsel %vm714, %v5941, 0
      %5962 = vmatprep.subr.mxu0 0.0
      %5963 = vmatpush1.msra.mxu0 %v2750
      %5964 = vmatprep.subr.mxu0 0.0
      %5965 = vmatpush1.msra.mxu0 %v2751
      %5966 = vmatprep.subr.mxu0 0.0
      %5967 = vmatpush1.msra.mxu0 0.0
      %5968 = vmatprep.subr.mxu0 0.0
      %5969 = vmatpush1.msra.mxu0 0.0
      %5970 = vmatprep.subr.mxu0 0.0
      %5971 = vmatpush1.msra.mxu0 0.0
      %5972 = vmatprep.subr.mxu0 0.0
      %5973 = vmatpush1.msra.mxu0 0.0
      %5974 = vmatprep.subr.mxu0 0.0
      %5975 = vmatpush1.msra.mxu0 0.0
      %5976 = vmatprep.subr.mxu0 0.0
      %5977 = vmatpush1.msra.mxu0 0.0
      %5978 = vmatprep.subr.mxu0 0.0
      %5979 = vmatpush1.msra.mxu0 0.0
      %5980 = vmatprep.subr.mxu0 0.0
      %5981 = vmatpush1.msra.mxu0 0.0
      %5982 = vmatprep.subr.mxu0 0.0
      %5983 = vmatpush1.msra.mxu0 0.0
      %5984 = vmatprep.subr.mxu0 0.0
      %5985 = vmatpush1.msra.mxu0 0.0
      %5986 = vmatprep.subr.mxu0 0.0
      %5987 = vmatpush1.msra.mxu0 0.0
      %5988 = vmatprep.subr.mxu0 0.0
      %5989 = vmatpush1.msra.mxu0 0.0
      %5990 = vmatprep.subr.mxu0 0.0
      %5991 = vmatpush1.msra.mxu0 0.0
      %5992 = vmatprep.subr.mxu0 0.0
      %5993 = vmatpush1.msra.mxu0 0.0
      %5994 = vmatprep.subr.mxu0 0.0
      %5995 = vmatpush1.msra.mxu0 0.0
      %5996 = vmatprep.subr.mxu0 0.0
      %5997 = vmatpush1.msra.mxu0 0.0
      %5998 = vmatprep.subr.mxu0 0.0
      %5999 = vmatpush1.msra.mxu0 0.0
      %6000 = vmatprep.subr.mxu0 0.0
      %6001 = vmatpush1.msra.mxu0 0.0
      %6002 = vmatprep.subr.mxu0 0.0
      %6003 = vmatpush1.msra.mxu0 0.0
      %6004 = vmatprep.subr.mxu0 0.0
      %6005 = vmatpush1.msra.mxu0 0.0
      %6006 = vmatprep.subr.mxu0 0.0
      %6007 = vmatpush1.msra.mxu0 0.0
      %6008 = vmatprep.subr.mxu0 0.0
      %6009 = vmatpush1.msra.mxu0 0.0
      %6010 = vmatprep.subr.mxu0 0.0
      %6011 = vmatpush1.msra.mxu0 0.0
      %6012 = vmatprep.subr.mxu0 0.0
      %6013 = vmatpush1.msra.mxu0 0.0
      %6014 = vmatprep.subr.mxu0 0.0
      %6015 = vmatpush1.msra.mxu0 0.0
      %6016 = vmatprep.subr.mxu0 0.0
      %6017 = vmatpush1.msra.mxu0 0.0
      %6018 = vmatprep.subr.mxu0 0.0
      %6019 = vmatpush1.msra.mxu0 0.0
      %6020 = vmatprep.subr.mxu0 0.0
      %6021 = vmatpush1.msra.mxu0 0.0
      %6022 = vmatprep.subr.mxu0 0.0
      %6023 = vmatpush1.msra.mxu0 0.0
      %6024 = vmatprep.subr.mxu0 0.0
      %6025 = vmatpush1.msra.mxu0 0.0
      %6026 = vmatprep.mubr.f32.mxu0 0.0
      %6027 = vmatmul.mubr.f32.gmra.mrb[0].mxu0 %v5957
      %v6028 = vpop.f32.mrb[0].mxu0
      %v6029 = vadd.f32 0.0, %v6028
      %v6030 = vpop.f32.mrb[0].mxu0
      %6031 = vmatprep.mubr.f32.mxu0 0.0
      %6032 = vmatmul.mubr.f32.gmra.mrb[0].mxu0 %v5960
      %v6033 = vpop.f32.mrb[0].mxu0
      %v6034 = vadd.f32 0.0, %v6033
      %v6035 = vpop.f32.mrb[0].mxu0
      %6036 = vdwg.mxu0
      %6037 = vxpose.xlu0.b32.start [1/16] %v2752, 128
      %6038 = vxpose.xlu0.b32.cont [2/16] %v2753, 128
      %6039 = vxpose.xlu0.b32.cont [3/16] 0.0, 128
      %6040 = vxpose.xlu0.b32.cont [4/16] 0.0, 128
      %6041 = vxpose.xlu0.b32.cont [5/16] 0.0, 128
      %6042 = vxpose.xlu0.b32.cont [6/16] 0.0, 128
      %6043 = vxpose.xlu0.b32.cont [7/16] 0.0, 128
      %6044 = vxpose.xlu0.b32.cont [8/16] 0.0, 128
      %6045 = vxpose.xlu0.b32.cont [9/16] 0.0, 128
      %6046 = vxpose.xlu0.b32.cont [10/16] 0.0, 128
      %6047 = vxpose.xlu0.b32.cont [11/16] 0.0, 128
      %6048 = vxpose.xlu0.b32.cont [12/16] 0.0, 128
      %6049 = vxpose.xlu0.b32.cont [13/16] 0.0, 128
      %6050 = vxpose.xlu0.b32.cont [14/16] 0.0, 128
      %6051 = vxpose.xlu0.b32.cont [15/16] 0.0, 128
      %6052 = vxpose.xlu0.b32.end [16/16] 0.0, 128
      %v6053 = vpop.trf.xlu0
      %v6054 = vpop.trf.xlu0
      %v6055 = vpop.trf.xlu0
      %v6056 = vpop.trf.xlu0
      %v6057 = vpop.trf.xlu0
      %v6058 = vpop.trf.xlu0
      %v6059 = vpop.trf.xlu0
      %v6060 = vpop.trf.xlu0
      %v6061 = vpop.trf.xlu0
      %v6062 = vpop.trf.xlu0
      %v6063 = vpop.trf.xlu0
      %v6064 = vpop.trf.xlu0
      %v6065 = vpop.trf.xlu0
      %v6066 = vpop.trf.xlu0
      %v6067 = vpop.trf.xlu0
      %v6068 = vpop.trf.xlu0
      %v6070 = vsel %vm714, %v6053, 0
      %v6073 = vsel %vm714, %v6054, 0
      %6075 = vmatprep.subr.mxu0 0.0
      %6076 = vmatpush1.msra.mxu0 %v2752
      %6077 = vmatprep.subr.mxu0 0.0
      %6078 = vmatpush1.msra.mxu0 %v2753
      %6079 = vmatprep.subr.mxu0 0.0
      %6080 = vmatpush1.msra.mxu0 0.0
      %6081 = vmatprep.subr.mxu0 0.0
      %6082 = vmatpush1.msra.mxu0 0.0
      %6083 = vmatprep.subr.mxu0 0.0
      %6084 = vmatpush1.msra.mxu0 0.0
      %6085 = vmatprep.subr.mxu0 0.0
      %6086 = vmatpush1.msra.mxu0 0.0
      %6087 = vmatprep.subr.mxu0 0.0
      %6088 = vmatpush1.msra.mxu0 0.0
      %6089 = vmatprep.subr.mxu0 0.0
      %6090 = vmatpush1.msra.mxu0 0.0
      %6091 = vmatprep.subr.mxu0 0.0
      %6092 = vmatpush1.msra.mxu0 0.0
      %6093 = vmatprep.subr.mxu0 0.0
      %6094 = vmatpush1.msra.mxu0 0.0
      %6095 = vmatprep.subr.mxu0 0.0
      %6096 = vmatpush1.msra.mxu0 0.0
      %6097 = vmatprep.subr.mxu0 0.0
      %6098 = vmatpush1.msra.mxu0 0.0
      %6099 = vmatprep.subr.mxu0 0.0
      %6100 = vmatpush1.msra.mxu0 0.0
      %6101 = vmatprep.subr.mxu0 0.0
      %6102 = vmatpush1.msra.mxu0 0.0
      %6103 = vmatprep.subr.mxu0 0.0
      %6104 = vmatpush1.msra.mxu0 0.0
      %6105 = vmatprep.subr.mxu0 0.0
      %6106 = vmatpush1.msra.mxu0 0.0
      %6107 = vmatprep.subr.mxu0 0.0
      %6108 = vmatpush1.msra.mxu0 0.0
      %6109 = vmatprep.subr.mxu0 0.0
      %6110 = vmatpush1.msra.mxu0 0.0
      %6111 = vmatprep.subr.mxu0 0.0
      %6112 = vmatpush1.msra.mxu0 0.0
      %6113 = vmatprep.subr.mxu0 0.0
      %6114 = vmatpush1.msra.mxu0 0.0
      %6115 = vmatprep.subr.mxu0 0.0
      %6116 = vmatpush1.msra.mxu0 0.0
      %6117 = vmatprep.subr.mxu0 0.0
      %6118 = vmatpush1.msra.mxu0 0.0
      %6119 = vmatprep.subr.mxu0 0.0
      %6120 = vmatpush1.msra.mxu0 0.0
      %6121 = vmatprep.subr.mxu0 0.0
      %6122 = vmatpush1.msra.mxu0 0.0
      %6123 = vmatprep.subr.mxu0 0.0
      %6124 = vmatpush1.msra.mxu0 0.0
      %6125 = vmatprep.subr.mxu0 0.0
      %6126 = vmatpush1.msra.mxu0 0.0
      %6127 = vmatprep.subr.mxu0 0.0
      %6128 = vmatpush1.msra.mxu0 0.0
      %6129 = vmatprep.subr.mxu0 0.0
      %6130 = vmatpush1.msra.mxu0 0.0
      %6131 = vmatprep.subr.mxu0 0.0
      %6132 = vmatpush1.msra.mxu0 0.0
      %6133 = vmatprep.subr.mxu0 0.0
      %6134 = vmatpush1.msra.mxu0 0.0
      %6135 = vmatprep.subr.mxu0 0.0
      %6136 = vmatpush1.msra.mxu0 0.0
      %6137 = vmatprep.subr.mxu0 0.0
      %6138 = vmatpush1.msra.mxu0 0.0
      %6139 = vmatprep.mubr.f32.mxu0 0.0
      %6140 = vmatmul.mubr.f32.gmra.mrb[0].mxu0 %v6070
      %v6141 = vpop.f32.mrb[0].mxu0
      %v6142 = vadd.f32 0.0, %v6141
      %v6143 = vpop.f32.mrb[0].mxu0
      %6144 = vmatprep.mubr.f32.mxu0 0.0
      %6145 = vmatmul.mubr.f32.gmra.mrb[0].mxu0 %v6073
      %v6146 = vpop.f32.mrb[0].mxu0
      %v6147 = vadd.f32 0.0, %v6146
      %v6148 = vpop.f32.mrb[0].mxu0
      %6149 = vdwg.mxu0
      %6150 = vxpose.xlu0.b32.start [1/16] %v2754, 128
      %6151 = vxpose.xlu0.b32.cont [2/16] %v2755, 128
      %6152 = vxpose.xlu0.b32.cont [3/16] 0.0, 128
      %6153 = vxpose.xlu0.b32.cont [4/16] 0.0, 128
      %6154 = vxpose.xlu0.b32.cont [5/16] 0.0, 128
      %6155 = vxpose.xlu0.b32.cont [6/16] 0.0, 128
      %6156 = vxpose.xlu0.b32.cont [7/16] 0.0, 128
      %6157 = vxpose.xlu0.b32.cont [8/16] 0.0, 128
      %6158 = vxpose.xlu0.b32.cont [9/16] 0.0, 128
      %6159 = vxpose.xlu0.b32.cont [10/16] 0.0, 128
      %6160 = vxpose.xlu0.b32.cont [11/16] 0.0, 128
      %6161 = vxpose.xlu0.b32.cont [12/16] 0.0, 128
      %6162 = vxpose.xlu0.b32.cont [13/16] 0.0, 128
      %6163 = vxpose.xlu0.b32.cont [14/16] 0.0, 128
      %6164 = vxpose.xlu0.b32.cont [15/16] 0.0, 128
      %6165 = vxpose.xlu0.b32.end [16/16] 0.0, 128
      %v6166 = vpop.trf.xlu0
      %v6167 = vpop.trf.xlu0
      %v6168 = vpop.trf.xlu0
      %v6169 = vpop.trf.xlu0
      %v6170 = vpop.trf.xlu0
      %v6171 = vpop.trf.xlu0
      %v6172 = vpop.trf.xlu0
      %v6173 = vpop.trf.xlu0
      %v6174 = vpop.trf.xlu0
      %v6175 = vpop.trf.xlu0
      %v6176 = vpop.trf.xlu0
      %v6177 = vpop.trf.xlu0
      %v6178 = vpop.trf.xlu0
      %v6179 = vpop.trf.xlu0
      %v6180 = vpop.trf.xlu0
      %v6181 = vpop.trf.xlu0
      %v6183 = vsel %vm714, %v6166, 0
      %v6186 = vsel %vm714, %v6167, 0
      %6188 = vmatprep.subr.mxu0 0.0
      %6189 = vmatpush1.msra.mxu0 %v2754
      %6190 = vmatprep.subr.mxu0 0.0
      %6191 = vmatpush1.msra.mxu0 %v2755
      %6192 = vmatprep.subr.mxu0 0.0
      %6193 = vmatpush1.msra.mxu0 0.0
      %6194 = vmatprep.subr.mxu0 0.0
      %6195 = vmatpush1.msra.mxu0 0.0
      %6196 = vmatprep.subr.mxu0 0.0
      %6197 = vmatpush1.msra.mxu0 0.0
      %6198 = vmatprep.subr.mxu0 0.0
      %6199 = vmatpush1.msra.mxu0 0.0
      %6200 = vmatprep.subr.mxu0 0.0
      %6201 = vmatpush1.msra.mxu0 0.0
      %6202 = vmatprep.subr.mxu0 0.0
      %6203 = vmatpush1.msra.mxu0 0.0
      %6204 = vmatprep.subr.mxu0 0.0
      %6205 = vmatpush1.msra.mxu0 0.0
      %6206 = vmatprep.subr.mxu0 0.0
      %6207 = vmatpush1.msra.mxu0 0.0
      %6208 = vmatprep.subr.mxu0 0.0
      %6209 = vmatpush1.msra.mxu0 0.0
      %6210 = vmatprep.subr.mxu0 0.0
      %6211 = vmatpush1.msra.mxu0 0.0
      %6212 = vmatprep.subr.mxu0 0.0
      %6213 = vmatpush1.msra.mxu0 0.0
      %6214 = vmatprep.subr.mxu0 0.0
      %6215 = vmatpush1.msra.mxu0 0.0
      %6216 = vmatprep.subr.mxu0 0.0
      %6217 = vmatpush1.msra.mxu0 0.0
      %6218 = vmatprep.subr.mxu0 0.0
      %6219 = vmatpush1.msra.mxu0 0.0
      %6220 = vmatprep.subr.mxu0 0.0
      %6221 = vmatpush1.msra.mxu0 0.0
      %6222 = vmatprep.subr.mxu0 0.0
      %6223 = vmatpush1.msra.mxu0 0.0
      %6224 = vmatprep.subr.mxu0 0.0
      %6225 = vmatpush1.msra.mxu0 0.0
      %6226 = vmatprep.subr.mxu0 0.0
      %6227 = vmatpush1.msra.mxu0 0.0
      %6228 = vmatprep.subr.mxu0 0.0
      %6229 = vmatpush1.msra.mxu0 0.0
      %6230 = vmatprep.subr.mxu0 0.0
      %6231 = vmatpush1.msra.mxu0 0.0
      %6232 = vmatprep.subr.mxu0 0.0
      %6233 = vmatpush1.msra.mxu0 0.0
      %6234 = vmatprep.subr.mxu0 0.0
      %6235 = vmatpush1.msra.mxu0 0.0
      %6236 = vmatprep.subr.mxu0 0.0
      %6237 = vmatpush1.msra.mxu0 0.0
      %6238 = vmatprep.subr.mxu0 0.0
      %6239 = vmatpush1.msra.mxu0 0.0
      %6240 = vmatprep.subr.mxu0 0.0
      %6241 = vmatpush1.msra.mxu0 0.0
      %6242 = vmatprep.subr.mxu0 0.0
      %6243 = vmatpush1.msra.mxu0 0.0
      %6244 = vmatprep.subr.mxu0 0.0
      %6245 = vmatpush1.msra.mxu0 0.0
      %6246 = vmatprep.subr.mxu0 0.0
      %6247 = vmatpush1.msra.mxu0 0.0
      %6248 = vmatprep.subr.mxu0 0.0
      %6249 = vmatpush1.msra.mxu0 0.0
      %6250 = vmatprep.subr.mxu0 0.0
      %6251 = vmatpush1.msra.mxu0 0.0
      %6252 = vmatprep.mubr.f32.mxu0 0.0
      %6253 = vmatmul.mubr.f32.gmra.mrb[0].mxu0 %v6183
      %v6254 = vpop.f32.mrb[0].mxu0
      %v6255 = vadd.f32 0.0, %v6254
      %v6256 = vpop.f32.mrb[0].mxu0
      %6257 = vmatprep.mubr.f32.mxu0 0.0
      %6258 = vmatmul.mubr.f32.gmra.mrb[0].mxu0 %v6186
      %v6259 = vpop.f32.mrb[0].mxu0
      %v6260 = vadd.f32 0.0, %v6259
      %v6261 = vpop.f32.mrb[0].mxu0
      %6262 = vdwg.mxu0
      %6263 = vxpose.xlu0.b32.start [1/16] %v2756, 128
      %6264 = vxpose.xlu0.b32.cont [2/16] %v2757, 128
      %6265 = vxpose.xlu0.b32.cont [3/16] 0.0, 128
      %6266 = vxpose.xlu0.b32.cont [4/16] 0.0, 128
      %6267 = vxpose.xlu0.b32.cont [5/16] 0.0, 128
      %6268 = vxpose.xlu0.b32.cont [6/16] 0.0, 128
      %6269 = vxpose.xlu0.b32.cont [7/16] 0.0, 128
      %6270 = vxpose.xlu0.b32.cont [8/16] 0.0, 128
      %6271 = vxpose.xlu0.b32.cont [9/16] 0.0, 128
      %6272 = vxpose.xlu0.b32.cont [10/16] 0.0, 128
      %6273 = vxpose.xlu0.b32.cont [11/16] 0.0, 128
      %6274 = vxpose.xlu0.b32.cont [12/16] 0.0, 128
      %6275 = vxpose.xlu0.b32.cont [13/16] 0.0, 128
      %6276 = vxpose.xlu0.b32.cont [14/16] 0.0, 128
      %6277 = vxpose.xlu0.b32.cont [15/16] 0.0, 128
      %6278 = vxpose.xlu0.b32.end [16/16] 0.0, 128
      %v6279 = vpop.trf.xlu0
      %v6280 = vpop.trf.xlu0
      %v6281 = vpop.trf.xlu0
      %v6282 = vpop.trf.xlu0
      %v6283 = vpop.trf.xlu0
      %v6284 = vpop.trf.xlu0
      %v6285 = vpop.trf.xlu0
      %v6286 = vpop.trf.xlu0
      %v6287 = vpop.trf.xlu0
      %v6288 = vpop.trf.xlu0
      %v6289 = vpop.trf.xlu0
      %v6290 = vpop.trf.xlu0
      %v6291 = vpop.trf.xlu0
      %v6292 = vpop.trf.xlu0
      %v6293 = vpop.trf.xlu0
      %v6294 = vpop.trf.xlu0
      %v6296 = vsel %vm714, %v6279, 0
      %v6299 = vsel %vm714, %v6280, 0
      %6301 = vmatprep.subr.mxu0 0.0
      %6302 = vmatpush1.msra.mxu0 %v2756
      %6303 = vmatprep.subr.mxu0 0.0
      %6304 = vmatpush1.msra.mxu0 %v2757
      %6305 = vmatprep.subr.mxu0 0.0
      %6306 = vmatpush1.msra.mxu0 0.0
      %6307 = vmatprep.subr.mxu0 0.0
      %6308 = vmatpush1.msra.mxu0 0.0
      %6309 = vmatprep.subr.mxu0 0.0
      %6310 = vmatpush1.msra.mxu0 0.0
      %6311 = vmatprep.subr.mxu0 0.0
      %6312 = vmatpush1.msra.mxu0 0.0
      %6313 = vmatprep.subr.mxu0 0.0
      %6314 = vmatpush1.msra.mxu0 0.0
      %6315 = vmatprep.subr.mxu0 0.0
      %6316 = vmatpush1.msra.mxu0 0.0
      %6317 = vmatprep.subr.mxu0 0.0
      %6318 = vmatpush1.msra.mxu0 0.0
      %6319 = vmatprep.subr.mxu0 0.0
      %6320 = vmatpush1.msra.mxu0 0.0
      %6321 = vmatprep.subr.mxu0 0.0
      %6322 = vmatpush1.msra.mxu0 0.0
      %6323 = vmatprep.subr.mxu0 0.0
      %6324 = vmatpush1.msra.mxu0 0.0
      %6325 = vmatprep.subr.mxu0 0.0
      %6326 = vmatpush1.msra.mxu0 0.0
      %6327 = vmatprep.subr.mxu0 0.0
      %6328 = vmatpush1.msra.mxu0 0.0
      %6329 = vmatprep.subr.mxu0 0.0
      %6330 = vmatpush1.msra.mxu0 0.0
      %6331 = vmatprep.subr.mxu0 0.0
      %6332 = vmatpush1.msra.mxu0 0.0
      %6333 = vmatprep.subr.mxu0 0.0
      %6334 = vmatpush1.msra.mxu0 0.0
      %6335 = vmatprep.subr.mxu0 0.0
      %6336 = vmatpush1.msra.mxu0 0.0
      %6337 = vmatprep.subr.mxu0 0.0
      %6338 = vmatpush1.msra.mxu0 0.0
      %6339 = vmatprep.subr.mxu0 0.0
      %6340 = vmatpush1.msra.mxu0 0.0
      %6341 = vmatprep.subr.mxu0 0.0
      %6342 = vmatpush1.msra.mxu0 0.0
      %6343 = vmatprep.subr.mxu0 0.0
      %6344 = vmatpush1.msra.mxu0 0.0
      %6345 = vmatprep.subr.mxu0 0.0
      %6346 = vmatpush1.msra.mxu0 0.0
      %6347 = vmatprep.subr.mxu0 0.0
      %6348 = vmatpush1.msra.mxu0 0.0
      %6349 = vmatprep.subr.mxu0 0.0
      %6350 = vmatpush1.msra.mxu0 0.0
      %6351 = vmatprep.subr.mxu0 0.0
      %6352 = vmatpush1.msra.mxu0 0.0
      %6353 = vmatprep.subr.mxu0 0.0
      %6354 = vmatpush1.msra.mxu0 0.0
      %6355 = vmatprep.subr.mxu0 0.0
      %6356 = vmatpush1.msra.mxu0 0.0
      %6357 = vmatprep.subr.mxu0 0.0
      %6358 = vmatpush1.msra.mxu0 0.0
      %6359 = vmatprep.subr.mxu0 0.0
      %6360 = vmatpush1.msra.mxu0 0.0
      %6361 = vmatprep.subr.mxu0 0.0
      %6362 = vmatpush1.msra.mxu0 0.0
      %6363 = vmatprep.subr.mxu0 0.0
      %6364 = vmatpush1.msra.mxu0 0.0
      %6365 = vmatprep.mubr.f32.mxu0 0.0
      %6366 = vmatmul.mubr.f32.gmra.mrb[0].mxu0 %v6296
      %v6367 = vpop.f32.mrb[0].mxu0
      %v6368 = vadd.f32 0.0, %v6367
      %v6369 = vpop.f32.mrb[0].mxu0
      %6370 = vmatprep.mubr.f32.mxu0 0.0
      %6371 = vmatmul.mubr.f32.gmra.mrb[0].mxu0 %v6299
      %v6372 = vpop.f32.mrb[0].mxu0
      %v6373 = vadd.f32 0.0, %v6372
      %v6374 = vpop.f32.mrb[0].mxu0
      %6375 = vdwg.mxu0
      %6376 = vxpose.xlu0.b32.start [1/16] %v2758, 128
      %6377 = vxpose.xlu0.b32.cont [2/16] %v2759, 128
      %6378 = vxpose.xlu0.b32.cont [3/16] 0.0, 128
      %6379 = vxpose.xlu0.b32.cont [4/16] 0.0, 128
      %6380 = vxpose.xlu0.b32.cont [5/16] 0.0, 128
      %6381 = vxpose.xlu0.b32.cont [6/16] 0.0, 128
      %6382 = vxpose.xlu0.b32.cont [7/16] 0.0, 128
      %6383 = vxpose.xlu0.b32.cont [8/16] 0.0, 128
      %6384 = vxpose.xlu0.b32.cont [9/16] 0.0, 128
      %6385 = vxpose.xlu0.b32.cont [10/16] 0.0, 128
      %6386 = vxpose.xlu0.b32.cont [11/16] 0.0, 128
      %6387 = vxpose.xlu0.b32.cont [12/16] 0.0, 128
      %6388 = vxpose.xlu0.b32.cont [13/16] 0.0, 128
      %6389 = vxpose.xlu0.b32.cont [14/16] 0.0, 128
      %6390 = vxpose.xlu0.b32.cont [15/16] 0.0, 128
      %6391 = vxpose.xlu0.b32.end [16/16] 0.0, 128
      %v6392 = vpop.trf.xlu0
      %v6393 = vpop.trf.xlu0
      %v6394 = vpop.trf.xlu0
      %v6395 = vpop.trf.xlu0
      %v6396 = vpop.trf.xlu0
      %v6397 = vpop.trf.xlu0
      %v6398 = vpop.trf.xlu0
      %v6399 = vpop.trf.xlu0
      %v6400 = vpop.trf.xlu0
      %v6401 = vpop.trf.xlu0
      %v6402 = vpop.trf.xlu0
      %v6403 = vpop.trf.xlu0
      %v6404 = vpop.trf.xlu0
      %v6405 = vpop.trf.xlu0
      %v6406 = vpop.trf.xlu0
      %v6407 = vpop.trf.xlu0
      %v6409 = vsel %vm714, %v6392, 0
      %v6412 = vsel %vm714, %v6393, 0
      %6414 = vmatprep.subr.mxu0 0.0
      %6415 = vmatpush1.msra.mxu0 %v2758
      %6416 = vmatprep.subr.mxu0 0.0
      %6417 = vmatpush1.msra.mxu0 %v2759
      %6418 = vmatprep.subr.mxu0 0.0
      %6419 = vmatpush1.msra.mxu0 0.0
      %6420 = vmatprep.subr.mxu0 0.0
      %6421 = vmatpush1.msra.mxu0 0.0
      %6422 = vmatprep.subr.mxu0 0.0
      %6423 = vmatpush1.msra.mxu0 0.0
      %6424 = vmatprep.subr.mxu0 0.0
      %6425 = vmatpush1.msra.mxu0 0.0
      %6426 = vmatprep.subr.mxu0 0.0
      %6427 = vmatpush1.msra.mxu0 0.0
      %6428 = vmatprep.subr.mxu0 0.0
      %6429 = vmatpush1.msra.mxu0 0.0
      %6430 = vmatprep.subr.mxu0 0.0
      %6431 = vmatpush1.msra.mxu0 0.0
      %6432 = vmatprep.subr.mxu0 0.0
      %6433 = vmatpush1.msra.mxu0 0.0
      %6434 = vmatprep.subr.mxu0 0.0
      %6435 = vmatpush1.msra.mxu0 0.0
      %6436 = vmatprep.subr.mxu0 0.0
      %6437 = vmatpush1.msra.mxu0 0.0
      %6438 = vmatprep.subr.mxu0 0.0
      %6439 = vmatpush1.msra.mxu0 0.0
      %6440 = vmatprep.subr.mxu0 0.0
      %6441 = vmatpush1.msra.mxu0 0.0
      %6442 = vmatprep.subr.mxu0 0.0
      %6443 = vmatpush1.msra.mxu0 0.0
      %6444 = vmatprep.subr.mxu0 0.0
      %6445 = vmatpush1.msra.mxu0 0.0
      %6446 = vmatprep.subr.mxu0 0.0
      %6447 = vmatpush1.msra.mxu0 0.0
      %6448 = vmatprep.subr.mxu0 0.0
      %6449 = vmatpush1.msra.mxu0 0.0
      %6450 = vmatprep.subr.mxu0 0.0
      %6451 = vmatpush1.msra.mxu0 0.0
      %6452 = vmatprep.subr.mxu0 0.0
      %6453 = vmatpush1.msra.mxu0 0.0
      %6454 = vmatprep.subr.mxu0 0.0
      %6455 = vmatpush1.msra.mxu0 0.0
      %6456 = vmatprep.subr.mxu0 0.0
      %6457 = vmatpush1.msra.mxu0 0.0
      %6458 = vmatprep.subr.mxu0 0.0
      %6459 = vmatpush1.msra.mxu0 0.0
      %6460 = vmatprep.subr.mxu0 0.0
      %6461 = vmatpush1.msra.mxu0 0.0
      %6462 = vmatprep.subr.mxu0 0.0
      %6463 = vmatpush1.msra.mxu0 0.0
      %6464 = vmatprep.subr.mxu0 0.0
      %6465 = vmatpush1.msra.mxu0 0.0
      %6466 = vmatprep.subr.mxu0 0.0
      %6467 = vmatpush1.msra.mxu0 0.0
      %6468 = vmatprep.subr.mxu0 0.0
      %6469 = vmatpush1.msra.mxu0 0.0
      %6470 = vmatprep.subr.mxu0 0.0
      %6471 = vmatpush1.msra.mxu0 0.0
      %6472 = vmatprep.subr.mxu0 0.0
      %6473 = vmatpush1.msra.mxu0 0.0
      %6474 = vmatprep.subr.mxu0 0.0
      %6475 = vmatpush1.msra.mxu0 0.0
      %6476 = vmatprep.subr.mxu0 0.0
      %6477 = vmatpush1.msra.mxu0 0.0
      %6478 = vmatprep.mubr.f32.mxu0 0.0
      %6479 = vmatmul.mubr.f32.gmra.mrb[0].mxu0 %v6409
      %v6480 = vpop.f32.mrb[0].mxu0
      %v6481 = vadd.f32 0.0, %v6480
      %v6482 = vpop.f32.mrb[0].mxu0
      %6483 = vmatprep.mubr.f32.mxu0 0.0
      %6484 = vmatmul.mubr.f32.gmra.mrb[0].mxu0 %v6412
      %v6485 = vpop.f32.mrb[0].mxu0
      %v6486 = vadd.f32 0.0, %v6485
      %v6487 = vpop.f32.mrb[0].mxu0
      %6488 = vdwg.mxu0
      %6489 = vxpose.xlu0.b32.start [1/16] %v2760, 128
      %6490 = vxpose.xlu0.b32.cont [2/16] %v2761, 128
      %6491 = vxpose.xlu0.b32.cont [3/16] 0.0, 128
      %6492 = vxpose.xlu0.b32.cont [4/16] 0.0, 128
      %6493 = vxpose.xlu0.b32.cont [5/16] 0.0, 128
      %6494 = vxpose.xlu0.b32.cont [6/16] 0.0, 128
      %6495 = vxpose.xlu0.b32.cont [7/16] 0.0, 128
      %6496 = vxpose.xlu0.b32.cont [8/16] 0.0, 128
      %6497 = vxpose.xlu0.b32.cont [9/16] 0.0, 128
      %6498 = vxpose.xlu0.b32.cont [10/16] 0.0, 128
      %6499 = vxpose.xlu0.b32.cont [11/16] 0.0, 128
      %6500 = vxpose.xlu0.b32.cont [12/16] 0.0, 128
      %6501 = vxpose.xlu0.b32.cont [13/16] 0.0, 128
      %6502 = vxpose.xlu0.b32.cont [14/16] 0.0, 128
      %6503 = vxpose.xlu0.b32.cont [15/16] 0.0, 128
      %6504 = vxpose.xlu0.b32.end [16/16] 0.0, 128
      %v6505 = vpop.trf.xlu0
      %v6506 = vpop.trf.xlu0
      %v6507 = vpop.trf.xlu0
      %v6508 = vpop.trf.xlu0
      %v6509 = vpop.trf.xlu0
      %v6510 = vpop.trf.xlu0
      %v6511 = vpop.trf.xlu0
      %v6512 = vpop.trf.xlu0
      %v6513 = vpop.trf.xlu0
      %v6514 = vpop.trf.xlu0
      %v6515 = vpop.trf.xlu0
      %v6516 = vpop.trf.xlu0
      %v6517 = vpop.trf.xlu0
      %v6518 = vpop.trf.xlu0
      %v6519 = vpop.trf.xlu0
      %v6520 = vpop.trf.xlu0
      %v6522 = vsel %vm714, %v6505, 0
      %v6525 = vsel %vm714, %v6506, 0
      %6527 = vmatprep.subr.mxu0 0.0
      %6528 = vmatpush1.msra.mxu0 %v2760
      %6529 = vmatprep.subr.mxu0 0.0
      %6530 = vmatpush1.msra.mxu0 %v2761
      %6531 = vmatprep.subr.mxu0 0.0
      %6532 = vmatpush1.msra.mxu0 0.0
      %6533 = vmatprep.subr.mxu0 0.0
      %6534 = vmatpush1.msra.mxu0 0.0
      %6535 = vmatprep.subr.mxu0 0.0
      %6536 = vmatpush1.msra.mxu0 0.0
      %6537 = vmatprep.subr.mxu0 0.0
      %6538 = vmatpush1.msra.mxu0 0.0
      %6539 = vmatprep.subr.mxu0 0.0
      %6540 = vmatpush1.msra.mxu0 0.0
      %6541 = vmatprep.subr.mxu0 0.0
      %6542 = vmatpush1.msra.mxu0 0.0
      %6543 = vmatprep.subr.mxu0 0.0
      %6544 = vmatpush1.msra.mxu0 0.0
      %6545 = vmatprep.subr.mxu0 0.0
      %6546 = vmatpush1.msra.mxu0 0.0
      %6547 = vmatprep.subr.mxu0 0.0
      %6548 = vmatpush1.msra.mxu0 0.0
      %6549 = vmatprep.subr.mxu0 0.0
      %6550 = vmatpush1.msra.mxu0 0.0
      %6551 = vmatprep.subr.mxu0 0.0
      %6552 = vmatpush1.msra.mxu0 0.0
      %6553 = vmatprep.subr.mxu0 0.0
      %6554 = vmatpush1.msra.mxu0 0.0
      %6555 = vmatprep.subr.mxu0 0.0
      %6556 = vmatpush1.msra.mxu0 0.0
      %6557 = vmatprep.subr.mxu0 0.0
      %6558 = vmatpush1.msra.mxu0 0.0
      %6559 = vmatprep.subr.mxu0 0.0
      %6560 = vmatpush1.msra.mxu0 0.0
      %6561 = vmatprep.subr.mxu0 0.0
      %6562 = vmatpush1.msra.mxu0 0.0
      %6563 = vmatprep.subr.mxu0 0.0
      %6564 = vmatpush1.msra.mxu0 0.0
      %6565 = vmatprep.subr.mxu0 0.0
      %6566 = vmatpush1.msra.mxu0 0.0
      %6567 = vmatprep.subr.mxu0 0.0
      %6568 = vmatpush1.msra.mxu0 0.0
      %6569 = vmatprep.subr.mxu0 0.0
      %6570 = vmatpush1.msra.mxu0 0.0
      %6571 = vmatprep.subr.mxu0 0.0
      %6572 = vmatpush1.msra.mxu0 0.0
      %6573 = vmatprep.subr.mxu0 0.0
      %6574 = vmatpush1.msra.mxu0 0.0
      %6575 = vmatprep.subr.mxu0 0.0
      %6576 = vmatpush1.msra.mxu0 0.0
      %6577 = vmatprep.subr.mxu0 0.0
      %6578 = vmatpush1.msra.mxu0 0.0
      %6579 = vmatprep.subr.mxu0 0.0
      %6580 = vmatpush1.msra.mxu0 0.0
      %6581 = vmatprep.subr.mxu0 0.0
      %6582 = vmatpush1.msra.mxu0 0.0
      %6583 = vmatprep.subr.mxu0 0.0
      %6584 = vmatpush1.msra.mxu0 0.0
      %6585 = vmatprep.subr.mxu0 0.0
      %6586 = vmatpush1.msra.mxu0 0.0
      %6587 = vmatprep.subr.mxu0 0.0
      %6588 = vmatpush1.msra.mxu0 0.0
      %6589 = vmatprep.subr.mxu0 0.0
      %6590 = vmatpush1.msra.mxu0 0.0
      %6591 = vmatprep.mubr.f32.mxu0 0.0
      %6592 = vmatmul.mubr.f32.gmra.mrb[0].mxu0 %v6522
      %v6593 = vpop.f32.mrb[0].mxu0
      %v6594 = vadd.f32 0.0, %v6593
      %v6595 = vpop.f32.mrb[0].mxu0
      %6596 = vmatprep.mubr.f32.mxu0 0.0
      %6597 = vmatmul.mubr.f32.gmra.mrb[0].mxu0 %v6525
      %v6598 = vpop.f32.mrb[0].mxu0
      %v6599 = vadd.f32 0.0, %v6598
      %v6600 = vpop.f32.mrb[0].mxu0
      %6601 = vdwg.mxu0
      %v6602 = vmul.f32 %v4899, %v4899
      %v6603 = vmul.f32 %v4904, %v4904
      %v6604 = vmul.f32 %v5012, %v5012
      %v6605 = vmul.f32 %v5017, %v5017
      %v6606 = vmul.f32 %v5125, %v5125
      %v6607 = vmul.f32 %v5130, %v5130
      %v6608 = vmul.f32 %v5238, %v5238
      %v6609 = vmul.f32 %v5243, %v5243
      %v6610 = vmul.f32 %v5351, %v5351
      %v6611 = vmul.f32 %v5356, %v5356
      %v6612 = vmul.f32 %v5464, %v5464
      %v6613 = vmul.f32 %v5469, %v5469
      %v6614 = vmul.f32 %v5577, %v5577
      %v6615 = vmul.f32 %v5582, %v5582
      %v6616 = vmul.f32 %v5690, %v5690
      %v6617 = vmul.f32 %v5695, %v5695
      %v6618 = vmul.f32 %v5803, %v5803
      %v6619 = vmul.f32 %v5808, %v5808
      %v6620 = vmul.f32 %v5916, %v5916
      %v6621 = vmul.f32 %v5921, %v5921
      %v6622 = vmul.f32 %v6029, %v6029
      %v6623 = vmul.f32 %v6034, %v6034
      %v6624 = vmul.f32 %v6142, %v6142
      %v6625 = vmul.f32 %v6147, %v6147
      %v6626 = vmul.f32 %v6255, %v6255
      %v6627 = vmul.f32 %v6260, %v6260
      %v6628 = vmul.f32 %v6368, %v6368
      %v6629 = vmul.f32 %v6373, %v6373
      %v6630 = vmul.f32 %v6481, %v6481
      %v6631 = vmul.f32 %v6486, %v6486
      %v6632 = vmul.f32 %v6594, %v6594
      %v6633 = vmul.f32 %v6599, %v6599
      %v6634 = vsel %vm714, %v6602, 0.0
      %6635 = vadd.xlane.f32.xlu0 %v6634
      %v6636 = vpop.xlane.xlu0 %6635
      %v6637 = vsel %vm714, %v6603, 0.0
      %6638 = vadd.xlane.f32.xlu0 %v6637
      %v6639 = vpop.xlane.xlu0 %6638
      %v6640 = vsel %vm714, %v6604, 0.0
      %6641 = vadd.xlane.f32.xlu0 %v6640
      %v6642 = vpop.xlane.xlu0 %6641
      %v6643 = vsel %vm714, %v6605, 0.0
      %6644 = vadd.xlane.f32.xlu0 %v6643
      %v6645 = vpop.xlane.xlu0 %6644
      %v6646 = vsel %vm714, %v6606, 0.0
      %6647 = vadd.xlane.f32.xlu0 %v6646
      %v6648 = vpop.xlane.xlu0 %6647
      %v6649 = vsel %vm714, %v6607, 0.0
      %6650 = vadd.xlane.f32.xlu0 %v6649
      %v6651 = vpop.xlane.xlu0 %6650
      %v6652 = vsel %vm714, %v6608, 0.0
      %6653 = vadd.xlane.f32.xlu0 %v6652
      %v6654 = vpop.xlane.xlu0 %6653
      %v6655 = vsel %vm714, %v6609, 0.0
      %6656 = vadd.xlane.f32.xlu0 %v6655
      %v6657 = vpop.xlane.xlu0 %6656
      %v6658 = vsel %vm714, %v6610, 0.0
      %6659 = vadd.xlane.f32.xlu0 %v6658
      %v6660 = vpop.xlane.xlu0 %6659
      %v6661 = vsel %vm714, %v6611, 0.0
      %6662 = vadd.xlane.f32.xlu0 %v6661
      %v6663 = vpop.xlane.xlu0 %6662
      %v6664 = vsel %vm714, %v6612, 0.0
      %6665 = vadd.xlane.f32.xlu0 %v6664
      %v6666 = vpop.xlane.xlu0 %6665
      %v6667 = vsel %vm714, %v6613, 0.0
      %6668 = vadd.xlane.f32.xlu0 %v6667
      %v6669 = vpop.xlane.xlu0 %6668
      %v6670 = vsel %vm714, %v6614, 0.0
      %6671 = vadd.xlane.f32.xlu0 %v6670
      %v6672 = vpop.xlane.xlu0 %6671
      %v6673 = vsel %vm714, %v6615, 0.0
      %6674 = vadd.xlane.f32.xlu0 %v6673
      %v6675 = vpop.xlane.xlu0 %6674
      %v6676 = vsel %vm714, %v6616, 0.0
      %6677 = vadd.xlane.f32.xlu0 %v6676
      %v6678 = vpop.xlane.xlu0 %6677
      %v6679 = vsel %vm714, %v6617, 0.0
      %6680 = vadd.xlane.f32.xlu0 %v6679
      %v6681 = vpop.xlane.xlu0 %6680
      %v6682 = vsel %vm714, %v6618, 0.0
      %6683 = vadd.xlane.f32.xlu0 %v6682
      %v6684 = vpop.xlane.xlu0 %6683
      %v6685 = vsel %vm714, %v6619, 0.0
      %6686 = vadd.xlane.f32.xlu0 %v6685
      %v6687 = vpop.xlane.xlu0 %6686
      %v6688 = vsel %vm714, %v6620, 0.0
      %6689 = vadd.xlane.f32.xlu0 %v6688
      %v6690 = vpop.xlane.xlu0 %6689
      %v6691 = vsel %vm714, %v6621, 0.0
      %6692 = vadd.xlane.f32.xlu0 %v6691
      %v6693 = vpop.xlane.xlu0 %6692
      %v6694 = vsel %vm714, %v6622, 0.0
      %6695 = vadd.xlane.f32.xlu0 %v6694
      %v6696 = vpop.xlane.xlu0 %6695
      %v6697 = vsel %vm714, %v6623, 0.0
      %6698 = vadd.xlane.f32.xlu0 %v6697
      %v6699 = vpop.xlane.xlu0 %6698
      %v6700 = vsel %vm714, %v6624, 0.0
      %6701 = vadd.xlane.f32.xlu0 %v6700
      %v6702 = vpop.xlane.xlu0 %6701
      %v6703 = vsel %vm714, %v6625, 0.0
      %6704 = vadd.xlane.f32.xlu0 %v6703
      %v6705 = vpop.xlane.xlu0 %6704
      %v6706 = vsel %vm714, %v6626, 0.0
      %6707 = vadd.xlane.f32.xlu0 %v6706
      %v6708 = vpop.xlane.xlu0 %6707
      %v6709 = vsel %vm714, %v6627, 0.0
      %6710 = vadd.xlane.f32.xlu0 %v6709
      %v6711 = vpop.xlane.xlu0 %6710
      %v6712 = vsel %vm714, %v6628, 0.0
      %6713 = vadd.xlane.f32.xlu0 %v6712
      %v6714 = vpop.xlane.xlu0 %6713
      %v6715 = vsel %vm714, %v6629, 0.0
      %6716 = vadd.xlane.f32.xlu0 %v6715
      %v6717 = vpop.xlane.xlu0 %6716
      %v6718 = vsel %vm714, %v6630, 0.0
      %6719 = vadd.xlane.f32.xlu0 %v6718
      %v6720 = vpop.xlane.xlu0 %6719
      %v6721 = vsel %vm714, %v6631, 0.0
      %6722 = vadd.xlane.f32.xlu0 %v6721
      %v6723 = vpop.xlane.xlu0 %6722
      %v6724 = vsel %vm714, %v6632, 0.0
      %6725 = vadd.xlane.f32.xlu0 %v6724
      %v6726 = vpop.xlane.xlu0 %6725
      %v6727 = vsel %vm714, %v6633, 0.0
      %6728 = vadd.xlane.f32.xlu0 %v6727
      %v6729 = vpop.xlane.xlu0 %6728
      %v6730 = vadd.f32 %v6636, %v6639
      %v6731 = vrot.slane %v6730, 4
      %v6732 = vadd.f32 %v6730, %v6731
      %v6733 = vrot.slane %v6732, 2
      %v6734 = vadd.f32 %v6732, %v6733
      %v6735 = vrot.slane %v6734, 1
      %v6736 = vadd.f32 %v6734, %v6735
      %v6737 = vadd.f32 %v6642, %v6645
      %v6738 = vrot.slane %v6737, 4
      %v6739 = vadd.f32 %v6737, %v6738
      %v6740 = vrot.slane %v6739, 2
      %v6741 = vadd.f32 %v6739, %v6740
      %v6742 = vrot.slane %v6741, 1
      %v6743 = vadd.f32 %v6741, %v6742
      %v6744 = vadd.f32 %v6648, %v6651
      %v6745 = vrot.slane %v6744, 4
      %v6746 = vadd.f32 %v6744, %v6745
      %v6747 = vrot.slane %v6746, 2
      %v6748 = vadd.f32 %v6746, %v6747
      %v6749 = vrot.slane %v6748, 1
      %v6750 = vadd.f32 %v6748, %v6749
      %v6751 = vadd.f32 %v6654, %v6657
      %v6752 = vrot.slane %v6751, 4
      %v6753 = vadd.f32 %v6751, %v6752
      %v6754 = vrot.slane %v6753, 2
      %v6755 = vadd.f32 %v6753, %v6754
      %v6756 = vrot.slane %v6755, 1
      %v6757 = vadd.f32 %v6755, %v6756
      %v6758 = vadd.f32 %v6660, %v6663
      %v6759 = vrot.slane %v6758, 4
      %v6760 = vadd.f32 %v6758, %v6759
      %v6761 = vrot.slane %v6760, 2
      %v6762 = vadd.f32 %v6760, %v6761
      %v6763 = vrot.slane %v6762, 1
      %v6764 = vadd.f32 %v6762, %v6763
      %v6765 = vadd.f32 %v6666, %v6669
      %v6766 = vrot.slane %v6765, 4
      %v6767 = vadd.f32 %v6765, %v6766
      %v6768 = vrot.slane %v6767, 2
      %v6769 = vadd.f32 %v6767, %v6768
      %v6770 = vrot.slane %v6769, 1
      %v6771 = vadd.f32 %v6769, %v6770
      %v6772 = vadd.f32 %v6672, %v6675
      %v6773 = vrot.slane %v6772, 4
      %v6774 = vadd.f32 %v6772, %v6773
      %v6775 = vrot.slane %v6774, 2
      %v6776 = vadd.f32 %v6774, %v6775
      %v6777 = vrot.slane %v6776, 1
      %v6778 = vadd.f32 %v6776, %v6777
      %v6779 = vadd.f32 %v6678, %v6681
      %v6780 = vrot.slane %v6779, 4
      %v6781 = vadd.f32 %v6779, %v6780
      %v6782 = vrot.slane %v6781, 2
      %v6783 = vadd.f32 %v6781, %v6782
      %v6784 = vrot.slane %v6783, 1
      %v6785 = vadd.f32 %v6783, %v6784
      %v6786 = vadd.f32 %v6684, %v6687
      %v6787 = vrot.slane %v6786, 4
      %v6788 = vadd.f32 %v6786, %v6787
      %v6789 = vrot.slane %v6788, 2
      %v6790 = vadd.f32 %v6788, %v6789
      %v6791 = vrot.slane %v6790, 1
      %v6792 = vadd.f32 %v6790, %v6791
      %v6793 = vadd.f32 %v6690, %v6693
      %v6794 = vrot.slane %v6793, 4
      %v6795 = vadd.f32 %v6793, %v6794
      %v6796 = vrot.slane %v6795, 2
      %v6797 = vadd.f32 %v6795, %v6796
      %v6798 = vrot.slane %v6797, 1
      %v6799 = vadd.f32 %v6797, %v6798
      %v6800 = vadd.f32 %v6696, %v6699
      %v6801 = vrot.slane %v6800, 4
      %v6802 = vadd.f32 %v6800, %v6801
      %v6803 = vrot.slane %v6802, 2
      %v6804 = vadd.f32 %v6802, %v6803
      %v6805 = vrot.slane %v6804, 1
      %v6806 = vadd.f32 %v6804, %v6805
      %v6807 = vadd.f32 %v6702, %v6705
      %v6808 = vrot.slane %v6807, 4
      %v6809 = vadd.f32 %v6807, %v6808
      %v6810 = vrot.slane %v6809, 2
      %v6811 = vadd.f32 %v6809, %v6810
      %v6812 = vrot.slane %v6811, 1
      %v6813 = vadd.f32 %v6811, %v6812
      %v6814 = vadd.f32 %v6708, %v6711
      %v6815 = vrot.slane %v6814, 4
      %v6816 = vadd.f32 %v6814, %v6815
      %v6817 = vrot.slane %v6816, 2
      %v6818 = vadd.f32 %v6816, %v6817
      %v6819 = vrot.slane %v6818, 1
      %v6820 = vadd.f32 %v6818, %v6819
      %v6821 = vadd.f32 %v6714, %v6717
      %v6822 = vrot.slane %v6821, 4
      %v6823 = vadd.f32 %v6821, %v6822
      %v6824 = vrot.slane %v6823, 2
      %v6825 = vadd.f32 %v6823, %v6824
      %v6826 = vrot.slane %v6825, 1
      %v6827 = vadd.f32 %v6825, %v6826
      %v6828 = vadd.f32 %v6720, %v6723
      %v6829 = vrot.slane %v6828, 4
      %v6830 = vadd.f32 %v6828, %v6829
      %v6831 = vrot.slane %v6830, 2
      %v6832 = vadd.f32 %v6830, %v6831
      %v6833 = vrot.slane %v6832, 1
      %v6834 = vadd.f32 %v6832, %v6833
      %v6835 = vadd.f32 %v6726, %v6729
      %v6836 = vrot.slane %v6835, 4
      %v6837 = vadd.f32 %v6835, %v6836
      %v6838 = vrot.slane %v6837, 2
      %v6839 = vadd.f32 %v6837, %v6838
      %v6840 = vrot.slane %v6839, 1
      %v6841 = vadd.f32 %v6839, %v6840
      %v6842 = vrsqrt.pop %v6736
      %v6843 = vmul.f32 %v6736, %v6842
      %vm6844 = vcmp.eq.f32.partialorder %v6736, inf
      %v6845 = vsel %vm6844, %v6736, %v6843
      %vm6846 = vcmp.eq.f32.partialorder %v6736, 0.0
      %v6847 = vand.u32 %v6736, 2147483648
      %v6848 = vsel %vm6846, %v6847, %v6845
      %v6849 = vrsqrt.pop %v6743
      %v6850 = vmul.f32 %v6743, %v6849
      %vm6851 = vcmp.eq.f32.partialorder %v6743, inf
      %v6852 = vsel %vm6851, %v6743, %v6850
      %vm6853 = vcmp.eq.f32.partialorder %v6743, 0.0
      %v6854 = vand.u32 %v6743, 2147483648
      %v6855 = vsel %vm6853, %v6854, %v6852
      %v6856 = vrsqrt.pop %v6750
      %v6857 = vmul.f32 %v6750, %v6856
      %vm6858 = vcmp.eq.f32.partialorder %v6750, inf
      %v6859 = vsel %vm6858, %v6750, %v6857
      %vm6860 = vcmp.eq.f32.partialorder %v6750, 0.0
      %v6861 = vand.u32 %v6750, 2147483648
      %v6862 = vsel %vm6860, %v6861, %v6859
      %v6863 = vrsqrt.pop %v6757
      %v6864 = vmul.f32 %v6757, %v6863
      %vm6865 = vcmp.eq.f32.partialorder %v6757, inf
      %v6866 = vsel %vm6865, %v6757, %v6864
      %vm6867 = vcmp.eq.f32.partialorder %v6757, 0.0
      %v6868 = vand.u32 %v6757, 2147483648
      %v6869 = vsel %vm6867, %v6868, %v6866
      %v6870 = vrsqrt.pop %v6764
      %v6871 = vmul.f32 %v6764, %v6870
      %vm6872 = vcmp.eq.f32.partialorder %v6764, inf
      %v6873 = vsel %vm6872, %v6764, %v6871
      %vm6874 = vcmp.eq.f32.partialorder %v6764, 0.0
      %v6875 = vand.u32 %v6764, 2147483648
      %v6876 = vsel %vm6874, %v6875, %v6873
      %v6877 = vrsqrt.pop %v6771
      %v6878 = vmul.f32 %v6771, %v6877
      %vm6879 = vcmp.eq.f32.partialorder %v6771, inf
      %v6880 = vsel %vm6879, %v6771, %v6878
      %vm6881 = vcmp.eq.f32.partialorder %v6771, 0.0
      %v6882 = vand.u32 %v6771, 2147483648
      %v6883 = vsel %vm6881, %v6882, %v6880
      %v6884 = vrsqrt.pop %v6778
      %v6885 = vmul.f32 %v6778, %v6884
      %vm6886 = vcmp.eq.f32.partialorder %v6778, inf
      %v6887 = vsel %vm6886, %v6778, %v6885
      %vm6888 = vcmp.eq.f32.partialorder %v6778, 0.0
      %v6889 = vand.u32 %v6778, 2147483648
      %v6890 = vsel %vm6888, %v6889, %v6887
      %v6891 = vrsqrt.pop %v6785
      %v6892 = vmul.f32 %v6785, %v6891
      %vm6893 = vcmp.eq.f32.partialorder %v6785, inf
      %v6894 = vsel %vm6893, %v6785, %v6892
      %vm6895 = vcmp.eq.f32.partialorder %v6785, 0.0
      %v6896 = vand.u32 %v6785, 2147483648
      %v6897 = vsel %vm6895, %v6896, %v6894
      %v6898 = vrsqrt.pop %v6792
      %v6899 = vmul.f32 %v6792, %v6898
      %vm6900 = vcmp.eq.f32.partialorder %v6792, inf
      %v6901 = vsel %vm6900, %v6792, %v6899
      %vm6902 = vcmp.eq.f32.partialorder %v6792, 0.0
      %v6903 = vand.u32 %v6792, 2147483648
      %v6904 = vsel %vm6902, %v6903, %v6901
      %v6905 = vrsqrt.pop %v6799
      %v6906 = vmul.f32 %v6799, %v6905
      %vm6907 = vcmp.eq.f32.partialorder %v6799, inf
      %v6908 = vsel %vm6907, %v6799, %v6906
      %vm6909 = vcmp.eq.f32.partialorder %v6799, 0.0
      %v6910 = vand.u32 %v6799, 2147483648
      %v6911 = vsel %vm6909, %v6910, %v6908
      %v6912 = vrsqrt.pop %v6806
      %v6913 = vmul.f32 %v6806, %v6912
      %vm6914 = vcmp.eq.f32.partialorder %v6806, inf
      %v6915 = vsel %vm6914, %v6806, %v6913
      %vm6916 = vcmp.eq.f32.partialorder %v6806, 0.0
      %v6917 = vand.u32 %v6806, 2147483648
      %v6918 = vsel %vm6916, %v6917, %v6915
      %v6919 = vrsqrt.pop %v6813
      %v6920 = vmul.f32 %v6813, %v6919
      %vm6921 = vcmp.eq.f32.partialorder %v6813, inf
      %v6922 = vsel %vm6921, %v6813, %v6920
      %vm6923 = vcmp.eq.f32.partialorder %v6813, 0.0
      %v6924 = vand.u32 %v6813, 2147483648
      %v6925 = vsel %vm6923, %v6924, %v6922
      %v6926 = vrsqrt.pop %v6820
      %v6927 = vmul.f32 %v6820, %v6926
      %vm6928 = vcmp.eq.f32.partialorder %v6820, inf
      %v6929 = vsel %vm6928, %v6820, %v6927
      %vm6930 = vcmp.eq.f32.partialorder %v6820, 0.0
      %v6931 = vand.u32 %v6820, 2147483648
      %v6932 = vsel %vm6930, %v6931, %v6929
      %v6933 = vrsqrt.pop %v6827
      %v6934 = vmul.f32 %v6827, %v6933
      %vm6935 = vcmp.eq.f32.partialorder %v6827, inf
      %v6936 = vsel %vm6935, %v6827, %v6934
      %vm6937 = vcmp.eq.f32.partialorder %v6827, 0.0
      %v6938 = vand.u32 %v6827, 2147483648
      %v6939 = vsel %vm6937, %v6938, %v6936
      %v6940 = vrsqrt.pop %v6834
      %v6941 = vmul.f32 %v6834, %v6940
      %vm6942 = vcmp.eq.f32.partialorder %v6834, inf
      %v6943 = vsel %vm6942, %v6834, %v6941
      %vm6944 = vcmp.eq.f32.partialorder %v6834, 0.0
      %v6945 = vand.u32 %v6834, 2147483648
      %v6946 = vsel %vm6944, %v6945, %v6943
      %v6947 = vrsqrt.pop %v6841
      %v6948 = vmul.f32 %v6841, %v6947
      %vm6949 = vcmp.eq.f32.partialorder %v6841, inf
      %v6950 = vsel %vm6949, %v6841, %v6948
      %vm6951 = vcmp.eq.f32.partialorder %v6841, 0.0
      %v6952 = vand.u32 %v6841, 2147483648
      %v6953 = vsel %vm6951, %v6952, %v6950
      %v6954 = vlaneseq
      %v6955 = vshrl.u32 %v6954, 7
      %v6956 = vadd.s32 %v6955, 8
      %v6957 = vlaneseq
      %v6958 = vand.u32 %v6957, 127
      %vm6959 = vcmp.eq.s32.totalorder %v6955, %v6958
      %vm6960 = vcmp.eq.s32.totalorder %v6956, %v6958
      %v6961 = vsel %vm6959, 0.25, 0.0
      %v6962 = vsel %vm6960, 0.25, 0.0
      %v6963 = vrcp.pop %v6848
      %v6964 = vmul.f32 %v4899, %v6963
      %v6965 = vmul.f32 %v4904, %v6963
      %v6966 = vrcp.pop %v6855
      %v6967 = vmul.f32 %v5012, %v6966
      %v6968 = vmul.f32 %v5017, %v6966
      %v6969 = vrcp.pop %v6862
      %v6970 = vmul.f32 %v5125, %v6969
      %v6971 = vmul.f32 %v5130, %v6969
      %v6972 = vrcp.pop %v6869
      %v6973 = vmul.f32 %v5238, %v6972
      %v6974 = vmul.f32 %v5243, %v6972
      %v6975 = vrcp.pop %v6876
      %v6976 = vmul.f32 %v5351, %v6975
      %v6977 = vmul.f32 %v5356, %v6975
      %v6978 = vrcp.pop %v6883
      %v6979 = vmul.f32 %v5464, %v6978
      %v6980 = vmul.f32 %v5469, %v6978
      %v6981 = vrcp.pop %v6890
      %v6982 = vmul.f32 %v5577, %v6981
      %v6983 = vmul.f32 %v5582, %v6981
      %v6984 = vrcp.pop %v6897
      %v6985 = vmul.f32 %v5690, %v6984
      %v6986 = vmul.f32 %v5695, %v6984
      %v6987 = vrcp.pop %v6904
      %v6988 = vmul.f32 %v5803, %v6987
      %v6989 = vmul.f32 %v5808, %v6987
      %v6990 = vrcp.pop %v6911
      %v6991 = vmul.f32 %v5916, %v6990
      %v6992 = vmul.f32 %v5921, %v6990
      %v6993 = vrcp.pop %v6918
      %v6994 = vmul.f32 %v6029, %v6993
      %v6995 = vmul.f32 %v6034, %v6993
      %v6996 = vrcp.pop %v6925
      %v6997 = vmul.f32 %v6142, %v6996
      %v6998 = vmul.f32 %v6147, %v6996
      %v6999 = vrcp.pop %v6932
      %v7000 = vmul.f32 %v6255, %v6999
      %v7001 = vmul.f32 %v6260, %v6999
      %v7002 = vrcp.pop %v6939
      %v7003 = vmul.f32 %v6368, %v7002
      %v7004 = vmul.f32 %v6373, %v7002
      %v7005 = vrcp.pop %v6946
      %v7006 = vmul.f32 %v6481, %v7005
      %v7007 = vmul.f32 %v6486, %v7005
      %v7008 = vrcp.pop %v6953
      %v7009 = vmul.f32 %v6594, %v7008
      %v7010 = vmul.f32 %v6599, %v7008
      %v7011 = vsub.f32 %v6964, %v6961
      %v7012 = vsub.f32 %v6965, %v6962
      %v7013 = vsub.f32 %v6967, %v6961
      %v7014 = vsub.f32 %v6968, %v6962
      %v7015 = vsub.f32 %v6970, %v6961
      %v7016 = vsub.f32 %v6971, %v6962
      %v7017 = vsub.f32 %v6973, %v6961
      %v7018 = vsub.f32 %v6974, %v6962
      %v7019 = vsub.f32 %v6976, %v6961
      %v7020 = vsub.f32 %v6977, %v6962
      %v7021 = vsub.f32 %v6979, %v6961
      %v7022 = vsub.f32 %v6980, %v6962
      %v7023 = vsub.f32 %v6982, %v6961
      %v7024 = vsub.f32 %v6983, %v6962
      %v7025 = vsub.f32 %v6985, %v6961
      %v7026 = vsub.f32 %v6986, %v6962
      %v7027 = vsub.f32 %v6988, %v6961
      %v7028 = vsub.f32 %v6989, %v6962
      %v7029 = vsub.f32 %v6991, %v6961
      %v7030 = vsub.f32 %v6992, %v6962
      %v7031 = vsub.f32 %v6994, %v6961
      %v7032 = vsub.f32 %v6995, %v6962
      %v7033 = vsub.f32 %v6997, %v6961
      %v7034 = vsub.f32 %v6998, %v6962
      %v7035 = vsub.f32 %v7000, %v6961
      %v7036 = vsub.f32 %v7001, %v6962
      %v7037 = vsub.f32 %v7003, %v6961
      %v7038 = vsub.f32 %v7004, %v6962
      %v7039 = vsub.f32 %v7006, %v6961
      %v7040 = vsub.f32 %v7007, %v6962
      %v7041 = vsub.f32 %v7009, %v6961
      %v7042 = vsub.f32 %v7010, %v6962
      %v7043 = vmul.f32 %v7011, %v7011
      %v7044 = vmul.f32 %v7012, %v7012
      %v7045 = vmul.f32 %v7013, %v7013
      %v7046 = vmul.f32 %v7014, %v7014
      %v7047 = vmul.f32 %v7015, %v7015
      %v7048 = vmul.f32 %v7016, %v7016
      %v7049 = vmul.f32 %v7017, %v7017
      %v7050 = vmul.f32 %v7018, %v7018
      %v7051 = vmul.f32 %v7019, %v7019
      %v7052 = vmul.f32 %v7020, %v7020
      %v7053 = vmul.f32 %v7021, %v7021
      %v7054 = vmul.f32 %v7022, %v7022
      %v7055 = vmul.f32 %v7023, %v7023
      %v7056 = vmul.f32 %v7024, %v7024
      %v7057 = vmul.f32 %v7025, %v7025
      %v7058 = vmul.f32 %v7026, %v7026
      %v7059 = vmul.f32 %v7027, %v7027
      %v7060 = vmul.f32 %v7028, %v7028
      %v7061 = vmul.f32 %v7029, %v7029
      %v7062 = vmul.f32 %v7030, %v7030
      %v7063 = vmul.f32 %v7031, %v7031
      %v7064 = vmul.f32 %v7032, %v7032
      %v7065 = vmul.f32 %v7033, %v7033
      %v7066 = vmul.f32 %v7034, %v7034
      %v7067 = vmul.f32 %v7035, %v7035
      %v7068 = vmul.f32 %v7036, %v7036
      %v7069 = vmul.f32 %v7037, %v7037
      %v7070 = vmul.f32 %v7038, %v7038
      %v7071 = vmul.f32 %v7039, %v7039
      %v7072 = vmul.f32 %v7040, %v7040
      %v7073 = vmul.f32 %v7041, %v7041
      %v7074 = vmul.f32 %v7042, %v7042
      %v7075 = vsel %vm714, %v7043, 0.0
      %7076 = vadd.xlane.f32.xlu0 %v7075
      %v7077 = vpop.xlane.xlu0 %7076
      %v7078 = vsel %vm714, %v7044, 0.0
      %7079 = vadd.xlane.f32.xlu0 %v7078
      %v7080 = vpop.xlane.xlu0 %7079
      %v7081 = vsel %vm714, %v7045, 0.0
      %7082 = vadd.xlane.f32.xlu0 %v7081
      %v7083 = vpop.xlane.xlu0 %7082
      %v7084 = vsel %vm714, %v7046, 0.0
      %7085 = vadd.xlane.f32.xlu0 %v7084
      %v7086 = vpop.xlane.xlu0 %7085
      %v7087 = vsel %vm714, %v7047, 0.0
      %7088 = vadd.xlane.f32.xlu0 %v7087
      %v7089 = vpop.xlane.xlu0 %7088
      %v7090 = vsel %vm714, %v7048, 0.0
      %7091 = vadd.xlane.f32.xlu0 %v7090
      %v7092 = vpop.xlane.xlu0 %7091
      %v7093 = vsel %vm714, %v7049, 0.0
      %7094 = vadd.xlane.f32.xlu0 %v7093
      %v7095 = vpop.xlane.xlu0 %7094
      %v7096 = vsel %vm714, %v7050, 0.0
      %7097 = vadd.xlane.f32.xlu0 %v7096
      %v7098 = vpop.xlane.xlu0 %7097
      %v7099 = vsel %vm714, %v7051, 0.0
      %7100 = vadd.xlane.f32.xlu0 %v7099
      %v7101 = vpop.xlane.xlu0 %7100
      %v7102 = vsel %vm714, %v7052, 0.0
      %7103 = vadd.xlane.f32.xlu0 %v7102
      %v7104 = vpop.xlane.xlu0 %7103
      %v7105 = vsel %vm714, %v7053, 0.0
      %7106 = vadd.xlane.f32.xlu0 %v7105
      %v7107 = vpop.xlane.xlu0 %7106
      %v7108 = vsel %vm714, %v7054, 0.0
      %7109 = vadd.xlane.f32.xlu0 %v7108
      %v7110 = vpop.xlane.xlu0 %7109
      %v7111 = vsel %vm714, %v7055, 0.0
      %7112 = vadd.xlane.f32.xlu0 %v7111
      %v7113 = vpop.xlane.xlu0 %7112
      %v7114 = vsel %vm714, %v7056, 0.0
      %7115 = vadd.xlane.f32.xlu0 %v7114
      %v7116 = vpop.xlane.xlu0 %7115
      %v7117 = vsel %vm714, %v7057, 0.0
      %7118 = vadd.xlane.f32.xlu0 %v7117
      %v7119 = vpop.xlane.xlu0 %7118
      %v7120 = vsel %vm714, %v7058, 0.0
      %7121 = vadd.xlane.f32.xlu0 %v7120
      %v7122 = vpop.xlane.xlu0 %7121
      %v7123 = vsel %vm714, %v7059, 0.0
      %7124 = vadd.xlane.f32.xlu0 %v7123
      %v7125 = vpop.xlane.xlu0 %7124
      %v7126 = vsel %vm714, %v7060, 0.0
      %7127 = vadd.xlane.f32.xlu0 %v7126
      %v7128 = vpop.xlane.xlu0 %7127
      %v7129 = vsel %vm714, %v7061, 0.0
      %7130 = vadd.xlane.f32.xlu0 %v7129
      %v7131 = vpop.xlane.xlu0 %7130
      %v7132 = vsel %vm714, %v7062, 0.0
      %7133 = vadd.xlane.f32.xlu0 %v7132
      %v7134 = vpop.xlane.xlu0 %7133
      %v7135 = vsel %vm714, %v7063, 0.0
      %7136 = vadd.xlane.f32.xlu0 %v7135
      %v7137 = vpop.xlane.xlu0 %7136
      %v7138 = vsel %vm714, %v7064, 0.0
      %7139 = vadd.xlane.f32.xlu0 %v7138
      %v7140 = vpop.xlane.xlu0 %7139
      %v7141 = vsel %vm714, %v7065, 0.0
      %7142 = vadd.xlane.f32.xlu0 %v7141
      %v7143 = vpop.xlane.xlu0 %7142
      %v7144 = vsel %vm714, %v7066, 0.0
      %7145 = vadd.xlane.f32.xlu0 %v7144
      %v7146 = vpop.xlane.xlu0 %7145
      %v7147 = vsel %vm714, %v7067, 0.0
      %7148 = vadd.xlane.f32.xlu0 %v7147
      %v7149 = vpop.xlane.xlu0 %7148
      %v7150 = vsel %vm714, %v7068, 0.0
      %7151 = vadd.xlane.f32.xlu0 %v7150
      %v7152 = vpop.xlane.xlu0 %7151
      %v7153 = vsel %vm714, %v7069, 0.0
      %7154 = vadd.xlane.f32.xlu0 %v7153
      %v7155 = vpop.xlane.xlu0 %7154
      %v7156 = vsel %vm714, %v7070, 0.0
      %7157 = vadd.xlane.f32.xlu0 %v7156
      %v7158 = vpop.xlane.xlu0 %7157
      %v7159 = vsel %vm714, %v7071, 0.0
      %7160 = vadd.xlane.f32.xlu0 %v7159
      %v7161 = vpop.xlane.xlu0 %7160
      %v7162 = vsel %vm714, %v7072, 0.0
      %7163 = vadd.xlane.f32.xlu0 %v7162
      %v7164 = vpop.xlane.xlu0 %7163
      %v7165 = vsel %vm714, %v7073, 0.0
      %7166 = vadd.xlane.f32.xlu0 %v7165
      %v7167 = vpop.xlane.xlu0 %7166
      %v7168 = vsel %vm714, %v7074, 0.0
      %7169 = vadd.xlane.f32.xlu0 %v7168
      %v7170 = vpop.xlane.xlu0 %7169
      %v7171 = vadd.f32 %v7077, %v7080
      %v7172 = vrot.slane %v7171, 4
      %v7173 = vadd.f32 %v7171, %v7172
      %v7174 = vrot.slane %v7173, 2
      %v7175 = vadd.f32 %v7173, %v7174
      %v7176 = vrot.slane %v7175, 1
      %v7177 = vadd.f32 %v7175, %v7176
      %v7178 = vadd.f32 %v7083, %v7086
      %v7179 = vrot.slane %v7178, 4
      %v7180 = vadd.f32 %v7178, %v7179
      %v7181 = vrot.slane %v7180, 2
      %v7182 = vadd.f32 %v7180, %v7181
      %v7183 = vrot.slane %v7182, 1
      %v7184 = vadd.f32 %v7182, %v7183
      %v7185 = vadd.f32 %v7089, %v7092
      %v7186 = vrot.slane %v7185, 4
      %v7187 = vadd.f32 %v7185, %v7186
      %v7188 = vrot.slane %v7187, 2
      %v7189 = vadd.f32 %v7187, %v7188
      %v7190 = vrot.slane %v7189, 1
      %v7191 = vadd.f32 %v7189, %v7190
      %v7192 = vadd.f32 %v7095, %v7098
      %v7193 = vrot.slane %v7192, 4
      %v7194 = vadd.f32 %v7192, %v7193
      %v7195 = vrot.slane %v7194, 2
      %v7196 = vadd.f32 %v7194, %v7195
      %v7197 = vrot.slane %v7196, 1
      %v7198 = vadd.f32 %v7196, %v7197
      %v7199 = vadd.f32 %v7101, %v7104
      %v7200 = vrot.slane %v7199, 4
      %v7201 = vadd.f32 %v7199, %v7200
      %v7202 = vrot.slane %v7201, 2
      %v7203 = vadd.f32 %v7201, %v7202
      %v7204 = vrot.slane %v7203, 1
      %v7205 = vadd.f32 %v7203, %v7204
      %v7206 = vadd.f32 %v7107, %v7110
      %v7207 = vrot.slane %v7206, 4
      %v7208 = vadd.f32 %v7206, %v7207
      %v7209 = vrot.slane %v7208, 2
      %v7210 = vadd.f32 %v7208, %v7209
      %v7211 = vrot.slane %v7210, 1
      %v7212 = vadd.f32 %v7210, %v7211
      %v7213 = vadd.f32 %v7113, %v7116
      %v7214 = vrot.slane %v7213, 4
      %v7215 = vadd.f32 %v7213, %v7214
      %v7216 = vrot.slane %v7215, 2
      %v7217 = vadd.f32 %v7215, %v7216
      %v7218 = vrot.slane %v7217, 1
      %v7219 = vadd.f32 %v7217, %v7218
      %v7220 = vadd.f32 %v7119, %v7122
      %v7221 = vrot.slane %v7220, 4
      %v7222 = vadd.f32 %v7220, %v7221
      %v7223 = vrot.slane %v7222, 2
      %v7224 = vadd.f32 %v7222, %v7223
      %v7225 = vrot.slane %v7224, 1
      %v7226 = vadd.f32 %v7224, %v7225
      %v7227 = vadd.f32 %v7125, %v7128
      %v7228 = vrot.slane %v7227, 4
      %v7229 = vadd.f32 %v7227, %v7228
      %v7230 = vrot.slane %v7229, 2
      %v7231 = vadd.f32 %v7229, %v7230
      %v7232 = vrot.slane %v7231, 1
      %v7233 = vadd.f32 %v7231, %v7232
      %v7234 = vadd.f32 %v7131, %v7134
      %v7235 = vrot.slane %v7234, 4
      %v7236 = vadd.f32 %v7234, %v7235
      %v7237 = vrot.slane %v7236, 2
      %v7238 = vadd.f32 %v7236, %v7237
      %v7239 = vrot.slane %v7238, 1
      %v7240 = vadd.f32 %v7238, %v7239
      %v7241 = vadd.f32 %v7137, %v7140
      %v7242 = vrot.slane %v7241, 4
      %v7243 = vadd.f32 %v7241, %v7242
      %v7244 = vrot.slane %v7243, 2
      %v7245 = vadd.f32 %v7243, %v7244
      %v7246 = vrot.slane %v7245, 1
      %v7247 = vadd.f32 %v7245, %v7246
      %v7248 = vadd.f32 %v7143, %v7146
      %v7249 = vrot.slane %v7248, 4
      %v7250 = vadd.f32 %v7248, %v7249
      %v7251 = vrot.slane %v7250, 2
      %v7252 = vadd.f32 %v7250, %v7251
      %v7253 = vrot.slane %v7252, 1
      %v7254 = vadd.f32 %v7252, %v7253
      %v7255 = vadd.f32 %v7149, %v7152
      %v7256 = vrot.slane %v7255, 4
      %v7257 = vadd.f32 %v7255, %v7256
      %v7258 = vrot.slane %v7257, 2
      %v7259 = vadd.f32 %v7257, %v7258
      %v7260 = vrot.slane %v7259, 1
      %v7261 = vadd.f32 %v7259, %v7260
      %v7262 = vadd.f32 %v7155, %v7158
      %v7263 = vrot.slane %v7262, 4
      %v7264 = vadd.f32 %v7262, %v7263
      %v7265 = vrot.slane %v7264, 2
      %v7266 = vadd.f32 %v7264, %v7265
      %v7267 = vrot.slane %v7266, 1
      %v7268 = vadd.f32 %v7266, %v7267
      %v7269 = vadd.f32 %v7161, %v7164
      %v7270 = vrot.slane %v7269, 4
      %v7271 = vadd.f32 %v7269, %v7270
      %v7272 = vrot.slane %v7271, 2
      %v7273 = vadd.f32 %v7271, %v7272
      %v7274 = vrot.slane %v7273, 1
      %v7275 = vadd.f32 %v7273, %v7274
      %v7276 = vadd.f32 %v7167, %v7170
      %v7277 = vrot.slane %v7276, 4
      %v7278 = vadd.f32 %v7276, %v7277
      %v7279 = vrot.slane %v7278, 2
      %v7280 = vadd.f32 %v7278, %v7279
      %v7281 = vrot.slane %v7280, 1
      %v7282 = vadd.f32 %v7280, %v7281
      %v7283 = vrsqrt.pop %v7177
      %v7284 = vmul.f32 %v7177, %v7283
      %vm7285 = vcmp.eq.f32.partialorder %v7177, inf
      %v7286 = vsel %vm7285, %v7177, %v7284
      %vm7287 = vcmp.eq.f32.partialorder %v7177, 0.0
      %v7288 = vand.u32 %v7177, 2147483648
      %v7289 = vsel %vm7287, %v7288, %v7286
      %v7290 = vrsqrt.pop %v7184
      %v7291 = vmul.f32 %v7184, %v7290
      %vm7292 = vcmp.eq.f32.partialorder %v7184, inf
      %v7293 = vsel %vm7292, %v7184, %v7291
      %vm7294 = vcmp.eq.f32.partialorder %v7184, 0.0
      %v7295 = vand.u32 %v7184, 2147483648
      %v7296 = vsel %vm7294, %v7295, %v7293
      %v7297 = vrsqrt.pop %v7191
      %v7298 = vmul.f32 %v7191, %v7297
      %vm7299 = vcmp.eq.f32.partialorder %v7191, inf
      %v7300 = vsel %vm7299, %v7191, %v7298
      %vm7301 = vcmp.eq.f32.partialorder %v7191, 0.0
      %v7302 = vand.u32 %v7191, 2147483648
      %v7303 = vsel %vm7301, %v7302, %v7300
      %v7304 = vrsqrt.pop %v7198
      %v7305 = vmul.f32 %v7198, %v7304
      %vm7306 = vcmp.eq.f32.partialorder %v7198, inf
      %v7307 = vsel %vm7306, %v7198, %v7305
      %vm7308 = vcmp.eq.f32.partialorder %v7198, 0.0
      %v7309 = vand.u32 %v7198, 2147483648
      %v7310 = vsel %vm7308, %v7309, %v7307
      %v7311 = vrsqrt.pop %v7205
      %v7312 = vmul.f32 %v7205, %v7311
      %vm7313 = vcmp.eq.f32.partialorder %v7205, inf
      %v7314 = vsel %vm7313, %v7205, %v7312
      %vm7315 = vcmp.eq.f32.partialorder %v7205, 0.0
      %v7316 = vand.u32 %v7205, 2147483648
      %v7317 = vsel %vm7315, %v7316, %v7314
      %v7318 = vrsqrt.pop %v7212
      %v7319 = vmul.f32 %v7212, %v7318
      %vm7320 = vcmp.eq.f32.partialorder %v7212, inf
      %v7321 = vsel %vm7320, %v7212, %v7319
      %vm7322 = vcmp.eq.f32.partialorder %v7212, 0.0
      %v7323 = vand.u32 %v7212, 2147483648
      %v7324 = vsel %vm7322, %v7323, %v7321
      %v7325 = vrsqrt.pop %v7219
      %v7326 = vmul.f32 %v7219, %v7325
      %vm7327 = vcmp.eq.f32.partialorder %v7219, inf
      %v7328 = vsel %vm7327, %v7219, %v7326
      %vm7329 = vcmp.eq.f32.partialorder %v7219, 0.0
      %v7330 = vand.u32 %v7219, 2147483648
      %v7331 = vsel %vm7329, %v7330, %v7328
      %v7332 = vrsqrt.pop %v7226
      %v7333 = vmul.f32 %v7226, %v7332
      %vm7334 = vcmp.eq.f32.partialorder %v7226, inf
      %v7335 = vsel %vm7334, %v7226, %v7333
      %vm7336 = vcmp.eq.f32.partialorder %v7226, 0.0
      %v7337 = vand.u32 %v7226, 2147483648
      %v7338 = vsel %vm7336, %v7337, %v7335
      %v7339 = vrsqrt.pop %v7233
      %v7340 = vmul.f32 %v7233, %v7339
      %vm7341 = vcmp.eq.f32.partialorder %v7233, inf
      %v7342 = vsel %vm7341, %v7233, %v7340
      %vm7343 = vcmp.eq.f32.partialorder %v7233, 0.0
      %v7344 = vand.u32 %v7233, 2147483648
      %v7345 = vsel %vm7343, %v7344, %v7342
      %v7346 = vrsqrt.pop %v7240
      %v7347 = vmul.f32 %v7240, %v7346
      %vm7348 = vcmp.eq.f32.partialorder %v7240, inf
      %v7349 = vsel %vm7348, %v7240, %v7347
      %vm7350 = vcmp.eq.f32.partialorder %v7240, 0.0
      %v7351 = vand.u32 %v7240, 2147483648
      %v7352 = vsel %vm7350, %v7351, %v7349
      %v7353 = vrsqrt.pop %v7247
      %v7354 = vmul.f32 %v7247, %v7353
      %vm7355 = vcmp.eq.f32.partialorder %v7247, inf
      %v7356 = vsel %vm7355, %v7247, %v7354
      %vm7357 = vcmp.eq.f32.partialorder %v7247, 0.0
      %v7358 = vand.u32 %v7247, 2147483648
      %v7359 = vsel %vm7357, %v7358, %v7356
      %v7360 = vrsqrt.pop %v7254
      %v7361 = vmul.f32 %v7254, %v7360
      %vm7362 = vcmp.eq.f32.partialorder %v7254, inf
      %v7363 = vsel %vm7362, %v7254, %v7361
      %vm7364 = vcmp.eq.f32.partialorder %v7254, 0.0
      %v7365 = vand.u32 %v7254, 2147483648
      %v7366 = vsel %vm7364, %v7365, %v7363
      %v7367 = vrsqrt.pop %v7261
      %v7368 = vmul.f32 %v7261, %v7367
      %vm7369 = vcmp.eq.f32.partialorder %v7261, inf
      %v7370 = vsel %vm7369, %v7261, %v7368
      %vm7371 = vcmp.eq.f32.partialorder %v7261, 0.0
      %v7372 = vand.u32 %v7261, 2147483648
      %v7373 = vsel %vm7371, %v7372, %v7370
      %v7374 = vrsqrt.pop %v7268
      %v7375 = vmul.f32 %v7268, %v7374
      %vm7376 = vcmp.eq.f32.partialorder %v7268, inf
      %v7377 = vsel %vm7376, %v7268, %v7375
      %vm7378 = vcmp.eq.f32.partialorder %v7268, 0.0
      %v7379 = vand.u32 %v7268, 2147483648
      %v7380 = vsel %vm7378, %v7379, %v7377
      %v7381 = vrsqrt.pop %v7275
      %v7382 = vmul.f32 %v7275, %v7381
      %vm7383 = vcmp.eq.f32.partialorder %v7275, inf
      %v7384 = vsel %vm7383, %v7275, %v7382
      %vm7385 = vcmp.eq.f32.partialorder %v7275, 0.0
      %v7386 = vand.u32 %v7275, 2147483648
      %v7387 = vsel %vm7385, %v7386, %v7384
      %v7388 = vrsqrt.pop %v7282
      %v7389 = vmul.f32 %v7282, %v7388
      %vm7390 = vcmp.eq.f32.partialorder %v7282, inf
      %v7391 = vsel %vm7390, %v7282, %v7389
      %vm7392 = vcmp.eq.f32.partialorder %v7282, 0.0
      %v7393 = vand.u32 %v7282, 2147483648
      %v7394 = vsel %vm7392, %v7393, %v7391
      %v7395 = vadd.f32 %v7289, %v4778
      %v7396 = vadd.f32 %v7296, %v4779
      %v7397 = vadd.f32 %v7303, %v4780
      %v7398 = vadd.f32 %v7310, %v4781
      %v7399 = vadd.f32 %v7317, %v4782
      %v7400 = vadd.f32 %v7324, %v4783
      %v7401 = vadd.f32 %v7331, %v4784
      %v7402 = vadd.f32 %v7338, %v4785
      %v7403 = vadd.f32 %v7345, %v4786
      %v7404 = vadd.f32 %v7352, %v4787
      %v7405 = vadd.f32 %v7359, %v4788
      %v7406 = vadd.f32 %v7366, %v4789
      %v7407 = vadd.f32 %v7373, %v4790
      %v7408 = vadd.f32 %v7380, %v4791
      %v7409 = vadd.f32 %v7387, %v4792
      %v7410 = vadd.f32 %v7394, %v4793
      %vm7411 = vcmask 0
      %7412 = vst.msk [vmem:[%s320] sm:$0x1] %vm7411, %v7395
      %7413 = vst.msk [vmem:[%s320 + $0x1] sm:$0x1] %vm7411, %v7396
      %7414 = vst.msk [vmem:[%s320 + $0x2] sm:$0x1] %vm7411, %v7397
      %7415 = vst.msk [vmem:[%s320 + $0x3] sm:$0x1] %vm7411, %v7398
      %7416 = vst.msk [vmem:[%s320 + $0x4] sm:$0x1] %vm7411, %v7399
      %7417 = vst.msk [vmem:[%s320 + $0x5] sm:$0x1] %vm7411, %v7400
      %7418 = vst.msk [vmem:[%s320 + $0x6] sm:$0x1] %vm7411, %v7401
      %7419 = vst.msk [vmem:[%s320 + $0x7] sm:$0x1] %vm7411, %v7402
      %7420 = vst.msk [vmem:[%s320 + $0x8] sm:$0x1] %vm7411, %v7403
      %7421 = vst.msk [vmem:[%s320 + $0x9] sm:$0x1] %vm7411, %v7404
      %7422 = vst.msk [vmem:[%s320 + $0xa] sm:$0x1] %vm7411, %v7405
      %7423 = vst.msk [vmem:[%s320 + $0xb] sm:$0x1] %vm7411, %v7406
      %7424 = vst.msk [vmem:[%s320 + $0xc] sm:$0x1] %vm7411, %v7407
      %7425 = vst.msk [vmem:[%s320 + $0xd] sm:$0x1] %vm7411, %v7408
      %7426 = vst.msk [vmem:[%s320 + $0xe] sm:$0x1] %vm7411, %v7409
      %7427 = vst.msk [vmem:[%s320 + $0xf] sm:$0x1] %vm7411, %v7410
      %s7428 = smul.u32 16, %s18
      %p7429 = scmp.lt.s32.totalorder %s7428, 63
      %s7430 = scalar_select %p7429, %s7428, 63
      %s7431 = smul.addr %s7430, 2
      %s7432 = smul.addr %s7431, 8
      %s7433 = scalar_lea.vmem %s5, %s7432
      %s7434 = smul.u32 16, %s18
      %p7435 = scmp.lt.s32.totalorder %s7434, 63
      %s7436 = scalar_select %p7435, %s7434, 63
      %s7437 = scalar_lea.vmem %s6, %s7436
      // Predicated region
      $region41: #{tpu_custom_call.1} parent=39 // pred_check
        %p7438 = pneg %p156
      $region42: #{tpu_custom_call.1} parent=39 // pred_check_branch
        %7440 = sbr.rel (%p7438) target = $region44
      $region43: #{tpu_custom_call.1} parent=39 // pred_region
        %s7441 = smul.u32 16, %s18
      $region44: #{tpu_custom_call.1} parent=39 // pred_fallthru
        _
      // Predicated region
      $region45: #{tpu_custom_call.1} parent=39 // pred_check
        %p7442 = pneg %p182
      $region46: #{tpu_custom_call.1} parent=39 // pred_check_branch
        %7444 = sbr.rel (%p7442) target = $region48
      $region47: #{tpu_custom_call.1} parent=39 // pred_region
        %s7445 = smul.u32 16, %s18
      $region48: #{tpu_custom_call.1} parent=39 // pred_fallthru
        _
    $region40: #{tpu_custom_call.1} parent=5 // pred_fallthru
      _
    %p7446 = scmp.le.s32.totalorder 2, %s13
    // Predicated region
    $region49: #{tpu_custom_call.1} parent=5 // pred_check
      %p7447 = pneg %p7446
    $region50: #{tpu_custom_call.1} parent=5 // pred_check_branch
      %7449 = sbr.rel (%p7447) target = $region52
    $region51: #{tpu_custom_call.1} parent=5 // pred_region
      %s7450 = ssub.s32 %s13, 2
      // Predicated region
      $region53: #{tpu_custom_call.1} parent=51 // pred_check
        %p7451 = pneg %p162
      $region54: #{tpu_custom_call.1} parent=51 // pred_check_branch
        %7453 = sbr.rel (%p7451) target = $region56
      $region55: #{tpu_custom_call.1} parent=51 // pred_region
        %s7454 = smul.u32 16, %s19
        %p7455 = scmp.lt.s32.totalorder %s7454, 63
        %s7456 = scalar_select %p7455, %s7454, 63
        %s7457 = smul.addr %s7456, 2
        %s7458 = smul.addr %s7457, 8
        %s7459 = scalar_lea.vmem %s5, %s7458
      $region56: #{tpu_custom_call.1} parent=51 // pred_fallthru
        _
      // Predicated region
      $region57: #{tpu_custom_call.1} parent=51 // pred_check
        %p7460 = pneg %p188
      $region58: #{tpu_custom_call.1} parent=51 // pred_check_branch
        %7462 = sbr.rel (%p7460) target = $region60
      $region59: #{tpu_custom_call.1} parent=51 // pred_region
        %s7463 = smul.u32 16, %s19
        %p7464 = scmp.lt.s32.totalorder %s7463, 63
        %s7465 = scalar_select %p7464, %s7463, 63
        %s7466 = scalar_lea.vmem %s6, %s7465
      $region60: #{tpu_custom_call.1} parent=51 // pred_fallthru
        _
    $region52: #{tpu_custom_call.1} parent=5 // pred_fallthru
      _
  $region6: #{tpu_custom_call.1} parent=0 // loop_footer
    %s17 = sadd.s32 1, %s13
  $region7: #{tpu_custom_call.1} parent=0 // loop_footer_branch
    %12 = sbr.rel target = $region3
  $region8: #{tpu_custom_call.1} parent=0 // loop_exit
    _

</llo_original>
